<compile_context>
chip_gen: v6e
topology: v6e:2x2x1
jax: 0.10.0
libtpu: 0.0.40
codegen_flags: <defaults>
</compile_context>

<pallas_src>
import jax
import jax.numpy as jnp
from jax import lax
from jax.experimental import pallas as pl
from jax.experimental.pallas import tpu as pltpu

H = W = 32                                 # spatial size implied by Linear(2048, 128)
C_IN, C1, C2 = 3, 16, 32
FC_HID, N_CLS = 128, 10
H1, H2, H3 = H, H // 2, H // 4             # 32, 16, 8 output rows per stage
K1, N1 = W * C_IN, (W // 2) * C1           # 96,  256  conv1 structured matmul dims
K2, N2 = (W // 2) * C1, (W // 4) * C2      # 256, 256  conv2 structured matmul dims
FC_IN = C2 * H3 * H3                       # 2048


# ---------------------------------------------------------------------------
# Kernel
# ---------------------------------------------------------------------------
def _fused_cnn_kernel(x_ref, w1_ref, b1_ref, w2_ref, b2_ref,
                      wl1_ref, bl1_ref, wl2_ref, bl2_ref,
                      out_ref, acc_ref, xb2_ref):
    f32 = jnp.float32
    bt = x_ref.shape[2]                    # batch tile (multiple of 8)
    mm_dtype = w1_ref.dtype                # f32 (exact parity) or bf16

    # ---- conv1: even/odd output columns via structured weights --------------
    # x_ref[0]: (H+2, bt, W*C_IN); rows = padded y, sublanes = batch, lanes = x*3+c.
    rows1 = H1 * bt
    for p in range(2):                                     # output-x parity
        for dy in range(3):                                # y tap
            a = x_ref[0, dy:dy + H1].reshape(rows1, K1).astype(mm_dtype)
            d = jnp.dot(a, w1_ref[dy, p], preferred_element_type=f32)
            if dy == 0:
                acc_ref[p, :rows1] = d
            else:
                acc_ref[p, :rows1] = acc_ref[p, :rows1] + d

    # 2x2 max-pool: x-pairs = parity max (element-wise), y-pairs = row-block max.
    m = jnp.maximum(acc_ref[0, :rows1], acc_ref[1, :rows1]) + b1_ref[...]
    m = m.reshape(H2, 2, bt, N1)
    p1 = jnp.maximum(m[:, 0], m[:, 1])                     # (16, bt, 256)

    # TODO(synk): Dropout(p=0.3) is identity (eval-mode semantics); training-mode
    #             stochastic masking (pltpu.prng_random_bits) is not implemented.

    # ---- conv2 input scratch: only the 2 y-halo rows are zeroed (every step,
    #      so it stays correct under megacore grid partitioning); the interior
    #      is fully rewritten each step. -------------------------------------
    zrow = jnp.zeros((bt, K2), f32)
    xb2_ref[0] = zrow
    xb2_ref[H2 + 1] = zrow
    xb2_ref[1:H2 + 1] = p1

    # ---- conv2 (same structured even/odd scheme, K = 256 fully lane-dense) --
    rows2 = H2 * bt
    for p in range(2):
        for dy in range(3):
            a = xb2_ref[dy:dy + H2].reshape(rows2, K2).astype(mm_dtype)
            d = jnp.dot(a, w2_ref[dy, p], preferred_element_type=f32)
            if dy == 0:
                acc_ref[p, :rows2] = d
            else:
                acc_ref[p, :rows2] = acc_ref[p, :rows2] + d

    m2 = jnp.maximum(acc_ref[0, :rows2], acc_ref[1, :rows2]) + b2_ref[...]
    m2 = m2.reshape(H3, 2, bt, N2)
    p2 = jnp.maximum(m2[:, 0], m2[:, 1])                   # (8, bt, 256)

    # ---- Flatten + Linear1 + ReLU: 8 accumulating matmuls (no copy loop) ----
    h = jnp.zeros((bt, FC_HID), f32)
    for yp in range(H3):
        h = h + jnp.dot(p2[yp].astype(mm_dtype), wl1_ref[yp],
                        preferred_element_type=f32)
    h = jnp.maximum(h + bl1_ref[...], 0.0)

    # ---- Linear2 (output lanes padded to 128; columns >= 10 are exact zeros) -
    o = jnp.dot(h.astype(mm_dtype), wl2_ref[...], preferred_element_type=f32)
    out_ref[...] = (o + bl2_ref[...]).astype(out_ref.dtype)


# ---------------------------------------------------------------------------
# One-time weight relayout (torch layouts -> kernel layouts)
# ---------------------------------------------------------------------------
def _structured_conv_weight(w, cin, cout, win, dtype):
    """Fold the 3 x-taps (and x zero-padding) of a 3x3 conv into the K dim.

    w: (cout, cin, 3, 3) torch OIHW.  Returns (3, 2, win*cin, (win//2)*cout):
      W[dy, parity, x_in*cin + ci, xe*cout + co] = w[co, ci, dy, dx]
    with dx = x_in - (2*xe + parity) + 1, zero outside [0, 2] (x zero-padding).
    """
    kx = jnp.repeat(jnp.arange(win), cin)
    kc = jnp.tile(jnp.arange(cin), win)
    nx = jnp.repeat(jnp.arange(win // 2), cout)
    nc = jnp.tile(jnp.arange(cout), win // 2)
    taps = []
    for dy in range(3):
        per_p = []
        for p in range(2):
            dx = kx[:, None] - (2 * nx[None, :] + p) + 1
            valid = (dx >= 0) & (dx <= 2)
            vals = w[nc[None, :], kc[:, None], dy, jnp.clip(dx, 0, 2)]
            per_p.append(jnp.where(valid, vals, 0.0))
        taps.append(jnp.stack(per_p))
    return jnp.stack(taps).astype(dtype)                   # (3, 2, K, N)


def prepare_params(params, dtype=jnp.float32):
    """dtype=jnp.bfloat16 trades exact torch parity for ~2x MXU throughput
    (accumulation and epilogues stay f32 in-kernel)."""
    w1s = _structured_conv_weight(params["w1"], C_IN, C1, W, dtype)        # (3,2,96,256)
    w2s = _structured_conv_weight(params["w2"], C1, C2, W // 2, dtype)     # (3,2,256,256)
    # conv biases tiled over the (x, channel) lane layout.
    b1t = jnp.tile(params["b1"], W // 2).reshape(1, N1)
    b2t = jnp.tile(params["b2"], W // 4).reshape(1, N2)
    # Linear1: fold torch's NCHW flatten order (f = c*64 + y*8 + x) into an
    # (y_row_block, x*C2 + c, hidden) weight -> no in-kernel flatten.
    wl1 = params["wl1"].reshape(FC_HID, C2, H3, H3)                        # (h, c, y, x)
    wl1r = jnp.transpose(wl1, (2, 3, 1, 0)).reshape(H3, H3 * C2, FC_HID)
    # Linear2: pre-transpose; pad the 10 logits up to one full lane tile.
    wl2p = jnp.zeros((FC_HID, 128), jnp.float32).at[:, :N_CLS].set(params["wl2"].T)
    bl2p = jnp.zeros((1, 128), jnp.float32).at[0, :N_CLS].set(params["bl2"])
    return {
        "w1s": w1s, "b1t": b1t,
        "w2s": w2s, "b2t": b2t,
        "wl1r": wl1r.astype(dtype), "bl1": params["bl1"].reshape(1, FC_HID),
        "wl2p": wl2p.astype(dtype), "bl2p": bl2p,
    }


# ---------------------------------------------------------------------------
# Forward wrapper
# ---------------------------------------------------------------------------
def _prep_input(x_nchw, bt):
    """NCHW -> (tiles, H+2, bt, W*C_IN) with the conv1 y-halo baked in.
    Single fused XLA relayout -- the only per-forward glue left (required by the
    NCHW interface); callers already holding this layout can skip it."""
    n = x_nchw.shape[0]
    n_tiles = -(-n // bt)
    n_pad = n_tiles * bt
    x = jnp.transpose(x_nchw, (0, 2, 3, 1))                     # (N, H, W, C)
    if n_pad != n:
        x = jnp.pad(x, ((0, n_pad - n), (0, 0), (0, 0), (0, 0)))
    x = x.reshape(n_tiles, bt, H, W * C_IN)
    x = jnp.transpose(x, (0, 2, 1, 3))                          # (T, H, bt, W*C)
    x = jnp.pad(x, ((0, 0), (1, 1), (0, 0), (0, 0)))            # y halo only
    return x, n_tiles, n_pad


def simple_cnn_forward(x_nchw, kp, *, bt=None):
    n = x_nchw.shape[0]
    if bt is None:
        # 32 amortizes per-grid-step overhead and raises the FC matmul M;
        # small batches use 8 (keeps >=1 grid step per TensorCore on v7x).
        bt = 32 if n > 16 else 8
    x, n_tiles, n_pad = _prep_input(x_nchw, bt)

    # VMEM (per core, f32, bt=32): x block 0.56 MiB + structured/FC weights
    # ~3.3 MiB (double-buffered) + 2 MiB acc scratch + 0.6 MiB xb2 scratch
    # + transients  ->  ~11 MiB.  32 MiB limit keeps honest headroom and stays
    # well inside v7x's 64 MiB physical VMEM.
    vmem_limit = 32 * 1024 * 1024

    grid_spec = pltpu.PrefetchScalarGridSpec(
        num_scalar_prefetch=0,
        grid=(n_tiles,),
        in_specs=[
            pl.BlockSpec((1, H + 2, bt, W * C_IN), lambda i: (i, 0, 0, 0)),
            pl.BlockSpec((3, 2, K1, N1), lambda i: (0, 0, 0, 0)),
            pl.BlockSpec((1, N1), lambda i: (0, 0)),
            pl.BlockSpec((3, 2, K2, N2), lambda i: (0, 0, 0, 0)),
            pl.BlockSpec((1, N2), lambda i: (0, 0)),
            pl.BlockSpec((H3, N2, FC_HID), lambda i: (0, 0, 0)),
            pl.BlockSpec((1, FC_HID), lambda i: (0, 0)),
            pl.BlockSpec((FC_HID, 128), lambda i: (0, 0)),
            pl.BlockSpec((1, 128), lambda i: (0, 0)),
        ],
        out_specs=pl.BlockSpec((bt, 128), lambda i: (i, 0)),
        scratch_shapes=[
            pltpu.VMEM((2, H1 * bt, N1), jnp.float32),   # even/odd conv accumulators
            pltpu.VMEM((H2 + 2, bt, K2), jnp.float32),   # conv2 input (+y halo rows)
        ],
    )
    out = pl.pallas_call(
        _fused_cnn_kernel,
        out_shape=jax.ShapeDtypeStruct((n_pad, 128), jnp.float32),
        grid_spec=grid_spec,
        compiler_params=pltpu.CompilerParams(
            dimension_semantics=("parallel",),
            vmem_limit_bytes=vmem_limit,
        ),
    )(x, kp["w1s"], kp["b1t"], kp["w2s"], kp["b2t"],
      kp["wl1r"], kp["bl1"], kp["wl2p"], kp["bl2p"])
    return out[:n, :N_CLS]


# ---------------------------------------------------------------------------
# Deterministic PyTorch-style init + pure-JAX reference (correctness check)
# ---------------------------------------------------------------------------
def init_params(key):
    ks = jax.random.split(key, 8)

    def u(k, shape, fan_in):
        bound = 1.0 / (fan_in ** 0.5)
        return jax.random.uniform(k, shape, jnp.float32, -bound, bound)

    return {
        "w1": u(ks[0], (C1, C_IN, 3, 3), C_IN * 9),     # Conv2d(3, 16, 3, padding=1)
        "b1": u(ks[1], (C1,), C_IN * 9),
        "w2": u(ks[2], (C2, C1, 3, 3), C1 * 9),         # Conv2d(16, 32, 3, padding=1)
        "b2": u(ks[3], (C2,), C1 * 9),
        "wl1": u(ks[4], (FC_HID, FC_IN), FC_IN),        # Linear(2048, 128)
        "bl1": u(ks[5], (FC_HID,), FC_IN),
        "wl2": u(ks[6], (N_CLS, FC_HID), FC_HID),       # Linear(128, 10)
        "bl2": u(ks[7], (N_CLS,), FC_HID),
    }


def _reference_forward(x_nchw, params):
    hi = lax.Precision.HIGHEST
    y = lax.conv_general_dilated(x_nchw, params["w1"], (1, 1), ((1, 1), (1, 1)),
                                 dimension_numbers=("NCHW", "OIHW", "NCHW"),
                                 precision=hi) + params["b1"][None, :, None, None]
    y = lax.reduce_window(y, -jnp.inf, lax.max, (1, 1, 2, 2), (1, 1, 2, 2), "VALID")
    y = lax.conv_general_dilated(y, params["w2"], (1, 1), ((1, 1), (1, 1)),
                                 dimension_numbers=("NCHW", "OIHW", "NCHW"),
                                 precision=hi) + params["b2"][None, :, None, None]
    y = lax.reduce_window(y, -jnp.inf, lax.max, (1, 1, 2, 2), (1, 1, 2, 2), "VALID")
    y = y.reshape(y.shape[0], -1)
    h = jnp.maximum(y @ params["wl1"].T + params["bl1"], 0.0)
    return h @ params["wl2"].T + params["bl2"]


if __name__ == "__main__":
    key = jax.random.PRNGKey(0)
    pkey, xkey = jax.random.split(key)
    params = init_params(pkey)
    kparams = prepare_params(params)                     # one-time relayout, f32 parity
    x = jax.random.normal(xkey, (2, C_IN, H, W), jnp.float32)   # NCHW input

    fwd = jax.jit(simple_cnn_forward)
    out = jax.block_until_ready(fwd(x, kparams))
    assert out.shape == (2, N_CLS), out.shape
    assert bool(jnp.all(jnp.isfinite(out)))

    ref = _reference_forward(x, params)
    err = float(jnp.max(jnp.abs(out - ref)))
    assert err < 5e-3, f"kernel/reference mismatch: max |err| = {err}"
    print("KERNEL_OK")
</pallas_src>

<mosaic_0001>
module attributes {stable_mosaic.version = 11 : i64} {
  func.func @_fused_cnn_kernel(%arg0: i32, %arg1: memref<1x34x8x96xf32, #tpu.memory_space<vmem>>, %arg2: memref<3x2x96x256xf32, #tpu.memory_space<vmem>>, %arg3: memref<1x256xf32, #tpu.memory_space<vmem>>, %arg4: memref<3x2x256x256xf32, #tpu.memory_space<vmem>>, %arg5: memref<1x256xf32, #tpu.memory_space<vmem>>, %arg6: memref<8x256x128xf32, #tpu.memory_space<vmem>>, %arg7: memref<1x128xf32, #tpu.memory_space<vmem>>, %arg8: memref<128x128xf32, #tpu.memory_space<vmem>>, %arg9: memref<1x128xf32, #tpu.memory_space<vmem>>, %arg10: memref<8x128xf32, #tpu.memory_space<vmem>>, %arg11: memref<2x256x256xf32, #tpu.memory_space<vmem>>, %arg12: memref<18x8x256xf32, #tpu.memory_space<vmem>>) attributes {dimension_semantics = [#tpu.dimension_semantics<parallel>], iteration_bounds = array<i64: 1>, scalar_prefetch = 0 : i64, scratch_operands = 2 : i64, tpu.core_type = #tpu.core_type<tc>, window_params = [{transform_indices = @transform_0, window_bounds = array<i64: 1, 34, 8, 96>}, {pipeline_mode = #tpu.pipeline_mode<synchronous>, transform_indices = @transform_1, window_bounds = array<i64: 3, 2, 96, 256>}, {pipeline_mode = #tpu.pipeline_mode<synchronous>, transform_indices = @transform_2, window_bounds = array<i64: 1, 256>}, {pipeline_mode = #tpu.pipeline_mode<synchronous>, transform_indices = @transform_3, window_bounds = array<i64: 3, 2, 256, 256>}, {pipeline_mode = #tpu.pipeline_mode<synchronous>, transform_indices = @transform_4, window_bounds = array<i64: 1, 256>}, {pipeline_mode = #tpu.pipeline_mode<synchronous>, transform_indices = @transform_5, window_bounds = array<i64: 8, 256, 128>}, {pipeline_mode = #tpu.pipeline_mode<synchronous>, transform_indices = @transform_6, window_bounds = array<i64: 1, 128>}, {pipeline_mode = #tpu.pipeline_mode<synchronous>, transform_indices = @transform_7, window_bounds = array<i64: 128, 128>}, {pipeline_mode = #tpu.pipeline_mode<synchronous>, transform_indices = @transform_8, window_bounds = array<i64: 1, 128>}, {transform_indices = @transform_9, window_bounds = array<i64: 8, 128>}]} {
    %c0 = arith.constant 0 : index
    %c0_0 = arith.constant 0 : index
    %c0_1 = arith.constant 0 : index
    %c0_2 = arith.constant 0 : index
    %0 = vector.load %arg1[%c0, %c0_0, %c0_1, %c0_2] : memref<1x34x8x96xf32, #tpu.memory_space<vmem>>, vector<1x32x8x96xf32>
    %1 = vector.shape_cast %0 : vector<1x32x8x96xf32> to vector<32x8x96xf32>
    %2 = vector.shape_cast %1 : vector<32x8x96xf32> to vector<256x96xf32>
    %c0_3 = arith.constant 0 : index
    %c0_4 = arith.constant 0 : index
    %c0_5 = arith.constant 0 : index
    %c0_6 = arith.constant 0 : index
    %3 = vector.load %arg2[%c0_3, %c0_4, %c0_5, %c0_6] : memref<3x2x96x256xf32, #tpu.memory_space<vmem>>, vector<1x1x96x256xf32>
    %4 = vector.shape_cast %3 : vector<1x1x96x256xf32> to vector<96x256xf32>
    %cst = arith.constant dense<0.000000e+00> : vector<256x256xf32>
    %5 = tpu.matmul %2, %4, %cst {dimension_numbers = #tpu.dot_dimension_numbers<[1], [0], [0], [1], [0, 0, 1, 1], [], []>} : vector<256x96xf32>, vector<96x256xf32>, vector<256x256xf32> -> vector<256x256xf32>
    %c0_7 = arith.constant 0 : index
    %c0_8 = arith.constant 0 : index
    %c0_9 = arith.constant 0 : index
    %6 = vector.load %arg11[%c0_7, %c0_8, %c0_9] : memref<2x256x256xf32, #tpu.memory_space<vmem>>, vector<1x256x256xf32>
    %7 = vector.shape_cast %6 : vector<1x256x256xf32> to vector<256x256xf32>
    %8 = vector.shape_cast %5 : vector<256x256xf32> to vector<1x256x256xf32>
    tpu.vector_store %arg11[%c0_7, %c0_8, %c0_9], %8 {strides = array<i32>} : memref<2x256x256xf32, #tpu.memory_space<vmem>>, vector<1x256x256xf32>,
    %c0_10 = arith.constant 0 : index
    %c1 = arith.constant 1 : index
    %c0_11 = arith.constant 0 : index
    %c0_12 = arith.constant 0 : index
    %9 = vector.load %arg1[%c0_10, %c1, %c0_11, %c0_12] : memref<1x34x8x96xf32, #tpu.memory_space<vmem>>, vector<1x32x8x96xf32>
    %10 = vector.shape_cast %9 : vector<1x32x8x96xf32> to vector<32x8x96xf32>
    %11 = vector.shape_cast %10 : vector<32x8x96xf32> to vector<256x96xf32>
    %c1_13 = arith.constant 1 : index
    %c0_14 = arith.constant 0 : index
    %c0_15 = arith.constant 0 : index
    %c0_16 = arith.constant 0 : index
    %12 = vector.load %arg2[%c1_13, %c0_14, %c0_15, %c0_16] : memref<3x2x96x256xf32, #tpu.memory_space<vmem>>, vector<1x1x96x256xf32>
    %13 = vector.shape_cast %12 : vector<1x1x96x256xf32> to vector<96x256xf32>
    %cst_17 = arith.constant dense<0.000000e+00> : vector<256x256xf32>
    %14 = tpu.matmul %11, %13, %cst_17 {dimension_numbers = #tpu.dot_dimension_numbers<[1], [0], [0], [1], [0, 0, 1, 1], [], []>} : vector<256x96xf32>, vector<96x256xf32>, vector<256x256xf32> -> vector<256x256xf32>
    %c0_18 = arith.constant 0 : index
    %c0_19 = arith.constant 0 : index
    %c0_20 = arith.constant 0 : index
    %15 = vector.load %arg11[%c0_18, %c0_19, %c0_20] : memref<2x256x256xf32, #tpu.memory_space<vmem>>, vector<1x256x256xf32>
    %16 = vector.shape_cast %15 : vector<1x256x256xf32> to vector<256x256xf32>
    %17 = arith.addf %16, %14 : vector<256x256xf32>
    %c0_21 = arith.constant 0 : index
    %c0_22 = arith.constant 0 : index
    %c0_23 = arith.constant 0 : index
    %18 = vector.load %arg11[%c0_21, %c0_22, %c0_23] : memref<2x256x256xf32, #tpu.memory_space<vmem>>, vector<1x256x256xf32>
    %19 = vector.shape_cast %18 : vector<1x256x256xf32> to vector<256x256xf32>
    %20 = vector.shape_cast %17 : vector<256x256xf32> to vector<1x256x256xf32>
    tpu.vector_store %arg11[%c0_21, %c0_22, %c0_23], %20 {strides = array<i32>} : memref<2x256x256xf32, #tpu.memory_space<vmem>>, vector<1x256x256xf32>,
    %c0_24 = arith.constant 0 : index
    %c2 = arith.constant 2 : index
    %c0_25 = arith.constant 0 : index
    %c0_26 = arith.constant 0 : index
    %21 = vector.load %arg1[%c0_24, %c2, %c0_25, %c0_26] : memref<1x34x8x96xf32, #tpu.memory_space<vmem>>, vector<1x32x8x96xf32>
    %22 = vector.shape_cast %21 : vector<1x32x8x96xf32> to vector<32x8x96xf32>
    %23 = vector.shape_cast %22 : vector<32x8x96xf32> to vector<256x96xf32>
    %c2_27 = arith.constant 2 : index
    %c0_28 = arith.constant 0 : index
    %c0_29 = arith.constant 0 : index
    %c0_30 = arith.constant 0 : index
    %24 = vector.load %arg2[%c2_27, %c0_28, %c0_29, %c0_30] : memref<3x2x96x256xf32, #tpu.memory_space<vmem>>, vector<1x1x96x256xf32>
    %25 = vector.shape_cast %24 : vector<1x1x96x256xf32> to vector<96x256xf32>
    %cst_31 = arith.constant dense<0.000000e+00> : vector<256x256xf32>
    %26 = tpu.matmul %23, %25, %cst_31 {dimension_numbers = #tpu.dot_dimension_numbers<[1], [0], [0], [1], [0, 0, 1, 1], [], []>} : vector<256x96xf32>, vector<96x256xf32>, vector<256x256xf32> -> vector<256x256xf32>
    %c0_32 = arith.constant 0 : index
    %c0_33 = arith.constant 0 : index
    %c0_34 = arith.constant 0 : index
    %27 = vector.load %arg11[%c0_32, %c0_33, %c0_34] : memref<2x256x256xf32, #tpu.memory_space<vmem>>, vector<1x256x256xf32>
    %28 = vector.shape_cast %27 : vector<1x256x256xf32> to vector<256x256xf32>
    %29 = arith.addf %28, %26 : vector<256x256xf32>
    %c0_35 = arith.constant 0 : index
    %c0_36 = arith.constant 0 : index
    %c0_37 = arith.constant 0 : index
    %30 = vector.load %arg11[%c0_35, %c0_36, %c0_37] : memref<2x256x256xf32, #tpu.memory_space<vmem>>, vector<1x256x256xf32>
    %31 = vector.shape_cast %30 : vector<1x256x256xf32> to vector<256x256xf32>
    %32 = vector.shape_cast %29 : vector<256x256xf32> to vector<1x256x256xf32>
    tpu.vector_store %arg11[%c0_35, %c0_36, %c0_37], %32 {strides = array<i32>} : memref<2x256x256xf32, #tpu.memory_space<vmem>>, vector<1x256x256xf32>,
    %c0_38 = arith.constant 0 : index
    %c0_39 = arith.constant 0 : index
    %c0_40 = arith.constant 0 : index
    %c0_41 = arith.constant 0 : index
    %33 = vector.load %arg1[%c0_38, %c0_39, %c0_40, %c0_41] : memref<1x34x8x96xf32, #tpu.memory_space<vmem>>, vector<1x32x8x96xf32>
    %34 = vector.shape_cast %33 : vector<1x32x8x96xf32> to vector<32x8x96xf32>
    %35 = vector.shape_cast %34 : vector<32x8x96xf32> to vector<256x96xf32>
    %c0_42 = arith.constant 0 : index
    %c1_43 = arith.constant 1 : index
    %c0_44 = arith.constant 0 : index
    %c0_45 = arith.constant 0 : index
    %36 = vector.load %arg2[%c0_42, %c1_43, %c0_44, %c0_45] : memref<3x2x96x256xf32, #tpu.memory_space<vmem>>, vector<1x1x96x256xf32>
    %37 = vector.shape_cast %36 : vector<1x1x96x256xf32> to vector<96x256xf32>
    %cst_46 = arith.constant dense<0.000000e+00> : vector<256x256xf32>
    %38 = tpu.matmul %35, %37, %cst_46 {dimension_numbers = #tpu.dot_dimension_numbers<[1], [0], [0], [1], [0, 0, 1, 1], [], []>} : vector<256x96xf32>, vector<96x256xf32>, vector<256x256xf32> -> vector<256x256xf32>
    %c1_47 = arith.constant 1 : index
    %c0_48 = arith.constant 0 : index
    %c0_49 = arith.constant 0 : index
    %39 = vector.load %arg11[%c1_47, %c0_48, %c0_49] : memref<2x256x256xf32, #tpu.memory_space<vmem>>, vector<1x256x256xf32>
    %40 = vector.shape_cast %39 : vector<1x256x256xf32> to vector<256x256xf32>
    %41 = vector.shape_cast %38 : vector<256x256xf32> to vector<1x256x256xf32>
    tpu.vector_store %arg11[%c1_47, %c0_48, %c0_49], %41 {strides = array<i32>} : memref<2x256x256xf32, #tpu.memory_space<vmem>>, vector<1x256x256xf32>,
    %c0_50 = arith.constant 0 : index
    %c1_51 = arith.constant 1 : index
    %c0_52 = arith.constant 0 : index
    %c0_53 = arith.constant 0 : index
    %42 = vector.load %arg1[%c0_50, %c1_51, %c0_52, %c0_53] : memref<1x34x8x96xf32, #tpu.memory_space<vmem>>, vector<1x32x8x96xf32>
    %43 = vector.shape_cast %42 : vector<1x32x8x96xf32> to vector<32x8x96xf32>
    %44 = vector.shape_cast %43 : vector<32x8x96xf32> to vector<256x96xf32>
    %c1_54 = arith.constant 1 : index
    %c1_55 = arith.constant 1 : index
    %c0_56 = arith.constant 0 : index
    %c0_57 = arith.constant 0 : index
    %45 = vector.load %arg2[%c1_54, %c1_55, %c0_56, %c0_57] : memref<3x2x96x256xf32, #tpu.memory_space<vmem>>, vector<1x1x96x256xf32>
    %46 = vector.shape_cast %45 : vector<1x1x96x256xf32> to vector<96x256xf32>
    %cst_58 = arith.constant dense<0.000000e+00> : vector<256x256xf32>
    %47 = tpu.matmul %44, %46, %cst_58 {dimension_numbers = #tpu.dot_dimension_numbers<[1], [0], [0], [1], [0, 0, 1, 1], [], []>} : vector<256x96xf32>, vector<96x256xf32>, vector<256x256xf32> -> vector<256x256xf32>
    %c1_59 = arith.constant 1 : index
    %c0_60 = arith.constant 0 : index
    %c0_61 = arith.constant 0 : index
    %48 = vector.load %arg11[%c1_59, %c0_60, %c0_61] : memref<2x256x256xf32, #tpu.memory_space<vmem>>, vector<1x256x256xf32>
    %49 = vector.shape_cast %48 : vector<1x256x256xf32> to vector<256x256xf32>
    %50 = arith.addf %49, %47 : vector<256x256xf32>
    %c1_62 = arith.constant 1 : index
    %c0_63 = arith.constant 0 : index
    %c0_64 = arith.constant 0 : index
    %51 = vector.load %arg11[%c1_62, %c0_63, %c0_64] : memref<2x256x256xf32, #tpu.memory_space<vmem>>, vector<1x256x256xf32>
    %52 = vector.shape_cast %51 : vector<1x256x256xf32> to vector<256x256xf32>
    %53 = vector.shape_cast %50 : vector<256x256xf32> to vector<1x256x256xf32>
    tpu.vector_store %arg11[%c1_62, %c0_63, %c0_64], %53 {strides = array<i32>} : memref<2x256x256xf32, #tpu.memory_space<vmem>>, vector<1x256x256xf32>,
    %c0_65 = arith.constant 0 : index
    %c2_66 = arith.constant 2 : index
    %c0_67 = arith.constant 0 : index
    %c0_68 = arith.constant 0 : index
    %54 = vector.load %arg1[%c0_65, %c2_66, %c0_67, %c0_68] : memref<1x34x8x96xf32, #tpu.memory_space<vmem>>, vector<1x32x8x96xf32>
    %55 = vector.shape_cast %54 : vector<1x32x8x96xf32> to vector<32x8x96xf32>
    %56 = vector.shape_cast %55 : vector<32x8x96xf32> to vector<256x96xf32>
    %c2_69 = arith.constant 2 : index
    %c1_70 = arith.constant 1 : index
    %c0_71 = arith.constant 0 : index
    %c0_72 = arith.constant 0 : index
    %57 = vector.load %arg2[%c2_69, %c1_70, %c0_71, %c0_72] : memref<3x2x96x256xf32, #tpu.memory_space<vmem>>, vector<1x1x96x256xf32>
    %58 = vector.shape_cast %57 : vector<1x1x96x256xf32> to vector<96x256xf32>
    %cst_73 = arith.constant dense<0.000000e+00> : vector<256x256xf32>
    %59 = tpu.matmul %56, %58, %cst_73 {dimension_numbers = #tpu.dot_dimension_numbers<[1], [0], [0], [1], [0, 0, 1, 1], [], []>} : vector<256x96xf32>, vector<96x256xf32>, vector<256x256xf32> -> vector<256x256xf32>
    %c1_74 = arith.constant 1 : index
    %c0_75 = arith.constant 0 : index
    %c0_76 = arith.constant 0 : index
    %60 = vector.load %arg11[%c1_74, %c0_75, %c0_76] : memref<2x256x256xf32, #tpu.memory_space<vmem>>, vector<1x256x256xf32>
    %61 = vector.shape_cast %60 : vector<1x256x256xf32> to vector<256x256xf32>
    %62 = arith.addf %61, %59 : vector<256x256xf32>
    %c1_77 = arith.constant 1 : index
    %c0_78 = arith.constant 0 : index
    %c0_79 = arith.constant 0 : index
    %63 = vector.load %arg11[%c1_77, %c0_78, %c0_79] : memref<2x256x256xf32, #tpu.memory_space<vmem>>, vector<1x256x256xf32>
    %64 = vector.shape_cast %63 : vector<1x256x256xf32> to vector<256x256xf32>
    %65 = vector.shape_cast %62 : vector<256x256xf32> to vector<1x256x256xf32>
    tpu.vector_store %arg11[%c1_77, %c0_78, %c0_79], %65 {strides = array<i32>} : memref<2x256x256xf32, #tpu.memory_space<vmem>>, vector<1x256x256xf32>,
    %c0_80 = arith.constant 0 : index
    %c0_81 = arith.constant 0 : index
    %c0_82 = arith.constant 0 : index
    %66 = vector.load %arg11[%c0_80, %c0_81, %c0_82] : memref<2x256x256xf32, #tpu.memory_space<vmem>>, vector<1x256x256xf32>
    %67 = vector.shape_cast %66 : vector<1x256x256xf32> to vector<256x256xf32>
    %c1_83 = arith.constant 1 : index
    %c0_84 = arith.constant 0 : index
    %c0_85 = arith.constant 0 : index
    %68 = vector.load %arg11[%c1_83, %c0_84, %c0_85] : memref<2x256x256xf32, #tpu.memory_space<vmem>>, vector<1x256x256xf32>
    %69 = vector.shape_cast %68 : vector<1x256x256xf32> to vector<256x256xf32>
    %70 = arith.maximumf %67, %69 : vector<256x256xf32>
    %c0_86 = arith.constant 0 : index
    %c0_87 = arith.constant 0 : index
    %71 = vector.load %arg3[%c0_86, %c0_87] : memref<1x256xf32, #tpu.memory_space<vmem>>, vector<1x256xf32>
    %72 = vector.broadcast %71 : vector<1x256xf32> to vector<256x256xf32>
    %73 = arith.addf %70, %72 : vector<256x256xf32>
    %74 = vector.shape_cast %73 : vector<256x256xf32> to vector<16x2x8x256xf32>
    %75 = vector.extract_strided_slice %74 {offsets = [0, 0, 0, 0], sizes = [16, 1, 8, 256], strides = [1, 1, 1, 1]} : vector<16x2x8x256xf32> to vector<16x1x8x256xf32>
    %76 = vector.shape_cast %75 : vector<16x1x8x256xf32> to vector<16x8x256xf32>
    %77 = vector.extract_strided_slice %74 {offsets = [0, 1, 0, 0], sizes = [16, 1, 8, 256], strides = [1, 1, 1, 1]} : vector<16x2x8x256xf32> to vector<16x1x8x256xf32>
    %78 = vector.shape_cast %77 : vector<16x1x8x256xf32> to vector<16x8x256xf32>
    %79 = arith.maximumf %76, %78 : vector<16x8x256xf32>
    %cst_88 = arith.constant 0.000000e+00 : f32
    %80 = vector.broadcast %cst_88 : f32 to vector<8x256xf32>
    %c0_89 = arith.constant 0 : index
    %c0_90 = arith.constant 0 : index
    %c0_91 = arith.constant 0 : index
    %81 = vector.load %arg12[%c0_89, %c0_90, %c0_91] : memref<18x8x256xf32, #tpu.memory_space<vmem>>, vector<1x8x256xf32>
    %82 = vector.shape_cast %81 : vector<1x8x256xf32> to vector<8x256xf32>
    %83 = vector.shape_cast %80 : vector<8x256xf32> to vector<1x8x256xf32>
    tpu.vector_store %arg12[%c0_89, %c0_90, %c0_91], %83 {strides = array<i32>} : memref<18x8x256xf32, #tpu.memory_space<vmem>>, vector<1x8x256xf32>,
    %c17 = arith.constant 17 : index
    %c0_92 = arith.constant 0 : index
    %c0_93 = arith.constant 0 : index
    %84 = vector.load %arg12[%c17, %c0_92, %c0_93] : memref<18x8x256xf32, #tpu.memory_space<vmem>>, vector<1x8x256xf32>
    %85 = vector.shape_cast %84 : vector<1x8x256xf32> to vector<8x256xf32>
    %86 = vector.shape_cast %80 : vector<8x256xf32> to vector<1x8x256xf32>
    tpu.vector_store %arg12[%c17, %c0_92, %c0_93], %86 {strides = array<i32>} : memref<18x8x256xf32, #tpu.memory_space<vmem>>, vector<1x8x256xf32>,
    %c1_94 = arith.constant 1 : index
    %c0_95 = arith.constant 0 : index
    %c0_96 = arith.constant 0 : index
    %87 = vector.load %arg12[%c1_94, %c0_95, %c0_96] : memref<18x8x256xf32, #tpu.memory_space<vmem>>, vector<16x8x256xf32>
    tpu.vector_store %arg12[%c1_94, %c0_95, %c0_96], %79 {strides = array<i32>} : memref<18x8x256xf32, #tpu.memory_space<vmem>>, vector<16x8x256xf32>,
    %c0_97 = arith.constant 0 : index
    %c0_98 = arith.constant 0 : index
    %c0_99 = arith.constant 0 : index
    %88 = vector.load %arg12[%c0_97, %c0_98, %c0_99] : memref<18x8x256xf32, #tpu.memory_space<vmem>>, vector<16x8x256xf32>
    %89 = vector.shape_cast %88 : vector<16x8x256xf32> to vector<128x256xf32>
    %c0_100 = arith.constant 0 : index
    %c0_101 = arith.constant 0 : index
    %c0_102 = arith.constant 0 : index
    %c0_103 = arith.constant 0 : index
    %90 = vector.load %arg4[%c0_100, %c0_101, %c0_102, %c0_103] : memref<3x2x256x256xf32, #tpu.memory_space<vmem>>, vector<1x1x256x256xf32>
    %91 = vector.shape_cast %90 : vector<1x1x256x256xf32> to vector<256x256xf32>
    %cst_104 = arith.constant dense<0.000000e+00> : vector<128x256xf32>
    %92 = tpu.matmul %89, %91, %cst_104 {dimension_numbers = #tpu.dot_dimension_numbers<[1], [0], [0], [1], [0, 0, 1, 1], [], []>} : vector<128x256xf32>, vector<256x256xf32>, vector<128x256xf32> -> vector<128x256xf32>
    %c0_105 = arith.constant 0 : index
    %c0_106 = arith.constant 0 : index
    %c0_107 = arith.constant 0 : index
    %93 = vector.load %arg11[%c0_105, %c0_106, %c0_107] : memref<2x256x256xf32, #tpu.memory_space<vmem>>, vector<1x128x256xf32>
    %94 = vector.shape_cast %93 : vector<1x128x256xf32> to vector<128x256xf32>
    %95 = vector.shape_cast %92 : vector<128x256xf32> to vector<1x128x256xf32>
    tpu.vector_store %arg11[%c0_105, %c0_106, %c0_107], %95 {strides = array<i32>} : memref<2x256x256xf32, #tpu.memory_space<vmem>>, vector<1x128x256xf32>,
    %c1_108 = arith.constant 1 : index
    %c0_109 = arith.constant 0 : index
    %c0_110 = arith.constant 0 : index
    %96 = vector.load %arg12[%c1_108, %c0_109, %c0_110] : memref<18x8x256xf32, #tpu.memory_space<vmem>>, vector<16x8x256xf32>
    %97 = vector.shape_cast %96 : vector<16x8x256xf32> to vector<128x256xf32>
    %c1_111 = arith.constant 1 : index
    %c0_112 = arith.constant 0 : index
    %c0_113 = arith.constant 0 : index
    %c0_114 = arith.constant 0 : index
    %98 = vector.load %arg4[%c1_111, %c0_112, %c0_113, %c0_114] : memref<3x2x256x256xf32, #tpu.memory_space<vmem>>, vector<1x1x256x256xf32>
    %99 = vector.shape_cast %98 : vector<1x1x256x256xf32> to vector<256x256xf32>
    %cst_115 = arith.constant dense<0.000000e+00> : vector<128x256xf32>
    %100 = tpu.matmul %97, %99, %cst_115 {dimension_numbers = #tpu.dot_dimension_numbers<[1], [0], [0], [1], [0, 0, 1, 1], [], []>} : vector<128x256xf32>, vector<256x256xf32>, vector<128x256xf32> -> vector<128x256xf32>
    %c0_116 = arith.constant 0 : index
    %c0_117 = arith.constant 0 : index
    %c0_118 = arith.constant 0 : index
    %101 = vector.load %arg11[%c0_116, %c0_117, %c0_118] : memref<2x256x256xf32, #tpu.memory_space<vmem>>, vector<1x128x256xf32>
    %102 = vector.shape_cast %101 : vector<1x128x256xf32> to vector<128x256xf32>
    %103 = arith.addf %102, %100 : vector<128x256xf32>
    %c0_119 = arith.constant 0 : index
    %c0_120 = arith.constant 0 : index
    %c0_121 = arith.constant 0 : index
    %104 = vector.load %arg11[%c0_119, %c0_120, %c0_121] : memref<2x256x256xf32, #tpu.memory_space<vmem>>, vector<1x128x256xf32>
    %105 = vector.shape_cast %104 : vector<1x128x256xf32> to vector<128x256xf32>
    %106 = vector.shape_cast %103 : vector<128x256xf32> to vector<1x128x256xf32>
    tpu.vector_store %arg11[%c0_119, %c0_120, %c0_121], %106 {strides = array<i32>} : memref<2x256x256xf32, #tpu.memory_space<vmem>>, vector<1x128x256xf32>,
    %c2_122 = arith.constant 2 : index
    %c0_123 = arith.constant 0 : index
    %c0_124 = arith.constant 0 : index
    %107 = vector.load %arg12[%c2_122, %c0_123, %c0_124] : memref<18x8x256xf32, #tpu.memory_space<vmem>>, vector<16x8x256xf32>
    %108 = vector.shape_cast %107 : vector<16x8x256xf32> to vector<128x256xf32>
    %c2_125 = arith.constant 2 : index
    %c0_126 = arith.constant 0 : index
    %c0_127 = arith.constant 0 : index
    %c0_128 = arith.constant 0 : index
    %109 = vector.load %arg4[%c2_125, %c0_126, %c0_127, %c0_128] : memref<3x2x256x256xf32, #tpu.memory_space<vmem>>, vector<1x1x256x256xf32>
    %110 = vector.shape_cast %109 : vector<1x1x256x256xf32> to vector<256x256xf32>
    %cst_129 = arith.constant dense<0.000000e+00> : vector<128x256xf32>
    %111 = tpu.matmul %108, %110, %cst_129 {dimension_numbers = #tpu.dot_dimension_numbers<[1], [0], [0], [1], [0, 0, 1, 1], [], []>} : vector<128x256xf32>, vector<256x256xf32>, vector<128x256xf32> -> vector<128x256xf32>
    %c0_130 = arith.constant 0 : index
    %c0_131 = arith.constant 0 : index
    %c0_132 = arith.constant 0 : index
    %112 = vector.load %arg11[%c0_130, %c0_131, %c0_132] : memref<2x256x256xf32, #tpu.memory_space<vmem>>, vector<1x128x256xf32>
    %113 = vector.shape_cast %112 : vector<1x128x256xf32> to vector<128x256xf32>
    %114 = arith.addf %113, %111 : vector<128x256xf32>
    %c0_133 = arith.constant 0 : index
    %c0_134 = arith.constant 0 : index
    %c0_135 = arith.constant 0 : index
    %115 = vector.load %arg11[%c0_133, %c0_134, %c0_135] : memref<2x256x256xf32, #tpu.memory_space<vmem>>, vector<1x128x256xf32>
    %116 = vector.shape_cast %115 : vector<1x128x256xf32> to vector<128x256xf32>
    %117 = vector.shape_cast %114 : vector<128x256xf32> to vector<1x128x256xf32>
    tpu.vector_store %arg11[%c0_133, %c0_134, %c0_135], %117 {strides = array<i32>} : memref<2x256x256xf32, #tpu.memory_space<vmem>>, vector<1x128x256xf32>,
    %c0_136 = arith.constant 0 : index
    %c0_137 = arith.constant 0 : index
    %c0_138 = arith.constant 0 : index
    %118 = vector.load %arg12[%c0_136, %c0_137, %c0_138] : memref<18x8x256xf32, #tpu.memory_space<vmem>>, vector<16x8x256xf32>
    %119 = vector.shape_cast %118 : vector<16x8x256xf32> to vector<128x256xf32>
    %c0_139 = arith.constant 0 : index
    %c1_140 = arith.constant 1 : index
    %c0_141 = arith.constant 0 : index
    %c0_142 = arith.constant 0 : index
    %120 = vector.load %arg4[%c0_139, %c1_140, %c0_141, %c0_142] : memref<3x2x256x256xf32, #tpu.memory_space<vmem>>, vector<1x1x256x256xf32>
    %121 = vector.shape_cast %120 : vector<1x1x256x256xf32> to vector<256x256xf32>
    %cst_143 = arith.constant dense<0.000000e+00> : vector<128x256xf32>
    %122 = tpu.matmul %119, %121, %cst_143 {dimension_numbers = #tpu.dot_dimension_numbers<[1], [0], [0], [1], [0, 0, 1, 1], [], []>} : vector<128x256xf32>, vector<256x256xf32>, vector<128x256xf32> -> vector<128x256xf32>
    %c1_144 = arith.constant 1 : index
    %c0_145 = arith.constant 0 : index
    %c0_146 = arith.constant 0 : index
    %123 = vector.load %arg11[%c1_144, %c0_145, %c0_146] : memref<2x256x256xf32, #tpu.memory_space<vmem>>, vector<1x128x256xf32>
    %124 = vector.shape_cast %123 : vector<1x128x256xf32> to vector<128x256xf32>
    %125 = vector.shape_cast %122 : vector<128x256xf32> to vector<1x128x256xf32>
    tpu.vector_store %arg11[%c1_144, %c0_145, %c0_146], %125 {strides = array<i32>} : memref<2x256x256xf32, #tpu.memory_space<vmem>>, vector<1x128x256xf32>,
    %c1_147 = arith.constant 1 : index
    %c0_148 = arith.constant 0 : index
    %c0_149 = arith.constant 0 : index
    %126 = vector.load %arg12[%c1_147, %c0_148, %c0_149] : memref<18x8x256xf32, #tpu.memory_space<vmem>>, vector<16x8x256xf32>
    %127 = vector.shape_cast %126 : vector<16x8x256xf32> to vector<128x256xf32>
    %c1_150 = arith.constant 1 : index
    %c1_151 = arith.constant 1 : index
    %c0_152 = arith.constant 0 : index
    %c0_153 = arith.constant 0 : index
    %128 = vector.load %arg4[%c1_150, %c1_151, %c0_152, %c0_153] : memref<3x2x256x256xf32, #tpu.memory_space<vmem>>, vector<1x1x256x256xf32>
    %129 = vector.shape_cast %128 : vector<1x1x256x256xf32> to vector<256x256xf32>
    %cst_154 = arith.constant dense<0.000000e+00> : vector<128x256xf32>
    %130 = tpu.matmul %127, %129, %cst_154 {dimension_numbers = #tpu.dot_dimension_numbers<[1], [0], [0], [1], [0, 0, 1, 1], [], []>} : vector<128x256xf32>, vector<256x256xf32>, vector<128x256xf32> -> vector<128x256xf32>
    %c1_155 = arith.constant 1 : index
    %c0_156 = arith.constant 0 : index
    %c0_157 = arith.constant 0 : index
    %131 = vector.load %arg11[%c1_155, %c0_156, %c0_157] : memref<2x256x256xf32, #tpu.memory_space<vmem>>, vector<1x128x256xf32>
    %132 = vector.shape_cast %131 : vector<1x128x256xf32> to vector<128x256xf32>
    %133 = arith.addf %132, %130 : vector<128x256xf32>
    %c1_158 = arith.constant 1 : index
    %c0_159 = arith.constant 0 : index
    %c0_160 = arith.constant 0 : index
    %134 = vector.load %arg11[%c1_158, %c0_159, %c0_160] : memref<2x256x256xf32, #tpu.memory_space<vmem>>, vector<1x128x256xf32>
    %135 = vector.shape_cast %134 : vector<1x128x256xf32> to vector<128x256xf32>
    %136 = vector.shape_cast %133 : vector<128x256xf32> to vector<1x128x256xf32>
    tpu.vector_store %arg11[%c1_158, %c0_159, %c0_160], %136 {strides = array<i32>} : memref<2x256x256xf32, #tpu.memory_space<vmem>>, vector<1x128x256xf32>,
    %c2_161 = arith.constant 2 : index
    %c0_162 = arith.constant 0 : index
    %c0_163 = arith.constant 0 : index
    %137 = vector.load %arg12[%c2_161, %c0_162, %c0_163] : memref<18x8x256xf32, #tpu.memory_space<vmem>>, vector<16x8x256xf32>
    %138 = vector.shape_cast %137 : vector<16x8x256xf32> to vector<128x256xf32>
    %c2_164 = arith.constant 2 : index
    %c1_165 = arith.constant 1 : index
    %c0_166 = arith.constant 0 : index
    %c0_167 = arith.constant 0 : index
    %139 = vector.load %arg4[%c2_164, %c1_165, %c0_166, %c0_167] : memref<3x2x256x256xf32, #tpu.memory_space<vmem>>, vector<1x1x256x256xf32>
    %140 = vector.shape_cast %139 : vector<1x1x256x256xf32> to vector<256x256xf32>
    %cst_168 = arith.constant dense<0.000000e+00> : vector<128x256xf32>
    %141 = tpu.matmul %138, %140, %cst_168 {dimension_numbers = #tpu.dot_dimension_numbers<[1], [0], [0], [1], [0, 0, 1, 1], [], []>} : vector<128x256xf32>, vector<256x256xf32>, vector<128x256xf32> -> vector<128x256xf32>
    %c1_169 = arith.constant 1 : index
    %c0_170 = arith.constant 0 : index
    %c0_171 = arith.constant 0 : index
    %142 = vector.load %arg11[%c1_169, %c0_170, %c0_171] : memref<2x256x256xf32, #tpu.memory_space<vmem>>, vector<1x128x256xf32>
    %143 = vector.shape_cast %142 : vector<1x128x256xf32> to vector<128x256xf32>
    %144 = arith.addf %143, %141 : vector<128x256xf32>
    %c1_172 = arith.constant 1 : index
    %c0_173 = arith.constant 0 : index
    %c0_174 = arith.constant 0 : index
    %145 = vector.load %arg11[%c1_172, %c0_173, %c0_174] : memref<2x256x256xf32, #tpu.memory_space<vmem>>, vector<1x128x256xf32>
    %146 = vector.shape_cast %145 : vector<1x128x256xf32> to vector<128x256xf32>
    %147 = vector.shape_cast %144 : vector<128x256xf32> to vector<1x128x256xf32>
    tpu.vector_store %arg11[%c1_172, %c0_173, %c0_174], %147 {strides = array<i32>} : memref<2x256x256xf32, #tpu.memory_space<vmem>>, vector<1x128x256xf32>,
    %c0_175 = arith.constant 0 : index
    %c0_176 = arith.constant 0 : index
    %c0_177 = arith.constant 0 : index
    %148 = vector.load %arg11[%c0_175, %c0_176, %c0_177] : memref<2x256x256xf32, #tpu.memory_space<vmem>>, vector<1x128x256xf32>
    %149 = vector.shape_cast %148 : vector<1x128x256xf32> to vector<128x256xf32>
    %c1_178 = arith.constant 1 : index
    %c0_179 = arith.constant 0 : index
    %c0_180 = arith.constant 0 : index
    %150 = vector.load %arg11[%c1_178, %c0_179, %c0_180] : memref<2x256x256xf32, #tpu.memory_space<vmem>>, vector<1x128x256xf32>
    %151 = vector.shape_cast %150 : vector<1x128x256xf32> to vector<128x256xf32>
    %152 = arith.maximumf %149, %151 : vector<128x256xf32>
    %c0_181 = arith.constant 0 : index
    %c0_182 = arith.constant 0 : index
    %153 = vector.load %arg5[%c0_181, %c0_182] : memref<1x256xf32, #tpu.memory_space<vmem>>, vector<1x256xf32>
    %154 = vector.broadcast %153 : vector<1x256xf32> to vector<128x256xf32>
    %155 = arith.addf %152, %154 : vector<128x256xf32>
    %156 = vector.shape_cast %155 : vector<128x256xf32> to vector<8x2x8x256xf32>
    %157 = vector.extract_strided_slice %156 {offsets = [0, 0, 0, 0], sizes = [8, 1, 8, 256], strides = [1, 1, 1, 1]} : vector<8x2x8x256xf32> to vector<8x1x8x256xf32>
    %158 = vector.shape_cast %157 : vector<8x1x8x256xf32> to vector<8x8x256xf32>
    %159 = vector.extract_strided_slice %156 {offsets = [0, 1, 0, 0], sizes = [8, 1, 8, 256], strides = [1, 1, 1, 1]} : vector<8x2x8x256xf32> to vector<8x1x8x256xf32>
    %160 = vector.shape_cast %159 : vector<8x1x8x256xf32> to vector<8x8x256xf32>
    %161 = arith.maximumf %158, %160 : vector<8x8x256xf32>
    %cst_183 = arith.constant 0.000000e+00 : f32
    %162 = vector.broadcast %cst_183 : f32 to vector<8x128xf32>
    %163 = vector.extract_strided_slice %161 {offsets = [0, 0, 0], sizes = [1, 8, 256], strides = [1, 1, 1]} : vector<8x8x256xf32> to vector<1x8x256xf32>
    %164 = vector.shape_cast %163 : vector<1x8x256xf32> to vector<8x256xf32>
    %c0_184 = arith.constant 0 : index
    %c0_185 = arith.constant 0 : index
    %c0_186 = arith.constant 0 : index
    %165 = vector.load %arg6[%c0_184, %c0_185, %c0_186] : memref<8x256x128xf32, #tpu.memory_space<vmem>>, vector<1x256x128xf32>
    %166 = vector.shape_cast %165 : vector<1x256x128xf32> to vector<256x128xf32>
    %cst_187 = arith.constant dense<0.000000e+00> : vector<8x128xf32>
    %167 = tpu.matmul %164, %166, %cst_187 {dimension_numbers = #tpu.dot_dimension_numbers<[1], [0], [0], [1], [0, 0, 1, 1], [], []>} : vector<8x256xf32>, vector<256x128xf32>, vector<8x128xf32> -> vector<8x128xf32>
    %168 = arith.addf %162, %167 : vector<8x128xf32>
    %169 = vector.extract_strided_slice %161 {offsets = [1, 0, 0], sizes = [1, 8, 256], strides = [1, 1, 1]} : vector<8x8x256xf32> to vector<1x8x256xf32>
    %170 = vector.shape_cast %169 : vector<1x8x256xf32> to vector<8x256xf32>
    %c1_188 = arith.constant 1 : index
    %c0_189 = arith.constant 0 : index
    %c0_190 = arith.constant 0 : index
    %171 = vector.load %arg6[%c1_188, %c0_189, %c0_190] : memref<8x256x128xf32, #tpu.memory_space<vmem>>, vector<1x256x128xf32>
    %172 = vector.shape_cast %171 : vector<1x256x128xf32> to vector<256x128xf32>
    %cst_191 = arith.constant dense<0.000000e+00> : vector<8x128xf32>
    %173 = tpu.matmul %170, %172, %cst_191 {dimension_numbers = #tpu.dot_dimension_numbers<[1], [0], [0], [1], [0, 0, 1, 1], [], []>} : vector<8x256xf32>, vector<256x128xf32>, vector<8x128xf32> -> vector<8x128xf32>
    %174 = arith.addf %168, %173 : vector<8x128xf32>
    %175 = vector.extract_strided_slice %161 {offsets = [2, 0, 0], sizes = [1, 8, 256], strides = [1, 1, 1]} : vector<8x8x256xf32> to vector<1x8x256xf32>
    %176 = vector.shape_cast %175 : vector<1x8x256xf32> to vector<8x256xf32>
    %c2_192 = arith.constant 2 : index
    %c0_193 = arith.constant 0 : index
    %c0_194 = arith.constant 0 : index
    %177 = vector.load %arg6[%c2_192, %c0_193, %c0_194] : memref<8x256x128xf32, #tpu.memory_space<vmem>>, vector<1x256x128xf32>
    %178 = vector.shape_cast %177 : vector<1x256x128xf32> to vector<256x128xf32>
    %cst_195 = arith.constant dense<0.000000e+00> : vector<8x128xf32>
    %179 = tpu.matmul %176, %178, %cst_195 {dimension_numbers = #tpu.dot_dimension_numbers<[1], [0], [0], [1], [0, 0, 1, 1], [], []>} : vector<8x256xf32>, vector<256x128xf32>, vector<8x128xf32> -> vector<8x128xf32>
    %180 = arith.addf %174, %179 : vector<8x128xf32>
    %181 = vector.extract_strided_slice %161 {offsets = [3, 0, 0], sizes = [1, 8, 256], strides = [1, 1, 1]} : vector<8x8x256xf32> to vector<1x8x256xf32>
    %182 = vector.shape_cast %181 : vector<1x8x256xf32> to vector<8x256xf32>
    %c3 = arith.constant 3 : index
    %c0_196 = arith.constant 0 : index
    %c0_197 = arith.constant 0 : index
    %183 = vector.load %arg6[%c3, %c0_196, %c0_197] : memref<8x256x128xf32, #tpu.memory_space<vmem>>, vector<1x256x128xf32>
    %184 = vector.shape_cast %183 : vector<1x256x128xf32> to vector<256x128xf32>
    %cst_198 = arith.constant dense<0.000000e+00> : vector<8x128xf32>
    %185 = tpu.matmul %182, %184, %cst_198 {dimension_numbers = #tpu.dot_dimension_numbers<[1], [0], [0], [1], [0, 0, 1, 1], [], []>} : vector<8x256xf32>, vector<256x128xf32>, vector<8x128xf32> -> vector<8x128xf32>
    %186 = arith.addf %180, %185 : vector<8x128xf32>
    %187 = vector.extract_strided_slice %161 {offsets = [4, 0, 0], sizes = [1, 8, 256], strides = [1, 1, 1]} : vector<8x8x256xf32> to vector<1x8x256xf32>
    %188 = vector.shape_cast %187 : vector<1x8x256xf32> to vector<8x256xf32>
    %c4 = arith.constant 4 : index
    %c0_199 = arith.constant 0 : index
    %c0_200 = arith.constant 0 : index
    %189 = vector.load %arg6[%c4, %c0_199, %c0_200] : memref<8x256x128xf32, #tpu.memory_space<vmem>>, vector<1x256x128xf32>
    %190 = vector.shape_cast %189 : vector<1x256x128xf32> to vector<256x128xf32>
    %cst_201 = arith.constant dense<0.000000e+00> : vector<8x128xf32>
    %191 = tpu.matmul %188, %190, %cst_201 {dimension_numbers = #tpu.dot_dimension_numbers<[1], [0], [0], [1], [0, 0, 1, 1], [], []>} : vector<8x256xf32>, vector<256x128xf32>, vector<8x128xf32> -> vector<8x128xf32>
    %192 = arith.addf %186, %191 : vector<8x128xf32>
    %193 = vector.extract_strided_slice %161 {offsets = [5, 0, 0], sizes = [1, 8, 256], strides = [1, 1, 1]} : vector<8x8x256xf32> to vector<1x8x256xf32>
    %194 = vector.shape_cast %193 : vector<1x8x256xf32> to vector<8x256xf32>
    %c5 = arith.constant 5 : index
    %c0_202 = arith.constant 0 : index
    %c0_203 = arith.constant 0 : index
    %195 = vector.load %arg6[%c5, %c0_202, %c0_203] : memref<8x256x128xf32, #tpu.memory_space<vmem>>, vector<1x256x128xf32>
    %196 = vector.shape_cast %195 : vector<1x256x128xf32> to vector<256x128xf32>
    %cst_204 = arith.constant dense<0.000000e+00> : vector<8x128xf32>
    %197 = tpu.matmul %194, %196, %cst_204 {dimension_numbers = #tpu.dot_dimension_numbers<[1], [0], [0], [1], [0, 0, 1, 1], [], []>} : vector<8x256xf32>, vector<256x128xf32>, vector<8x128xf32> -> vector<8x128xf32>
    %198 = arith.addf %192, %197 : vector<8x128xf32>
    %199 = vector.extract_strided_slice %161 {offsets = [6, 0, 0], sizes = [1, 8, 256], strides = [1, 1, 1]} : vector<8x8x256xf32> to vector<1x8x256xf32>
    %200 = vector.shape_cast %199 : vector<1x8x256xf32> to vector<8x256xf32>
    %c6 = arith.constant 6 : index
    %c0_205 = arith.constant 0 : index
    %c0_206 = arith.constant 0 : index
    %201 = vector.load %arg6[%c6, %c0_205, %c0_206] : memref<8x256x128xf32, #tpu.memory_space<vmem>>, vector<1x256x128xf32>
    %202 = vector.shape_cast %201 : vector<1x256x128xf32> to vector<256x128xf32>
    %cst_207 = arith.constant dense<0.000000e+00> : vector<8x128xf32>
    %203 = tpu.matmul %200, %202, %cst_207 {dimension_numbers = #tpu.dot_dimension_numbers<[1], [0], [0], [1], [0, 0, 1, 1], [], []>} : vector<8x256xf32>, vector<256x128xf32>, vector<8x128xf32> -> vector<8x128xf32>
    %204 = arith.addf %198, %203 : vector<8x128xf32>
    %205 = vector.extract_strided_slice %161 {offsets = [7, 0, 0], sizes = [1, 8, 256], strides = [1, 1, 1]} : vector<8x8x256xf32> to vector<1x8x256xf32>
    %206 = vector.shape_cast %205 : vector<1x8x256xf32> to vector<8x256xf32>
    %c7 = arith.constant 7 : index
    %c0_208 = arith.constant 0 : index
    %c0_209 = arith.constant 0 : index
    %207 = vector.load %arg6[%c7, %c0_208, %c0_209] : memref<8x256x128xf32, #tpu.memory_space<vmem>>, vector<1x256x128xf32>
    %208 = vector.shape_cast %207 : vector<1x256x128xf32> to vector<256x128xf32>
    %cst_210 = arith.constant dense<0.000000e+00> : vector<8x128xf32>
    %209 = tpu.matmul %206, %208, %cst_210 {dimension_numbers = #tpu.dot_dimension_numbers<[1], [0], [0], [1], [0, 0, 1, 1], [], []>} : vector<8x256xf32>, vector<256x128xf32>, vector<8x128xf32> -> vector<8x128xf32>
    %210 = arith.addf %204, %209 : vector<8x128xf32>
    %c0_211 = arith.constant 0 : index
    %c0_212 = arith.constant 0 : index
    %211 = vector.load %arg7[%c0_211, %c0_212] : memref<1x128xf32, #tpu.memory_space<vmem>>, vector<1x128xf32>
    %212 = vector.broadcast %211 : vector<1x128xf32> to vector<8x128xf32>
    %213 = arith.addf %210, %212 : vector<8x128xf32>
    %cst_213 = arith.constant 0.000000e+00 : f32
    %214 = vector.broadcast %cst_213 : f32 to vector<8x128xf32>
    %215 = arith.maximumf %213, %214 : vector<8x128xf32>
    %c0_214 = arith.constant 0 : index
    %c0_215 = arith.constant 0 : index
    %216 = vector.load %arg8[%c0_214, %c0_215] : memref<128x128xf32, #tpu.memory_space<vmem>>, vector<128x128xf32>
    %cst_216 = arith.constant dense<0.000000e+00> : vector<8x128xf32>
    %217 = tpu.matmul %215, %216, %cst_216 {dimension_numbers = #tpu.dot_dimension_numbers<[1], [0], [0], [1], [0, 0, 1, 1], [], []>} : vector<8x128xf32>, vector<128x128xf32>, vector<8x128xf32> -> vector<8x128xf32>
    %c0_217 = arith.constant 0 : index
    %c0_218 = arith.constant 0 : index
    %218 = vector.load %arg9[%c0_217, %c0_218] : memref<1x128xf32, #tpu.memory_space<vmem>>, vector<1x128xf32>
    %219 = vector.broadcast %218 : vector<1x128xf32> to vector<8x128xf32>
    %220 = arith.addf %217, %219 : vector<8x128xf32>
    %c0_219 = arith.constant 0 : index
    %c0_220 = arith.constant 0 : index
    %221 = vector.load %arg10[%c0_219, %c0_220] : memref<8x128xf32, #tpu.memory_space<vmem>>, vector<8x128xf32>
    tpu.vector_store %arg10[%c0_219, %c0_220], %220 {strides = array<i32>} : memref<8x128xf32, #tpu.memory_space<vmem>>, vector<8x128xf32>,
    return
  }
  func.func @transform_0(%arg0: i32) -> (i32, i32, i32, i32) {
    %c0_i32 = arith.constant 0 : i32
    %c0_i32_0 = arith.constant 0 : i32
    %c0_i32_1 = arith.constant 0 : i32
    %c0_i32_2 = arith.constant 0 : i32
    return %arg0, %c0_i32, %c0_i32_0, %c0_i32_1 : i32, i32, i32, i32
  }
  func.func @transform_1(%arg0: i32) -> (i32, i32, i32, i32) {
    %c0_i32 = arith.constant 0 : i32
    %c0_i32_0 = arith.constant 0 : i32
    %c0_i32_1 = arith.constant 0 : i32
    %c0_i32_2 = arith.constant 0 : i32
    %c0_i32_3 = arith.constant 0 : i32
    return %c0_i32, %c0_i32_0, %c0_i32_1, %c0_i32_2 : i32, i32, i32, i32
  }
  func.func @transform_2(%arg0: i32) -> (i32, i32) {
    %c0_i32 = arith.constant 0 : i32
    %c0_i32_0 = arith.constant 0 : i32
    %c0_i32_1 = arith.constant 0 : i32
    return %c0_i32, %c0_i32_0 : i32, i32
  }
  func.func @transform_3(%arg0: i32) -> (i32, i32, i32, i32) {
    %c0_i32 = arith.constant 0 : i32
    %c0_i32_0 = arith.constant 0 : i32
    %c0_i32_1 = arith.constant 0 : i32
    %c0_i32_2 = arith.constant 0 : i32
    %c0_i32_3 = arith.constant 0 : i32
    return %c0_i32, %c0_i32_0, %c0_i32_1, %c0_i32_2 : i32, i32, i32, i32
  }
  func.func @transform_4(%arg0: i32) -> (i32, i32) {
    %c0_i32 = arith.constant 0 : i32
    %c0_i32_0 = arith.constant 0 : i32
    %c0_i32_1 = arith.constant 0 : i32
    return %c0_i32, %c0_i32_0 : i32, i32
  }
  func.func @transform_5(%arg0: i32) -> (i32, i32, i32) {
    %c0_i32 = arith.constant 0 : i32
    %c0_i32_0 = arith.constant 0 : i32
    %c0_i32_1 = arith.constant 0 : i32
    %c0_i32_2 = arith.constant 0 : i32
    return %c0_i32, %c0_i32_0, %c0_i32_1 : i32, i32, i32
  }
  func.func @transform_6(%arg0: i32) -> (i32, i32) {
    %c0_i32 = arith.constant 0 : i32
    %c0_i32_0 = arith.constant 0 : i32
    %c0_i32_1 = arith.constant 0 : i32
    return %c0_i32, %c0_i32_0 : i32, i32
  }
  func.func @transform_7(%arg0: i32) -> (i32, i32) {
    %c0_i32 = arith.constant 0 : i32
    %c0_i32_0 = arith.constant 0 : i32
    %c0_i32_1 = arith.constant 0 : i32
    return %c0_i32, %c0_i32_0 : i32, i32
  }
  func.func @transform_8(%arg0: i32) -> (i32, i32) {
    %c0_i32 = arith.constant 0 : i32
    %c0_i32_0 = arith.constant 0 : i32
    %c0_i32_1 = arith.constant 0 : i32
    return %c0_i32, %c0_i32_0 : i32, i32
  }
  func.func @transform_9(%arg0: i32) -> (i32, i32) {
    %c0_i32 = arith.constant 0 : i32
    %c0_i32_0 = arith.constant 0 : i32
    return %arg0, %c0_i32 : i32, i32
  }
}

</mosaic_0001>

<llo_original>
// kernel: simple_cnn_forward.1
$region0: #{simple_cnn_forward.1}
  #allocation0 [shape = 'u32[]', space=smem, size = 0x4, offset = 0x4, fixed_abs, tag = 'smem constant byte address 0x4 - core index']
  #allocation1 [shape = 'u32[144,128]{1,0:T(1,128)}', space=vmem, size = 0x12000, scoped, tag = 'internal scratch']
  #allocation2 [shape = 'f32[2,256,256]{2,1,0:T(8,128)}', space=vmem, size = 0x80000, scoped, tag = 'scratch operand']
  #allocation3 [shape = 'f32[18,8,256]{2,1,0:T(8,128)}', space=vmem, size = 0x24000, scoped, tag = 'scratch operand']
  %s0 = inlined_call_operand.vmem [shape: f32[1,34,8,96], index: 0, kind: input, shape index: {}]
  %s1 = inlined_call_operand.hbm [shape: f32[3,2,96,256], index: 1, kind: input, shape index: {}]
  %s2 = inlined_call_operand.hbm [shape: f32[1,256], index: 2, kind: input, shape index: {}]
  %s3 = inlined_call_operand.hbm [shape: f32[3,2,256,256], index: 3, kind: input, shape index: {}]
  %s4 = inlined_call_operand.hbm [shape: f32[1,256], index: 4, kind: input, shape index: {}]
  %s5 = inlined_call_operand.vmem [shape: f32[8,256,128], index: 5, kind: input, shape index: {}]
  %s6 = inlined_call_operand.hbm [shape: f32[1,128], index: 6, kind: input, shape index: {}]
  %s7 = inlined_call_operand.hbm [shape: f32[128,128], index: 7, kind: input, shape index: {}]
  %s8 = inlined_call_operand.hbm [shape: f32[1,128], index: 8, kind: input, shape index: {}]
  %s9 = inlined_call_operand.vmem [shape: f32[8,128], index: 9, kind: output, shape index: {}]
  %s10 = sld [smem:[#allocation0]]
  $region74: #{simple_cnn_forward.1} parent=0
    _
  %s12 = ssub.s32 1, %s10
  %s13 = scalar_select 0, %s12, %s10
  $region1: #{simple_cnn_forward.1} parent=0
    #allocation4 [shape = 'u8[589824]{0}', space=vmem, size = 0x90000, scoped, tag = 'input window, operand 1, single buffered']
    #allocation5 [shape = 's32[1]{0}', space=sflag, size = 0x4, scoped, tag = 'scoped memory for simple_cnn_forward.1']
    #allocation6 [shape = 'u8[1024]{0}', space=vmem, size = 0x400, scoped, tag = 'input window, operand 2, single buffered']
    #allocation7 [shape = 's32[1]{0}', space=sflag, size = 0x4, scoped, tag = 'scoped memory for simple_cnn_forward.1']
    #allocation8 [shape = 'u8[1572864]{0}', space=vmem, size = 0x180000, scoped, tag = 'input window, operand 3, single buffered']
    #allocation9 [shape = 'u8[1024]{0}', space=vmem, size = 0x400, scoped, tag = 'input window, operand 4, single buffered']
    #allocation10 [shape = 's32[1]{0}', space=sflag, size = 0x4, scoped, tag = 'scoped memory for simple_cnn_forward.1']
    #allocation11 [shape = 'u8[512]{0}', space=vmem, size = 0x400, scoped, tag = 'input window, operand 6, single buffered']
    #allocation12 [shape = 'u8[65536]{0}', space=vmem, size = 0x10000, scoped, tag = 'input window, operand 7, single buffered']
    #allocation13 [shape = 's32[1]{0}', space=sflag, size = 0x4, scoped, tag = 'scoped memory for simple_cnn_forward.1']
    #allocation14 [shape = 'u8[512]{0}', space=vmem, size = 0x400, scoped, tag = 'input window, operand 8, single buffered']
    %14 = vsyncpa [#allocation5], 0
    %15 = vsyncpa [#allocation7], 0
    %16 = vsyncpa [#allocation10], 0
    %17 = vsyncpa [#allocation13], 0
    // Predicated region
    $region2: #{simple_cnn_forward.1} parent=1 // pred_check
      _
    $region3: #{simple_cnn_forward.1} parent=1 // pred_check_branch
      %19 = sbr.rel (0) target = $region5
    $region4: #{simple_cnn_forward.1} parent=1 // pred_region
      _
    $region5: #{simple_cnn_forward.1} parent=1 // pred_fallthru
      _
    // Predicated region
    $region6: #{simple_cnn_forward.1} parent=1 // pred_check
      _
    $region7: #{simple_cnn_forward.1} parent=1 // pred_check_branch
      %21 = sbr.rel (0) target = $region9
    $region8: #{simple_cnn_forward.1} parent=1 // pred_region
      %s23 = ssub.s32 18432, 18432
      %24 = vsyncadd [#allocation5], %s23
      %s25 = sshll.u32 [#allocation4], 4
      %s26 = int_to_ptr.vmem [resolvable:$true] %s25
      %31 = dma.hbm_to_vmem [thread:$0]  %s1, 18432, %s26, [#allocation5], 256, 256, 16
    $region9: #{simple_cnn_forward.1} parent=1 // pred_fallthru
      _
    // Predicated region
    $region10: #{simple_cnn_forward.1} parent=1 // pred_check
      _
    $region11: #{simple_cnn_forward.1} parent=1 // pred_check_branch
      %33 = sbr.rel (0) target = $region13
    $region12: #{simple_cnn_forward.1} parent=1 // pred_region
      %s35 = ssub.s32 32, 32
      %36 = vsyncadd [#allocation7], %s35
      %s38 = sshll.u32 [#allocation6], 4
      %s39 = int_to_ptr.vmem [resolvable:$true] %s38
      %41 = dma.hbm_to_vmem [thread:$0]  %s2, 32, %s39, [#allocation7]
    $region13: #{simple_cnn_forward.1} parent=1 // pred_fallthru
      _
    // Predicated region
    $region14: #{simple_cnn_forward.1} parent=1 // pred_check
      _
    $region15: #{simple_cnn_forward.1} parent=1 // pred_check_branch
      %43 = sbr.rel (0) target = $region17
    $region16: #{simple_cnn_forward.1} parent=1 // pred_region
      %s45 = ssub.s32 49152, 49152
      %46 = vsyncadd [#allocation7], %s45
      %s47 = sshll.u32 [#allocation8], 4
      %s48 = int_to_ptr.vmem [resolvable:$true] %s47
      %53 = dma.hbm_to_vmem [thread:$0]  %s3, 49152, %s48, [#allocation7], 256, 256, 16
    $region17: #{simple_cnn_forward.1} parent=1 // pred_fallthru
      _
    // Predicated region
    $region18: #{simple_cnn_forward.1} parent=1 // pred_check
      _
    $region19: #{simple_cnn_forward.1} parent=1 // pred_check_branch
      %55 = sbr.rel (0) target = $region21
    $region20: #{simple_cnn_forward.1} parent=1 // pred_region
      %s57 = ssub.s32 32, 32
      %58 = vsyncadd [#allocation10], %s57
      %s60 = sshll.u32 [#allocation9], 4
      %s61 = int_to_ptr.vmem [resolvable:$true] %s60
      %63 = dma.hbm_to_vmem [thread:$0]  %s4, 32, %s61, [#allocation10]
    $region21: #{simple_cnn_forward.1} parent=1 // pred_fallthru
      _
    // Predicated region
    $region22: #{simple_cnn_forward.1} parent=1 // pred_check
      _
    $region23: #{simple_cnn_forward.1} parent=1 // pred_check_branch
      %65 = sbr.rel (0) target = $region25
    $region24: #{simple_cnn_forward.1} parent=1 // pred_region
      _
    $region25: #{simple_cnn_forward.1} parent=1 // pred_fallthru
      _
    // Predicated region
    $region26: #{simple_cnn_forward.1} parent=1 // pred_check
      _
    $region27: #{simple_cnn_forward.1} parent=1 // pred_check_branch
      %67 = sbr.rel (0) target = $region29
    $region28: #{simple_cnn_forward.1} parent=1 // pred_region
      %s69 = ssub.s32 16, 16
      %70 = vsyncadd [#allocation10], %s69
      %s72 = sshll.u32 [#allocation11], 4
      %s73 = int_to_ptr.vmem [resolvable:$true] %s72
      %75 = dma.hbm_to_vmem [thread:$0]  %s6, 16, %s73, [#allocation10]
    $region29: #{simple_cnn_forward.1} parent=1 // pred_fallthru
      _
    // Predicated region
    $region30: #{simple_cnn_forward.1} parent=1 // pred_check
      _
    $region31: #{simple_cnn_forward.1} parent=1 // pred_check_branch
      %77 = sbr.rel (0) target = $region33
    $region32: #{simple_cnn_forward.1} parent=1 // pred_region
      %s79 = ssub.s32 2048, 2048
      %80 = vsyncadd [#allocation13], %s79
      %s81 = sshll.u32 [#allocation12], 4
      %s82 = int_to_ptr.vmem [resolvable:$true] %s81
      %87 = dma.hbm_to_vmem [thread:$0]  %s7, 2048, %s82, [#allocation13], 128, 128, 8
    $region33: #{simple_cnn_forward.1} parent=1 // pred_fallthru
      _
    // Predicated region
    $region34: #{simple_cnn_forward.1} parent=1 // pred_check
      _
    $region35: #{simple_cnn_forward.1} parent=1 // pred_check_branch
      %89 = sbr.rel (0) target = $region37
    $region36: #{simple_cnn_forward.1} parent=1 // pred_region
      %s91 = ssub.s32 16, 16
      %92 = vsyncadd [#allocation13], %s91
      %s94 = sshll.u32 [#allocation14], 4
      %s95 = int_to_ptr.vmem [resolvable:$true] %s94
      %97 = dma.hbm_to_vmem [thread:$0]  %s8, 16, %s95, [#allocation13]
    $region37: #{simple_cnn_forward.1} parent=1 // pred_fallthru
      _
    // Predicated region
    $region38: #{simple_cnn_forward.1} parent=1 // pred_check
      _
    $region39: #{simple_cnn_forward.1} parent=1 // pred_check_branch
      %99 = sbr.rel (0) target = $region41
    $region40: #{simple_cnn_forward.1} parent=1 // pred_region
      %100 = dma.done [#allocation5], 18432
    $region41: #{simple_cnn_forward.1} parent=1 // pred_fallthru
      _
    // Predicated region
    $region42: #{simple_cnn_forward.1} parent=1 // pred_check
      _
    $region43: #{simple_cnn_forward.1} parent=1 // pred_check_branch
      %102 = sbr.rel (0) target = $region45
    $region44: #{simple_cnn_forward.1} parent=1 // pred_region
      %103 = dma.done [#allocation7], 32
    $region45: #{simple_cnn_forward.1} parent=1 // pred_fallthru
      _
    // Predicated region
    $region46: #{simple_cnn_forward.1} parent=1 // pred_check
      _
    $region47: #{simple_cnn_forward.1} parent=1 // pred_check_branch
      %105 = sbr.rel (0) target = $region49
    $region48: #{simple_cnn_forward.1} parent=1 // pred_region
      %106 = dma.done [#allocation7], 49152
    $region49: #{simple_cnn_forward.1} parent=1 // pred_fallthru
      _
    // Predicated region
    $region50: #{simple_cnn_forward.1} parent=1 // pred_check
      _
    $region51: #{simple_cnn_forward.1} parent=1 // pred_check_branch
      %108 = sbr.rel (0) target = $region53
    $region52: #{simple_cnn_forward.1} parent=1 // pred_region
      %109 = dma.done [#allocation10], 32
    $region53: #{simple_cnn_forward.1} parent=1 // pred_fallthru
      _
    // Predicated region
    $region54: #{simple_cnn_forward.1} parent=1 // pred_check
      _
    $region55: #{simple_cnn_forward.1} parent=1 // pred_check_branch
      %111 = sbr.rel (0) target = $region57
    $region56: #{simple_cnn_forward.1} parent=1 // pred_region
      %112 = dma.done [#allocation10], 16
    $region57: #{simple_cnn_forward.1} parent=1 // pred_fallthru
      _
    // Predicated region
    $region58: #{simple_cnn_forward.1} parent=1 // pred_check
      _
    $region59: #{simple_cnn_forward.1} parent=1 // pred_check_branch
      %114 = sbr.rel (0) target = $region61
    $region60: #{simple_cnn_forward.1} parent=1 // pred_region
      %115 = dma.done [#allocation13], 2048
    $region61: #{simple_cnn_forward.1} parent=1 // pred_fallthru
      _
    // Predicated region
    $region62: #{simple_cnn_forward.1} parent=1 // pred_check
      _
    $region63: #{simple_cnn_forward.1} parent=1 // pred_check_branch
      %117 = sbr.rel (0) target = $region65
    $region64: #{simple_cnn_forward.1} parent=1 // pred_region
      %118 = dma.done [#allocation13], 16
    $region65: #{simple_cnn_forward.1} parent=1 // pred_fallthru
      _
    %v119 = vld [vmem:[%s0] sm:$0xff]
    %v120 = vld [vmem:[%s0 + $0x8] sm:$0xff]
    %v121 = vld [vmem:[%s0 + $0x10] sm:$0xff]
    %v122 = vld [vmem:[%s0 + $0x18] sm:$0xff]
    %v123 = vld [vmem:[%s0 + $0x20] sm:$0xff]
    %v124 = vld [vmem:[%s0 + $0x28] sm:$0xff]
    %v125 = vld [vmem:[%s0 + $0x30] sm:$0xff]
    %v126 = vld [vmem:[%s0 + $0x38] sm:$0xff]
    %v127 = vld [vmem:[%s0 + $0x40] sm:$0xff]
    %v128 = vld [vmem:[%s0 + $0x48] sm:$0xff]
    %v129 = vld [vmem:[%s0 + $0x50] sm:$0xff]
    %v130 = vld [vmem:[%s0 + $0x58] sm:$0xff]
    %v131 = vld [vmem:[%s0 + $0x60] sm:$0xff]
    %v132 = vld [vmem:[%s0 + $0x68] sm:$0xff]
    %v133 = vld [vmem:[%s0 + $0x70] sm:$0xff]
    %v134 = vld [vmem:[%s0 + $0x78] sm:$0xff]
    %v135 = vld [vmem:[%s0 + $0x80] sm:$0xff]
    %v136 = vld [vmem:[%s0 + $0x88] sm:$0xff]
    %v137 = vld [vmem:[%s0 + $0x90] sm:$0xff]
    %v138 = vld [vmem:[%s0 + $0x98] sm:$0xff]
    %v139 = vld [vmem:[%s0 + $0xa0] sm:$0xff]
    %v140 = vld [vmem:[%s0 + $0xa8] sm:$0xff]
    %v141 = vld [vmem:[%s0 + $0xb0] sm:$0xff]
    %v142 = vld [vmem:[%s0 + $0xb8] sm:$0xff]
    %v143 = vld [vmem:[%s0 + $0xc0] sm:$0xff]
    %v144 = vld [vmem:[%s0 + $0xc8] sm:$0xff]
    %v145 = vld [vmem:[%s0 + $0xd0] sm:$0xff]
    %v146 = vld [vmem:[%s0 + $0xd8] sm:$0xff]
    %v147 = vld [vmem:[%s0 + $0xe0] sm:$0xff]
    %v148 = vld [vmem:[%s0 + $0xe8] sm:$0xff]
    %v149 = vld [vmem:[%s0 + $0xf0] sm:$0xff]
    %v150 = vld [vmem:[%s0 + $0xf8] sm:$0xff]
    %v151 = vld [vmem:[#allocation4] sm:$0xff]
    %v152 = vld [vmem:[#allocation4 + $0x8] sm:$0xff]
    %v153 = vld [vmem:[#allocation4 + $0x10] sm:$0xff]
    %v154 = vld [vmem:[#allocation4 + $0x18] sm:$0xff]
    %v155 = vld [vmem:[#allocation4 + $0x20] sm:$0xff]
    %v156 = vld [vmem:[#allocation4 + $0x28] sm:$0xff]
    %v157 = vld [vmem:[#allocation4 + $0x30] sm:$0xff]
    %v158 = vld [vmem:[#allocation4 + $0x38] sm:$0xff]
    %v159 = vld [vmem:[#allocation4 + $0x40] sm:$0xff]
    %v160 = vld [vmem:[#allocation4 + $0x48] sm:$0xff]
    %v161 = vld [vmem:[#allocation4 + $0x50] sm:$0xff]
    %v162 = vld [vmem:[#allocation4 + $0x58] sm:$0xff]
    %v163 = vld [vmem:[#allocation4 + $0x60] sm:$0xff]
    %v164 = vld [vmem:[#allocation4 + $0x68] sm:$0xff]
    %v165 = vld [vmem:[#allocation4 + $0x70] sm:$0xff]
    %v166 = vld [vmem:[#allocation4 + $0x78] sm:$0xff]
    %v167 = vld [vmem:[#allocation4 + $0x80] sm:$0xff]
    %v168 = vld [vmem:[#allocation4 + $0x88] sm:$0xff]
    %v169 = vld [vmem:[#allocation4 + $0x90] sm:$0xff]
    %v170 = vld [vmem:[#allocation4 + $0x98] sm:$0xff]
    %v171 = vld [vmem:[#allocation4 + $0xa0] sm:$0xff]
    %v172 = vld [vmem:[#allocation4 + $0xa8] sm:$0xff]
    %v173 = vld [vmem:[#allocation4 + $0xb0] sm:$0xff]
    %v174 = vld [vmem:[#allocation4 + $0xb8] sm:$0xff]
    %vm175 = vcmask 785408
    %v177 = vsel %vm175, %v119, 0
    %v180 = vsel %vm175, %v120, 0
    %v183 = vsel %vm175, %v121, 0
    %v186 = vsel %vm175, %v122, 0
    %v189 = vsel %vm175, %v123, 0
    %v192 = vsel %vm175, %v124, 0
    %v195 = vsel %vm175, %v125, 0
    %v198 = vsel %vm175, %v126, 0
    %v201 = vsel %vm175, %v127, 0
    %v204 = vsel %vm175, %v128, 0
    %v207 = vsel %vm175, %v129, 0
    %v210 = vsel %vm175, %v130, 0
    %v213 = vsel %vm175, %v131, 0
    %v216 = vsel %vm175, %v132, 0
    %v219 = vsel %vm175, %v133, 0
    %v222 = vsel %vm175, %v134, 0
    %v225 = vsel %vm175, %v135, 0
    %v228 = vsel %vm175, %v136, 0
    %v231 = vsel %vm175, %v137, 0
    %v234 = vsel %vm175, %v138, 0
    %v237 = vsel %vm175, %v139, 0
    %v240 = vsel %vm175, %v140, 0
    %v243 = vsel %vm175, %v141, 0
    %v246 = vsel %vm175, %v142, 0
    %v249 = vsel %vm175, %v143, 0
    %v252 = vsel %vm175, %v144, 0
    %v255 = vsel %vm175, %v145, 0
    %v258 = vsel %vm175, %v146, 0
    %v261 = vsel %vm175, %v147, 0
    %v264 = vsel %vm175, %v148, 0
    %v267 = vsel %vm175, %v149, 0
    %v270 = vsel %vm175, %v150, 0
    %272 = vmatprep.subr.mxu0 0.0
    %273 = vmatpush1.msra.mxu0 0.0
    %274 = vmatprep.subr.mxu0 0.0
    %275 = vmatpush1.msra.mxu0 0.0
    %276 = vmatprep.subr.mxu0 0.0
    %277 = vmatpush1.msra.mxu0 0.0
    %278 = vmatprep.subr.mxu0 0.0
    %279 = vmatpush1.msra.mxu0 0.0
    %280 = vmatprep.subr.mxu0 %v174
    %281 = vmatpush1.msra.mxu0 %v173
    %282 = vmatprep.subr.mxu0 %v172
    %283 = vmatpush1.msra.mxu0 %v171
    %284 = vmatprep.subr.mxu0 %v170
    %285 = vmatpush1.msra.mxu0 %v169
    %286 = vmatprep.subr.mxu0 %v168
    %287 = vmatpush1.msra.mxu0 %v167
    %288 = vmatprep.subr.mxu0 %v166
    %289 = vmatpush1.msra.mxu0 %v165
    %290 = vmatprep.subr.mxu0 %v164
    %291 = vmatpush1.msra.mxu0 %v163
    %292 = vmatprep.subr.mxu0 %v162
    %293 = vmatpush1.msra.mxu0 %v161
    %294 = vmatprep.subr.mxu0 %v160
    %295 = vmatpush1.msra.mxu0 %v159
    %296 = vmatprep.subr.mxu0 %v158
    %297 = vmatpush1.msra.mxu0 %v157
    %298 = vmatprep.subr.mxu0 %v156
    %299 = vmatpush1.msra.mxu0 %v155
    %300 = vmatprep.subr.mxu0 %v154
    %301 = vmatpush1.msra.mxu0 %v153
    %302 = vmatprep.subr.mxu0 %v152
    %303 = vmatpush1.msra.mxu0 %v151
    %304 = vmatprep.subr.mxu0 0.0
    %305 = vmatpush2.msra.mxu0 0.0
    %306 = vmatprep.subr.mxu0 0.0
    %307 = vmatpush2.msra.mxu0 0.0
    %308 = vmatprep.subr.mxu0 0.0
    %309 = vmatpush2.msra.mxu0 0.0
    %310 = vmatprep.subr.mxu0 0.0
    %311 = vmatpush2.msra.mxu0 0.0
    %312 = vmatprep.subr.mxu0 0.0
    %313 = vmatpush2.msra.mxu0 0.0
    %314 = vmatprep.subr.mxu0 0.0
    %315 = vmatpush2.msra.mxu0 0.0
    %316 = vmatprep.subr.mxu0 0.0
    %317 = vmatpush2.msra.mxu0 0.0
    %318 = vmatprep.subr.mxu0 0.0
    %319 = vmatpush2.msra.mxu0 0.0
    %320 = vmatprep.subr.mxu0 0.0
    %321 = vmatpush2.msra.mxu0 0.0
    %322 = vmatprep.subr.mxu0 0.0
    %323 = vmatpush2.msra.mxu0 0.0
    %324 = vmatprep.subr.mxu0 0.0
    %325 = vmatpush2.msra.mxu0 0.0
    %326 = vmatprep.subr.mxu0 0.0
    %327 = vmatpush2.msra.mxu0 0.0
    %328 = vmatprep.subr.mxu0 0.0
    %329 = vmatpush2.msra.mxu0 0.0
    %330 = vmatprep.subr.mxu0 0.0
    %331 = vmatpush2.msra.mxu0 0.0
    %332 = vmatprep.subr.mxu0 0.0
    %333 = vmatpush2.msra.mxu0 0.0
    %334 = vmatprep.subr.mxu0 0.0
    %335 = vmatpush2.msra.mxu0 0.0
    %336 = vmatprep.mubr.f32.mxu0 0.0
    %337 = vmatmul.mubr.f32.gmra.mxu0 %v177
    %v338 = vpop.f32.mrf.mxu0
    %v339 = vadd.f32 0.0, %v338
    %v340 = vpop.f32.mrf.mxu0
    %v341 = vadd.f32 0.0, %v340
    %342 = vmatprep.mubr.f32.mxu0 0.0
    %343 = vmatmul.mubr.f32.gmra.mxu0 %v180
    %v344 = vpop.f32.mrf.mxu0
    %v345 = vadd.f32 0.0, %v344
    %v346 = vpop.f32.mrf.mxu0
    %v347 = vadd.f32 0.0, %v346
    %348 = vmatprep.mubr.f32.mxu0 0.0
    %349 = vmatmul.mubr.f32.gmra.mxu0 %v183
    %v350 = vpop.f32.mrf.mxu0
    %v351 = vadd.f32 0.0, %v350
    %v352 = vpop.f32.mrf.mxu0
    %v353 = vadd.f32 0.0, %v352
    %354 = vmatprep.mubr.f32.mxu0 0.0
    %355 = vmatmul.mubr.f32.gmra.mxu0 %v186
    %v356 = vpop.f32.mrf.mxu0
    %v357 = vadd.f32 0.0, %v356
    %v358 = vpop.f32.mrf.mxu0
    %v359 = vadd.f32 0.0, %v358
    %360 = vmatprep.mubr.f32.mxu0 0.0
    %361 = vmatmul.mubr.f32.gmra.mxu0 %v189
    %v362 = vpop.f32.mrf.mxu0
    %v363 = vadd.f32 0.0, %v362
    %v364 = vpop.f32.mrf.mxu0
    %v365 = vadd.f32 0.0, %v364
    %366 = vmatprep.mubr.f32.mxu0 0.0
    %367 = vmatmul.mubr.f32.gmra.mxu0 %v192
    %v368 = vpop.f32.mrf.mxu0
    %v369 = vadd.f32 0.0, %v368
    %v370 = vpop.f32.mrf.mxu0
    %v371 = vadd.f32 0.0, %v370
    %372 = vmatprep.mubr.f32.mxu0 0.0
    %373 = vmatmul.mubr.f32.gmra.mxu0 %v195
    %v374 = vpop.f32.mrf.mxu0
    %v375 = vadd.f32 0.0, %v374
    %v376 = vpop.f32.mrf.mxu0
    %v377 = vadd.f32 0.0, %v376
    %378 = vmatprep.mubr.f32.mxu0 0.0
    %379 = vmatmul.mubr.f32.gmra.mxu0 %v198
    %v380 = vpop.f32.mrf.mxu0
    %v381 = vadd.f32 0.0, %v380
    %v382 = vpop.f32.mrf.mxu0
    %v383 = vadd.f32 0.0, %v382
    %384 = vmatprep.mubr.f32.mxu0 0.0
    %385 = vmatmul.mubr.f32.gmra.mxu0 %v201
    %v386 = vpop.f32.mrf.mxu0
    %v387 = vadd.f32 0.0, %v386
    %v388 = vpop.f32.mrf.mxu0
    %v389 = vadd.f32 0.0, %v388
    %390 = vmatprep.mubr.f32.mxu0 0.0
    %391 = vmatmul.mubr.f32.gmra.mxu0 %v204
    %v392 = vpop.f32.mrf.mxu0
    %v393 = vadd.f32 0.0, %v392
    %v394 = vpop.f32.mrf.mxu0
    %v395 = vadd.f32 0.0, %v394
    %396 = vmatprep.mubr.f32.mxu0 0.0
    %397 = vmatmul.mubr.f32.gmra.mxu0 %v207
    %v398 = vpop.f32.mrf.mxu0
    %v399 = vadd.f32 0.0, %v398
    %v400 = vpop.f32.mrf.mxu0
    %v401 = vadd.f32 0.0, %v400
    %402 = vmatprep.mubr.f32.mxu0 0.0
    %403 = vmatmul.mubr.f32.gmra.mxu0 %v210
    %v404 = vpop.f32.mrf.mxu0
    %v405 = vadd.f32 0.0, %v404
    %v406 = vpop.f32.mrf.mxu0
    %v407 = vadd.f32 0.0, %v406
    %408 = vmatprep.mubr.f32.mxu0 0.0
    %409 = vmatmul.mubr.f32.gmra.mxu0 %v213
    %v410 = vpop.f32.mrf.mxu0
    %v411 = vadd.f32 0.0, %v410
    %v412 = vpop.f32.mrf.mxu0
    %v413 = vadd.f32 0.0, %v412
    %414 = vmatprep.mubr.f32.mxu0 0.0
    %415 = vmatmul.mubr.f32.gmra.mxu0 %v216
    %v416 = vpop.f32.mrf.mxu0
    %v417 = vadd.f32 0.0, %v416
    %v418 = vpop.f32.mrf.mxu0
    %v419 = vadd.f32 0.0, %v418
    %420 = vmatprep.mubr.f32.mxu0 0.0
    %421 = vmatmul.mubr.f32.gmra.mxu0 %v219
    %v422 = vpop.f32.mrf.mxu0
    %v423 = vadd.f32 0.0, %v422
    %v424 = vpop.f32.mrf.mxu0
    %v425 = vadd.f32 0.0, %v424
    %426 = vmatprep.mubr.f32.mxu0 0.0
    %427 = vmatmul.mubr.f32.gmra.mxu0 %v222
    %v428 = vpop.f32.mrf.mxu0
    %v429 = vadd.f32 0.0, %v428
    %v430 = vpop.f32.mrf.mxu0
    %v431 = vadd.f32 0.0, %v430
    %432 = vmatprep.mubr.f32.mxu0 0.0
    %433 = vmatmul.mubr.f32.gmra.mxu0 %v225
    %v434 = vpop.f32.mrf.mxu0
    %v435 = vadd.f32 0.0, %v434
    %v436 = vpop.f32.mrf.mxu0
    %v437 = vadd.f32 0.0, %v436
    %438 = vmatprep.mubr.f32.mxu0 0.0
    %439 = vmatmul.mubr.f32.gmra.mxu0 %v228
    %v440 = vpop.f32.mrf.mxu0
    %v441 = vadd.f32 0.0, %v440
    %v442 = vpop.f32.mrf.mxu0
    %v443 = vadd.f32 0.0, %v442
    %444 = vmatprep.mubr.f32.mxu0 0.0
    %445 = vmatmul.mubr.f32.gmra.mxu0 %v231
    %v446 = vpop.f32.mrf.mxu0
    %v447 = vadd.f32 0.0, %v446
    %v448 = vpop.f32.mrf.mxu0
    %v449 = vadd.f32 0.0, %v448
    %450 = vmatprep.mubr.f32.mxu0 0.0
    %451 = vmatmul.mubr.f32.gmra.mxu0 %v234
    %v452 = vpop.f32.mrf.mxu0
    %v453 = vadd.f32 0.0, %v452
    %v454 = vpop.f32.mrf.mxu0
    %v455 = vadd.f32 0.0, %v454
    %456 = vmatprep.mubr.f32.mxu0 0.0
    %457 = vmatmul.mubr.f32.gmra.mxu0 %v237
    %v458 = vpop.f32.mrf.mxu0
    %v459 = vadd.f32 0.0, %v458
    %v460 = vpop.f32.mrf.mxu0
    %v461 = vadd.f32 0.0, %v460
    %462 = vmatprep.mubr.f32.mxu0 0.0
    %463 = vmatmul.mubr.f32.gmra.mxu0 %v240
    %v464 = vpop.f32.mrf.mxu0
    %v465 = vadd.f32 0.0, %v464
    %v466 = vpop.f32.mrf.mxu0
    %v467 = vadd.f32 0.0, %v466
    %468 = vmatprep.mubr.f32.mxu0 0.0
    %469 = vmatmul.mubr.f32.gmra.mxu0 %v243
    %v470 = vpop.f32.mrf.mxu0
    %v471 = vadd.f32 0.0, %v470
    %v472 = vpop.f32.mrf.mxu0
    %v473 = vadd.f32 0.0, %v472
    %474 = vmatprep.mubr.f32.mxu0 0.0
    %475 = vmatmul.mubr.f32.gmra.mxu0 %v246
    %v476 = vpop.f32.mrf.mxu0
    %v477 = vadd.f32 0.0, %v476
    %v478 = vpop.f32.mrf.mxu0
    %v479 = vadd.f32 0.0, %v478
    %480 = vmatprep.mubr.f32.mxu0 0.0
    %481 = vmatmul.mubr.f32.gmra.mxu0 %v249
    %v482 = vpop.f32.mrf.mxu0
    %v483 = vadd.f32 0.0, %v482
    %v484 = vpop.f32.mrf.mxu0
    %v485 = vadd.f32 0.0, %v484
    %486 = vmatprep.mubr.f32.mxu0 0.0
    %487 = vmatmul.mubr.f32.gmra.mxu0 %v252
    %v488 = vpop.f32.mrf.mxu0
    %v489 = vadd.f32 0.0, %v488
    %v490 = vpop.f32.mrf.mxu0
    %v491 = vadd.f32 0.0, %v490
    %492 = vmatprep.mubr.f32.mxu0 0.0
    %493 = vmatmul.mubr.f32.gmra.mxu0 %v255
    %v494 = vpop.f32.mrf.mxu0
    %v495 = vadd.f32 0.0, %v494
    %v496 = vpop.f32.mrf.mxu0
    %v497 = vadd.f32 0.0, %v496
    %498 = vmatprep.mubr.f32.mxu0 0.0
    %499 = vmatmul.mubr.f32.gmra.mxu0 %v258
    %v500 = vpop.f32.mrf.mxu0
    %v501 = vadd.f32 0.0, %v500
    %v502 = vpop.f32.mrf.mxu0
    %v503 = vadd.f32 0.0, %v502
    %504 = vmatprep.mubr.f32.mxu0 0.0
    %505 = vmatmul.mubr.f32.gmra.mxu0 %v261
    %v506 = vpop.f32.mrf.mxu0
    %v507 = vadd.f32 0.0, %v506
    %v508 = vpop.f32.mrf.mxu0
    %v509 = vadd.f32 0.0, %v508
    %510 = vmatprep.mubr.f32.mxu0 0.0
    %511 = vmatmul.mubr.f32.gmra.mxu0 %v264
    %v512 = vpop.f32.mrf.mxu0
    %v513 = vadd.f32 0.0, %v512
    %v514 = vpop.f32.mrf.mxu0
    %v515 = vadd.f32 0.0, %v514
    %516 = vmatprep.mubr.f32.mxu0 0.0
    %517 = vmatmul.mubr.f32.gmra.mxu0 %v267
    %v518 = vpop.f32.mrf.mxu0
    %v519 = vadd.f32 0.0, %v518
    %v520 = vpop.f32.mrf.mxu0
    %v521 = vadd.f32 0.0, %v520
    %522 = vmatprep.mubr.f32.mxu0 0.0
    %523 = vmatmul.mubr.f32.gmra.mxu0 %v270
    %v524 = vpop.f32.mrf.mxu0
    %v525 = vadd.f32 0.0, %v524
    %v526 = vpop.f32.mrf.mxu0
    %v527 = vadd.f32 0.0, %v526
    %528 = vdwg.mxu0
    %529 = vst [vmem:[#allocation2] sm:$0xff] %v339
    %530 = vst [vmem:[#allocation2 + $0x8] sm:$0xff] %v341
    %531 = vst [vmem:[#allocation2 + $0x10] sm:$0xff] %v345
    %532 = vst [vmem:[#allocation2 + $0x18] sm:$0xff] %v347
    %533 = vst [vmem:[#allocation2 + $0x20] sm:$0xff] %v351
    %534 = vst [vmem:[#allocation2 + $0x28] sm:$0xff] %v353
    %535 = vst [vmem:[#allocation2 + $0x30] sm:$0xff] %v357
    %536 = vst [vmem:[#allocation2 + $0x38] sm:$0xff] %v359
    %537 = vst [vmem:[#allocation2 + $0x40] sm:$0xff] %v363
    %538 = vst [vmem:[#allocation2 + $0x48] sm:$0xff] %v365
    %539 = vst [vmem:[#allocation2 + $0x50] sm:$0xff] %v369
    %540 = vst [vmem:[#allocation2 + $0x58] sm:$0xff] %v371
    %541 = vst [vmem:[#allocation2 + $0x60] sm:$0xff] %v375
    %542 = vst [vmem:[#allocation2 + $0x68] sm:$0xff] %v377
    %543 = vst [vmem:[#allocation2 + $0x70] sm:$0xff] %v381
    %544 = vst [vmem:[#allocation2 + $0x78] sm:$0xff] %v383
    %545 = vst [vmem:[#allocation2 + $0x80] sm:$0xff] %v387
    %546 = vst [vmem:[#allocation2 + $0x88] sm:$0xff] %v389
    %547 = vst [vmem:[#allocation2 + $0x90] sm:$0xff] %v393
    %548 = vst [vmem:[#allocation2 + $0x98] sm:$0xff] %v395
    %549 = vst [vmem:[#allocation2 + $0xa0] sm:$0xff] %v399
    %550 = vst [vmem:[#allocation2 + $0xa8] sm:$0xff] %v401
    %551 = vst [vmem:[#allocation2 + $0xb0] sm:$0xff] %v405
    %552 = vst [vmem:[#allocation2 + $0xb8] sm:$0xff] %v407
    %553 = vst [vmem:[#allocation2 + $0xc0] sm:$0xff] %v411
    %554 = vst [vmem:[#allocation2 + $0xc8] sm:$0xff] %v413
    %555 = vst [vmem:[#allocation2 + $0xd0] sm:$0xff] %v417
    %556 = vst [vmem:[#allocation2 + $0xd8] sm:$0xff] %v419
    %557 = vst [vmem:[#allocation2 + $0xe0] sm:$0xff] %v423
    %558 = vst [vmem:[#allocation2 + $0xe8] sm:$0xff] %v425
    %559 = vst [vmem:[#allocation2 + $0xf0] sm:$0xff] %v429
    %560 = vst [vmem:[#allocation2 + $0xf8] sm:$0xff] %v431
    %561 = vst [vmem:[#allocation2 + $0x100] sm:$0xff] %v435
    %562 = vst [vmem:[#allocation2 + $0x108] sm:$0xff] %v437
    %563 = vst [vmem:[#allocation2 + $0x110] sm:$0xff] %v441
    %564 = vst [vmem:[#allocation2 + $0x118] sm:$0xff] %v443
    %565 = vst [vmem:[#allocation2 + $0x120] sm:$0xff] %v447
    %566 = vst [vmem:[#allocation2 + $0x128] sm:$0xff] %v449
    %567 = vst [vmem:[#allocation2 + $0x130] sm:$0xff] %v453
    %568 = vst [vmem:[#allocation2 + $0x138] sm:$0xff] %v455
    %569 = vst [vmem:[#allocation2 + $0x140] sm:$0xff] %v459
    %570 = vst [vmem:[#allocation2 + $0x148] sm:$0xff] %v461
    %571 = vst [vmem:[#allocation2 + $0x150] sm:$0xff] %v465
    %572 = vst [vmem:[#allocation2 + $0x158] sm:$0xff] %v467
    %573 = vst [vmem:[#allocation2 + $0x160] sm:$0xff] %v471
    %574 = vst [vmem:[#allocation2 + $0x168] sm:$0xff] %v473
    %575 = vst [vmem:[#allocation2 + $0x170] sm:$0xff] %v477
    %576 = vst [vmem:[#allocation2 + $0x178] sm:$0xff] %v479
    %577 = vst [vmem:[#allocation2 + $0x180] sm:$0xff] %v483
    %578 = vst [vmem:[#allocation2 + $0x188] sm:$0xff] %v485
    %579 = vst [vmem:[#allocation2 + $0x190] sm:$0xff] %v489
    %580 = vst [vmem:[#allocation2 + $0x198] sm:$0xff] %v491
    %581 = vst [vmem:[#allocation2 + $0x1a0] sm:$0xff] %v495
    %582 = vst [vmem:[#allocation2 + $0x1a8] sm:$0xff] %v497
    %583 = vst [vmem:[#allocation2 + $0x1b0] sm:$0xff] %v501
    %584 = vst [vmem:[#allocation2 + $0x1b8] sm:$0xff] %v503
    %585 = vst [vmem:[#allocation2 + $0x1c0] sm:$0xff] %v507
    %586 = vst [vmem:[#allocation2 + $0x1c8] sm:$0xff] %v509
    %587 = vst [vmem:[#allocation2 + $0x1d0] sm:$0xff] %v513
    %588 = vst [vmem:[#allocation2 + $0x1d8] sm:$0xff] %v515
    %589 = vst [vmem:[#allocation2 + $0x1e0] sm:$0xff] %v519
    %590 = vst [vmem:[#allocation2 + $0x1e8] sm:$0xff] %v521
    %591 = vst [vmem:[#allocation2 + $0x1f0] sm:$0xff] %v525
    %592 = vst [vmem:[#allocation2 + $0x1f8] sm:$0xff] %v527
    %s593 = scalar_lea.vmem %s0, 8
    %v594 = vld [vmem:[%s593] sm:$0xff]
    %v595 = vld [vmem:[%s593 + $0x8] sm:$0xff]
    %v596 = vld [vmem:[%s593 + $0x10] sm:$0xff]
    %v597 = vld [vmem:[%s593 + $0x18] sm:$0xff]
    %v598 = vld [vmem:[%s593 + $0x20] sm:$0xff]
    %v599 = vld [vmem:[%s593 + $0x28] sm:$0xff]
    %v600 = vld [vmem:[%s593 + $0x30] sm:$0xff]
    %v601 = vld [vmem:[%s593 + $0x38] sm:$0xff]
    %v602 = vld [vmem:[%s593 + $0x40] sm:$0xff]
    %v603 = vld [vmem:[%s593 + $0x48] sm:$0xff]
    %v604 = vld [vmem:[%s593 + $0x50] sm:$0xff]
    %v605 = vld [vmem:[%s593 + $0x58] sm:$0xff]
    %v606 = vld [vmem:[%s593 + $0x60] sm:$0xff]
    %v607 = vld [vmem:[%s593 + $0x68] sm:$0xff]
    %v608 = vld [vmem:[%s593 + $0x70] sm:$0xff]
    %v609 = vld [vmem:[%s593 + $0x78] sm:$0xff]
    %v610 = vld [vmem:[%s593 + $0x80] sm:$0xff]
    %v611 = vld [vmem:[%s593 + $0x88] sm:$0xff]
    %v612 = vld [vmem:[%s593 + $0x90] sm:$0xff]
    %v613 = vld [vmem:[%s593 + $0x98] sm:$0xff]
    %v614 = vld [vmem:[%s593 + $0xa0] sm:$0xff]
    %v615 = vld [vmem:[%s593 + $0xa8] sm:$0xff]
    %v616 = vld [vmem:[%s593 + $0xb0] sm:$0xff]
    %v617 = vld [vmem:[%s593 + $0xb8] sm:$0xff]
    %v618 = vld [vmem:[%s593 + $0xc0] sm:$0xff]
    %v619 = vld [vmem:[%s593 + $0xc8] sm:$0xff]
    %v620 = vld [vmem:[%s593 + $0xd0] sm:$0xff]
    %v621 = vld [vmem:[%s593 + $0xd8] sm:$0xff]
    %v622 = vld [vmem:[%s593 + $0xe0] sm:$0xff]
    %v623 = vld [vmem:[%s593 + $0xe8] sm:$0xff]
    %v624 = vld [vmem:[%s593 + $0xf0] sm:$0xff]
    %v625 = vld [vmem:[%s593 + $0xf8] sm:$0xff]
    %s626 = scalar_lea.vmem [#allocation4], 384
    %v627 = vld [vmem:[%s626] sm:$0xff]
    %v628 = vld [vmem:[%s626 + $0x8] sm:$0xff]
    %v629 = vld [vmem:[%s626 + $0x10] sm:$0xff]
    %v630 = vld [vmem:[%s626 + $0x18] sm:$0xff]
    %v631 = vld [vmem:[%s626 + $0x20] sm:$0xff]
    %v632 = vld [vmem:[%s626 + $0x28] sm:$0xff]
    %v633 = vld [vmem:[%s626 + $0x30] sm:$0xff]
    %v634 = vld [vmem:[%s626 + $0x38] sm:$0xff]
    %v635 = vld [vmem:[%s626 + $0x40] sm:$0xff]
    %v636 = vld [vmem:[%s626 + $0x48] sm:$0xff]
    %v637 = vld [vmem:[%s626 + $0x50] sm:$0xff]
    %v638 = vld [vmem:[%s626 + $0x58] sm:$0xff]
    %v639 = vld [vmem:[%s626 + $0x60] sm:$0xff]
    %v640 = vld [vmem:[%s626 + $0x68] sm:$0xff]
    %v641 = vld [vmem:[%s626 + $0x70] sm:$0xff]
    %v642 = vld [vmem:[%s626 + $0x78] sm:$0xff]
    %v643 = vld [vmem:[%s626 + $0x80] sm:$0xff]
    %v644 = vld [vmem:[%s626 + $0x88] sm:$0xff]
    %v645 = vld [vmem:[%s626 + $0x90] sm:$0xff]
    %v646 = vld [vmem:[%s626 + $0x98] sm:$0xff]
    %v647 = vld [vmem:[%s626 + $0xa0] sm:$0xff]
    %v648 = vld [vmem:[%s626 + $0xa8] sm:$0xff]
    %v649 = vld [vmem:[%s626 + $0xb0] sm:$0xff]
    %v650 = vld [vmem:[%s626 + $0xb8] sm:$0xff]
    %v652 = vsel %vm175, %v594, 0
    %v655 = vsel %vm175, %v595, 0
    %v658 = vsel %vm175, %v596, 0
    %v661 = vsel %vm175, %v597, 0
    %v664 = vsel %vm175, %v598, 0
    %v667 = vsel %vm175, %v599, 0
    %v670 = vsel %vm175, %v600, 0
    %v673 = vsel %vm175, %v601, 0
    %v676 = vsel %vm175, %v602, 0
    %v679 = vsel %vm175, %v603, 0
    %v682 = vsel %vm175, %v604, 0
    %v685 = vsel %vm175, %v605, 0
    %v688 = vsel %vm175, %v606, 0
    %v691 = vsel %vm175, %v607, 0
    %v694 = vsel %vm175, %v608, 0
    %v697 = vsel %vm175, %v609, 0
    %v700 = vsel %vm175, %v610, 0
    %v703 = vsel %vm175, %v611, 0
    %v706 = vsel %vm175, %v612, 0
    %v709 = vsel %vm175, %v613, 0
    %v712 = vsel %vm175, %v614, 0
    %v715 = vsel %vm175, %v615, 0
    %v718 = vsel %vm175, %v616, 0
    %v721 = vsel %vm175, %v617, 0
    %v724 = vsel %vm175, %v618, 0
    %v727 = vsel %vm175, %v619, 0
    %v730 = vsel %vm175, %v620, 0
    %v733 = vsel %vm175, %v621, 0
    %v736 = vsel %vm175, %v622, 0
    %v739 = vsel %vm175, %v623, 0
    %v742 = vsel %vm175, %v624, 0
    %v745 = vsel %vm175, %v625, 0
    %747 = vmatprep.subr.mxu0 0.0
    %748 = vmatpush1.msra.mxu0 0.0
    %749 = vmatprep.subr.mxu0 0.0
    %750 = vmatpush1.msra.mxu0 0.0
    %751 = vmatprep.subr.mxu0 0.0
    %752 = vmatpush1.msra.mxu0 0.0
    %753 = vmatprep.subr.mxu0 0.0
    %754 = vmatpush1.msra.mxu0 0.0
    %755 = vmatprep.subr.mxu0 %v650
    %756 = vmatpush1.msra.mxu0 %v649
    %757 = vmatprep.subr.mxu0 %v648
    %758 = vmatpush1.msra.mxu0 %v647
    %759 = vmatprep.subr.mxu0 %v646
    %760 = vmatpush1.msra.mxu0 %v645
    %761 = vmatprep.subr.mxu0 %v644
    %762 = vmatpush1.msra.mxu0 %v643
    %763 = vmatprep.subr.mxu0 %v642
    %764 = vmatpush1.msra.mxu0 %v641
    %765 = vmatprep.subr.mxu0 %v640
    %766 = vmatpush1.msra.mxu0 %v639
    %767 = vmatprep.subr.mxu0 %v638
    %768 = vmatpush1.msra.mxu0 %v637
    %769 = vmatprep.subr.mxu0 %v636
    %770 = vmatpush1.msra.mxu0 %v635
    %771 = vmatprep.subr.mxu0 %v634
    %772 = vmatpush1.msra.mxu0 %v633
    %773 = vmatprep.subr.mxu0 %v632
    %774 = vmatpush1.msra.mxu0 %v631
    %775 = vmatprep.subr.mxu0 %v630
    %776 = vmatpush1.msra.mxu0 %v629
    %777 = vmatprep.subr.mxu0 %v628
    %778 = vmatpush1.msra.mxu0 %v627
    %779 = vmatprep.subr.mxu0 0.0
    %780 = vmatpush2.msra.mxu0 0.0
    %781 = vmatprep.subr.mxu0 0.0
    %782 = vmatpush2.msra.mxu0 0.0
    %783 = vmatprep.subr.mxu0 0.0
    %784 = vmatpush2.msra.mxu0 0.0
    %785 = vmatprep.subr.mxu0 0.0
    %786 = vmatpush2.msra.mxu0 0.0
    %787 = vmatprep.subr.mxu0 0.0
    %788 = vmatpush2.msra.mxu0 0.0
    %789 = vmatprep.subr.mxu0 0.0
    %790 = vmatpush2.msra.mxu0 0.0
    %791 = vmatprep.subr.mxu0 0.0
    %792 = vmatpush2.msra.mxu0 0.0
    %793 = vmatprep.subr.mxu0 0.0
    %794 = vmatpush2.msra.mxu0 0.0
    %795 = vmatprep.subr.mxu0 0.0
    %796 = vmatpush2.msra.mxu0 0.0
    %797 = vmatprep.subr.mxu0 0.0
    %798 = vmatpush2.msra.mxu0 0.0
    %799 = vmatprep.subr.mxu0 0.0
    %800 = vmatpush2.msra.mxu0 0.0
    %801 = vmatprep.subr.mxu0 0.0
    %802 = vmatpush2.msra.mxu0 0.0
    %803 = vmatprep.subr.mxu0 0.0
    %804 = vmatpush2.msra.mxu0 0.0
    %805 = vmatprep.subr.mxu0 0.0
    %806 = vmatpush2.msra.mxu0 0.0
    %807 = vmatprep.subr.mxu0 0.0
    %808 = vmatpush2.msra.mxu0 0.0
    %809 = vmatprep.subr.mxu0 0.0
    %810 = vmatpush2.msra.mxu0 0.0
    %811 = vmatprep.mubr.f32.mxu0 0.0
    %812 = vmatmul.mubr.f32.gmra.mxu0 %v652
    %v813 = vpop.f32.mrf.mxu0
    %v814 = vadd.f32 0.0, %v813
    %v815 = vpop.f32.mrf.mxu0
    %v816 = vadd.f32 0.0, %v815
    %817 = vmatprep.mubr.f32.mxu0 0.0
    %818 = vmatmul.mubr.f32.gmra.mxu0 %v655
    %v819 = vpop.f32.mrf.mxu0
    %v820 = vadd.f32 0.0, %v819
    %v821 = vpop.f32.mrf.mxu0
    %v822 = vadd.f32 0.0, %v821
    %823 = vmatprep.mubr.f32.mxu0 0.0
    %824 = vmatmul.mubr.f32.gmra.mxu0 %v658
    %v825 = vpop.f32.mrf.mxu0
    %v826 = vadd.f32 0.0, %v825
    %v827 = vpop.f32.mrf.mxu0
    %v828 = vadd.f32 0.0, %v827
    %829 = vmatprep.mubr.f32.mxu0 0.0
    %830 = vmatmul.mubr.f32.gmra.mxu0 %v661
    %v831 = vpop.f32.mrf.mxu0
    %v832 = vadd.f32 0.0, %v831
    %v833 = vpop.f32.mrf.mxu0
    %v834 = vadd.f32 0.0, %v833
    %835 = vmatprep.mubr.f32.mxu0 0.0
    %836 = vmatmul.mubr.f32.gmra.mxu0 %v664
    %v837 = vpop.f32.mrf.mxu0
    %v838 = vadd.f32 0.0, %v837
    %v839 = vpop.f32.mrf.mxu0
    %v840 = vadd.f32 0.0, %v839
    %841 = vmatprep.mubr.f32.mxu0 0.0
    %842 = vmatmul.mubr.f32.gmra.mxu0 %v667
    %v843 = vpop.f32.mrf.mxu0
    %v844 = vadd.f32 0.0, %v843
    %v845 = vpop.f32.mrf.mxu0
    %v846 = vadd.f32 0.0, %v845
    %847 = vmatprep.mubr.f32.mxu0 0.0
    %848 = vmatmul.mubr.f32.gmra.mxu0 %v670
    %v849 = vpop.f32.mrf.mxu0
    %v850 = vadd.f32 0.0, %v849
    %v851 = vpop.f32.mrf.mxu0
    %v852 = vadd.f32 0.0, %v851
    %853 = vmatprep.mubr.f32.mxu0 0.0
    %854 = vmatmul.mubr.f32.gmra.mxu0 %v673
    %v855 = vpop.f32.mrf.mxu0
    %v856 = vadd.f32 0.0, %v855
    %v857 = vpop.f32.mrf.mxu0
    %v858 = vadd.f32 0.0, %v857
    %859 = vmatprep.mubr.f32.mxu0 0.0
    %860 = vmatmul.mubr.f32.gmra.mxu0 %v676
    %v861 = vpop.f32.mrf.mxu0
    %v862 = vadd.f32 0.0, %v861
    %v863 = vpop.f32.mrf.mxu0
    %v864 = vadd.f32 0.0, %v863
    %865 = vmatprep.mubr.f32.mxu0 0.0
    %866 = vmatmul.mubr.f32.gmra.mxu0 %v679
    %v867 = vpop.f32.mrf.mxu0
    %v868 = vadd.f32 0.0, %v867
    %v869 = vpop.f32.mrf.mxu0
    %v870 = vadd.f32 0.0, %v869
    %871 = vmatprep.mubr.f32.mxu0 0.0
    %872 = vmatmul.mubr.f32.gmra.mxu0 %v682
    %v873 = vpop.f32.mrf.mxu0
    %v874 = vadd.f32 0.0, %v873
    %v875 = vpop.f32.mrf.mxu0
    %v876 = vadd.f32 0.0, %v875
    %877 = vmatprep.mubr.f32.mxu0 0.0
    %878 = vmatmul.mubr.f32.gmra.mxu0 %v685
    %v879 = vpop.f32.mrf.mxu0
    %v880 = vadd.f32 0.0, %v879
    %v881 = vpop.f32.mrf.mxu0
    %v882 = vadd.f32 0.0, %v881
    %883 = vmatprep.mubr.f32.mxu0 0.0
    %884 = vmatmul.mubr.f32.gmra.mxu0 %v688
    %v885 = vpop.f32.mrf.mxu0
    %v886 = vadd.f32 0.0, %v885
    %v887 = vpop.f32.mrf.mxu0
    %v888 = vadd.f32 0.0, %v887
    %889 = vmatprep.mubr.f32.mxu0 0.0
    %890 = vmatmul.mubr.f32.gmra.mxu0 %v691
    %v891 = vpop.f32.mrf.mxu0
    %v892 = vadd.f32 0.0, %v891
    %v893 = vpop.f32.mrf.mxu0
    %v894 = vadd.f32 0.0, %v893
    %895 = vmatprep.mubr.f32.mxu0 0.0
    %896 = vmatmul.mubr.f32.gmra.mxu0 %v694
    %v897 = vpop.f32.mrf.mxu0
    %v898 = vadd.f32 0.0, %v897
    %v899 = vpop.f32.mrf.mxu0
    %v900 = vadd.f32 0.0, %v899
    %901 = vmatprep.mubr.f32.mxu0 0.0
    %902 = vmatmul.mubr.f32.gmra.mxu0 %v697
    %v903 = vpop.f32.mrf.mxu0
    %v904 = vadd.f32 0.0, %v903
    %v905 = vpop.f32.mrf.mxu0
    %v906 = vadd.f32 0.0, %v905
    %907 = vmatprep.mubr.f32.mxu0 0.0
    %908 = vmatmul.mubr.f32.gmra.mxu0 %v700
    %v909 = vpop.f32.mrf.mxu0
    %v910 = vadd.f32 0.0, %v909
    %v911 = vpop.f32.mrf.mxu0
    %v912 = vadd.f32 0.0, %v911
    %913 = vmatprep.mubr.f32.mxu0 0.0
    %914 = vmatmul.mubr.f32.gmra.mxu0 %v703
    %v915 = vpop.f32.mrf.mxu0
    %v916 = vadd.f32 0.0, %v915
    %v917 = vpop.f32.mrf.mxu0
    %v918 = vadd.f32 0.0, %v917
    %919 = vmatprep.mubr.f32.mxu0 0.0
    %920 = vmatmul.mubr.f32.gmra.mxu0 %v706
    %v921 = vpop.f32.mrf.mxu0
    %v922 = vadd.f32 0.0, %v921
    %v923 = vpop.f32.mrf.mxu0
    %v924 = vadd.f32 0.0, %v923
    %925 = vmatprep.mubr.f32.mxu0 0.0
    %926 = vmatmul.mubr.f32.gmra.mxu0 %v709
    %v927 = vpop.f32.mrf.mxu0
    %v928 = vadd.f32 0.0, %v927
    %v929 = vpop.f32.mrf.mxu0
    %v930 = vadd.f32 0.0, %v929
    %931 = vmatprep.mubr.f32.mxu0 0.0
    %932 = vmatmul.mubr.f32.gmra.mxu0 %v712
    %v933 = vpop.f32.mrf.mxu0
    %v934 = vadd.f32 0.0, %v933
    %v935 = vpop.f32.mrf.mxu0
    %v936 = vadd.f32 0.0, %v935
    %937 = vmatprep.mubr.f32.mxu0 0.0
    %938 = vmatmul.mubr.f32.gmra.mxu0 %v715
    %v939 = vpop.f32.mrf.mxu0
    %v940 = vadd.f32 0.0, %v939
    %v941 = vpop.f32.mrf.mxu0
    %v942 = vadd.f32 0.0, %v941
    %943 = vmatprep.mubr.f32.mxu0 0.0
    %944 = vmatmul.mubr.f32.gmra.mxu0 %v718
    %v945 = vpop.f32.mrf.mxu0
    %v946 = vadd.f32 0.0, %v945
    %v947 = vpop.f32.mrf.mxu0
    %v948 = vadd.f32 0.0, %v947
    %949 = vmatprep.mubr.f32.mxu0 0.0
    %950 = vmatmul.mubr.f32.gmra.mxu0 %v721
    %v951 = vpop.f32.mrf.mxu0
    %v952 = vadd.f32 0.0, %v951
    %v953 = vpop.f32.mrf.mxu0
    %v954 = vadd.f32 0.0, %v953
    %955 = vmatprep.mubr.f32.mxu0 0.0
    %956 = vmatmul.mubr.f32.gmra.mxu0 %v724
    %v957 = vpop.f32.mrf.mxu0
    %v958 = vadd.f32 0.0, %v957
    %v959 = vpop.f32.mrf.mxu0
    %v960 = vadd.f32 0.0, %v959
    %961 = vmatprep.mubr.f32.mxu0 0.0
    %962 = vmatmul.mubr.f32.gmra.mxu0 %v727
    %v963 = vpop.f32.mrf.mxu0
    %v964 = vadd.f32 0.0, %v963
    %v965 = vpop.f32.mrf.mxu0
    %v966 = vadd.f32 0.0, %v965
    %967 = vmatprep.mubr.f32.mxu0 0.0
    %968 = vmatmul.mubr.f32.gmra.mxu0 %v730
    %v969 = vpop.f32.mrf.mxu0
    %v970 = vadd.f32 0.0, %v969
    %v971 = vpop.f32.mrf.mxu0
    %v972 = vadd.f32 0.0, %v971
    %973 = vmatprep.mubr.f32.mxu0 0.0
    %974 = vmatmul.mubr.f32.gmra.mxu0 %v733
    %v975 = vpop.f32.mrf.mxu0
    %v976 = vadd.f32 0.0, %v975
    %v977 = vpop.f32.mrf.mxu0
    %v978 = vadd.f32 0.0, %v977
    %979 = vmatprep.mubr.f32.mxu0 0.0
    %980 = vmatmul.mubr.f32.gmra.mxu0 %v736
    %v981 = vpop.f32.mrf.mxu0
    %v982 = vadd.f32 0.0, %v981
    %v983 = vpop.f32.mrf.mxu0
    %v984 = vadd.f32 0.0, %v983
    %985 = vmatprep.mubr.f32.mxu0 0.0
    %986 = vmatmul.mubr.f32.gmra.mxu0 %v739
    %v987 = vpop.f32.mrf.mxu0
    %v988 = vadd.f32 0.0, %v987
    %v989 = vpop.f32.mrf.mxu0
    %v990 = vadd.f32 0.0, %v989
    %991 = vmatprep.mubr.f32.mxu0 0.0
    %992 = vmatmul.mubr.f32.gmra.mxu0 %v742
    %v993 = vpop.f32.mrf.mxu0
    %v994 = vadd.f32 0.0, %v993
    %v995 = vpop.f32.mrf.mxu0
    %v996 = vadd.f32 0.0, %v995
    %997 = vmatprep.mubr.f32.mxu0 0.0
    %998 = vmatmul.mubr.f32.gmra.mxu0 %v745
    %v999 = vpop.f32.mrf.mxu0
    %v1000 = vadd.f32 0.0, %v999
    %v1001 = vpop.f32.mrf.mxu0
    %v1002 = vadd.f32 0.0, %v1001
    %1003 = vdwg.mxu0
    %v1004 = vld [vmem:[#allocation2] sm:$0xff]
    %v1005 = vld [vmem:[#allocation2 + $0x8] sm:$0xff]
    %v1006 = vld [vmem:[#allocation2 + $0x10] sm:$0xff]
    %v1007 = vld [vmem:[#allocation2 + $0x18] sm:$0xff]
    %v1008 = vld [vmem:[#allocation2 + $0x20] sm:$0xff]
    %v1009 = vld [vmem:[#allocation2 + $0x28] sm:$0xff]
    %v1010 = vld [vmem:[#allocation2 + $0x30] sm:$0xff]
    %v1011 = vld [vmem:[#allocation2 + $0x38] sm:$0xff]
    %v1012 = vld [vmem:[#allocation2 + $0x40] sm:$0xff]
    %v1013 = vld [vmem:[#allocation2 + $0x48] sm:$0xff]
    %v1014 = vld [vmem:[#allocation2 + $0x50] sm:$0xff]
    %v1015 = vld [vmem:[#allocation2 + $0x58] sm:$0xff]
    %v1016 = vld [vmem:[#allocation2 + $0x60] sm:$0xff]
    %v1017 = vld [vmem:[#allocation2 + $0x68] sm:$0xff]
    %v1018 = vld [vmem:[#allocation2 + $0x70] sm:$0xff]
    %v1019 = vld [vmem:[#allocation2 + $0x78] sm:$0xff]
    %v1020 = vld [vmem:[#allocation2 + $0x80] sm:$0xff]
    %v1021 = vld [vmem:[#allocation2 + $0x88] sm:$0xff]
    %v1022 = vld [vmem:[#allocation2 + $0x90] sm:$0xff]
    %v1023 = vld [vmem:[#allocation2 + $0x98] sm:$0xff]
    %v1024 = vld [vmem:[#allocation2 + $0xa0] sm:$0xff]
    %v1025 = vld [vmem:[#allocation2 + $0xa8] sm:$0xff]
    %v1026 = vld [vmem:[#allocation2 + $0xb0] sm:$0xff]
    %v1027 = vld [vmem:[#allocation2 + $0xb8] sm:$0xff]
    %v1028 = vld [vmem:[#allocation2 + $0xc0] sm:$0xff]
    %v1029 = vld [vmem:[#allocation2 + $0xc8] sm:$0xff]
    %v1030 = vld [vmem:[#allocation2 + $0xd0] sm:$0xff]
    %v1031 = vld [vmem:[#allocation2 + $0xd8] sm:$0xff]
    %v1032 = vld [vmem:[#allocation2 + $0xe0] sm:$0xff]
    %v1033 = vld [vmem:[#allocation2 + $0xe8] sm:$0xff]
    %v1034 = vld [vmem:[#allocation2 + $0xf0] sm:$0xff]
    %v1035 = vld [vmem:[#allocation2 + $0xf8] sm:$0xff]
    %v1036 = vld [vmem:[#allocation2 + $0x100] sm:$0xff]
    %v1037 = vld [vmem:[#allocation2 + $0x108] sm:$0xff]
    %v1038 = vld [vmem:[#allocation2 + $0x110] sm:$0xff]
    %v1039 = vld [vmem:[#allocation2 + $0x118] sm:$0xff]
    %v1040 = vld [vmem:[#allocation2 + $0x120] sm:$0xff]
    %v1041 = vld [vmem:[#allocation2 + $0x128] sm:$0xff]
    %v1042 = vld [vmem:[#allocation2 + $0x130] sm:$0xff]
    %v1043 = vld [vmem:[#allocation2 + $0x138] sm:$0xff]
    %v1044 = vld [vmem:[#allocation2 + $0x140] sm:$0xff]
    %v1045 = vld [vmem:[#allocation2 + $0x148] sm:$0xff]
    %v1046 = vld [vmem:[#allocation2 + $0x150] sm:$0xff]
    %v1047 = vld [vmem:[#allocation2 + $0x158] sm:$0xff]
    %v1048 = vld [vmem:[#allocation2 + $0x160] sm:$0xff]
    %v1049 = vld [vmem:[#allocation2 + $0x168] sm:$0xff]
    %v1050 = vld [vmem:[#allocation2 + $0x170] sm:$0xff]
    %v1051 = vld [vmem:[#allocation2 + $0x178] sm:$0xff]
    %v1052 = vld [vmem:[#allocation2 + $0x180] sm:$0xff]
    %v1053 = vld [vmem:[#allocation2 + $0x188] sm:$0xff]
    %v1054 = vld [vmem:[#allocation2 + $0x190] sm:$0xff]
    %v1055 = vld [vmem:[#allocation2 + $0x198] sm:$0xff]
    %v1056 = vld [vmem:[#allocation2 + $0x1a0] sm:$0xff]
    %v1057 = vld [vmem:[#allocation2 + $0x1a8] sm:$0xff]
    %v1058 = vld [vmem:[#allocation2 + $0x1b0] sm:$0xff]
    %v1059 = vld [vmem:[#allocation2 + $0x1b8] sm:$0xff]
    %v1060 = vld [vmem:[#allocation2 + $0x1c0] sm:$0xff]
    %v1061 = vld [vmem:[#allocation2 + $0x1c8] sm:$0xff]
    %v1062 = vld [vmem:[#allocation2 + $0x1d0] sm:$0xff]
    %v1063 = vld [vmem:[#allocation2 + $0x1d8] sm:$0xff]
    %v1064 = vld [vmem:[#allocation2 + $0x1e0] sm:$0xff]
    %v1065 = vld [vmem:[#allocation2 + $0x1e8] sm:$0xff]
    %v1066 = vld [vmem:[#allocation2 + $0x1f0] sm:$0xff]
    %v1067 = vld [vmem:[#allocation2 + $0x1f8] sm:$0xff]
    %v1068 = vadd.f32 %v1004, %v814
    %v1069 = vadd.f32 %v1005, %v816
    %v1070 = vadd.f32 %v1006, %v820
    %v1071 = vadd.f32 %v1007, %v822
    %v1072 = vadd.f32 %v1008, %v826
    %v1073 = vadd.f32 %v1009, %v828
    %v1074 = vadd.f32 %v1010, %v832
    %v1075 = vadd.f32 %v1011, %v834
    %v1076 = vadd.f32 %v1012, %v838
    %v1077 = vadd.f32 %v1013, %v840
    %v1078 = vadd.f32 %v1014, %v844
    %v1079 = vadd.f32 %v1015, %v846
    %v1080 = vadd.f32 %v1016, %v850
    %v1081 = vadd.f32 %v1017, %v852
    %v1082 = vadd.f32 %v1018, %v856
    %v1083 = vadd.f32 %v1019, %v858
    %v1084 = vadd.f32 %v1020, %v862
    %v1085 = vadd.f32 %v1021, %v864
    %v1086 = vadd.f32 %v1022, %v868
    %v1087 = vadd.f32 %v1023, %v870
    %v1088 = vadd.f32 %v1024, %v874
    %v1089 = vadd.f32 %v1025, %v876
    %v1090 = vadd.f32 %v1026, %v880
    %v1091 = vadd.f32 %v1027, %v882
    %v1092 = vadd.f32 %v1028, %v886
    %v1093 = vadd.f32 %v1029, %v888
    %v1094 = vadd.f32 %v1030, %v892
    %v1095 = vadd.f32 %v1031, %v894
    %v1096 = vadd.f32 %v1032, %v898
    %v1097 = vadd.f32 %v1033, %v900
    %v1098 = vadd.f32 %v1034, %v904
    %v1099 = vadd.f32 %v1035, %v906
    %v1100 = vadd.f32 %v1036, %v910
    %v1101 = vadd.f32 %v1037, %v912
    %v1102 = vadd.f32 %v1038, %v916
    %v1103 = vadd.f32 %v1039, %v918
    %v1104 = vadd.f32 %v1040, %v922
    %v1105 = vadd.f32 %v1041, %v924
    %v1106 = vadd.f32 %v1042, %v928
    %v1107 = vadd.f32 %v1043, %v930
    %v1108 = vadd.f32 %v1044, %v934
    %v1109 = vadd.f32 %v1045, %v936
    %v1110 = vadd.f32 %v1046, %v940
    %v1111 = vadd.f32 %v1047, %v942
    %v1112 = vadd.f32 %v1048, %v946
    %v1113 = vadd.f32 %v1049, %v948
    %v1114 = vadd.f32 %v1050, %v952
    %v1115 = vadd.f32 %v1051, %v954
    %v1116 = vadd.f32 %v1052, %v958
    %v1117 = vadd.f32 %v1053, %v960
    %v1118 = vadd.f32 %v1054, %v964
    %v1119 = vadd.f32 %v1055, %v966
    %v1120 = vadd.f32 %v1056, %v970
    %v1121 = vadd.f32 %v1057, %v972
    %v1122 = vadd.f32 %v1058, %v976
    %v1123 = vadd.f32 %v1059, %v978
    %v1124 = vadd.f32 %v1060, %v982
    %v1125 = vadd.f32 %v1061, %v984
    %v1126 = vadd.f32 %v1062, %v988
    %v1127 = vadd.f32 %v1063, %v990
    %v1128 = vadd.f32 %v1064, %v994
    %v1129 = vadd.f32 %v1065, %v996
    %v1130 = vadd.f32 %v1066, %v1000
    %v1131 = vadd.f32 %v1067, %v1002
    %1132 = vst [vmem:[#allocation2] sm:$0xff] %v1068
    %1133 = vst [vmem:[#allocation2 + $0x8] sm:$0xff] %v1069
    %1134 = vst [vmem:[#allocation2 + $0x10] sm:$0xff] %v1070
    %1135 = vst [vmem:[#allocation2 + $0x18] sm:$0xff] %v1071
    %1136 = vst [vmem:[#allocation2 + $0x20] sm:$0xff] %v1072
    %1137 = vst [vmem:[#allocation2 + $0x28] sm:$0xff] %v1073
    %1138 = vst [vmem:[#allocation2 + $0x30] sm:$0xff] %v1074
    %1139 = vst [vmem:[#allocation2 + $0x38] sm:$0xff] %v1075
    %1140 = vst [vmem:[#allocation2 + $0x40] sm:$0xff] %v1076
    %1141 = vst [vmem:[#allocation2 + $0x48] sm:$0xff] %v1077
    %1142 = vst [vmem:[#allocation2 + $0x50] sm:$0xff] %v1078
    %1143 = vst [vmem:[#allocation2 + $0x58] sm:$0xff] %v1079
    %1144 = vst [vmem:[#allocation2 + $0x60] sm:$0xff] %v1080
    %1145 = vst [vmem:[#allocation2 + $0x68] sm:$0xff] %v1081
    %1146 = vst [vmem:[#allocation2 + $0x70] sm:$0xff] %v1082
    %1147 = vst [vmem:[#allocation2 + $0x78] sm:$0xff] %v1083
    %1148 = vst [vmem:[#allocation2 + $0x80] sm:$0xff] %v1084
    %1149 = vst [vmem:[#allocation2 + $0x88] sm:$0xff] %v1085
    %1150 = vst [vmem:[#allocation2 + $0x90] sm:$0xff] %v1086
    %1151 = vst [vmem:[#allocation2 + $0x98] sm:$0xff] %v1087
    %1152 = vst [vmem:[#allocation2 + $0xa0] sm:$0xff] %v1088
    %1153 = vst [vmem:[#allocation2 + $0xa8] sm:$0xff] %v1089
    %1154 = vst [vmem:[#allocation2 + $0xb0] sm:$0xff] %v1090
    %1155 = vst [vmem:[#allocation2 + $0xb8] sm:$0xff] %v1091
    %1156 = vst [vmem:[#allocation2 + $0xc0] sm:$0xff] %v1092
    %1157 = vst [vmem:[#allocation2 + $0xc8] sm:$0xff] %v1093
    %1158 = vst [vmem:[#allocation2 + $0xd0] sm:$0xff] %v1094
    %1159 = vst [vmem:[#allocation2 + $0xd8] sm:$0xff] %v1095
    %1160 = vst [vmem:[#allocation2 + $0xe0] sm:$0xff] %v1096
    %1161 = vst [vmem:[#allocation2 + $0xe8] sm:$0xff] %v1097
    %1162 = vst [vmem:[#allocation2 + $0xf0] sm:$0xff] %v1098
    %1163 = vst [vmem:[#allocation2 + $0xf8] sm:$0xff] %v1099
    %1164 = vst [vmem:[#allocation2 + $0x100] sm:$0xff] %v1100
    %1165 = vst [vmem:[#allocation2 + $0x108] sm:$0xff] %v1101
    %1166 = vst [vmem:[#allocation2 + $0x110] sm:$0xff] %v1102
    %1167 = vst [vmem:[#allocation2 + $0x118] sm:$0xff] %v1103
    %1168 = vst [vmem:[#allocation2 + $0x120] sm:$0xff] %v1104
    %1169 = vst [vmem:[#allocation2 + $0x128] sm:$0xff] %v1105
    %1170 = vst [vmem:[#allocation2 + $0x130] sm:$0xff] %v1106
    %1171 = vst [vmem:[#allocation2 + $0x138] sm:$0xff] %v1107
    %1172 = vst [vmem:[#allocation2 + $0x140] sm:$0xff] %v1108
    %1173 = vst [vmem:[#allocation2 + $0x148] sm:$0xff] %v1109
    %1174 = vst [vmem:[#allocation2 + $0x150] sm:$0xff] %v1110
    %1175 = vst [vmem:[#allocation2 + $0x158] sm:$0xff] %v1111
    %1176 = vst [vmem:[#allocation2 + $0x160] sm:$0xff] %v1112
    %1177 = vst [vmem:[#allocation2 + $0x168] sm:$0xff] %v1113
    %1178 = vst [vmem:[#allocation2 + $0x170] sm:$0xff] %v1114
    %1179 = vst [vmem:[#allocation2 + $0x178] sm:$0xff] %v1115
    %1180 = vst [vmem:[#allocation2 + $0x180] sm:$0xff] %v1116
    %1181 = vst [vmem:[#allocation2 + $0x188] sm:$0xff] %v1117
    %1182 = vst [vmem:[#allocation2 + $0x190] sm:$0xff] %v1118
    %1183 = vst [vmem:[#allocation2 + $0x198] sm:$0xff] %v1119
    %1184 = vst [vmem:[#allocation2 + $0x1a0] sm:$0xff] %v1120
    %1185 = vst [vmem:[#allocation2 + $0x1a8] sm:$0xff] %v1121
    %1186 = vst [vmem:[#allocation2 + $0x1b0] sm:$0xff] %v1122
    %1187 = vst [vmem:[#allocation2 + $0x1b8] sm:$0xff] %v1123
    %1188 = vst [vmem:[#allocation2 + $0x1c0] sm:$0xff] %v1124
    %1189 = vst [vmem:[#allocation2 + $0x1c8] sm:$0xff] %v1125
    %1190 = vst [vmem:[#allocation2 + $0x1d0] sm:$0xff] %v1126
    %1191 = vst [vmem:[#allocation2 + $0x1d8] sm:$0xff] %v1127
    %1192 = vst [vmem:[#allocation2 + $0x1e0] sm:$0xff] %v1128
    %1193 = vst [vmem:[#allocation2 + $0x1e8] sm:$0xff] %v1129
    %1194 = vst [vmem:[#allocation2 + $0x1f0] sm:$0xff] %v1130
    %1195 = vst [vmem:[#allocation2 + $0x1f8] sm:$0xff] %v1131
    %s1196 = scalar_lea.vmem %s0, 16
    %v1197 = vld [vmem:[%s1196] sm:$0xff]
    %v1198 = vld [vmem:[%s1196 + $0x8] sm:$0xff]
    %v1199 = vld [vmem:[%s1196 + $0x10] sm:$0xff]
    %v1200 = vld [vmem:[%s1196 + $0x18] sm:$0xff]
    %v1201 = vld [vmem:[%s1196 + $0x20] sm:$0xff]
    %v1202 = vld [vmem:[%s1196 + $0x28] sm:$0xff]
    %v1203 = vld [vmem:[%s1196 + $0x30] sm:$0xff]
    %v1204 = vld [vmem:[%s1196 + $0x38] sm:$0xff]
    %v1205 = vld [vmem:[%s1196 + $0x40] sm:$0xff]
    %v1206 = vld [vmem:[%s1196 + $0x48] sm:$0xff]
    %v1207 = vld [vmem:[%s1196 + $0x50] sm:$0xff]
    %v1208 = vld [vmem:[%s1196 + $0x58] sm:$0xff]
    %v1209 = vld [vmem:[%s1196 + $0x60] sm:$0xff]
    %v1210 = vld [vmem:[%s1196 + $0x68] sm:$0xff]
    %v1211 = vld [vmem:[%s1196 + $0x70] sm:$0xff]
    %v1212 = vld [vmem:[%s1196 + $0x78] sm:$0xff]
    %v1213 = vld [vmem:[%s1196 + $0x80] sm:$0xff]
    %v1214 = vld [vmem:[%s1196 + $0x88] sm:$0xff]
    %v1215 = vld [vmem:[%s1196 + $0x90] sm:$0xff]
    %v1216 = vld [vmem:[%s1196 + $0x98] sm:$0xff]
    %v1217 = vld [vmem:[%s1196 + $0xa0] sm:$0xff]
    %v1218 = vld [vmem:[%s1196 + $0xa8] sm:$0xff]
    %v1219 = vld [vmem:[%s1196 + $0xb0] sm:$0xff]
    %v1220 = vld [vmem:[%s1196 + $0xb8] sm:$0xff]
    %v1221 = vld [vmem:[%s1196 + $0xc0] sm:$0xff]
    %v1222 = vld [vmem:[%s1196 + $0xc8] sm:$0xff]
    %v1223 = vld [vmem:[%s1196 + $0xd0] sm:$0xff]
    %v1224 = vld [vmem:[%s1196 + $0xd8] sm:$0xff]
    %v1225 = vld [vmem:[%s1196 + $0xe0] sm:$0xff]
    %v1226 = vld [vmem:[%s1196 + $0xe8] sm:$0xff]
    %v1227 = vld [vmem:[%s1196 + $0xf0] sm:$0xff]
    %v1228 = vld [vmem:[%s1196 + $0xf8] sm:$0xff]
    %s1229 = scalar_lea.vmem [#allocation4], 768
    %v1230 = vld [vmem:[%s1229] sm:$0xff]
    %v1231 = vld [vmem:[%s1229 + $0x8] sm:$0xff]
    %v1232 = vld [vmem:[%s1229 + $0x10] sm:$0xff]
    %v1233 = vld [vmem:[%s1229 + $0x18] sm:$0xff]
    %v1234 = vld [vmem:[%s1229 + $0x20] sm:$0xff]
    %v1235 = vld [vmem:[%s1229 + $0x28] sm:$0xff]
    %v1236 = vld [vmem:[%s1229 + $0x30] sm:$0xff]
    %v1237 = vld [vmem:[%s1229 + $0x38] sm:$0xff]
    %v1238 = vld [vmem:[%s1229 + $0x40] sm:$0xff]
    %v1239 = vld [vmem:[%s1229 + $0x48] sm:$0xff]
    %v1240 = vld [vmem:[%s1229 + $0x50] sm:$0xff]
    %v1241 = vld [vmem:[%s1229 + $0x58] sm:$0xff]
    %v1242 = vld [vmem:[%s1229 + $0x60] sm:$0xff]
    %v1243 = vld [vmem:[%s1229 + $0x68] sm:$0xff]
    %v1244 = vld [vmem:[%s1229 + $0x70] sm:$0xff]
    %v1245 = vld [vmem:[%s1229 + $0x78] sm:$0xff]
    %v1246 = vld [vmem:[%s1229 + $0x80] sm:$0xff]
    %v1247 = vld [vmem:[%s1229 + $0x88] sm:$0xff]
    %v1248 = vld [vmem:[%s1229 + $0x90] sm:$0xff]
    %v1249 = vld [vmem:[%s1229 + $0x98] sm:$0xff]
    %v1250 = vld [vmem:[%s1229 + $0xa0] sm:$0xff]
    %v1251 = vld [vmem:[%s1229 + $0xa8] sm:$0xff]
    %v1252 = vld [vmem:[%s1229 + $0xb0] sm:$0xff]
    %v1253 = vld [vmem:[%s1229 + $0xb8] sm:$0xff]
    %v1255 = vsel %vm175, %v1197, 0
    %v1258 = vsel %vm175, %v1198, 0
    %v1261 = vsel %vm175, %v1199, 0
    %v1264 = vsel %vm175, %v1200, 0
    %v1267 = vsel %vm175, %v1201, 0
    %v1270 = vsel %vm175, %v1202, 0
    %v1273 = vsel %vm175, %v1203, 0
    %v1276 = vsel %vm175, %v1204, 0
    %v1279 = vsel %vm175, %v1205, 0
    %v1282 = vsel %vm175, %v1206, 0
    %v1285 = vsel %vm175, %v1207, 0
    %v1288 = vsel %vm175, %v1208, 0
    %v1291 = vsel %vm175, %v1209, 0
    %v1294 = vsel %vm175, %v1210, 0
    %v1297 = vsel %vm175, %v1211, 0
    %v1300 = vsel %vm175, %v1212, 0
    %v1303 = vsel %vm175, %v1213, 0
    %v1306 = vsel %vm175, %v1214, 0
    %v1309 = vsel %vm175, %v1215, 0
    %v1312 = vsel %vm175, %v1216, 0
    %v1315 = vsel %vm175, %v1217, 0
    %v1318 = vsel %vm175, %v1218, 0
    %v1321 = vsel %vm175, %v1219, 0
    %v1324 = vsel %vm175, %v1220, 0
    %v1327 = vsel %vm175, %v1221, 0
    %v1330 = vsel %vm175, %v1222, 0
    %v1333 = vsel %vm175, %v1223, 0
    %v1336 = vsel %vm175, %v1224, 0
    %v1339 = vsel %vm175, %v1225, 0
    %v1342 = vsel %vm175, %v1226, 0
    %v1345 = vsel %vm175, %v1227, 0
    %v1348 = vsel %vm175, %v1228, 0
    %1350 = vmatprep.subr.mxu0 0.0
    %1351 = vmatpush1.msra.mxu0 0.0
    %1352 = vmatprep.subr.mxu0 0.0
    %1353 = vmatpush1.msra.mxu0 0.0
    %1354 = vmatprep.subr.mxu0 0.0
    %1355 = vmatpush1.msra.mxu0 0.0
    %1356 = vmatprep.subr.mxu0 0.0
    %1357 = vmatpush1.msra.mxu0 0.0
    %1358 = vmatprep.subr.mxu0 %v1253
    %1359 = vmatpush1.msra.mxu0 %v1252
    %1360 = vmatprep.subr.mxu0 %v1251
    %1361 = vmatpush1.msra.mxu0 %v1250
    %1362 = vmatprep.subr.mxu0 %v1249
    %1363 = vmatpush1.msra.mxu0 %v1248
    %1364 = vmatprep.subr.mxu0 %v1247
    %1365 = vmatpush1.msra.mxu0 %v1246
    %1366 = vmatprep.subr.mxu0 %v1245
    %1367 = vmatpush1.msra.mxu0 %v1244
    %1368 = vmatprep.subr.mxu0 %v1243
    %1369 = vmatpush1.msra.mxu0 %v1242
    %1370 = vmatprep.subr.mxu0 %v1241
    %1371 = vmatpush1.msra.mxu0 %v1240
    %1372 = vmatprep.subr.mxu0 %v1239
    %1373 = vmatpush1.msra.mxu0 %v1238
    %1374 = vmatprep.subr.mxu0 %v1237
    %1375 = vmatpush1.msra.mxu0 %v1236
    %1376 = vmatprep.subr.mxu0 %v1235
    %1377 = vmatpush1.msra.mxu0 %v1234
    %1378 = vmatprep.subr.mxu0 %v1233
    %1379 = vmatpush1.msra.mxu0 %v1232
    %1380 = vmatprep.subr.mxu0 %v1231
    %1381 = vmatpush1.msra.mxu0 %v1230
    %1382 = vmatprep.subr.mxu0 0.0
    %1383 = vmatpush2.msra.mxu0 0.0
    %1384 = vmatprep.subr.mxu0 0.0
    %1385 = vmatpush2.msra.mxu0 0.0
    %1386 = vmatprep.subr.mxu0 0.0
    %1387 = vmatpush2.msra.mxu0 0.0
    %1388 = vmatprep.subr.mxu0 0.0
    %1389 = vmatpush2.msra.mxu0 0.0
    %1390 = vmatprep.subr.mxu0 0.0
    %1391 = vmatpush2.msra.mxu0 0.0
    %1392 = vmatprep.subr.mxu0 0.0
    %1393 = vmatpush2.msra.mxu0 0.0
    %1394 = vmatprep.subr.mxu0 0.0
    %1395 = vmatpush2.msra.mxu0 0.0
    %1396 = vmatprep.subr.mxu0 0.0
    %1397 = vmatpush2.msra.mxu0 0.0
    %1398 = vmatprep.subr.mxu0 0.0
    %1399 = vmatpush2.msra.mxu0 0.0
    %1400 = vmatprep.subr.mxu0 0.0
    %1401 = vmatpush2.msra.mxu0 0.0
    %1402 = vmatprep.subr.mxu0 0.0
    %1403 = vmatpush2.msra.mxu0 0.0
    %1404 = vmatprep.subr.mxu0 0.0
    %1405 = vmatpush2.msra.mxu0 0.0
    %1406 = vmatprep.subr.mxu0 0.0
    %1407 = vmatpush2.msra.mxu0 0.0
    %1408 = vmatprep.subr.mxu0 0.0
    %1409 = vmatpush2.msra.mxu0 0.0
    %1410 = vmatprep.subr.mxu0 0.0
    %1411 = vmatpush2.msra.mxu0 0.0
    %1412 = vmatprep.subr.mxu0 0.0
    %1413 = vmatpush2.msra.mxu0 0.0
    %1414 = vmatprep.mubr.f32.mxu0 0.0
    %1415 = vmatmul.mubr.f32.gmra.mxu0 %v1255
    %v1416 = vpop.f32.mrf.mxu0
    %v1417 = vadd.f32 0.0, %v1416
    %v1418 = vpop.f32.mrf.mxu0
    %v1419 = vadd.f32 0.0, %v1418
    %1420 = vmatprep.mubr.f32.mxu0 0.0
    %1421 = vmatmul.mubr.f32.gmra.mxu0 %v1258
    %v1422 = vpop.f32.mrf.mxu0
    %v1423 = vadd.f32 0.0, %v1422
    %v1424 = vpop.f32.mrf.mxu0
    %v1425 = vadd.f32 0.0, %v1424
    %1426 = vmatprep.mubr.f32.mxu0 0.0
    %1427 = vmatmul.mubr.f32.gmra.mxu0 %v1261
    %v1428 = vpop.f32.mrf.mxu0
    %v1429 = vadd.f32 0.0, %v1428
    %v1430 = vpop.f32.mrf.mxu0
    %v1431 = vadd.f32 0.0, %v1430
    %1432 = vmatprep.mubr.f32.mxu0 0.0
    %1433 = vmatmul.mubr.f32.gmra.mxu0 %v1264
    %v1434 = vpop.f32.mrf.mxu0
    %v1435 = vadd.f32 0.0, %v1434
    %v1436 = vpop.f32.mrf.mxu0
    %v1437 = vadd.f32 0.0, %v1436
    %1438 = vmatprep.mubr.f32.mxu0 0.0
    %1439 = vmatmul.mubr.f32.gmra.mxu0 %v1267
    %v1440 = vpop.f32.mrf.mxu0
    %v1441 = vadd.f32 0.0, %v1440
    %v1442 = vpop.f32.mrf.mxu0
    %v1443 = vadd.f32 0.0, %v1442
    %1444 = vmatprep.mubr.f32.mxu0 0.0
    %1445 = vmatmul.mubr.f32.gmra.mxu0 %v1270
    %v1446 = vpop.f32.mrf.mxu0
    %v1447 = vadd.f32 0.0, %v1446
    %v1448 = vpop.f32.mrf.mxu0
    %v1449 = vadd.f32 0.0, %v1448
    %1450 = vmatprep.mubr.f32.mxu0 0.0
    %1451 = vmatmul.mubr.f32.gmra.mxu0 %v1273
    %v1452 = vpop.f32.mrf.mxu0
    %v1453 = vadd.f32 0.0, %v1452
    %v1454 = vpop.f32.mrf.mxu0
    %v1455 = vadd.f32 0.0, %v1454
    %1456 = vmatprep.mubr.f32.mxu0 0.0
    %1457 = vmatmul.mubr.f32.gmra.mxu0 %v1276
    %v1458 = vpop.f32.mrf.mxu0
    %v1459 = vadd.f32 0.0, %v1458
    %v1460 = vpop.f32.mrf.mxu0
    %v1461 = vadd.f32 0.0, %v1460
    %1462 = vmatprep.mubr.f32.mxu0 0.0
    %1463 = vmatmul.mubr.f32.gmra.mxu0 %v1279
    %v1464 = vpop.f32.mrf.mxu0
    %v1465 = vadd.f32 0.0, %v1464
    %v1466 = vpop.f32.mrf.mxu0
    %v1467 = vadd.f32 0.0, %v1466
    %1468 = vmatprep.mubr.f32.mxu0 0.0
    %1469 = vmatmul.mubr.f32.gmra.mxu0 %v1282
    %v1470 = vpop.f32.mrf.mxu0
    %v1471 = vadd.f32 0.0, %v1470
    %v1472 = vpop.f32.mrf.mxu0
    %v1473 = vadd.f32 0.0, %v1472
    %1474 = vmatprep.mubr.f32.mxu0 0.0
    %1475 = vmatmul.mubr.f32.gmra.mxu0 %v1285
    %v1476 = vpop.f32.mrf.mxu0
    %v1477 = vadd.f32 0.0, %v1476
    %v1478 = vpop.f32.mrf.mxu0
    %v1479 = vadd.f32 0.0, %v1478
    %1480 = vmatprep.mubr.f32.mxu0 0.0
    %1481 = vmatmul.mubr.f32.gmra.mxu0 %v1288
    %v1482 = vpop.f32.mrf.mxu0
    %v1483 = vadd.f32 0.0, %v1482
    %v1484 = vpop.f32.mrf.mxu0
    %v1485 = vadd.f32 0.0, %v1484
    %1486 = vmatprep.mubr.f32.mxu0 0.0
    %1487 = vmatmul.mubr.f32.gmra.mxu0 %v1291
    %v1488 = vpop.f32.mrf.mxu0
    %v1489 = vadd.f32 0.0, %v1488
    %v1490 = vpop.f32.mrf.mxu0
    %v1491 = vadd.f32 0.0, %v1490
    %1492 = vmatprep.mubr.f32.mxu0 0.0
    %1493 = vmatmul.mubr.f32.gmra.mxu0 %v1294
    %v1494 = vpop.f32.mrf.mxu0
    %v1495 = vadd.f32 0.0, %v1494
    %v1496 = vpop.f32.mrf.mxu0
    %v1497 = vadd.f32 0.0, %v1496
    %1498 = vmatprep.mubr.f32.mxu0 0.0
    %1499 = vmatmul.mubr.f32.gmra.mxu0 %v1297
    %v1500 = vpop.f32.mrf.mxu0
    %v1501 = vadd.f32 0.0, %v1500
    %v1502 = vpop.f32.mrf.mxu0
    %v1503 = vadd.f32 0.0, %v1502
    %1504 = vmatprep.mubr.f32.mxu0 0.0
    %1505 = vmatmul.mubr.f32.gmra.mxu0 %v1300
    %v1506 = vpop.f32.mrf.mxu0
    %v1507 = vadd.f32 0.0, %v1506
    %v1508 = vpop.f32.mrf.mxu0
    %v1509 = vadd.f32 0.0, %v1508
    %1510 = vmatprep.mubr.f32.mxu0 0.0
    %1511 = vmatmul.mubr.f32.gmra.mxu0 %v1303
    %v1512 = vpop.f32.mrf.mxu0
    %v1513 = vadd.f32 0.0, %v1512
    %v1514 = vpop.f32.mrf.mxu0
    %v1515 = vadd.f32 0.0, %v1514
    %1516 = vmatprep.mubr.f32.mxu0 0.0
    %1517 = vmatmul.mubr.f32.gmra.mxu0 %v1306
    %v1518 = vpop.f32.mrf.mxu0
    %v1519 = vadd.f32 0.0, %v1518
    %v1520 = vpop.f32.mrf.mxu0
    %v1521 = vadd.f32 0.0, %v1520
    %1522 = vmatprep.mubr.f32.mxu0 0.0
    %1523 = vmatmul.mubr.f32.gmra.mxu0 %v1309
    %v1524 = vpop.f32.mrf.mxu0
    %v1525 = vadd.f32 0.0, %v1524
    %v1526 = vpop.f32.mrf.mxu0
    %v1527 = vadd.f32 0.0, %v1526
    %1528 = vmatprep.mubr.f32.mxu0 0.0
    %1529 = vmatmul.mubr.f32.gmra.mxu0 %v1312
    %v1530 = vpop.f32.mrf.mxu0
    %v1531 = vadd.f32 0.0, %v1530
    %v1532 = vpop.f32.mrf.mxu0
    %v1533 = vadd.f32 0.0, %v1532
    %1534 = vmatprep.mubr.f32.mxu0 0.0
    %1535 = vmatmul.mubr.f32.gmra.mxu0 %v1315
    %v1536 = vpop.f32.mrf.mxu0
    %v1537 = vadd.f32 0.0, %v1536
    %v1538 = vpop.f32.mrf.mxu0
    %v1539 = vadd.f32 0.0, %v1538
    %1540 = vmatprep.mubr.f32.mxu0 0.0
    %1541 = vmatmul.mubr.f32.gmra.mxu0 %v1318
    %v1542 = vpop.f32.mrf.mxu0
    %v1543 = vadd.f32 0.0, %v1542
    %v1544 = vpop.f32.mrf.mxu0
    %v1545 = vadd.f32 0.0, %v1544
    %1546 = vmatprep.mubr.f32.mxu0 0.0
    %1547 = vmatmul.mubr.f32.gmra.mxu0 %v1321
    %v1548 = vpop.f32.mrf.mxu0
    %v1549 = vadd.f32 0.0, %v1548
    %v1550 = vpop.f32.mrf.mxu0
    %v1551 = vadd.f32 0.0, %v1550
    %1552 = vmatprep.mubr.f32.mxu0 0.0
    %1553 = vmatmul.mubr.f32.gmra.mxu0 %v1324
    %v1554 = vpop.f32.mrf.mxu0
    %v1555 = vadd.f32 0.0, %v1554
    %v1556 = vpop.f32.mrf.mxu0
    %v1557 = vadd.f32 0.0, %v1556
    %1558 = vmatprep.mubr.f32.mxu0 0.0
    %1559 = vmatmul.mubr.f32.gmra.mxu0 %v1327
    %v1560 = vpop.f32.mrf.mxu0
    %v1561 = vadd.f32 0.0, %v1560
    %v1562 = vpop.f32.mrf.mxu0
    %v1563 = vadd.f32 0.0, %v1562
    %1564 = vmatprep.mubr.f32.mxu0 0.0
    %1565 = vmatmul.mubr.f32.gmra.mxu0 %v1330
    %v1566 = vpop.f32.mrf.mxu0
    %v1567 = vadd.f32 0.0, %v1566
    %v1568 = vpop.f32.mrf.mxu0
    %v1569 = vadd.f32 0.0, %v1568
    %1570 = vmatprep.mubr.f32.mxu0 0.0
    %1571 = vmatmul.mubr.f32.gmra.mxu0 %v1333
    %v1572 = vpop.f32.mrf.mxu0
    %v1573 = vadd.f32 0.0, %v1572
    %v1574 = vpop.f32.mrf.mxu0
    %v1575 = vadd.f32 0.0, %v1574
    %1576 = vmatprep.mubr.f32.mxu0 0.0
    %1577 = vmatmul.mubr.f32.gmra.mxu0 %v1336
    %v1578 = vpop.f32.mrf.mxu0
    %v1579 = vadd.f32 0.0, %v1578
    %v1580 = vpop.f32.mrf.mxu0
    %v1581 = vadd.f32 0.0, %v1580
    %1582 = vmatprep.mubr.f32.mxu0 0.0
    %1583 = vmatmul.mubr.f32.gmra.mxu0 %v1339
    %v1584 = vpop.f32.mrf.mxu0
    %v1585 = vadd.f32 0.0, %v1584
    %v1586 = vpop.f32.mrf.mxu0
    %v1587 = vadd.f32 0.0, %v1586
    %1588 = vmatprep.mubr.f32.mxu0 0.0
    %1589 = vmatmul.mubr.f32.gmra.mxu0 %v1342
    %v1590 = vpop.f32.mrf.mxu0
    %v1591 = vadd.f32 0.0, %v1590
    %v1592 = vpop.f32.mrf.mxu0
    %v1593 = vadd.f32 0.0, %v1592
    %1594 = vmatprep.mubr.f32.mxu0 0.0
    %1595 = vmatmul.mubr.f32.gmra.mxu0 %v1345
    %v1596 = vpop.f32.mrf.mxu0
    %v1597 = vadd.f32 0.0, %v1596
    %v1598 = vpop.f32.mrf.mxu0
    %v1599 = vadd.f32 0.0, %v1598
    %1600 = vmatprep.mubr.f32.mxu0 0.0
    %1601 = vmatmul.mubr.f32.gmra.mxu0 %v1348
    %v1602 = vpop.f32.mrf.mxu0
    %v1603 = vadd.f32 0.0, %v1602
    %v1604 = vpop.f32.mrf.mxu0
    %v1605 = vadd.f32 0.0, %v1604
    %1606 = vdwg.mxu0
    %v1607 = vld [vmem:[#allocation2] sm:$0xff]
    %v1608 = vld [vmem:[#allocation2 + $0x8] sm:$0xff]
    %v1609 = vld [vmem:[#allocation2 + $0x10] sm:$0xff]
    %v1610 = vld [vmem:[#allocation2 + $0x18] sm:$0xff]
    %v1611 = vld [vmem:[#allocation2 + $0x20] sm:$0xff]
    %v1612 = vld [vmem:[#allocation2 + $0x28] sm:$0xff]
    %v1613 = vld [vmem:[#allocation2 + $0x30] sm:$0xff]
    %v1614 = vld [vmem:[#allocation2 + $0x38] sm:$0xff]
    %v1615 = vld [vmem:[#allocation2 + $0x40] sm:$0xff]
    %v1616 = vld [vmem:[#allocation2 + $0x48] sm:$0xff]
    %v1617 = vld [vmem:[#allocation2 + $0x50] sm:$0xff]
    %v1618 = vld [vmem:[#allocation2 + $0x58] sm:$0xff]
    %v1619 = vld [vmem:[#allocation2 + $0x60] sm:$0xff]
    %v1620 = vld [vmem:[#allocation2 + $0x68] sm:$0xff]
    %v1621 = vld [vmem:[#allocation2 + $0x70] sm:$0xff]
    %v1622 = vld [vmem:[#allocation2 + $0x78] sm:$0xff]
    %v1623 = vld [vmem:[#allocation2 + $0x80] sm:$0xff]
    %v1624 = vld [vmem:[#allocation2 + $0x88] sm:$0xff]
    %v1625 = vld [vmem:[#allocation2 + $0x90] sm:$0xff]
    %v1626 = vld [vmem:[#allocation2 + $0x98] sm:$0xff]
    %v1627 = vld [vmem:[#allocation2 + $0xa0] sm:$0xff]
    %v1628 = vld [vmem:[#allocation2 + $0xa8] sm:$0xff]
    %v1629 = vld [vmem:[#allocation2 + $0xb0] sm:$0xff]
    %v1630 = vld [vmem:[#allocation2 + $0xb8] sm:$0xff]
    %v1631 = vld [vmem:[#allocation2 + $0xc0] sm:$0xff]
    %v1632 = vld [vmem:[#allocation2 + $0xc8] sm:$0xff]
    %v1633 = vld [vmem:[#allocation2 + $0xd0] sm:$0xff]
    %v1634 = vld [vmem:[#allocation2 + $0xd8] sm:$0xff]
    %v1635 = vld [vmem:[#allocation2 + $0xe0] sm:$0xff]
    %v1636 = vld [vmem:[#allocation2 + $0xe8] sm:$0xff]
    %v1637 = vld [vmem:[#allocation2 + $0xf0] sm:$0xff]
    %v1638 = vld [vmem:[#allocation2 + $0xf8] sm:$0xff]
    %v1639 = vld [vmem:[#allocation2 + $0x100] sm:$0xff]
    %v1640 = vld [vmem:[#allocation2 + $0x108] sm:$0xff]
    %v1641 = vld [vmem:[#allocation2 + $0x110] sm:$0xff]
    %v1642 = vld [vmem:[#allocation2 + $0x118] sm:$0xff]
    %v1643 = vld [vmem:[#allocation2 + $0x120] sm:$0xff]
    %v1644 = vld [vmem:[#allocation2 + $0x128] sm:$0xff]
    %v1645 = vld [vmem:[#allocation2 + $0x130] sm:$0xff]
    %v1646 = vld [vmem:[#allocation2 + $0x138] sm:$0xff]
    %v1647 = vld [vmem:[#allocation2 + $0x140] sm:$0xff]
    %v1648 = vld [vmem:[#allocation2 + $0x148] sm:$0xff]
    %v1649 = vld [vmem:[#allocation2 + $0x150] sm:$0xff]
    %v1650 = vld [vmem:[#allocation2 + $0x158] sm:$0xff]
    %v1651 = vld [vmem:[#allocation2 + $0x160] sm:$0xff]
    %v1652 = vld [vmem:[#allocation2 + $0x168] sm:$0xff]
    %v1653 = vld [vmem:[#allocation2 + $0x170] sm:$0xff]
    %v1654 = vld [vmem:[#allocation2 + $0x178] sm:$0xff]
    %v1655 = vld [vmem:[#allocation2 + $0x180] sm:$0xff]
    %v1656 = vld [vmem:[#allocation2 + $0x188] sm:$0xff]
    %v1657 = vld [vmem:[#allocation2 + $0x190] sm:$0xff]
    %v1658 = vld [vmem:[#allocation2 + $0x198] sm:$0xff]
    %v1659 = vld [vmem:[#allocation2 + $0x1a0] sm:$0xff]
    %v1660 = vld [vmem:[#allocation2 + $0x1a8] sm:$0xff]
    %v1661 = vld [vmem:[#allocation2 + $0x1b0] sm:$0xff]
    %v1662 = vld [vmem:[#allocation2 + $0x1b8] sm:$0xff]
    %v1663 = vld [vmem:[#allocation2 + $0x1c0] sm:$0xff]
    %v1664 = vld [vmem:[#allocation2 + $0x1c8] sm:$0xff]
    %v1665 = vld [vmem:[#allocation2 + $0x1d0] sm:$0xff]
    %v1666 = vld [vmem:[#allocation2 + $0x1d8] sm:$0xff]
    %v1667 = vld [vmem:[#allocation2 + $0x1e0] sm:$0xff]
    %v1668 = vld [vmem:[#allocation2 + $0x1e8] sm:$0xff]
    %v1669 = vld [vmem:[#allocation2 + $0x1f0] sm:$0xff]
    %v1670 = vld [vmem:[#allocation2 + $0x1f8] sm:$0xff]
    %v1671 = vadd.f32 %v1607, %v1417
    %v1672 = vadd.f32 %v1608, %v1419
    %v1673 = vadd.f32 %v1609, %v1423
    %v1674 = vadd.f32 %v1610, %v1425
    %v1675 = vadd.f32 %v1611, %v1429
    %v1676 = vadd.f32 %v1612, %v1431
    %v1677 = vadd.f32 %v1613, %v1435
    %v1678 = vadd.f32 %v1614, %v1437
    %v1679 = vadd.f32 %v1615, %v1441
    %v1680 = vadd.f32 %v1616, %v1443
    %v1681 = vadd.f32 %v1617, %v1447
    %v1682 = vadd.f32 %v1618, %v1449
    %v1683 = vadd.f32 %v1619, %v1453
    %v1684 = vadd.f32 %v1620, %v1455
    %v1685 = vadd.f32 %v1621, %v1459
    %v1686 = vadd.f32 %v1622, %v1461
    %v1687 = vadd.f32 %v1623, %v1465
    %v1688 = vadd.f32 %v1624, %v1467
    %v1689 = vadd.f32 %v1625, %v1471
    %v1690 = vadd.f32 %v1626, %v1473
    %v1691 = vadd.f32 %v1627, %v1477
    %v1692 = vadd.f32 %v1628, %v1479
    %v1693 = vadd.f32 %v1629, %v1483
    %v1694 = vadd.f32 %v1630, %v1485
    %v1695 = vadd.f32 %v1631, %v1489
    %v1696 = vadd.f32 %v1632, %v1491
    %v1697 = vadd.f32 %v1633, %v1495
    %v1698 = vadd.f32 %v1634, %v1497
    %v1699 = vadd.f32 %v1635, %v1501
    %v1700 = vadd.f32 %v1636, %v1503
    %v1701 = vadd.f32 %v1637, %v1507
    %v1702 = vadd.f32 %v1638, %v1509
    %v1703 = vadd.f32 %v1639, %v1513
    %v1704 = vadd.f32 %v1640, %v1515
    %v1705 = vadd.f32 %v1641, %v1519
    %v1706 = vadd.f32 %v1642, %v1521
    %v1707 = vadd.f32 %v1643, %v1525
    %v1708 = vadd.f32 %v1644, %v1527
    %v1709 = vadd.f32 %v1645, %v1531
    %v1710 = vadd.f32 %v1646, %v1533
    %v1711 = vadd.f32 %v1647, %v1537
    %v1712 = vadd.f32 %v1648, %v1539
    %v1713 = vadd.f32 %v1649, %v1543
    %v1714 = vadd.f32 %v1650, %v1545
    %v1715 = vadd.f32 %v1651, %v1549
    %v1716 = vadd.f32 %v1652, %v1551
    %v1717 = vadd.f32 %v1653, %v1555
    %v1718 = vadd.f32 %v1654, %v1557
    %v1719 = vadd.f32 %v1655, %v1561
    %v1720 = vadd.f32 %v1656, %v1563
    %v1721 = vadd.f32 %v1657, %v1567
    %v1722 = vadd.f32 %v1658, %v1569
    %v1723 = vadd.f32 %v1659, %v1573
    %v1724 = vadd.f32 %v1660, %v1575
    %v1725 = vadd.f32 %v1661, %v1579
    %v1726 = vadd.f32 %v1662, %v1581
    %v1727 = vadd.f32 %v1663, %v1585
    %v1728 = vadd.f32 %v1664, %v1587
    %v1729 = vadd.f32 %v1665, %v1591
    %v1730 = vadd.f32 %v1666, %v1593
    %v1731 = vadd.f32 %v1667, %v1597
    %v1732 = vadd.f32 %v1668, %v1599
    %v1733 = vadd.f32 %v1669, %v1603
    %v1734 = vadd.f32 %v1670, %v1605
    %1735 = vst [vmem:[#allocation2] sm:$0xff] %v1671
    %1736 = vst [vmem:[#allocation2 + $0x8] sm:$0xff] %v1672
    %1737 = vst [vmem:[#allocation2 + $0x10] sm:$0xff] %v1673
    %1738 = vst [vmem:[#allocation2 + $0x18] sm:$0xff] %v1674
    %1739 = vst [vmem:[#allocation2 + $0x20] sm:$0xff] %v1675
    %1740 = vst [vmem:[#allocation2 + $0x28] sm:$0xff] %v1676
    %1741 = vst [vmem:[#allocation2 + $0x30] sm:$0xff] %v1677
    %1742 = vst [vmem:[#allocation2 + $0x38] sm:$0xff] %v1678
    %1743 = vst [vmem:[#allocation2 + $0x40] sm:$0xff] %v1679
    %1744 = vst [vmem:[#allocation2 + $0x48] sm:$0xff] %v1680
    %1745 = vst [vmem:[#allocation2 + $0x50] sm:$0xff] %v1681
    %1746 = vst [vmem:[#allocation2 + $0x58] sm:$0xff] %v1682
    %1747 = vst [vmem:[#allocation2 + $0x60] sm:$0xff] %v1683
    %1748 = vst [vmem:[#allocation2 + $0x68] sm:$0xff] %v1684
    %1749 = vst [vmem:[#allocation2 + $0x70] sm:$0xff] %v1685
    %1750 = vst [vmem:[#allocation2 + $0x78] sm:$0xff] %v1686
    %1751 = vst [vmem:[#allocation2 + $0x80] sm:$0xff] %v1687
    %1752 = vst [vmem:[#allocation2 + $0x88] sm:$0xff] %v1688
    %1753 = vst [vmem:[#allocation2 + $0x90] sm:$0xff] %v1689
    %1754 = vst [vmem:[#allocation2 + $0x98] sm:$0xff] %v1690
    %1755 = vst [vmem:[#allocation2 + $0xa0] sm:$0xff] %v1691
    %1756 = vst [vmem:[#allocation2 + $0xa8] sm:$0xff] %v1692
    %1757 = vst [vmem:[#allocation2 + $0xb0] sm:$0xff] %v1693
    %1758 = vst [vmem:[#allocation2 + $0xb8] sm:$0xff] %v1694
    %1759 = vst [vmem:[#allocation2 + $0xc0] sm:$0xff] %v1695
    %1760 = vst [vmem:[#allocation2 + $0xc8] sm:$0xff] %v1696
    %1761 = vst [vmem:[#allocation2 + $0xd0] sm:$0xff] %v1697
    %1762 = vst [vmem:[#allocation2 + $0xd8] sm:$0xff] %v1698
    %1763 = vst [vmem:[#allocation2 + $0xe0] sm:$0xff] %v1699
    %1764 = vst [vmem:[#allocation2 + $0xe8] sm:$0xff] %v1700
    %1765 = vst [vmem:[#allocation2 + $0xf0] sm:$0xff] %v1701
    %1766 = vst [vmem:[#allocation2 + $0xf8] sm:$0xff] %v1702
    %1767 = vst [vmem:[#allocation2 + $0x100] sm:$0xff] %v1703
    %1768 = vst [vmem:[#allocation2 + $0x108] sm:$0xff] %v1704
    %1769 = vst [vmem:[#allocation2 + $0x110] sm:$0xff] %v1705
    %1770 = vst [vmem:[#allocation2 + $0x118] sm:$0xff] %v1706
    %1771 = vst [vmem:[#allocation2 + $0x120] sm:$0xff] %v1707
    %1772 = vst [vmem:[#allocation2 + $0x128] sm:$0xff] %v1708
    %1773 = vst [vmem:[#allocation2 + $0x130] sm:$0xff] %v1709
    %1774 = vst [vmem:[#allocation2 + $0x138] sm:$0xff] %v1710
    %1775 = vst [vmem:[#allocation2 + $0x140] sm:$0xff] %v1711
    %1776 = vst [vmem:[#allocation2 + $0x148] sm:$0xff] %v1712
    %1777 = vst [vmem:[#allocation2 + $0x150] sm:$0xff] %v1713
    %1778 = vst [vmem:[#allocation2 + $0x158] sm:$0xff] %v1714
    %1779 = vst [vmem:[#allocation2 + $0x160] sm:$0xff] %v1715
    %1780 = vst [vmem:[#allocation2 + $0x168] sm:$0xff] %v1716
    %1781 = vst [vmem:[#allocation2 + $0x170] sm:$0xff] %v1717
    %1782 = vst [vmem:[#allocation2 + $0x178] sm:$0xff] %v1718
    %1783 = vst [vmem:[#allocation2 + $0x180] sm:$0xff] %v1719
    %1784 = vst [vmem:[#allocation2 + $0x188] sm:$0xff] %v1720
    %1785 = vst [vmem:[#allocation2 + $0x190] sm:$0xff] %v1721
    %1786 = vst [vmem:[#allocation2 + $0x198] sm:$0xff] %v1722
    %1787 = vst [vmem:[#allocation2 + $0x1a0] sm:$0xff] %v1723
    %1788 = vst [vmem:[#allocation2 + $0x1a8] sm:$0xff] %v1724
    %1789 = vst [vmem:[#allocation2 + $0x1b0] sm:$0xff] %v1725
    %1790 = vst [vmem:[#allocation2 + $0x1b8] sm:$0xff] %v1726
    %1791 = vst [vmem:[#allocation2 + $0x1c0] sm:$0xff] %v1727
    %1792 = vst [vmem:[#allocation2 + $0x1c8] sm:$0xff] %v1728
    %1793 = vst [vmem:[#allocation2 + $0x1d0] sm:$0xff] %v1729
    %1794 = vst [vmem:[#allocation2 + $0x1d8] sm:$0xff] %v1730
    %1795 = vst [vmem:[#allocation2 + $0x1e0] sm:$0xff] %v1731
    %1796 = vst [vmem:[#allocation2 + $0x1e8] sm:$0xff] %v1732
    %1797 = vst [vmem:[#allocation2 + $0x1f0] sm:$0xff] %v1733
    %1798 = vst [vmem:[#allocation2 + $0x1f8] sm:$0xff] %v1734
    %v1799 = vld [vmem:[%s0] sm:$0xff]
    %v1800 = vld [vmem:[%s0 + $0x8] sm:$0xff]
    %v1801 = vld [vmem:[%s0 + $0x10] sm:$0xff]
    %v1802 = vld [vmem:[%s0 + $0x18] sm:$0xff]
    %v1803 = vld [vmem:[%s0 + $0x20] sm:$0xff]
    %v1804 = vld [vmem:[%s0 + $0x28] sm:$0xff]
    %v1805 = vld [vmem:[%s0 + $0x30] sm:$0xff]
    %v1806 = vld [vmem:[%s0 + $0x38] sm:$0xff]
    %v1807 = vld [vmem:[%s0 + $0x40] sm:$0xff]
    %v1808 = vld [vmem:[%s0 + $0x48] sm:$0xff]
    %v1809 = vld [vmem:[%s0 + $0x50] sm:$0xff]
    %v1810 = vld [vmem:[%s0 + $0x58] sm:$0xff]
    %v1811 = vld [vmem:[%s0 + $0x60] sm:$0xff]
    %v1812 = vld [vmem:[%s0 + $0x68] sm:$0xff]
    %v1813 = vld [vmem:[%s0 + $0x70] sm:$0xff]
    %v1814 = vld [vmem:[%s0 + $0x78] sm:$0xff]
    %v1815 = vld [vmem:[%s0 + $0x80] sm:$0xff]
    %v1816 = vld [vmem:[%s0 + $0x88] sm:$0xff]
    %v1817 = vld [vmem:[%s0 + $0x90] sm:$0xff]
    %v1818 = vld [vmem:[%s0 + $0x98] sm:$0xff]
    %v1819 = vld [vmem:[%s0 + $0xa0] sm:$0xff]
    %v1820 = vld [vmem:[%s0 + $0xa8] sm:$0xff]
    %v1821 = vld [vmem:[%s0 + $0xb0] sm:$0xff]
    %v1822 = vld [vmem:[%s0 + $0xb8] sm:$0xff]
    %v1823 = vld [vmem:[%s0 + $0xc0] sm:$0xff]
    %v1824 = vld [vmem:[%s0 + $0xc8] sm:$0xff]
    %v1825 = vld [vmem:[%s0 + $0xd0] sm:$0xff]
    %v1826 = vld [vmem:[%s0 + $0xd8] sm:$0xff]
    %v1827 = vld [vmem:[%s0 + $0xe0] sm:$0xff]
    %v1828 = vld [vmem:[%s0 + $0xe8] sm:$0xff]
    %v1829 = vld [vmem:[%s0 + $0xf0] sm:$0xff]
    %v1830 = vld [vmem:[%s0 + $0xf8] sm:$0xff]
    %s1831 = scalar_lea.vmem [#allocation4], 192
    %v1832 = vld [vmem:[%s1831] sm:$0xff]
    %v1833 = vld [vmem:[%s1831 + $0x8] sm:$0xff]
    %v1834 = vld [vmem:[%s1831 + $0x10] sm:$0xff]
    %v1835 = vld [vmem:[%s1831 + $0x18] sm:$0xff]
    %v1836 = vld [vmem:[%s1831 + $0x20] sm:$0xff]
    %v1837 = vld [vmem:[%s1831 + $0x28] sm:$0xff]
    %v1838 = vld [vmem:[%s1831 + $0x30] sm:$0xff]
    %v1839 = vld [vmem:[%s1831 + $0x38] sm:$0xff]
    %v1840 = vld [vmem:[%s1831 + $0x40] sm:$0xff]
    %v1841 = vld [vmem:[%s1831 + $0x48] sm:$0xff]
    %v1842 = vld [vmem:[%s1831 + $0x50] sm:$0xff]
    %v1843 = vld [vmem:[%s1831 + $0x58] sm:$0xff]
    %v1844 = vld [vmem:[%s1831 + $0x60] sm:$0xff]
    %v1845 = vld [vmem:[%s1831 + $0x68] sm:$0xff]
    %v1846 = vld [vmem:[%s1831 + $0x70] sm:$0xff]
    %v1847 = vld [vmem:[%s1831 + $0x78] sm:$0xff]
    %v1848 = vld [vmem:[%s1831 + $0x80] sm:$0xff]
    %v1849 = vld [vmem:[%s1831 + $0x88] sm:$0xff]
    %v1850 = vld [vmem:[%s1831 + $0x90] sm:$0xff]
    %v1851 = vld [vmem:[%s1831 + $0x98] sm:$0xff]
    %v1852 = vld [vmem:[%s1831 + $0xa0] sm:$0xff]
    %v1853 = vld [vmem:[%s1831 + $0xa8] sm:$0xff]
    %v1854 = vld [vmem:[%s1831 + $0xb0] sm:$0xff]
    %v1855 = vld [vmem:[%s1831 + $0xb8] sm:$0xff]
    %v1857 = vsel %vm175, %v1799, 0
    %v1860 = vsel %vm175, %v1800, 0
    %v1863 = vsel %vm175, %v1801, 0
    %v1866 = vsel %vm175, %v1802, 0
    %v1869 = vsel %vm175, %v1803, 0
    %v1872 = vsel %vm175, %v1804, 0
    %v1875 = vsel %vm175, %v1805, 0
    %v1878 = vsel %vm175, %v1806, 0
    %v1881 = vsel %vm175, %v1807, 0
    %v1884 = vsel %vm175, %v1808, 0
    %v1887 = vsel %vm175, %v1809, 0
    %v1890 = vsel %vm175, %v1810, 0
    %v1893 = vsel %vm175, %v1811, 0
    %v1896 = vsel %vm175, %v1812, 0
    %v1899 = vsel %vm175, %v1813, 0
    %v1902 = vsel %vm175, %v1814, 0
    %v1905 = vsel %vm175, %v1815, 0
    %v1908 = vsel %vm175, %v1816, 0
    %v1911 = vsel %vm175, %v1817, 0
    %v1914 = vsel %vm175, %v1818, 0
    %v1917 = vsel %vm175, %v1819, 0
    %v1920 = vsel %vm175, %v1820, 0
    %v1923 = vsel %vm175, %v1821, 0
    %v1926 = vsel %vm175, %v1822, 0
    %v1929 = vsel %vm175, %v1823, 0
    %v1932 = vsel %vm175, %v1824, 0
    %v1935 = vsel %vm175, %v1825, 0
    %v1938 = vsel %vm175, %v1826, 0
    %v1941 = vsel %vm175, %v1827, 0
    %v1944 = vsel %vm175, %v1828, 0
    %v1947 = vsel %vm175, %v1829, 0
    %v1950 = vsel %vm175, %v1830, 0
    %1952 = vmatprep.subr.mxu0 0.0
    %1953 = vmatpush1.msra.mxu0 0.0
    %1954 = vmatprep.subr.mxu0 0.0
    %1955 = vmatpush1.msra.mxu0 0.0
    %1956 = vmatprep.subr.mxu0 0.0
    %1957 = vmatpush1.msra.mxu0 0.0
    %1958 = vmatprep.subr.mxu0 0.0
    %1959 = vmatpush1.msra.mxu0 0.0
    %1960 = vmatprep.subr.mxu0 %v1855
    %1961 = vmatpush1.msra.mxu0 %v1854
    %1962 = vmatprep.subr.mxu0 %v1853
    %1963 = vmatpush1.msra.mxu0 %v1852
    %1964 = vmatprep.subr.mxu0 %v1851
    %1965 = vmatpush1.msra.mxu0 %v1850
    %1966 = vmatprep.subr.mxu0 %v1849
    %1967 = vmatpush1.msra.mxu0 %v1848
    %1968 = vmatprep.subr.mxu0 %v1847
    %1969 = vmatpush1.msra.mxu0 %v1846
    %1970 = vmatprep.subr.mxu0 %v1845
    %1971 = vmatpush1.msra.mxu0 %v1844
    %1972 = vmatprep.subr.mxu0 %v1843
    %1973 = vmatpush1.msra.mxu0 %v1842
    %1974 = vmatprep.subr.mxu0 %v1841
    %1975 = vmatpush1.msra.mxu0 %v1840
    %1976 = vmatprep.subr.mxu0 %v1839
    %1977 = vmatpush1.msra.mxu0 %v1838
    %1978 = vmatprep.subr.mxu0 %v1837
    %1979 = vmatpush1.msra.mxu0 %v1836
    %1980 = vmatprep.subr.mxu0 %v1835
    %1981 = vmatpush1.msra.mxu0 %v1834
    %1982 = vmatprep.subr.mxu0 %v1833
    %1983 = vmatpush1.msra.mxu0 %v1832
    %1984 = vmatprep.subr.mxu0 0.0
    %1985 = vmatpush2.msra.mxu0 0.0
    %1986 = vmatprep.subr.mxu0 0.0
    %1987 = vmatpush2.msra.mxu0 0.0
    %1988 = vmatprep.subr.mxu0 0.0
    %1989 = vmatpush2.msra.mxu0 0.0
    %1990 = vmatprep.subr.mxu0 0.0
    %1991 = vmatpush2.msra.mxu0 0.0
    %1992 = vmatprep.subr.mxu0 0.0
    %1993 = vmatpush2.msra.mxu0 0.0
    %1994 = vmatprep.subr.mxu0 0.0
    %1995 = vmatpush2.msra.mxu0 0.0
    %1996 = vmatprep.subr.mxu0 0.0
    %1997 = vmatpush2.msra.mxu0 0.0
    %1998 = vmatprep.subr.mxu0 0.0
    %1999 = vmatpush2.msra.mxu0 0.0
    %2000 = vmatprep.subr.mxu0 0.0
    %2001 = vmatpush2.msra.mxu0 0.0
    %2002 = vmatprep.subr.mxu0 0.0
    %2003 = vmatpush2.msra.mxu0 0.0
    %2004 = vmatprep.subr.mxu0 0.0
    %2005 = vmatpush2.msra.mxu0 0.0
    %2006 = vmatprep.subr.mxu0 0.0
    %2007 = vmatpush2.msra.mxu0 0.0
    %2008 = vmatprep.subr.mxu0 0.0
    %2009 = vmatpush2.msra.mxu0 0.0
    %2010 = vmatprep.subr.mxu0 0.0
    %2011 = vmatpush2.msra.mxu0 0.0
    %2012 = vmatprep.subr.mxu0 0.0
    %2013 = vmatpush2.msra.mxu0 0.0
    %2014 = vmatprep.subr.mxu0 0.0
    %2015 = vmatpush2.msra.mxu0 0.0
    %2016 = vmatprep.mubr.f32.mxu0 0.0
    %2017 = vmatmul.mubr.f32.gmra.mxu0 %v1857
    %v2018 = vpop.f32.mrf.mxu0
    %v2019 = vadd.f32 0.0, %v2018
    %v2020 = vpop.f32.mrf.mxu0
    %v2021 = vadd.f32 0.0, %v2020
    %2022 = vmatprep.mubr.f32.mxu0 0.0
    %2023 = vmatmul.mubr.f32.gmra.mxu0 %v1860
    %v2024 = vpop.f32.mrf.mxu0
    %v2025 = vadd.f32 0.0, %v2024
    %v2026 = vpop.f32.mrf.mxu0
    %v2027 = vadd.f32 0.0, %v2026
    %2028 = vmatprep.mubr.f32.mxu0 0.0
    %2029 = vmatmul.mubr.f32.gmra.mxu0 %v1863
    %v2030 = vpop.f32.mrf.mxu0
    %v2031 = vadd.f32 0.0, %v2030
    %v2032 = vpop.f32.mrf.mxu0
    %v2033 = vadd.f32 0.0, %v2032
    %2034 = vmatprep.mubr.f32.mxu0 0.0
    %2035 = vmatmul.mubr.f32.gmra.mxu0 %v1866
    %v2036 = vpop.f32.mrf.mxu0
    %v2037 = vadd.f32 0.0, %v2036
    %v2038 = vpop.f32.mrf.mxu0
    %v2039 = vadd.f32 0.0, %v2038
    %2040 = vmatprep.mubr.f32.mxu0 0.0
    %2041 = vmatmul.mubr.f32.gmra.mxu0 %v1869
    %v2042 = vpop.f32.mrf.mxu0
    %v2043 = vadd.f32 0.0, %v2042
    %v2044 = vpop.f32.mrf.mxu0
    %v2045 = vadd.f32 0.0, %v2044
    %2046 = vmatprep.mubr.f32.mxu0 0.0
    %2047 = vmatmul.mubr.f32.gmra.mxu0 %v1872
    %v2048 = vpop.f32.mrf.mxu0
    %v2049 = vadd.f32 0.0, %v2048
    %v2050 = vpop.f32.mrf.mxu0
    %v2051 = vadd.f32 0.0, %v2050
    %2052 = vmatprep.mubr.f32.mxu0 0.0
    %2053 = vmatmul.mubr.f32.gmra.mxu0 %v1875
    %v2054 = vpop.f32.mrf.mxu0
    %v2055 = vadd.f32 0.0, %v2054
    %v2056 = vpop.f32.mrf.mxu0
    %v2057 = vadd.f32 0.0, %v2056
    %2058 = vmatprep.mubr.f32.mxu0 0.0
    %2059 = vmatmul.mubr.f32.gmra.mxu0 %v1878
    %v2060 = vpop.f32.mrf.mxu0
    %v2061 = vadd.f32 0.0, %v2060
    %v2062 = vpop.f32.mrf.mxu0
    %v2063 = vadd.f32 0.0, %v2062
    %2064 = vmatprep.mubr.f32.mxu0 0.0
    %2065 = vmatmul.mubr.f32.gmra.mxu0 %v1881
    %v2066 = vpop.f32.mrf.mxu0
    %v2067 = vadd.f32 0.0, %v2066
    %v2068 = vpop.f32.mrf.mxu0
    %v2069 = vadd.f32 0.0, %v2068
    %2070 = vmatprep.mubr.f32.mxu0 0.0
    %2071 = vmatmul.mubr.f32.gmra.mxu0 %v1884
    %v2072 = vpop.f32.mrf.mxu0
    %v2073 = vadd.f32 0.0, %v2072
    %v2074 = vpop.f32.mrf.mxu0
    %v2075 = vadd.f32 0.0, %v2074
    %2076 = vmatprep.mubr.f32.mxu0 0.0
    %2077 = vmatmul.mubr.f32.gmra.mxu0 %v1887
    %v2078 = vpop.f32.mrf.mxu0
    %v2079 = vadd.f32 0.0, %v2078
    %v2080 = vpop.f32.mrf.mxu0
    %v2081 = vadd.f32 0.0, %v2080
    %2082 = vmatprep.mubr.f32.mxu0 0.0
    %2083 = vmatmul.mubr.f32.gmra.mxu0 %v1890
    %v2084 = vpop.f32.mrf.mxu0
    %v2085 = vadd.f32 0.0, %v2084
    %v2086 = vpop.f32.mrf.mxu0
    %v2087 = vadd.f32 0.0, %v2086
    %2088 = vmatprep.mubr.f32.mxu0 0.0
    %2089 = vmatmul.mubr.f32.gmra.mxu0 %v1893
    %v2090 = vpop.f32.mrf.mxu0
    %v2091 = vadd.f32 0.0, %v2090
    %v2092 = vpop.f32.mrf.mxu0
    %v2093 = vadd.f32 0.0, %v2092
    %2094 = vmatprep.mubr.f32.mxu0 0.0
    %2095 = vmatmul.mubr.f32.gmra.mxu0 %v1896
    %v2096 = vpop.f32.mrf.mxu0
    %v2097 = vadd.f32 0.0, %v2096
    %v2098 = vpop.f32.mrf.mxu0
    %v2099 = vadd.f32 0.0, %v2098
    %2100 = vmatprep.mubr.f32.mxu0 0.0
    %2101 = vmatmul.mubr.f32.gmra.mxu0 %v1899
    %v2102 = vpop.f32.mrf.mxu0
    %v2103 = vadd.f32 0.0, %v2102
    %v2104 = vpop.f32.mrf.mxu0
    %v2105 = vadd.f32 0.0, %v2104
    %2106 = vmatprep.mubr.f32.mxu0 0.0
    %2107 = vmatmul.mubr.f32.gmra.mxu0 %v1902
    %v2108 = vpop.f32.mrf.mxu0
    %v2109 = vadd.f32 0.0, %v2108
    %v2110 = vpop.f32.mrf.mxu0
    %v2111 = vadd.f32 0.0, %v2110
    %2112 = vmatprep.mubr.f32.mxu0 0.0
    %2113 = vmatmul.mubr.f32.gmra.mxu0 %v1905
    %v2114 = vpop.f32.mrf.mxu0
    %v2115 = vadd.f32 0.0, %v2114
    %v2116 = vpop.f32.mrf.mxu0
    %v2117 = vadd.f32 0.0, %v2116
    %2118 = vmatprep.mubr.f32.mxu0 0.0
    %2119 = vmatmul.mubr.f32.gmra.mxu0 %v1908
    %v2120 = vpop.f32.mrf.mxu0
    %v2121 = vadd.f32 0.0, %v2120
    %v2122 = vpop.f32.mrf.mxu0
    %v2123 = vadd.f32 0.0, %v2122
    %2124 = vmatprep.mubr.f32.mxu0 0.0
    %2125 = vmatmul.mubr.f32.gmra.mxu0 %v1911
    %v2126 = vpop.f32.mrf.mxu0
    %v2127 = vadd.f32 0.0, %v2126
    %v2128 = vpop.f32.mrf.mxu0
    %v2129 = vadd.f32 0.0, %v2128
    %2130 = vmatprep.mubr.f32.mxu0 0.0
    %2131 = vmatmul.mubr.f32.gmra.mxu0 %v1914
    %v2132 = vpop.f32.mrf.mxu0
    %v2133 = vadd.f32 0.0, %v2132
    %v2134 = vpop.f32.mrf.mxu0
    %v2135 = vadd.f32 0.0, %v2134
    %2136 = vmatprep.mubr.f32.mxu0 0.0
    %2137 = vmatmul.mubr.f32.gmra.mxu0 %v1917
    %v2138 = vpop.f32.mrf.mxu0
    %v2139 = vadd.f32 0.0, %v2138
    %v2140 = vpop.f32.mrf.mxu0
    %v2141 = vadd.f32 0.0, %v2140
    %2142 = vmatprep.mubr.f32.mxu0 0.0
    %2143 = vmatmul.mubr.f32.gmra.mxu0 %v1920
    %v2144 = vpop.f32.mrf.mxu0
    %v2145 = vadd.f32 0.0, %v2144
    %v2146 = vpop.f32.mrf.mxu0
    %v2147 = vadd.f32 0.0, %v2146
    %2148 = vmatprep.mubr.f32.mxu0 0.0
    %2149 = vmatmul.mubr.f32.gmra.mxu0 %v1923
    %v2150 = vpop.f32.mrf.mxu0
    %v2151 = vadd.f32 0.0, %v2150
    %v2152 = vpop.f32.mrf.mxu0
    %v2153 = vadd.f32 0.0, %v2152
    %2154 = vmatprep.mubr.f32.mxu0 0.0
    %2155 = vmatmul.mubr.f32.gmra.mxu0 %v1926
    %v2156 = vpop.f32.mrf.mxu0
    %v2157 = vadd.f32 0.0, %v2156
    %v2158 = vpop.f32.mrf.mxu0
    %v2159 = vadd.f32 0.0, %v2158
    %2160 = vmatprep.mubr.f32.mxu0 0.0
    %2161 = vmatmul.mubr.f32.gmra.mxu0 %v1929
    %v2162 = vpop.f32.mrf.mxu0
    %v2163 = vadd.f32 0.0, %v2162
    %v2164 = vpop.f32.mrf.mxu0
    %v2165 = vadd.f32 0.0, %v2164
    %2166 = vmatprep.mubr.f32.mxu0 0.0
    %2167 = vmatmul.mubr.f32.gmra.mxu0 %v1932
    %v2168 = vpop.f32.mrf.mxu0
    %v2169 = vadd.f32 0.0, %v2168
    %v2170 = vpop.f32.mrf.mxu0
    %v2171 = vadd.f32 0.0, %v2170
    %2172 = vmatprep.mubr.f32.mxu0 0.0
    %2173 = vmatmul.mubr.f32.gmra.mxu0 %v1935
    %v2174 = vpop.f32.mrf.mxu0
    %v2175 = vadd.f32 0.0, %v2174
    %v2176 = vpop.f32.mrf.mxu0
    %v2177 = vadd.f32 0.0, %v2176
    %2178 = vmatprep.mubr.f32.mxu0 0.0
    %2179 = vmatmul.mubr.f32.gmra.mxu0 %v1938
    %v2180 = vpop.f32.mrf.mxu0
    %v2181 = vadd.f32 0.0, %v2180
    %v2182 = vpop.f32.mrf.mxu0
    %v2183 = vadd.f32 0.0, %v2182
    %2184 = vmatprep.mubr.f32.mxu0 0.0
    %2185 = vmatmul.mubr.f32.gmra.mxu0 %v1941
    %v2186 = vpop.f32.mrf.mxu0
    %v2187 = vadd.f32 0.0, %v2186
    %v2188 = vpop.f32.mrf.mxu0
    %v2189 = vadd.f32 0.0, %v2188
    %2190 = vmatprep.mubr.f32.mxu0 0.0
    %2191 = vmatmul.mubr.f32.gmra.mxu0 %v1944
    %v2192 = vpop.f32.mrf.mxu0
    %v2193 = vadd.f32 0.0, %v2192
    %v2194 = vpop.f32.mrf.mxu0
    %v2195 = vadd.f32 0.0, %v2194
    %2196 = vmatprep.mubr.f32.mxu0 0.0
    %2197 = vmatmul.mubr.f32.gmra.mxu0 %v1947
    %v2198 = vpop.f32.mrf.mxu0
    %v2199 = vadd.f32 0.0, %v2198
    %v2200 = vpop.f32.mrf.mxu0
    %v2201 = vadd.f32 0.0, %v2200
    %2202 = vmatprep.mubr.f32.mxu0 0.0
    %2203 = vmatmul.mubr.f32.gmra.mxu0 %v1950
    %v2204 = vpop.f32.mrf.mxu0
    %v2205 = vadd.f32 0.0, %v2204
    %v2206 = vpop.f32.mrf.mxu0
    %v2207 = vadd.f32 0.0, %v2206
    %2208 = vdwg.mxu0
    %s2209 = scalar_lea.vmem [#allocation2], 512
    %2210 = vst [vmem:[%s2209] sm:$0xff] %v2019
    %2211 = vst [vmem:[%s2209 + $0x8] sm:$0xff] %v2021
    %2212 = vst [vmem:[%s2209 + $0x10] sm:$0xff] %v2025
    %2213 = vst [vmem:[%s2209 + $0x18] sm:$0xff] %v2027
    %2214 = vst [vmem:[%s2209 + $0x20] sm:$0xff] %v2031
    %2215 = vst [vmem:[%s2209 + $0x28] sm:$0xff] %v2033
    %2216 = vst [vmem:[%s2209 + $0x30] sm:$0xff] %v2037
    %2217 = vst [vmem:[%s2209 + $0x38] sm:$0xff] %v2039
    %2218 = vst [vmem:[%s2209 + $0x40] sm:$0xff] %v2043
    %2219 = vst [vmem:[%s2209 + $0x48] sm:$0xff] %v2045
    %2220 = vst [vmem:[%s2209 + $0x50] sm:$0xff] %v2049
    %2221 = vst [vmem:[%s2209 + $0x58] sm:$0xff] %v2051
    %2222 = vst [vmem:[%s2209 + $0x60] sm:$0xff] %v2055
    %2223 = vst [vmem:[%s2209 + $0x68] sm:$0xff] %v2057
    %2224 = vst [vmem:[%s2209 + $0x70] sm:$0xff] %v2061
    %2225 = vst [vmem:[%s2209 + $0x78] sm:$0xff] %v2063
    %2226 = vst [vmem:[%s2209 + $0x80] sm:$0xff] %v2067
    %2227 = vst [vmem:[%s2209 + $0x88] sm:$0xff] %v2069
    %2228 = vst [vmem:[%s2209 + $0x90] sm:$0xff] %v2073
    %2229 = vst [vmem:[%s2209 + $0x98] sm:$0xff] %v2075
    %2230 = vst [vmem:[%s2209 + $0xa0] sm:$0xff] %v2079
    %2231 = vst [vmem:[%s2209 + $0xa8] sm:$0xff] %v2081
    %2232 = vst [vmem:[%s2209 + $0xb0] sm:$0xff] %v2085
    %2233 = vst [vmem:[%s2209 + $0xb8] sm:$0xff] %v2087
    %2234 = vst [vmem:[%s2209 + $0xc0] sm:$0xff] %v2091
    %2235 = vst [vmem:[%s2209 + $0xc8] sm:$0xff] %v2093
    %2236 = vst [vmem:[%s2209 + $0xd0] sm:$0xff] %v2097
    %2237 = vst [vmem:[%s2209 + $0xd8] sm:$0xff] %v2099
    %2238 = vst [vmem:[%s2209 + $0xe0] sm:$0xff] %v2103
    %2239 = vst [vmem:[%s2209 + $0xe8] sm:$0xff] %v2105
    %2240 = vst [vmem:[%s2209 + $0xf0] sm:$0xff] %v2109
    %2241 = vst [vmem:[%s2209 + $0xf8] sm:$0xff] %v2111
    %2242 = vst [vmem:[%s2209 + $0x100] sm:$0xff] %v2115
    %2243 = vst [vmem:[%s2209 + $0x108] sm:$0xff] %v2117
    %2244 = vst [vmem:[%s2209 + $0x110] sm:$0xff] %v2121
    %2245 = vst [vmem:[%s2209 + $0x118] sm:$0xff] %v2123
    %2246 = vst [vmem:[%s2209 + $0x120] sm:$0xff] %v2127
    %2247 = vst [vmem:[%s2209 + $0x128] sm:$0xff] %v2129
    %2248 = vst [vmem:[%s2209 + $0x130] sm:$0xff] %v2133
    %2249 = vst [vmem:[%s2209 + $0x138] sm:$0xff] %v2135
    %2250 = vst [vmem:[%s2209 + $0x140] sm:$0xff] %v2139
    %2251 = vst [vmem:[%s2209 + $0x148] sm:$0xff] %v2141
    %2252 = vst [vmem:[%s2209 + $0x150] sm:$0xff] %v2145
    %2253 = vst [vmem:[%s2209 + $0x158] sm:$0xff] %v2147
    %2254 = vst [vmem:[%s2209 + $0x160] sm:$0xff] %v2151
    %2255 = vst [vmem:[%s2209 + $0x168] sm:$0xff] %v2153
    %2256 = vst [vmem:[%s2209 + $0x170] sm:$0xff] %v2157
    %2257 = vst [vmem:[%s2209 + $0x178] sm:$0xff] %v2159
    %2258 = vst [vmem:[%s2209 + $0x180] sm:$0xff] %v2163
    %2259 = vst [vmem:[%s2209 + $0x188] sm:$0xff] %v2165
    %2260 = vst [vmem:[%s2209 + $0x190] sm:$0xff] %v2169
    %2261 = vst [vmem:[%s2209 + $0x198] sm:$0xff] %v2171
    %2262 = vst [vmem:[%s2209 + $0x1a0] sm:$0xff] %v2175
    %2263 = vst [vmem:[%s2209 + $0x1a8] sm:$0xff] %v2177
    %2264 = vst [vmem:[%s2209 + $0x1b0] sm:$0xff] %v2181
    %2265 = vst [vmem:[%s2209 + $0x1b8] sm:$0xff] %v2183
    %2266 = vst [vmem:[%s2209 + $0x1c0] sm:$0xff] %v2187
    %2267 = vst [vmem:[%s2209 + $0x1c8] sm:$0xff] %v2189
    %2268 = vst [vmem:[%s2209 + $0x1d0] sm:$0xff] %v2193
    %2269 = vst [vmem:[%s2209 + $0x1d8] sm:$0xff] %v2195
    %2270 = vst [vmem:[%s2209 + $0x1e0] sm:$0xff] %v2199
    %2271 = vst [vmem:[%s2209 + $0x1e8] sm:$0xff] %v2201
    %2272 = vst [vmem:[%s2209 + $0x1f0] sm:$0xff] %v2205
    %2273 = vst [vmem:[%s2209 + $0x1f8] sm:$0xff] %v2207
    %v2274 = vld [vmem:[%s593] sm:$0xff]
    %v2275 = vld [vmem:[%s593 + $0x8] sm:$0xff]
    %v2276 = vld [vmem:[%s593 + $0x10] sm:$0xff]
    %v2277 = vld [vmem:[%s593 + $0x18] sm:$0xff]
    %v2278 = vld [vmem:[%s593 + $0x20] sm:$0xff]
    %v2279 = vld [vmem:[%s593 + $0x28] sm:$0xff]
    %v2280 = vld [vmem:[%s593 + $0x30] sm:$0xff]
    %v2281 = vld [vmem:[%s593 + $0x38] sm:$0xff]
    %v2282 = vld [vmem:[%s593 + $0x40] sm:$0xff]
    %v2283 = vld [vmem:[%s593 + $0x48] sm:$0xff]
    %v2284 = vld [vmem:[%s593 + $0x50] sm:$0xff]
    %v2285 = vld [vmem:[%s593 + $0x58] sm:$0xff]
    %v2286 = vld [vmem:[%s593 + $0x60] sm:$0xff]
    %v2287 = vld [vmem:[%s593 + $0x68] sm:$0xff]
    %v2288 = vld [vmem:[%s593 + $0x70] sm:$0xff]
    %v2289 = vld [vmem:[%s593 + $0x78] sm:$0xff]
    %v2290 = vld [vmem:[%s593 + $0x80] sm:$0xff]
    %v2291 = vld [vmem:[%s593 + $0x88] sm:$0xff]
    %v2292 = vld [vmem:[%s593 + $0x90] sm:$0xff]
    %v2293 = vld [vmem:[%s593 + $0x98] sm:$0xff]
    %v2294 = vld [vmem:[%s593 + $0xa0] sm:$0xff]
    %v2295 = vld [vmem:[%s593 + $0xa8] sm:$0xff]
    %v2296 = vld [vmem:[%s593 + $0xb0] sm:$0xff]
    %v2297 = vld [vmem:[%s593 + $0xb8] sm:$0xff]
    %v2298 = vld [vmem:[%s593 + $0xc0] sm:$0xff]
    %v2299 = vld [vmem:[%s593 + $0xc8] sm:$0xff]
    %v2300 = vld [vmem:[%s593 + $0xd0] sm:$0xff]
    %v2301 = vld [vmem:[%s593 + $0xd8] sm:$0xff]
    %v2302 = vld [vmem:[%s593 + $0xe0] sm:$0xff]
    %v2303 = vld [vmem:[%s593 + $0xe8] sm:$0xff]
    %v2304 = vld [vmem:[%s593 + $0xf0] sm:$0xff]
    %v2305 = vld [vmem:[%s593 + $0xf8] sm:$0xff]
    %s2306 = scalar_lea.vmem [#allocation4], 576
    %v2307 = vld [vmem:[%s2306] sm:$0xff]
    %v2308 = vld [vmem:[%s2306 + $0x8] sm:$0xff]
    %v2309 = vld [vmem:[%s2306 + $0x10] sm:$0xff]
    %v2310 = vld [vmem:[%s2306 + $0x18] sm:$0xff]
    %v2311 = vld [vmem:[%s2306 + $0x20] sm:$0xff]
    %v2312 = vld [vmem:[%s2306 + $0x28] sm:$0xff]
    %v2313 = vld [vmem:[%s2306 + $0x30] sm:$0xff]
    %v2314 = vld [vmem:[%s2306 + $0x38] sm:$0xff]
    %v2315 = vld [vmem:[%s2306 + $0x40] sm:$0xff]
    %v2316 = vld [vmem:[%s2306 + $0x48] sm:$0xff]
    %v2317 = vld [vmem:[%s2306 + $0x50] sm:$0xff]
    %v2318 = vld [vmem:[%s2306 + $0x58] sm:$0xff]
    %v2319 = vld [vmem:[%s2306 + $0x60] sm:$0xff]
    %v2320 = vld [vmem:[%s2306 + $0x68] sm:$0xff]
    %v2321 = vld [vmem:[%s2306 + $0x70] sm:$0xff]
    %v2322 = vld [vmem:[%s2306 + $0x78] sm:$0xff]
    %v2323 = vld [vmem:[%s2306 + $0x80] sm:$0xff]
    %v2324 = vld [vmem:[%s2306 + $0x88] sm:$0xff]
    %v2325 = vld [vmem:[%s2306 + $0x90] sm:$0xff]
    %v2326 = vld [vmem:[%s2306 + $0x98] sm:$0xff]
    %v2327 = vld [vmem:[%s2306 + $0xa0] sm:$0xff]
    %v2328 = vld [vmem:[%s2306 + $0xa8] sm:$0xff]
    %v2329 = vld [vmem:[%s2306 + $0xb0] sm:$0xff]
    %v2330 = vld [vmem:[%s2306 + $0xb8] sm:$0xff]
    %v2332 = vsel %vm175, %v2274, 0
    %v2335 = vsel %vm175, %v2275, 0
    %v2338 = vsel %vm175, %v2276, 0
    %v2341 = vsel %vm175, %v2277, 0
    %v2344 = vsel %vm175, %v2278, 0
    %v2347 = vsel %vm175, %v2279, 0
    %v2350 = vsel %vm175, %v2280, 0
    %v2353 = vsel %vm175, %v2281, 0
    %v2356 = vsel %vm175, %v2282, 0
    %v2359 = vsel %vm175, %v2283, 0
    %v2362 = vsel %vm175, %v2284, 0
    %v2365 = vsel %vm175, %v2285, 0
    %v2368 = vsel %vm175, %v2286, 0
    %v2371 = vsel %vm175, %v2287, 0
    %v2374 = vsel %vm175, %v2288, 0
    %v2377 = vsel %vm175, %v2289, 0
    %v2380 = vsel %vm175, %v2290, 0
    %v2383 = vsel %vm175, %v2291, 0
    %v2386 = vsel %vm175, %v2292, 0
    %v2389 = vsel %vm175, %v2293, 0
    %v2392 = vsel %vm175, %v2294, 0
    %v2395 = vsel %vm175, %v2295, 0
    %v2398 = vsel %vm175, %v2296, 0
    %v2401 = vsel %vm175, %v2297, 0
    %v2404 = vsel %vm175, %v2298, 0
    %v2407 = vsel %vm175, %v2299, 0
    %v2410 = vsel %vm175, %v2300, 0
    %v2413 = vsel %vm175, %v2301, 0
    %v2416 = vsel %vm175, %v2302, 0
    %v2419 = vsel %vm175, %v2303, 0
    %v2422 = vsel %vm175, %v2304, 0
    %v2425 = vsel %vm175, %v2305, 0
    %2427 = vmatprep.subr.mxu0 0.0
    %2428 = vmatpush1.msra.mxu0 0.0
    %2429 = vmatprep.subr.mxu0 0.0
    %2430 = vmatpush1.msra.mxu0 0.0
    %2431 = vmatprep.subr.mxu0 0.0
    %2432 = vmatpush1.msra.mxu0 0.0
    %2433 = vmatprep.subr.mxu0 0.0
    %2434 = vmatpush1.msra.mxu0 0.0
    %2435 = vmatprep.subr.mxu0 %v2330
    %2436 = vmatpush1.msra.mxu0 %v2329
    %2437 = vmatprep.subr.mxu0 %v2328
    %2438 = vmatpush1.msra.mxu0 %v2327
    %2439 = vmatprep.subr.mxu0 %v2326
    %2440 = vmatpush1.msra.mxu0 %v2325
    %2441 = vmatprep.subr.mxu0 %v2324
    %2442 = vmatpush1.msra.mxu0 %v2323
    %2443 = vmatprep.subr.mxu0 %v2322
    %2444 = vmatpush1.msra.mxu0 %v2321
    %2445 = vmatprep.subr.mxu0 %v2320
    %2446 = vmatpush1.msra.mxu0 %v2319
    %2447 = vmatprep.subr.mxu0 %v2318
    %2448 = vmatpush1.msra.mxu0 %v2317
    %2449 = vmatprep.subr.mxu0 %v2316
    %2450 = vmatpush1.msra.mxu0 %v2315
    %2451 = vmatprep.subr.mxu0 %v2314
    %2452 = vmatpush1.msra.mxu0 %v2313
    %2453 = vmatprep.subr.mxu0 %v2312
    %2454 = vmatpush1.msra.mxu0 %v2311
    %2455 = vmatprep.subr.mxu0 %v2310
    %2456 = vmatpush1.msra.mxu0 %v2309
    %2457 = vmatprep.subr.mxu0 %v2308
    %2458 = vmatpush1.msra.mxu0 %v2307
    %2459 = vmatprep.subr.mxu0 0.0
    %2460 = vmatpush2.msra.mxu0 0.0
    %2461 = vmatprep.subr.mxu0 0.0
    %2462 = vmatpush2.msra.mxu0 0.0
    %2463 = vmatprep.subr.mxu0 0.0
    %2464 = vmatpush2.msra.mxu0 0.0
    %2465 = vmatprep.subr.mxu0 0.0
    %2466 = vmatpush2.msra.mxu0 0.0
    %2467 = vmatprep.subr.mxu0 0.0
    %2468 = vmatpush2.msra.mxu0 0.0
    %2469 = vmatprep.subr.mxu0 0.0
    %2470 = vmatpush2.msra.mxu0 0.0
    %2471 = vmatprep.subr.mxu0 0.0
    %2472 = vmatpush2.msra.mxu0 0.0
    %2473 = vmatprep.subr.mxu0 0.0
    %2474 = vmatpush2.msra.mxu0 0.0
    %2475 = vmatprep.subr.mxu0 0.0
    %2476 = vmatpush2.msra.mxu0 0.0
    %2477 = vmatprep.subr.mxu0 0.0
    %2478 = vmatpush2.msra.mxu0 0.0
    %2479 = vmatprep.subr.mxu0 0.0
    %2480 = vmatpush2.msra.mxu0 0.0
    %2481 = vmatprep.subr.mxu0 0.0
    %2482 = vmatpush2.msra.mxu0 0.0
    %2483 = vmatprep.subr.mxu0 0.0
    %2484 = vmatpush2.msra.mxu0 0.0
    %2485 = vmatprep.subr.mxu0 0.0
    %2486 = vmatpush2.msra.mxu0 0.0
    %2487 = vmatprep.subr.mxu0 0.0
    %2488 = vmatpush2.msra.mxu0 0.0
    %2489 = vmatprep.subr.mxu0 0.0
    %2490 = vmatpush2.msra.mxu0 0.0
    %2491 = vmatprep.mubr.f32.mxu0 0.0
    %2492 = vmatmul.mubr.f32.gmra.mxu0 %v2332
    %v2493 = vpop.f32.mrf.mxu0
    %v2494 = vadd.f32 0.0, %v2493
    %v2495 = vpop.f32.mrf.mxu0
    %v2496 = vadd.f32 0.0, %v2495
    %2497 = vmatprep.mubr.f32.mxu0 0.0
    %2498 = vmatmul.mubr.f32.gmra.mxu0 %v2335
    %v2499 = vpop.f32.mrf.mxu0
    %v2500 = vadd.f32 0.0, %v2499
    %v2501 = vpop.f32.mrf.mxu0
    %v2502 = vadd.f32 0.0, %v2501
    %2503 = vmatprep.mubr.f32.mxu0 0.0
    %2504 = vmatmul.mubr.f32.gmra.mxu0 %v2338
    %v2505 = vpop.f32.mrf.mxu0
    %v2506 = vadd.f32 0.0, %v2505
    %v2507 = vpop.f32.mrf.mxu0
    %v2508 = vadd.f32 0.0, %v2507
    %2509 = vmatprep.mubr.f32.mxu0 0.0
    %2510 = vmatmul.mubr.f32.gmra.mxu0 %v2341
    %v2511 = vpop.f32.mrf.mxu0
    %v2512 = vadd.f32 0.0, %v2511
    %v2513 = vpop.f32.mrf.mxu0
    %v2514 = vadd.f32 0.0, %v2513
    %2515 = vmatprep.mubr.f32.mxu0 0.0
    %2516 = vmatmul.mubr.f32.gmra.mxu0 %v2344
    %v2517 = vpop.f32.mrf.mxu0
    %v2518 = vadd.f32 0.0, %v2517
    %v2519 = vpop.f32.mrf.mxu0
    %v2520 = vadd.f32 0.0, %v2519
    %2521 = vmatprep.mubr.f32.mxu0 0.0
    %2522 = vmatmul.mubr.f32.gmra.mxu0 %v2347
    %v2523 = vpop.f32.mrf.mxu0
    %v2524 = vadd.f32 0.0, %v2523
    %v2525 = vpop.f32.mrf.mxu0
    %v2526 = vadd.f32 0.0, %v2525
    %2527 = vmatprep.mubr.f32.mxu0 0.0
    %2528 = vmatmul.mubr.f32.gmra.mxu0 %v2350
    %v2529 = vpop.f32.mrf.mxu0
    %v2530 = vadd.f32 0.0, %v2529
    %v2531 = vpop.f32.mrf.mxu0
    %v2532 = vadd.f32 0.0, %v2531
    %2533 = vmatprep.mubr.f32.mxu0 0.0
    %2534 = vmatmul.mubr.f32.gmra.mxu0 %v2353
    %v2535 = vpop.f32.mrf.mxu0
    %v2536 = vadd.f32 0.0, %v2535
    %v2537 = vpop.f32.mrf.mxu0
    %v2538 = vadd.f32 0.0, %v2537
    %2539 = vmatprep.mubr.f32.mxu0 0.0
    %2540 = vmatmul.mubr.f32.gmra.mxu0 %v2356
    %v2541 = vpop.f32.mrf.mxu0
    %v2542 = vadd.f32 0.0, %v2541
    %v2543 = vpop.f32.mrf.mxu0
    %v2544 = vadd.f32 0.0, %v2543
    %2545 = vmatprep.mubr.f32.mxu0 0.0
    %2546 = vmatmul.mubr.f32.gmra.mxu0 %v2359
    %v2547 = vpop.f32.mrf.mxu0
    %v2548 = vadd.f32 0.0, %v2547
    %v2549 = vpop.f32.mrf.mxu0
    %v2550 = vadd.f32 0.0, %v2549
    %2551 = vmatprep.mubr.f32.mxu0 0.0
    %2552 = vmatmul.mubr.f32.gmra.mxu0 %v2362
    %v2553 = vpop.f32.mrf.mxu0
    %v2554 = vadd.f32 0.0, %v2553
    %v2555 = vpop.f32.mrf.mxu0
    %v2556 = vadd.f32 0.0, %v2555
    %2557 = vmatprep.mubr.f32.mxu0 0.0
    %2558 = vmatmul.mubr.f32.gmra.mxu0 %v2365
    %v2559 = vpop.f32.mrf.mxu0
    %v2560 = vadd.f32 0.0, %v2559
    %v2561 = vpop.f32.mrf.mxu0
    %v2562 = vadd.f32 0.0, %v2561
    %2563 = vmatprep.mubr.f32.mxu0 0.0
    %2564 = vmatmul.mubr.f32.gmra.mxu0 %v2368
    %v2565 = vpop.f32.mrf.mxu0
    %v2566 = vadd.f32 0.0, %v2565
    %v2567 = vpop.f32.mrf.mxu0
    %v2568 = vadd.f32 0.0, %v2567
    %2569 = vmatprep.mubr.f32.mxu0 0.0
    %2570 = vmatmul.mubr.f32.gmra.mxu0 %v2371
    %v2571 = vpop.f32.mrf.mxu0
    %v2572 = vadd.f32 0.0, %v2571
    %v2573 = vpop.f32.mrf.mxu0
    %v2574 = vadd.f32 0.0, %v2573
    %2575 = vmatprep.mubr.f32.mxu0 0.0
    %2576 = vmatmul.mubr.f32.gmra.mxu0 %v2374
    %v2577 = vpop.f32.mrf.mxu0
    %v2578 = vadd.f32 0.0, %v2577
    %v2579 = vpop.f32.mrf.mxu0
    %v2580 = vadd.f32 0.0, %v2579
    %2581 = vmatprep.mubr.f32.mxu0 0.0
    %2582 = vmatmul.mubr.f32.gmra.mxu0 %v2377
    %v2583 = vpop.f32.mrf.mxu0
    %v2584 = vadd.f32 0.0, %v2583
    %v2585 = vpop.f32.mrf.mxu0
    %v2586 = vadd.f32 0.0, %v2585
    %2587 = vmatprep.mubr.f32.mxu0 0.0
    %2588 = vmatmul.mubr.f32.gmra.mxu0 %v2380
    %v2589 = vpop.f32.mrf.mxu0
    %v2590 = vadd.f32 0.0, %v2589
    %v2591 = vpop.f32.mrf.mxu0
    %v2592 = vadd.f32 0.0, %v2591
    %2593 = vmatprep.mubr.f32.mxu0 0.0
    %2594 = vmatmul.mubr.f32.gmra.mxu0 %v2383
    %v2595 = vpop.f32.mrf.mxu0
    %v2596 = vadd.f32 0.0, %v2595
    %v2597 = vpop.f32.mrf.mxu0
    %v2598 = vadd.f32 0.0, %v2597
    %2599 = vmatprep.mubr.f32.mxu0 0.0
    %2600 = vmatmul.mubr.f32.gmra.mxu0 %v2386
    %v2601 = vpop.f32.mrf.mxu0
    %v2602 = vadd.f32 0.0, %v2601
    %v2603 = vpop.f32.mrf.mxu0
    %v2604 = vadd.f32 0.0, %v2603
    %2605 = vmatprep.mubr.f32.mxu0 0.0
    %2606 = vmatmul.mubr.f32.gmra.mxu0 %v2389
    %v2607 = vpop.f32.mrf.mxu0
    %v2608 = vadd.f32 0.0, %v2607
    %v2609 = vpop.f32.mrf.mxu0
    %v2610 = vadd.f32 0.0, %v2609
    %2611 = vmatprep.mubr.f32.mxu0 0.0
    %2612 = vmatmul.mubr.f32.gmra.mxu0 %v2392
    %v2613 = vpop.f32.mrf.mxu0
    %v2614 = vadd.f32 0.0, %v2613
    %v2615 = vpop.f32.mrf.mxu0
    %v2616 = vadd.f32 0.0, %v2615
    %2617 = vmatprep.mubr.f32.mxu0 0.0
    %2618 = vmatmul.mubr.f32.gmra.mxu0 %v2395
    %v2619 = vpop.f32.mrf.mxu0
    %v2620 = vadd.f32 0.0, %v2619
    %v2621 = vpop.f32.mrf.mxu0
    %v2622 = vadd.f32 0.0, %v2621
    %2623 = vmatprep.mubr.f32.mxu0 0.0
    %2624 = vmatmul.mubr.f32.gmra.mxu0 %v2398
    %v2625 = vpop.f32.mrf.mxu0
    %v2626 = vadd.f32 0.0, %v2625
    %v2627 = vpop.f32.mrf.mxu0
    %v2628 = vadd.f32 0.0, %v2627
    %2629 = vmatprep.mubr.f32.mxu0 0.0
    %2630 = vmatmul.mubr.f32.gmra.mxu0 %v2401
    %v2631 = vpop.f32.mrf.mxu0
    %v2632 = vadd.f32 0.0, %v2631
    %v2633 = vpop.f32.mrf.mxu0
    %v2634 = vadd.f32 0.0, %v2633
    %2635 = vmatprep.mubr.f32.mxu0 0.0
    %2636 = vmatmul.mubr.f32.gmra.mxu0 %v2404
    %v2637 = vpop.f32.mrf.mxu0
    %v2638 = vadd.f32 0.0, %v2637
    %v2639 = vpop.f32.mrf.mxu0
    %v2640 = vadd.f32 0.0, %v2639
    %2641 = vmatprep.mubr.f32.mxu0 0.0
    %2642 = vmatmul.mubr.f32.gmra.mxu0 %v2407
    %v2643 = vpop.f32.mrf.mxu0
    %v2644 = vadd.f32 0.0, %v2643
    %v2645 = vpop.f32.mrf.mxu0
    %v2646 = vadd.f32 0.0, %v2645
    %2647 = vmatprep.mubr.f32.mxu0 0.0
    %2648 = vmatmul.mubr.f32.gmra.mxu0 %v2410
    %v2649 = vpop.f32.mrf.mxu0
    %v2650 = vadd.f32 0.0, %v2649
    %v2651 = vpop.f32.mrf.mxu0
    %v2652 = vadd.f32 0.0, %v2651
    %2653 = vmatprep.mubr.f32.mxu0 0.0
    %2654 = vmatmul.mubr.f32.gmra.mxu0 %v2413
    %v2655 = vpop.f32.mrf.mxu0
    %v2656 = vadd.f32 0.0, %v2655
    %v2657 = vpop.f32.mrf.mxu0
    %v2658 = vadd.f32 0.0, %v2657
    %2659 = vmatprep.mubr.f32.mxu0 0.0
    %2660 = vmatmul.mubr.f32.gmra.mxu0 %v2416
    %v2661 = vpop.f32.mrf.mxu0
    %v2662 = vadd.f32 0.0, %v2661
    %v2663 = vpop.f32.mrf.mxu0
    %v2664 = vadd.f32 0.0, %v2663
    %2665 = vmatprep.mubr.f32.mxu0 0.0
    %2666 = vmatmul.mubr.f32.gmra.mxu0 %v2419
    %v2667 = vpop.f32.mrf.mxu0
    %v2668 = vadd.f32 0.0, %v2667
    %v2669 = vpop.f32.mrf.mxu0
    %v2670 = vadd.f32 0.0, %v2669
    %2671 = vmatprep.mubr.f32.mxu0 0.0
    %2672 = vmatmul.mubr.f32.gmra.mxu0 %v2422
    %v2673 = vpop.f32.mrf.mxu0
    %v2674 = vadd.f32 0.0, %v2673
    %v2675 = vpop.f32.mrf.mxu0
    %v2676 = vadd.f32 0.0, %v2675
    %2677 = vmatprep.mubr.f32.mxu0 0.0
    %2678 = vmatmul.mubr.f32.gmra.mxu0 %v2425
    %v2679 = vpop.f32.mrf.mxu0
    %v2680 = vadd.f32 0.0, %v2679
    %v2681 = vpop.f32.mrf.mxu0
    %v2682 = vadd.f32 0.0, %v2681
    %2683 = vdwg.mxu0
    %v2684 = vld [vmem:[%s2209] sm:$0xff]
    %v2685 = vld [vmem:[%s2209 + $0x8] sm:$0xff]
    %v2686 = vld [vmem:[%s2209 + $0x10] sm:$0xff]
    %v2687 = vld [vmem:[%s2209 + $0x18] sm:$0xff]
    %v2688 = vld [vmem:[%s2209 + $0x20] sm:$0xff]
    %v2689 = vld [vmem:[%s2209 + $0x28] sm:$0xff]
    %v2690 = vld [vmem:[%s2209 + $0x30] sm:$0xff]
    %v2691 = vld [vmem:[%s2209 + $0x38] sm:$0xff]
    %v2692 = vld [vmem:[%s2209 + $0x40] sm:$0xff]
    %v2693 = vld [vmem:[%s2209 + $0x48] sm:$0xff]
    %v2694 = vld [vmem:[%s2209 + $0x50] sm:$0xff]
    %v2695 = vld [vmem:[%s2209 + $0x58] sm:$0xff]
    %v2696 = vld [vmem:[%s2209 + $0x60] sm:$0xff]
    %v2697 = vld [vmem:[%s2209 + $0x68] sm:$0xff]
    %v2698 = vld [vmem:[%s2209 + $0x70] sm:$0xff]
    %v2699 = vld [vmem:[%s2209 + $0x78] sm:$0xff]
    %v2700 = vld [vmem:[%s2209 + $0x80] sm:$0xff]
    %v2701 = vld [vmem:[%s2209 + $0x88] sm:$0xff]
    %v2702 = vld [vmem:[%s2209 + $0x90] sm:$0xff]
    %v2703 = vld [vmem:[%s2209 + $0x98] sm:$0xff]
    %v2704 = vld [vmem:[%s2209 + $0xa0] sm:$0xff]
    %v2705 = vld [vmem:[%s2209 + $0xa8] sm:$0xff]
    %v2706 = vld [vmem:[%s2209 + $0xb0] sm:$0xff]
    %v2707 = vld [vmem:[%s2209 + $0xb8] sm:$0xff]
    %v2708 = vld [vmem:[%s2209 + $0xc0] sm:$0xff]
    %v2709 = vld [vmem:[%s2209 + $0xc8] sm:$0xff]
    %v2710 = vld [vmem:[%s2209 + $0xd0] sm:$0xff]
    %v2711 = vld [vmem:[%s2209 + $0xd8] sm:$0xff]
    %v2712 = vld [vmem:[%s2209 + $0xe0] sm:$0xff]
    %v2713 = vld [vmem:[%s2209 + $0xe8] sm:$0xff]
    %v2714 = vld [vmem:[%s2209 + $0xf0] sm:$0xff]
    %v2715 = vld [vmem:[%s2209 + $0xf8] sm:$0xff]
    %v2716 = vld [vmem:[%s2209 + $0x100] sm:$0xff]
    %v2717 = vld [vmem:[%s2209 + $0x108] sm:$0xff]
    %v2718 = vld [vmem:[%s2209 + $0x110] sm:$0xff]
    %v2719 = vld [vmem:[%s2209 + $0x118] sm:$0xff]
    %v2720 = vld [vmem:[%s2209 + $0x120] sm:$0xff]
    %v2721 = vld [vmem:[%s2209 + $0x128] sm:$0xff]
    %v2722 = vld [vmem:[%s2209 + $0x130] sm:$0xff]
    %v2723 = vld [vmem:[%s2209 + $0x138] sm:$0xff]
    %v2724 = vld [vmem:[%s2209 + $0x140] sm:$0xff]
    %v2725 = vld [vmem:[%s2209 + $0x148] sm:$0xff]
    %v2726 = vld [vmem:[%s2209 + $0x150] sm:$0xff]
    %v2727 = vld [vmem:[%s2209 + $0x158] sm:$0xff]
    %v2728 = vld [vmem:[%s2209 + $0x160] sm:$0xff]
    %v2729 = vld [vmem:[%s2209 + $0x168] sm:$0xff]
    %v2730 = vld [vmem:[%s2209 + $0x170] sm:$0xff]
    %v2731 = vld [vmem:[%s2209 + $0x178] sm:$0xff]
    %v2732 = vld [vmem:[%s2209 + $0x180] sm:$0xff]
    %v2733 = vld [vmem:[%s2209 + $0x188] sm:$0xff]
    %v2734 = vld [vmem:[%s2209 + $0x190] sm:$0xff]
    %v2735 = vld [vmem:[%s2209 + $0x198] sm:$0xff]
    %v2736 = vld [vmem:[%s2209 + $0x1a0] sm:$0xff]
    %v2737 = vld [vmem:[%s2209 + $0x1a8] sm:$0xff]
    %v2738 = vld [vmem:[%s2209 + $0x1b0] sm:$0xff]
    %v2739 = vld [vmem:[%s2209 + $0x1b8] sm:$0xff]
    %v2740 = vld [vmem:[%s2209 + $0x1c0] sm:$0xff]
    %v2741 = vld [vmem:[%s2209 + $0x1c8] sm:$0xff]
    %v2742 = vld [vmem:[%s2209 + $0x1d0] sm:$0xff]
    %v2743 = vld [vmem:[%s2209 + $0x1d8] sm:$0xff]
    %v2744 = vld [vmem:[%s2209 + $0x1e0] sm:$0xff]
    %v2745 = vld [vmem:[%s2209 + $0x1e8] sm:$0xff]
    %v2746 = vld [vmem:[%s2209 + $0x1f0] sm:$0xff]
    %v2747 = vld [vmem:[%s2209 + $0x1f8] sm:$0xff]
    %v2748 = vadd.f32 %v2684, %v2494
    %v2749 = vadd.f32 %v2685, %v2496
    %v2750 = vadd.f32 %v2686, %v2500
    %v2751 = vadd.f32 %v2687, %v2502
    %v2752 = vadd.f32 %v2688, %v2506
    %v2753 = vadd.f32 %v2689, %v2508
    %v2754 = vadd.f32 %v2690, %v2512
    %v2755 = vadd.f32 %v2691, %v2514
    %v2756 = vadd.f32 %v2692, %v2518
    %v2757 = vadd.f32 %v2693, %v2520
    %v2758 = vadd.f32 %v2694, %v2524
    %v2759 = vadd.f32 %v2695, %v2526
    %v2760 = vadd.f32 %v2696, %v2530
    %v2761 = vadd.f32 %v2697, %v2532
    %v2762 = vadd.f32 %v2698, %v2536
    %v2763 = vadd.f32 %v2699, %v2538
    %v2764 = vadd.f32 %v2700, %v2542
    %v2765 = vadd.f32 %v2701, %v2544
    %v2766 = vadd.f32 %v2702, %v2548
    %v2767 = vadd.f32 %v2703, %v2550
    %v2768 = vadd.f32 %v2704, %v2554
    %v2769 = vadd.f32 %v2705, %v2556
    %v2770 = vadd.f32 %v2706, %v2560
    %v2771 = vadd.f32 %v2707, %v2562
    %v2772 = vadd.f32 %v2708, %v2566
    %v2773 = vadd.f32 %v2709, %v2568
    %v2774 = vadd.f32 %v2710, %v2572
    %v2775 = vadd.f32 %v2711, %v2574
    %v2776 = vadd.f32 %v2712, %v2578
    %v2777 = vadd.f32 %v2713, %v2580
    %v2778 = vadd.f32 %v2714, %v2584
    %v2779 = vadd.f32 %v2715, %v2586
    %v2780 = vadd.f32 %v2716, %v2590
    %v2781 = vadd.f32 %v2717, %v2592
    %v2782 = vadd.f32 %v2718, %v2596
    %v2783 = vadd.f32 %v2719, %v2598
    %v2784 = vadd.f32 %v2720, %v2602
    %v2785 = vadd.f32 %v2721, %v2604
    %v2786 = vadd.f32 %v2722, %v2608
    %v2787 = vadd.f32 %v2723, %v2610
    %v2788 = vadd.f32 %v2724, %v2614
    %v2789 = vadd.f32 %v2725, %v2616
    %v2790 = vadd.f32 %v2726, %v2620
    %v2791 = vadd.f32 %v2727, %v2622
    %v2792 = vadd.f32 %v2728, %v2626
    %v2793 = vadd.f32 %v2729, %v2628
    %v2794 = vadd.f32 %v2730, %v2632
    %v2795 = vadd.f32 %v2731, %v2634
    %v2796 = vadd.f32 %v2732, %v2638
    %v2797 = vadd.f32 %v2733, %v2640
    %v2798 = vadd.f32 %v2734, %v2644
    %v2799 = vadd.f32 %v2735, %v2646
    %v2800 = vadd.f32 %v2736, %v2650
    %v2801 = vadd.f32 %v2737, %v2652
    %v2802 = vadd.f32 %v2738, %v2656
    %v2803 = vadd.f32 %v2739, %v2658
    %v2804 = vadd.f32 %v2740, %v2662
    %v2805 = vadd.f32 %v2741, %v2664
    %v2806 = vadd.f32 %v2742, %v2668
    %v2807 = vadd.f32 %v2743, %v2670
    %v2808 = vadd.f32 %v2744, %v2674
    %v2809 = vadd.f32 %v2745, %v2676
    %v2810 = vadd.f32 %v2746, %v2680
    %v2811 = vadd.f32 %v2747, %v2682
    %2812 = vst [vmem:[%s2209] sm:$0xff] %v2748
    %2813 = vst [vmem:[%s2209 + $0x8] sm:$0xff] %v2749
    %2814 = vst [vmem:[%s2209 + $0x10] sm:$0xff] %v2750
    %2815 = vst [vmem:[%s2209 + $0x18] sm:$0xff] %v2751
    %2816 = vst [vmem:[%s2209 + $0x20] sm:$0xff] %v2752
    %2817 = vst [vmem:[%s2209 + $0x28] sm:$0xff] %v2753
    %2818 = vst [vmem:[%s2209 + $0x30] sm:$0xff] %v2754
    %2819 = vst [vmem:[%s2209 + $0x38] sm:$0xff] %v2755
    %2820 = vst [vmem:[%s2209 + $0x40] sm:$0xff] %v2756
    %2821 = vst [vmem:[%s2209 + $0x48] sm:$0xff] %v2757
    %2822 = vst [vmem:[%s2209 + $0x50] sm:$0xff] %v2758
    %2823 = vst [vmem:[%s2209 + $0x58] sm:$0xff] %v2759
    %2824 = vst [vmem:[%s2209 + $0x60] sm:$0xff] %v2760
    %2825 = vst [vmem:[%s2209 + $0x68] sm:$0xff] %v2761
    %2826 = vst [vmem:[%s2209 + $0x70] sm:$0xff] %v2762
    %2827 = vst [vmem:[%s2209 + $0x78] sm:$0xff] %v2763
    %2828 = vst [vmem:[%s2209 + $0x80] sm:$0xff] %v2764
    %2829 = vst [vmem:[%s2209 + $0x88] sm:$0xff] %v2765
    %2830 = vst [vmem:[%s2209 + $0x90] sm:$0xff] %v2766
    %2831 = vst [vmem:[%s2209 + $0x98] sm:$0xff] %v2767
    %2832 = vst [vmem:[%s2209 + $0xa0] sm:$0xff] %v2768
    %2833 = vst [vmem:[%s2209 + $0xa8] sm:$0xff] %v2769
    %2834 = vst [vmem:[%s2209 + $0xb0] sm:$0xff] %v2770
    %2835 = vst [vmem:[%s2209 + $0xb8] sm:$0xff] %v2771
    %2836 = vst [vmem:[%s2209 + $0xc0] sm:$0xff] %v2772
    %2837 = vst [vmem:[%s2209 + $0xc8] sm:$0xff] %v2773
    %2838 = vst [vmem:[%s2209 + $0xd0] sm:$0xff] %v2774
    %2839 = vst [vmem:[%s2209 + $0xd8] sm:$0xff] %v2775
    %2840 = vst [vmem:[%s2209 + $0xe0] sm:$0xff] %v2776
    %2841 = vst [vmem:[%s2209 + $0xe8] sm:$0xff] %v2777
    %2842 = vst [vmem:[%s2209 + $0xf0] sm:$0xff] %v2778
    %2843 = vst [vmem:[%s2209 + $0xf8] sm:$0xff] %v2779
    %2844 = vst [vmem:[%s2209 + $0x100] sm:$0xff] %v2780
    %2845 = vst [vmem:[%s2209 + $0x108] sm:$0xff] %v2781
    %2846 = vst [vmem:[%s2209 + $0x110] sm:$0xff] %v2782
    %2847 = vst [vmem:[%s2209 + $0x118] sm:$0xff] %v2783
    %2848 = vst [vmem:[%s2209 + $0x120] sm:$0xff] %v2784
    %2849 = vst [vmem:[%s2209 + $0x128] sm:$0xff] %v2785
    %2850 = vst [vmem:[%s2209 + $0x130] sm:$0xff] %v2786
    %2851 = vst [vmem:[%s2209 + $0x138] sm:$0xff] %v2787
    %2852 = vst [vmem:[%s2209 + $0x140] sm:$0xff] %v2788
    %2853 = vst [vmem:[%s2209 + $0x148] sm:$0xff] %v2789
    %2854 = vst [vmem:[%s2209 + $0x150] sm:$0xff] %v2790
    %2855 = vst [vmem:[%s2209 + $0x158] sm:$0xff] %v2791
    %2856 = vst [vmem:[%s2209 + $0x160] sm:$0xff] %v2792
    %2857 = vst [vmem:[%s2209 + $0x168] sm:$0xff] %v2793
    %2858 = vst [vmem:[%s2209 + $0x170] sm:$0xff] %v2794
    %2859 = vst [vmem:[%s2209 + $0x178] sm:$0xff] %v2795
    %2860 = vst [vmem:[%s2209 + $0x180] sm:$0xff] %v2796
    %2861 = vst [vmem:[%s2209 + $0x188] sm:$0xff] %v2797
    %2862 = vst [vmem:[%s2209 + $0x190] sm:$0xff] %v2798
    %2863 = vst [vmem:[%s2209 + $0x198] sm:$0xff] %v2799
    %2864 = vst [vmem:[%s2209 + $0x1a0] sm:$0xff] %v2800
    %2865 = vst [vmem:[%s2209 + $0x1a8] sm:$0xff] %v2801
    %2866 = vst [vmem:[%s2209 + $0x1b0] sm:$0xff] %v2802
    %2867 = vst [vmem:[%s2209 + $0x1b8] sm:$0xff] %v2803
    %2868 = vst [vmem:[%s2209 + $0x1c0] sm:$0xff] %v2804
    %2869 = vst [vmem:[%s2209 + $0x1c8] sm:$0xff] %v2805
    %2870 = vst [vmem:[%s2209 + $0x1d0] sm:$0xff] %v2806
    %2871 = vst [vmem:[%s2209 + $0x1d8] sm:$0xff] %v2807
    %2872 = vst [vmem:[%s2209 + $0x1e0] sm:$0xff] %v2808
    %2873 = vst [vmem:[%s2209 + $0x1e8] sm:$0xff] %v2809
    %2874 = vst [vmem:[%s2209 + $0x1f0] sm:$0xff] %v2810
    %2875 = vst [vmem:[%s2209 + $0x1f8] sm:$0xff] %v2811
    %v2876 = vld [vmem:[%s1196] sm:$0xff]
    %v2877 = vld [vmem:[%s1196 + $0x8] sm:$0xff]
    %v2878 = vld [vmem:[%s1196 + $0x10] sm:$0xff]
    %v2879 = vld [vmem:[%s1196 + $0x18] sm:$0xff]
    %v2880 = vld [vmem:[%s1196 + $0x20] sm:$0xff]
    %v2881 = vld [vmem:[%s1196 + $0x28] sm:$0xff]
    %v2882 = vld [vmem:[%s1196 + $0x30] sm:$0xff]
    %v2883 = vld [vmem:[%s1196 + $0x38] sm:$0xff]
    %v2884 = vld [vmem:[%s1196 + $0x40] sm:$0xff]
    %v2885 = vld [vmem:[%s1196 + $0x48] sm:$0xff]
    %v2886 = vld [vmem:[%s1196 + $0x50] sm:$0xff]
    %v2887 = vld [vmem:[%s1196 + $0x58] sm:$0xff]
    %v2888 = vld [vmem:[%s1196 + $0x60] sm:$0xff]
    %v2889 = vld [vmem:[%s1196 + $0x68] sm:$0xff]
    %v2890 = vld [vmem:[%s1196 + $0x70] sm:$0xff]
    %v2891 = vld [vmem:[%s1196 + $0x78] sm:$0xff]
    %v2892 = vld [vmem:[%s1196 + $0x80] sm:$0xff]
    %v2893 = vld [vmem:[%s1196 + $0x88] sm:$0xff]
    %v2894 = vld [vmem:[%s1196 + $0x90] sm:$0xff]
    %v2895 = vld [vmem:[%s1196 + $0x98] sm:$0xff]
    %v2896 = vld [vmem:[%s1196 + $0xa0] sm:$0xff]
    %v2897 = vld [vmem:[%s1196 + $0xa8] sm:$0xff]
    %v2898 = vld [vmem:[%s1196 + $0xb0] sm:$0xff]
    %v2899 = vld [vmem:[%s1196 + $0xb8] sm:$0xff]
    %v2900 = vld [vmem:[%s1196 + $0xc0] sm:$0xff]
    %v2901 = vld [vmem:[%s1196 + $0xc8] sm:$0xff]
    %v2902 = vld [vmem:[%s1196 + $0xd0] sm:$0xff]
    %v2903 = vld [vmem:[%s1196 + $0xd8] sm:$0xff]
    %v2904 = vld [vmem:[%s1196 + $0xe0] sm:$0xff]
    %v2905 = vld [vmem:[%s1196 + $0xe8] sm:$0xff]
    %v2906 = vld [vmem:[%s1196 + $0xf0] sm:$0xff]
    %v2907 = vld [vmem:[%s1196 + $0xf8] sm:$0xff]
    %s2908 = scalar_lea.vmem [#allocation4], 960
    %v2909 = vld [vmem:[%s2908] sm:$0xff]
    %v2910 = vld [vmem:[%s2908 + $0x8] sm:$0xff]
    %v2911 = vld [vmem:[%s2908 + $0x10] sm:$0xff]
    %v2912 = vld [vmem:[%s2908 + $0x18] sm:$0xff]
    %v2913 = vld [vmem:[%s2908 + $0x20] sm:$0xff]
    %v2914 = vld [vmem:[%s2908 + $0x28] sm:$0xff]
    %v2915 = vld [vmem:[%s2908 + $0x30] sm:$0xff]
    %v2916 = vld [vmem:[%s2908 + $0x38] sm:$0xff]
    %v2917 = vld [vmem:[%s2908 + $0x40] sm:$0xff]
    %v2918 = vld [vmem:[%s2908 + $0x48] sm:$0xff]
    %v2919 = vld [vmem:[%s2908 + $0x50] sm:$0xff]
    %v2920 = vld [vmem:[%s2908 + $0x58] sm:$0xff]
    %v2921 = vld [vmem:[%s2908 + $0x60] sm:$0xff]
    %v2922 = vld [vmem:[%s2908 + $0x68] sm:$0xff]
    %v2923 = vld [vmem:[%s2908 + $0x70] sm:$0xff]
    %v2924 = vld [vmem:[%s2908 + $0x78] sm:$0xff]
    %v2925 = vld [vmem:[%s2908 + $0x80] sm:$0xff]
    %v2926 = vld [vmem:[%s2908 + $0x88] sm:$0xff]
    %v2927 = vld [vmem:[%s2908 + $0x90] sm:$0xff]
    %v2928 = vld [vmem:[%s2908 + $0x98] sm:$0xff]
    %v2929 = vld [vmem:[%s2908 + $0xa0] sm:$0xff]
    %v2930 = vld [vmem:[%s2908 + $0xa8] sm:$0xff]
    %v2931 = vld [vmem:[%s2908 + $0xb0] sm:$0xff]
    %v2932 = vld [vmem:[%s2908 + $0xb8] sm:$0xff]
    %v2934 = vsel %vm175, %v2876, 0
    %v2937 = vsel %vm175, %v2877, 0
    %v2940 = vsel %vm175, %v2878, 0
    %v2943 = vsel %vm175, %v2879, 0
    %v2946 = vsel %vm175, %v2880, 0
    %v2949 = vsel %vm175, %v2881, 0
    %v2952 = vsel %vm175, %v2882, 0
    %v2955 = vsel %vm175, %v2883, 0
    %v2958 = vsel %vm175, %v2884, 0
    %v2961 = vsel %vm175, %v2885, 0
    %v2964 = vsel %vm175, %v2886, 0
    %v2967 = vsel %vm175, %v2887, 0
    %v2970 = vsel %vm175, %v2888, 0
    %v2973 = vsel %vm175, %v2889, 0
    %v2976 = vsel %vm175, %v2890, 0
    %v2979 = vsel %vm175, %v2891, 0
    %v2982 = vsel %vm175, %v2892, 0
    %v2985 = vsel %vm175, %v2893, 0
    %v2988 = vsel %vm175, %v2894, 0
    %v2991 = vsel %vm175, %v2895, 0
    %v2994 = vsel %vm175, %v2896, 0
    %v2997 = vsel %vm175, %v2897, 0
    %v3000 = vsel %vm175, %v2898, 0
    %v3003 = vsel %vm175, %v2899, 0
    %v3006 = vsel %vm175, %v2900, 0
    %v3009 = vsel %vm175, %v2901, 0
    %v3012 = vsel %vm175, %v2902, 0
    %v3015 = vsel %vm175, %v2903, 0
    %v3018 = vsel %vm175, %v2904, 0
    %v3021 = vsel %vm175, %v2905, 0
    %v3024 = vsel %vm175, %v2906, 0
    %v3027 = vsel %vm175, %v2907, 0
    %3029 = vmatprep.subr.mxu0 0.0
    %3030 = vmatpush1.msra.mxu0 0.0
    %3031 = vmatprep.subr.mxu0 0.0
    %3032 = vmatpush1.msra.mxu0 0.0
    %3033 = vmatprep.subr.mxu0 0.0
    %3034 = vmatpush1.msra.mxu0 0.0
    %3035 = vmatprep.subr.mxu0 0.0
    %3036 = vmatpush1.msra.mxu0 0.0
    %3037 = vmatprep.subr.mxu0 %v2932
    %3038 = vmatpush1.msra.mxu0 %v2931
    %3039 = vmatprep.subr.mxu0 %v2930
    %3040 = vmatpush1.msra.mxu0 %v2929
    %3041 = vmatprep.subr.mxu0 %v2928
    %3042 = vmatpush1.msra.mxu0 %v2927
    %3043 = vmatprep.subr.mxu0 %v2926
    %3044 = vmatpush1.msra.mxu0 %v2925
    %3045 = vmatprep.subr.mxu0 %v2924
    %3046 = vmatpush1.msra.mxu0 %v2923
    %3047 = vmatprep.subr.mxu0 %v2922
    %3048 = vmatpush1.msra.mxu0 %v2921
    %3049 = vmatprep.subr.mxu0 %v2920
    %3050 = vmatpush1.msra.mxu0 %v2919
    %3051 = vmatprep.subr.mxu0 %v2918
    %3052 = vmatpush1.msra.mxu0 %v2917
    %3053 = vmatprep.subr.mxu0 %v2916
    %3054 = vmatpush1.msra.mxu0 %v2915
    %3055 = vmatprep.subr.mxu0 %v2914
    %3056 = vmatpush1.msra.mxu0 %v2913
    %3057 = vmatprep.subr.mxu0 %v2912
    %3058 = vmatpush1.msra.mxu0 %v2911
    %3059 = vmatprep.subr.mxu0 %v2910
    %3060 = vmatpush1.msra.mxu0 %v2909
    %3061 = vmatprep.subr.mxu0 0.0
    %3062 = vmatpush2.msra.mxu0 0.0
    %3063 = vmatprep.subr.mxu0 0.0
    %3064 = vmatpush2.msra.mxu0 0.0
    %3065 = vmatprep.subr.mxu0 0.0
    %3066 = vmatpush2.msra.mxu0 0.0
    %3067 = vmatprep.subr.mxu0 0.0
    %3068 = vmatpush2.msra.mxu0 0.0
    %3069 = vmatprep.subr.mxu0 0.0
    %3070 = vmatpush2.msra.mxu0 0.0
    %3071 = vmatprep.subr.mxu0 0.0
    %3072 = vmatpush2.msra.mxu0 0.0
    %3073 = vmatprep.subr.mxu0 0.0
    %3074 = vmatpush2.msra.mxu0 0.0
    %3075 = vmatprep.subr.mxu0 0.0
    %3076 = vmatpush2.msra.mxu0 0.0
    %3077 = vmatprep.subr.mxu0 0.0
    %3078 = vmatpush2.msra.mxu0 0.0
    %3079 = vmatprep.subr.mxu0 0.0
    %3080 = vmatpush2.msra.mxu0 0.0
    %3081 = vmatprep.subr.mxu0 0.0
    %3082 = vmatpush2.msra.mxu0 0.0
    %3083 = vmatprep.subr.mxu0 0.0
    %3084 = vmatpush2.msra.mxu0 0.0
    %3085 = vmatprep.subr.mxu0 0.0
    %3086 = vmatpush2.msra.mxu0 0.0
    %3087 = vmatprep.subr.mxu0 0.0
    %3088 = vmatpush2.msra.mxu0 0.0
    %3089 = vmatprep.subr.mxu0 0.0
    %3090 = vmatpush2.msra.mxu0 0.0
    %3091 = vmatprep.subr.mxu0 0.0
    %3092 = vmatpush2.msra.mxu0 0.0
    %3093 = vmatprep.mubr.f32.mxu0 0.0
    %3094 = vmatmul.mubr.f32.gmra.mxu0 %v2934
    %v3095 = vpop.f32.mrf.mxu0
    %v3096 = vadd.f32 0.0, %v3095
    %v3097 = vpop.f32.mrf.mxu0
    %v3098 = vadd.f32 0.0, %v3097
    %3099 = vmatprep.mubr.f32.mxu0 0.0
    %3100 = vmatmul.mubr.f32.gmra.mxu0 %v2937
    %v3101 = vpop.f32.mrf.mxu0
    %v3102 = vadd.f32 0.0, %v3101
    %v3103 = vpop.f32.mrf.mxu0
    %v3104 = vadd.f32 0.0, %v3103
    %3105 = vmatprep.mubr.f32.mxu0 0.0
    %3106 = vmatmul.mubr.f32.gmra.mxu0 %v2940
    %v3107 = vpop.f32.mrf.mxu0
    %v3108 = vadd.f32 0.0, %v3107
    %v3109 = vpop.f32.mrf.mxu0
    %v3110 = vadd.f32 0.0, %v3109
    %3111 = vmatprep.mubr.f32.mxu0 0.0
    %3112 = vmatmul.mubr.f32.gmra.mxu0 %v2943
    %v3113 = vpop.f32.mrf.mxu0
    %v3114 = vadd.f32 0.0, %v3113
    %v3115 = vpop.f32.mrf.mxu0
    %v3116 = vadd.f32 0.0, %v3115
    %3117 = vmatprep.mubr.f32.mxu0 0.0
    %3118 = vmatmul.mubr.f32.gmra.mxu0 %v2946
    %v3119 = vpop.f32.mrf.mxu0
    %v3120 = vadd.f32 0.0, %v3119
    %v3121 = vpop.f32.mrf.mxu0
    %v3122 = vadd.f32 0.0, %v3121
    %3123 = vmatprep.mubr.f32.mxu0 0.0
    %3124 = vmatmul.mubr.f32.gmra.mxu0 %v2949
    %v3125 = vpop.f32.mrf.mxu0
    %v3126 = vadd.f32 0.0, %v3125
    %v3127 = vpop.f32.mrf.mxu0
    %v3128 = vadd.f32 0.0, %v3127
    %3129 = vmatprep.mubr.f32.mxu0 0.0
    %3130 = vmatmul.mubr.f32.gmra.mxu0 %v2952
    %v3131 = vpop.f32.mrf.mxu0
    %v3132 = vadd.f32 0.0, %v3131
    %v3133 = vpop.f32.mrf.mxu0
    %v3134 = vadd.f32 0.0, %v3133
    %3135 = vmatprep.mubr.f32.mxu0 0.0
    %3136 = vmatmul.mubr.f32.gmra.mxu0 %v2955
    %v3137 = vpop.f32.mrf.mxu0
    %v3138 = vadd.f32 0.0, %v3137
    %v3139 = vpop.f32.mrf.mxu0
    %v3140 = vadd.f32 0.0, %v3139
    %3141 = vmatprep.mubr.f32.mxu0 0.0
    %3142 = vmatmul.mubr.f32.gmra.mxu0 %v2958
    %v3143 = vpop.f32.mrf.mxu0
    %v3144 = vadd.f32 0.0, %v3143
    %v3145 = vpop.f32.mrf.mxu0
    %v3146 = vadd.f32 0.0, %v3145
    %3147 = vmatprep.mubr.f32.mxu0 0.0
    %3148 = vmatmul.mubr.f32.gmra.mxu0 %v2961
    %v3149 = vpop.f32.mrf.mxu0
    %v3150 = vadd.f32 0.0, %v3149
    %v3151 = vpop.f32.mrf.mxu0
    %v3152 = vadd.f32 0.0, %v3151
    %3153 = vmatprep.mubr.f32.mxu0 0.0
    %3154 = vmatmul.mubr.f32.gmra.mxu0 %v2964
    %v3155 = vpop.f32.mrf.mxu0
    %v3156 = vadd.f32 0.0, %v3155
    %v3157 = vpop.f32.mrf.mxu0
    %v3158 = vadd.f32 0.0, %v3157
    %3159 = vmatprep.mubr.f32.mxu0 0.0
    %3160 = vmatmul.mubr.f32.gmra.mxu0 %v2967
    %v3161 = vpop.f32.mrf.mxu0
    %v3162 = vadd.f32 0.0, %v3161
    %v3163 = vpop.f32.mrf.mxu0
    %v3164 = vadd.f32 0.0, %v3163
    %3165 = vmatprep.mubr.f32.mxu0 0.0
    %3166 = vmatmul.mubr.f32.gmra.mxu0 %v2970
    %v3167 = vpop.f32.mrf.mxu0
    %v3168 = vadd.f32 0.0, %v3167
    %v3169 = vpop.f32.mrf.mxu0
    %v3170 = vadd.f32 0.0, %v3169
    %3171 = vmatprep.mubr.f32.mxu0 0.0
    %3172 = vmatmul.mubr.f32.gmra.mxu0 %v2973
    %v3173 = vpop.f32.mrf.mxu0
    %v3174 = vadd.f32 0.0, %v3173
    %v3175 = vpop.f32.mrf.mxu0
    %v3176 = vadd.f32 0.0, %v3175
    %3177 = vmatprep.mubr.f32.mxu0 0.0
    %3178 = vmatmul.mubr.f32.gmra.mxu0 %v2976
    %v3179 = vpop.f32.mrf.mxu0
    %v3180 = vadd.f32 0.0, %v3179
    %v3181 = vpop.f32.mrf.mxu0
    %v3182 = vadd.f32 0.0, %v3181
    %3183 = vmatprep.mubr.f32.mxu0 0.0
    %3184 = vmatmul.mubr.f32.gmra.mxu0 %v2979
    %v3185 = vpop.f32.mrf.mxu0
    %v3186 = vadd.f32 0.0, %v3185
    %v3187 = vpop.f32.mrf.mxu0
    %v3188 = vadd.f32 0.0, %v3187
    %3189 = vmatprep.mubr.f32.mxu0 0.0
    %3190 = vmatmul.mubr.f32.gmra.mxu0 %v2982
    %v3191 = vpop.f32.mrf.mxu0
    %v3192 = vadd.f32 0.0, %v3191
    %v3193 = vpop.f32.mrf.mxu0
    %v3194 = vadd.f32 0.0, %v3193
    %3195 = vmatprep.mubr.f32.mxu0 0.0
    %3196 = vmatmul.mubr.f32.gmra.mxu0 %v2985
    %v3197 = vpop.f32.mrf.mxu0
    %v3198 = vadd.f32 0.0, %v3197
    %v3199 = vpop.f32.mrf.mxu0
    %v3200 = vadd.f32 0.0, %v3199
    %3201 = vmatprep.mubr.f32.mxu0 0.0
    %3202 = vmatmul.mubr.f32.gmra.mxu0 %v2988
    %v3203 = vpop.f32.mrf.mxu0
    %v3204 = vadd.f32 0.0, %v3203
    %v3205 = vpop.f32.mrf.mxu0
    %v3206 = vadd.f32 0.0, %v3205
    %3207 = vmatprep.mubr.f32.mxu0 0.0
    %3208 = vmatmul.mubr.f32.gmra.mxu0 %v2991
    %v3209 = vpop.f32.mrf.mxu0
    %v3210 = vadd.f32 0.0, %v3209
    %v3211 = vpop.f32.mrf.mxu0
    %v3212 = vadd.f32 0.0, %v3211
    %3213 = vmatprep.mubr.f32.mxu0 0.0
    %3214 = vmatmul.mubr.f32.gmra.mxu0 %v2994
    %v3215 = vpop.f32.mrf.mxu0
    %v3216 = vadd.f32 0.0, %v3215
    %v3217 = vpop.f32.mrf.mxu0
    %v3218 = vadd.f32 0.0, %v3217
    %3219 = vmatprep.mubr.f32.mxu0 0.0
    %3220 = vmatmul.mubr.f32.gmra.mxu0 %v2997
    %v3221 = vpop.f32.mrf.mxu0
    %v3222 = vadd.f32 0.0, %v3221
    %v3223 = vpop.f32.mrf.mxu0
    %v3224 = vadd.f32 0.0, %v3223
    %3225 = vmatprep.mubr.f32.mxu0 0.0
    %3226 = vmatmul.mubr.f32.gmra.mxu0 %v3000
    %v3227 = vpop.f32.mrf.mxu0
    %v3228 = vadd.f32 0.0, %v3227
    %v3229 = vpop.f32.mrf.mxu0
    %v3230 = vadd.f32 0.0, %v3229
    %3231 = vmatprep.mubr.f32.mxu0 0.0
    %3232 = vmatmul.mubr.f32.gmra.mxu0 %v3003
    %v3233 = vpop.f32.mrf.mxu0
    %v3234 = vadd.f32 0.0, %v3233
    %v3235 = vpop.f32.mrf.mxu0
    %v3236 = vadd.f32 0.0, %v3235
    %3237 = vmatprep.mubr.f32.mxu0 0.0
    %3238 = vmatmul.mubr.f32.gmra.mxu0 %v3006
    %v3239 = vpop.f32.mrf.mxu0
    %v3240 = vadd.f32 0.0, %v3239
    %v3241 = vpop.f32.mrf.mxu0
    %v3242 = vadd.f32 0.0, %v3241
    %3243 = vmatprep.mubr.f32.mxu0 0.0
    %3244 = vmatmul.mubr.f32.gmra.mxu0 %v3009
    %v3245 = vpop.f32.mrf.mxu0
    %v3246 = vadd.f32 0.0, %v3245
    %v3247 = vpop.f32.mrf.mxu0
    %v3248 = vadd.f32 0.0, %v3247
    %3249 = vmatprep.mubr.f32.mxu0 0.0
    %3250 = vmatmul.mubr.f32.gmra.mxu0 %v3012
    %v3251 = vpop.f32.mrf.mxu0
    %v3252 = vadd.f32 0.0, %v3251
    %v3253 = vpop.f32.mrf.mxu0
    %v3254 = vadd.f32 0.0, %v3253
    %3255 = vmatprep.mubr.f32.mxu0 0.0
    %3256 = vmatmul.mubr.f32.gmra.mxu0 %v3015
    %v3257 = vpop.f32.mrf.mxu0
    %v3258 = vadd.f32 0.0, %v3257
    %v3259 = vpop.f32.mrf.mxu0
    %v3260 = vadd.f32 0.0, %v3259
    %3261 = vmatprep.mubr.f32.mxu0 0.0
    %3262 = vmatmul.mubr.f32.gmra.mxu0 %v3018
    %v3263 = vpop.f32.mrf.mxu0
    %v3264 = vadd.f32 0.0, %v3263
    %v3265 = vpop.f32.mrf.mxu0
    %v3266 = vadd.f32 0.0, %v3265
    %3267 = vmatprep.mubr.f32.mxu0 0.0
    %3268 = vmatmul.mubr.f32.gmra.mxu0 %v3021
    %v3269 = vpop.f32.mrf.mxu0
    %v3270 = vadd.f32 0.0, %v3269
    %v3271 = vpop.f32.mrf.mxu0
    %v3272 = vadd.f32 0.0, %v3271
    %3273 = vmatprep.mubr.f32.mxu0 0.0
    %3274 = vmatmul.mubr.f32.gmra.mxu0 %v3024
    %v3275 = vpop.f32.mrf.mxu0
    %v3276 = vadd.f32 0.0, %v3275
    %v3277 = vpop.f32.mrf.mxu0
    %v3278 = vadd.f32 0.0, %v3277
    %3279 = vmatprep.mubr.f32.mxu0 0.0
    %3280 = vmatmul.mubr.f32.gmra.mxu0 %v3027
    %v3281 = vpop.f32.mrf.mxu0
    %v3282 = vadd.f32 0.0, %v3281
    %v3283 = vpop.f32.mrf.mxu0
    %v3284 = vadd.f32 0.0, %v3283
    %3285 = vdwg.mxu0
    %v3286 = vld [vmem:[%s2209] sm:$0xff]
    %v3287 = vld [vmem:[%s2209 + $0x8] sm:$0xff]
    %v3288 = vld [vmem:[%s2209 + $0x10] sm:$0xff]
    %v3289 = vld [vmem:[%s2209 + $0x18] sm:$0xff]
    %v3290 = vld [vmem:[%s2209 + $0x20] sm:$0xff]
    %v3291 = vld [vmem:[%s2209 + $0x28] sm:$0xff]
    %v3292 = vld [vmem:[%s2209 + $0x30] sm:$0xff]
    %v3293 = vld [vmem:[%s2209 + $0x38] sm:$0xff]
    %v3294 = vld [vmem:[%s2209 + $0x40] sm:$0xff]
    %v3295 = vld [vmem:[%s2209 + $0x48] sm:$0xff]
    %v3296 = vld [vmem:[%s2209 + $0x50] sm:$0xff]
    %v3297 = vld [vmem:[%s2209 + $0x58] sm:$0xff]
    %v3298 = vld [vmem:[%s2209 + $0x60] sm:$0xff]
    %v3299 = vld [vmem:[%s2209 + $0x68] sm:$0xff]
    %v3300 = vld [vmem:[%s2209 + $0x70] sm:$0xff]
    %v3301 = vld [vmem:[%s2209 + $0x78] sm:$0xff]
    %v3302 = vld [vmem:[%s2209 + $0x80] sm:$0xff]
    %v3303 = vld [vmem:[%s2209 + $0x88] sm:$0xff]
    %v3304 = vld [vmem:[%s2209 + $0x90] sm:$0xff]
    %v3305 = vld [vmem:[%s2209 + $0x98] sm:$0xff]
    %v3306 = vld [vmem:[%s2209 + $0xa0] sm:$0xff]
    %v3307 = vld [vmem:[%s2209 + $0xa8] sm:$0xff]
    %v3308 = vld [vmem:[%s2209 + $0xb0] sm:$0xff]
    %v3309 = vld [vmem:[%s2209 + $0xb8] sm:$0xff]
    %v3310 = vld [vmem:[%s2209 + $0xc0] sm:$0xff]
    %v3311 = vld [vmem:[%s2209 + $0xc8] sm:$0xff]
    %v3312 = vld [vmem:[%s2209 + $0xd0] sm:$0xff]
    %v3313 = vld [vmem:[%s2209 + $0xd8] sm:$0xff]
    %v3314 = vld [vmem:[%s2209 + $0xe0] sm:$0xff]
    %v3315 = vld [vmem:[%s2209 + $0xe8] sm:$0xff]
    %v3316 = vld [vmem:[%s2209 + $0xf0] sm:$0xff]
    %v3317 = vld [vmem:[%s2209 + $0xf8] sm:$0xff]
    %v3318 = vld [vmem:[%s2209 + $0x100] sm:$0xff]
    %v3319 = vld [vmem:[%s2209 + $0x108] sm:$0xff]
    %v3320 = vld [vmem:[%s2209 + $0x110] sm:$0xff]
    %v3321 = vld [vmem:[%s2209 + $0x118] sm:$0xff]
    %v3322 = vld [vmem:[%s2209 + $0x120] sm:$0xff]
    %v3323 = vld [vmem:[%s2209 + $0x128] sm:$0xff]
    %v3324 = vld [vmem:[%s2209 + $0x130] sm:$0xff]
    %v3325 = vld [vmem:[%s2209 + $0x138] sm:$0xff]
    %v3326 = vld [vmem:[%s2209 + $0x140] sm:$0xff]
    %v3327 = vld [vmem:[%s2209 + $0x148] sm:$0xff]
    %v3328 = vld [vmem:[%s2209 + $0x150] sm:$0xff]
    %v3329 = vld [vmem:[%s2209 + $0x158] sm:$0xff]
    %v3330 = vld [vmem:[%s2209 + $0x160] sm:$0xff]
    %v3331 = vld [vmem:[%s2209 + $0x168] sm:$0xff]
    %v3332 = vld [vmem:[%s2209 + $0x170] sm:$0xff]
    %v3333 = vld [vmem:[%s2209 + $0x178] sm:$0xff]
    %v3334 = vld [vmem:[%s2209 + $0x180] sm:$0xff]
    %v3335 = vld [vmem:[%s2209 + $0x188] sm:$0xff]
    %v3336 = vld [vmem:[%s2209 + $0x190] sm:$0xff]
    %v3337 = vld [vmem:[%s2209 + $0x198] sm:$0xff]
    %v3338 = vld [vmem:[%s2209 + $0x1a0] sm:$0xff]
    %v3339 = vld [vmem:[%s2209 + $0x1a8] sm:$0xff]
    %v3340 = vld [vmem:[%s2209 + $0x1b0] sm:$0xff]
    %v3341 = vld [vmem:[%s2209 + $0x1b8] sm:$0xff]
    %v3342 = vld [vmem:[%s2209 + $0x1c0] sm:$0xff]
    %v3343 = vld [vmem:[%s2209 + $0x1c8] sm:$0xff]
    %v3344 = vld [vmem:[%s2209 + $0x1d0] sm:$0xff]
    %v3345 = vld [vmem:[%s2209 + $0x1d8] sm:$0xff]
    %v3346 = vld [vmem:[%s2209 + $0x1e0] sm:$0xff]
    %v3347 = vld [vmem:[%s2209 + $0x1e8] sm:$0xff]
    %v3348 = vld [vmem:[%s2209 + $0x1f0] sm:$0xff]
    %v3349 = vld [vmem:[%s2209 + $0x1f8] sm:$0xff]
    %v3350 = vadd.f32 %v3286, %v3096
    %v3351 = vadd.f32 %v3287, %v3098
    %v3352 = vadd.f32 %v3288, %v3102
    %v3353 = vadd.f32 %v3289, %v3104
    %v3354 = vadd.f32 %v3290, %v3108
    %v3355 = vadd.f32 %v3291, %v3110
    %v3356 = vadd.f32 %v3292, %v3114
    %v3357 = vadd.f32 %v3293, %v3116
    %v3358 = vadd.f32 %v3294, %v3120
    %v3359 = vadd.f32 %v3295, %v3122
    %v3360 = vadd.f32 %v3296, %v3126
    %v3361 = vadd.f32 %v3297, %v3128
    %v3362 = vadd.f32 %v3298, %v3132
    %v3363 = vadd.f32 %v3299, %v3134
    %v3364 = vadd.f32 %v3300, %v3138
    %v3365 = vadd.f32 %v3301, %v3140
    %v3366 = vadd.f32 %v3302, %v3144
    %v3367 = vadd.f32 %v3303, %v3146
    %v3368 = vadd.f32 %v3304, %v3150
    %v3369 = vadd.f32 %v3305, %v3152
    %v3370 = vadd.f32 %v3306, %v3156
    %v3371 = vadd.f32 %v3307, %v3158
    %v3372 = vadd.f32 %v3308, %v3162
    %v3373 = vadd.f32 %v3309, %v3164
    %v3374 = vadd.f32 %v3310, %v3168
    %v3375 = vadd.f32 %v3311, %v3170
    %v3376 = vadd.f32 %v3312, %v3174
    %v3377 = vadd.f32 %v3313, %v3176
    %v3378 = vadd.f32 %v3314, %v3180
    %v3379 = vadd.f32 %v3315, %v3182
    %v3380 = vadd.f32 %v3316, %v3186
    %v3381 = vadd.f32 %v3317, %v3188
    %v3382 = vadd.f32 %v3318, %v3192
    %v3383 = vadd.f32 %v3319, %v3194
    %v3384 = vadd.f32 %v3320, %v3198
    %v3385 = vadd.f32 %v3321, %v3200
    %v3386 = vadd.f32 %v3322, %v3204
    %v3387 = vadd.f32 %v3323, %v3206
    %v3388 = vadd.f32 %v3324, %v3210
    %v3389 = vadd.f32 %v3325, %v3212
    %v3390 = vadd.f32 %v3326, %v3216
    %v3391 = vadd.f32 %v3327, %v3218
    %v3392 = vadd.f32 %v3328, %v3222
    %v3393 = vadd.f32 %v3329, %v3224
    %v3394 = vadd.f32 %v3330, %v3228
    %v3395 = vadd.f32 %v3331, %v3230
    %v3396 = vadd.f32 %v3332, %v3234
    %v3397 = vadd.f32 %v3333, %v3236
    %v3398 = vadd.f32 %v3334, %v3240
    %v3399 = vadd.f32 %v3335, %v3242
    %v3400 = vadd.f32 %v3336, %v3246
    %v3401 = vadd.f32 %v3337, %v3248
    %v3402 = vadd.f32 %v3338, %v3252
    %v3403 = vadd.f32 %v3339, %v3254
    %v3404 = vadd.f32 %v3340, %v3258
    %v3405 = vadd.f32 %v3341, %v3260
    %v3406 = vadd.f32 %v3342, %v3264
    %v3407 = vadd.f32 %v3343, %v3266
    %v3408 = vadd.f32 %v3344, %v3270
    %v3409 = vadd.f32 %v3345, %v3272
    %v3410 = vadd.f32 %v3346, %v3276
    %v3411 = vadd.f32 %v3347, %v3278
    %v3412 = vadd.f32 %v3348, %v3282
    %v3413 = vadd.f32 %v3349, %v3284
    %3414 = vst [vmem:[%s2209] sm:$0xff] %v3350
    %3415 = vst [vmem:[%s2209 + $0x8] sm:$0xff] %v3351
    %3416 = vst [vmem:[%s2209 + $0x10] sm:$0xff] %v3352
    %3417 = vst [vmem:[%s2209 + $0x18] sm:$0xff] %v3353
    %3418 = vst [vmem:[%s2209 + $0x20] sm:$0xff] %v3354
    %3419 = vst [vmem:[%s2209 + $0x28] sm:$0xff] %v3355
    %3420 = vst [vmem:[%s2209 + $0x30] sm:$0xff] %v3356
    %3421 = vst [vmem:[%s2209 + $0x38] sm:$0xff] %v3357
    %3422 = vst [vmem:[%s2209 + $0x40] sm:$0xff] %v3358
    %3423 = vst [vmem:[%s2209 + $0x48] sm:$0xff] %v3359
    %3424 = vst [vmem:[%s2209 + $0x50] sm:$0xff] %v3360
    %3425 = vst [vmem:[%s2209 + $0x58] sm:$0xff] %v3361
    %3426 = vst [vmem:[%s2209 + $0x60] sm:$0xff] %v3362
    %3427 = vst [vmem:[%s2209 + $0x68] sm:$0xff] %v3363
    %3428 = vst [vmem:[%s2209 + $0x70] sm:$0xff] %v3364
    %3429 = vst [vmem:[%s2209 + $0x78] sm:$0xff] %v3365
    %3430 = vst [vmem:[%s2209 + $0x80] sm:$0xff] %v3366
    %3431 = vst [vmem:[%s2209 + $0x88] sm:$0xff] %v3367
    %3432 = vst [vmem:[%s2209 + $0x90] sm:$0xff] %v3368
    %3433 = vst [vmem:[%s2209 + $0x98] sm:$0xff] %v3369
    %3434 = vst [vmem:[%s2209 + $0xa0] sm:$0xff] %v3370
    %3435 = vst [vmem:[%s2209 + $0xa8] sm:$0xff] %v3371
    %3436 = vst [vmem:[%s2209 + $0xb0] sm:$0xff] %v3372
    %3437 = vst [vmem:[%s2209 + $0xb8] sm:$0xff] %v3373
    %3438 = vst [vmem:[%s2209 + $0xc0] sm:$0xff] %v3374
    %3439 = vst [vmem:[%s2209 + $0xc8] sm:$0xff] %v3375
    %3440 = vst [vmem:[%s2209 + $0xd0] sm:$0xff] %v3376
    %3441 = vst [vmem:[%s2209 + $0xd8] sm:$0xff] %v3377
    %3442 = vst [vmem:[%s2209 + $0xe0] sm:$0xff] %v3378
    %3443 = vst [vmem:[%s2209 + $0xe8] sm:$0xff] %v3379
    %3444 = vst [vmem:[%s2209 + $0xf0] sm:$0xff] %v3380
    %3445 = vst [vmem:[%s2209 + $0xf8] sm:$0xff] %v3381
    %3446 = vst [vmem:[%s2209 + $0x100] sm:$0xff] %v3382
    %3447 = vst [vmem:[%s2209 + $0x108] sm:$0xff] %v3383
    %3448 = vst [vmem:[%s2209 + $0x110] sm:$0xff] %v3384
    %3449 = vst [vmem:[%s2209 + $0x118] sm:$0xff] %v3385
    %3450 = vst [vmem:[%s2209 + $0x120] sm:$0xff] %v3386
    %3451 = vst [vmem:[%s2209 + $0x128] sm:$0xff] %v3387
    %3452 = vst [vmem:[%s2209 + $0x130] sm:$0xff] %v3388
    %3453 = vst [vmem:[%s2209 + $0x138] sm:$0xff] %v3389
    %3454 = vst [vmem:[%s2209 + $0x140] sm:$0xff] %v3390
    %3455 = vst [vmem:[%s2209 + $0x148] sm:$0xff] %v3391
    %3456 = vst [vmem:[%s2209 + $0x150] sm:$0xff] %v3392
    %3457 = vst [vmem:[%s2209 + $0x158] sm:$0xff] %v3393
    %3458 = vst [vmem:[%s2209 + $0x160] sm:$0xff] %v3394
    %3459 = vst [vmem:[%s2209 + $0x168] sm:$0xff] %v3395
    %3460 = vst [vmem:[%s2209 + $0x170] sm:$0xff] %v3396
    %3461 = vst [vmem:[%s2209 + $0x178] sm:$0xff] %v3397
    %3462 = vst [vmem:[%s2209 + $0x180] sm:$0xff] %v3398
    %3463 = vst [vmem:[%s2209 + $0x188] sm:$0xff] %v3399
    %3464 = vst [vmem:[%s2209 + $0x190] sm:$0xff] %v3400
    %3465 = vst [vmem:[%s2209 + $0x198] sm:$0xff] %v3401
    %3466 = vst [vmem:[%s2209 + $0x1a0] sm:$0xff] %v3402
    %3467 = vst [vmem:[%s2209 + $0x1a8] sm:$0xff] %v3403
    %3468 = vst [vmem:[%s2209 + $0x1b0] sm:$0xff] %v3404
    %3469 = vst [vmem:[%s2209 + $0x1b8] sm:$0xff] %v3405
    %3470 = vst [vmem:[%s2209 + $0x1c0] sm:$0xff] %v3406
    %3471 = vst [vmem:[%s2209 + $0x1c8] sm:$0xff] %v3407
    %3472 = vst [vmem:[%s2209 + $0x1d0] sm:$0xff] %v3408
    %3473 = vst [vmem:[%s2209 + $0x1d8] sm:$0xff] %v3409
    %3474 = vst [vmem:[%s2209 + $0x1e0] sm:$0xff] %v3410
    %3475 = vst [vmem:[%s2209 + $0x1e8] sm:$0xff] %v3411
    %3476 = vst [vmem:[%s2209 + $0x1f0] sm:$0xff] %v3412
    %3477 = vst [vmem:[%s2209 + $0x1f8] sm:$0xff] %v3413
    %v3478 = vld [vmem:[#allocation2] sm:$0xff]
    %v3479 = vld [vmem:[#allocation2 + $0x8] sm:$0xff]
    %v3480 = vld [vmem:[#allocation2 + $0x10] sm:$0xff]
    %v3481 = vld [vmem:[#allocation2 + $0x18] sm:$0xff]
    %v3482 = vld [vmem:[#allocation2 + $0x20] sm:$0xff]
    %v3483 = vld [vmem:[#allocation2 + $0x28] sm:$0xff]
    %v3484 = vld [vmem:[#allocation2 + $0x30] sm:$0xff]
    %v3485 = vld [vmem:[#allocation2 + $0x38] sm:$0xff]
    %v3486 = vld [vmem:[#allocation2 + $0x40] sm:$0xff]
    %v3487 = vld [vmem:[#allocation2 + $0x48] sm:$0xff]
    %v3488 = vld [vmem:[#allocation2 + $0x50] sm:$0xff]
    %v3489 = vld [vmem:[#allocation2 + $0x58] sm:$0xff]
    %v3490 = vld [vmem:[#allocation2 + $0x60] sm:$0xff]
    %v3491 = vld [vmem:[#allocation2 + $0x68] sm:$0xff]
    %v3492 = vld [vmem:[#allocation2 + $0x70] sm:$0xff]
    %v3493 = vld [vmem:[#allocation2 + $0x78] sm:$0xff]
    %v3494 = vld [vmem:[#allocation2 + $0x80] sm:$0xff]
    %v3495 = vld [vmem:[#allocation2 + $0x88] sm:$0xff]
    %v3496 = vld [vmem:[#allocation2 + $0x90] sm:$0xff]
    %v3497 = vld [vmem:[#allocation2 + $0x98] sm:$0xff]
    %v3498 = vld [vmem:[#allocation2 + $0xa0] sm:$0xff]
    %v3499 = vld [vmem:[#allocation2 + $0xa8] sm:$0xff]
    %v3500 = vld [vmem:[#allocation2 + $0xb0] sm:$0xff]
    %v3501 = vld [vmem:[#allocation2 + $0xb8] sm:$0xff]
    %v3502 = vld [vmem:[#allocation2 + $0xc0] sm:$0xff]
    %v3503 = vld [vmem:[#allocation2 + $0xc8] sm:$0xff]
    %v3504 = vld [vmem:[#allocation2 + $0xd0] sm:$0xff]
    %v3505 = vld [vmem:[#allocation2 + $0xd8] sm:$0xff]
    %v3506 = vld [vmem:[#allocation2 + $0xe0] sm:$0xff]
    %v3507 = vld [vmem:[#allocation2 + $0xe8] sm:$0xff]
    %v3508 = vld [vmem:[#allocation2 + $0xf0] sm:$0xff]
    %v3509 = vld [vmem:[#allocation2 + $0xf8] sm:$0xff]
    %v3510 = vld [vmem:[#allocation2 + $0x100] sm:$0xff]
    %v3511 = vld [vmem:[#allocation2 + $0x108] sm:$0xff]
    %v3512 = vld [vmem:[#allocation2 + $0x110] sm:$0xff]
    %v3513 = vld [vmem:[#allocation2 + $0x118] sm:$0xff]
    %v3514 = vld [vmem:[#allocation2 + $0x120] sm:$0xff]
    %v3515 = vld [vmem:[#allocation2 + $0x128] sm:$0xff]
    %v3516 = vld [vmem:[#allocation2 + $0x130] sm:$0xff]
    %v3517 = vld [vmem:[#allocation2 + $0x138] sm:$0xff]
    %v3518 = vld [vmem:[#allocation2 + $0x140] sm:$0xff]
    %v3519 = vld [vmem:[#allocation2 + $0x148] sm:$0xff]
    %v3520 = vld [vmem:[#allocation2 + $0x150] sm:$0xff]
    %v3521 = vld [vmem:[#allocation2 + $0x158] sm:$0xff]
    %v3522 = vld [vmem:[#allocation2 + $0x160] sm:$0xff]
    %v3523 = vld [vmem:[#allocation2 + $0x168] sm:$0xff]
    %v3524 = vld [vmem:[#allocation2 + $0x170] sm:$0xff]
    %v3525 = vld [vmem:[#allocation2 + $0x178] sm:$0xff]
    %v3526 = vld [vmem:[#allocation2 + $0x180] sm:$0xff]
    %v3527 = vld [vmem:[#allocation2 + $0x188] sm:$0xff]
    %v3528 = vld [vmem:[#allocation2 + $0x190] sm:$0xff]
    %v3529 = vld [vmem:[#allocation2 + $0x198] sm:$0xff]
    %v3530 = vld [vmem:[#allocation2 + $0x1a0] sm:$0xff]
    %v3531 = vld [vmem:[#allocation2 + $0x1a8] sm:$0xff]
    %v3532 = vld [vmem:[#allocation2 + $0x1b0] sm:$0xff]
    %v3533 = vld [vmem:[#allocation2 + $0x1b8] sm:$0xff]
    %v3534 = vld [vmem:[#allocation2 + $0x1c0] sm:$0xff]
    %v3535 = vld [vmem:[#allocation2 + $0x1c8] sm:$0xff]
    %v3536 = vld [vmem:[#allocation2 + $0x1d0] sm:$0xff]
    %v3537 = vld [vmem:[#allocation2 + $0x1d8] sm:$0xff]
    %v3538 = vld [vmem:[#allocation2 + $0x1e0] sm:$0xff]
    %v3539 = vld [vmem:[#allocation2 + $0x1e8] sm:$0xff]
    %v3540 = vld [vmem:[#allocation2 + $0x1f0] sm:$0xff]
    %v3541 = vld [vmem:[#allocation2 + $0x1f8] sm:$0xff]
    %v3542 = vld [vmem:[%s2209] sm:$0xff]
    %v3543 = vld [vmem:[%s2209 + $0x8] sm:$0xff]
    %v3544 = vld [vmem:[%s2209 + $0x10] sm:$0xff]
    %v3545 = vld [vmem:[%s2209 + $0x18] sm:$0xff]
    %v3546 = vld [vmem:[%s2209 + $0x20] sm:$0xff]
    %v3547 = vld [vmem:[%s2209 + $0x28] sm:$0xff]
    %v3548 = vld [vmem:[%s2209 + $0x30] sm:$0xff]
    %v3549 = vld [vmem:[%s2209 + $0x38] sm:$0xff]
    %v3550 = vld [vmem:[%s2209 + $0x40] sm:$0xff]
    %v3551 = vld [vmem:[%s2209 + $0x48] sm:$0xff]
    %v3552 = vld [vmem:[%s2209 + $0x50] sm:$0xff]
    %v3553 = vld [vmem:[%s2209 + $0x58] sm:$0xff]
    %v3554 = vld [vmem:[%s2209 + $0x60] sm:$0xff]
    %v3555 = vld [vmem:[%s2209 + $0x68] sm:$0xff]
    %v3556 = vld [vmem:[%s2209 + $0x70] sm:$0xff]
    %v3557 = vld [vmem:[%s2209 + $0x78] sm:$0xff]
    %v3558 = vld [vmem:[%s2209 + $0x80] sm:$0xff]
    %v3559 = vld [vmem:[%s2209 + $0x88] sm:$0xff]
    %v3560 = vld [vmem:[%s2209 + $0x90] sm:$0xff]
    %v3561 = vld [vmem:[%s2209 + $0x98] sm:$0xff]
    %v3562 = vld [vmem:[%s2209 + $0xa0] sm:$0xff]
    %v3563 = vld [vmem:[%s2209 + $0xa8] sm:$0xff]
    %v3564 = vld [vmem:[%s2209 + $0xb0] sm:$0xff]
    %v3565 = vld [vmem:[%s2209 + $0xb8] sm:$0xff]
    %v3566 = vld [vmem:[%s2209 + $0xc0] sm:$0xff]
    %v3567 = vld [vmem:[%s2209 + $0xc8] sm:$0xff]
    %v3568 = vld [vmem:[%s2209 + $0xd0] sm:$0xff]
    %v3569 = vld [vmem:[%s2209 + $0xd8] sm:$0xff]
    %v3570 = vld [vmem:[%s2209 + $0xe0] sm:$0xff]
    %v3571 = vld [vmem:[%s2209 + $0xe8] sm:$0xff]
    %v3572 = vld [vmem:[%s2209 + $0xf0] sm:$0xff]
    %v3573 = vld [vmem:[%s2209 + $0xf8] sm:$0xff]
    %v3574 = vld [vmem:[%s2209 + $0x100] sm:$0xff]
    %v3575 = vld [vmem:[%s2209 + $0x108] sm:$0xff]
    %v3576 = vld [vmem:[%s2209 + $0x110] sm:$0xff]
    %v3577 = vld [vmem:[%s2209 + $0x118] sm:$0xff]
    %v3578 = vld [vmem:[%s2209 + $0x120] sm:$0xff]
    %v3579 = vld [vmem:[%s2209 + $0x128] sm:$0xff]
    %v3580 = vld [vmem:[%s2209 + $0x130] sm:$0xff]
    %v3581 = vld [vmem:[%s2209 + $0x138] sm:$0xff]
    %v3582 = vld [vmem:[%s2209 + $0x140] sm:$0xff]
    %v3583 = vld [vmem:[%s2209 + $0x148] sm:$0xff]
    %v3584 = vld [vmem:[%s2209 + $0x150] sm:$0xff]
    %v3585 = vld [vmem:[%s2209 + $0x158] sm:$0xff]
    %v3586 = vld [vmem:[%s2209 + $0x160] sm:$0xff]
    %v3587 = vld [vmem:[%s2209 + $0x168] sm:$0xff]
    %v3588 = vld [vmem:[%s2209 + $0x170] sm:$0xff]
    %v3589 = vld [vmem:[%s2209 + $0x178] sm:$0xff]
    %v3590 = vld [vmem:[%s2209 + $0x180] sm:$0xff]
    %v3591 = vld [vmem:[%s2209 + $0x188] sm:$0xff]
    %v3592 = vld [vmem:[%s2209 + $0x190] sm:$0xff]
    %v3593 = vld [vmem:[%s2209 + $0x198] sm:$0xff]
    %v3594 = vld [vmem:[%s2209 + $0x1a0] sm:$0xff]
    %v3595 = vld [vmem:[%s2209 + $0x1a8] sm:$0xff]
    %v3596 = vld [vmem:[%s2209 + $0x1b0] sm:$0xff]
    %v3597 = vld [vmem:[%s2209 + $0x1b8] sm:$0xff]
    %v3598 = vld [vmem:[%s2209 + $0x1c0] sm:$0xff]
    %v3599 = vld [vmem:[%s2209 + $0x1c8] sm:$0xff]
    %v3600 = vld [vmem:[%s2209 + $0x1d0] sm:$0xff]
    %v3601 = vld [vmem:[%s2209 + $0x1d8] sm:$0xff]
    %v3602 = vld [vmem:[%s2209 + $0x1e0] sm:$0xff]
    %v3603 = vld [vmem:[%s2209 + $0x1e8] sm:$0xff]
    %v3604 = vld [vmem:[%s2209 + $0x1f0] sm:$0xff]
    %v3605 = vld [vmem:[%s2209 + $0x1f8] sm:$0xff]
    %v3606 = vmax.f32 %v3478, %v3542
    %v3607 = vmax.f32 %v3479, %v3543
    %v3608 = vmax.f32 %v3480, %v3544
    %v3609 = vmax.f32 %v3481, %v3545
    %v3610 = vmax.f32 %v3482, %v3546
    %v3611 = vmax.f32 %v3483, %v3547
    %v3612 = vmax.f32 %v3484, %v3548
    %v3613 = vmax.f32 %v3485, %v3549
    %v3614 = vmax.f32 %v3486, %v3550
    %v3615 = vmax.f32 %v3487, %v3551
    %v3616 = vmax.f32 %v3488, %v3552
    %v3617 = vmax.f32 %v3489, %v3553
    %v3618 = vmax.f32 %v3490, %v3554
    %v3619 = vmax.f32 %v3491, %v3555
    %v3620 = vmax.f32 %v3492, %v3556
    %v3621 = vmax.f32 %v3493, %v3557
    %v3622 = vmax.f32 %v3494, %v3558
    %v3623 = vmax.f32 %v3495, %v3559
    %v3624 = vmax.f32 %v3496, %v3560
    %v3625 = vmax.f32 %v3497, %v3561
    %v3626 = vmax.f32 %v3498, %v3562
    %v3627 = vmax.f32 %v3499, %v3563
    %v3628 = vmax.f32 %v3500, %v3564
    %v3629 = vmax.f32 %v3501, %v3565
    %v3630 = vmax.f32 %v3502, %v3566
    %v3631 = vmax.f32 %v3503, %v3567
    %v3632 = vmax.f32 %v3504, %v3568
    %v3633 = vmax.f32 %v3505, %v3569
    %v3634 = vmax.f32 %v3506, %v3570
    %v3635 = vmax.f32 %v3507, %v3571
    %v3636 = vmax.f32 %v3508, %v3572
    %v3637 = vmax.f32 %v3509, %v3573
    %v3638 = vmax.f32 %v3510, %v3574
    %v3639 = vmax.f32 %v3511, %v3575
    %v3640 = vmax.f32 %v3512, %v3576
    %v3641 = vmax.f32 %v3513, %v3577
    %v3642 = vmax.f32 %v3514, %v3578
    %v3643 = vmax.f32 %v3515, %v3579
    %v3644 = vmax.f32 %v3516, %v3580
    %v3645 = vmax.f32 %v3517, %v3581
    %v3646 = vmax.f32 %v3518, %v3582
    %v3647 = vmax.f32 %v3519, %v3583
    %v3648 = vmax.f32 %v3520, %v3584
    %v3649 = vmax.f32 %v3521, %v3585
    %v3650 = vmax.f32 %v3522, %v3586
    %v3651 = vmax.f32 %v3523, %v3587
    %v3652 = vmax.f32 %v3524, %v3588
    %v3653 = vmax.f32 %v3525, %v3589
    %v3654 = vmax.f32 %v3526, %v3590
    %v3655 = vmax.f32 %v3527, %v3591
    %v3656 = vmax.f32 %v3528, %v3592
    %v3657 = vmax.f32 %v3529, %v3593
    %v3658 = vmax.f32 %v3530, %v3594
    %v3659 = vmax.f32 %v3531, %v3595
    %v3660 = vmax.f32 %v3532, %v3596
    %v3661 = vmax.f32 %v3533, %v3597
    %v3662 = vmax.f32 %v3534, %v3598
    %v3663 = vmax.f32 %v3535, %v3599
    %v3664 = vmax.f32 %v3536, %v3600
    %v3665 = vmax.f32 %v3537, %v3601
    %v3666 = vmax.f32 %v3538, %v3602
    %v3667 = vmax.f32 %v3539, %v3603
    %v3668 = vmax.f32 %v3540, %v3604
    %v3669 = vmax.f32 %v3541, %v3605
    %v3670 = vld [vmem:[#allocation6] sm:$0x3]
    %v3672 = vlaneseq
    %v3673 = vshrl.u32 %v3672, 7
    %v3674 = vsub.s32 0, %v3673
    %v3675 = vrot.slane %v3670, %v3674
    %v3676 = vlaneseq
    %v3677 = vshrl.u32 %v3676, 7
    %v3678 = vsub.s32 1, %v3677
    %v3679 = vrot.slane %v3670, %v3678
    %v3682 = vadd.f32 %v3606, %v3675
    %v3683 = vadd.f32 %v3607, %v3679
    %v3684 = vadd.f32 %v3608, %v3675
    %v3685 = vadd.f32 %v3609, %v3679
    %v3686 = vadd.f32 %v3610, %v3675
    %v3687 = vadd.f32 %v3611, %v3679
    %v3688 = vadd.f32 %v3612, %v3675
    %v3689 = vadd.f32 %v3613, %v3679
    %v3690 = vadd.f32 %v3614, %v3675
    %v3691 = vadd.f32 %v3615, %v3679
    %v3692 = vadd.f32 %v3616, %v3675
    %v3693 = vadd.f32 %v3617, %v3679
    %v3694 = vadd.f32 %v3618, %v3675
    %v3695 = vadd.f32 %v3619, %v3679
    %v3696 = vadd.f32 %v3620, %v3675
    %v3697 = vadd.f32 %v3621, %v3679
    %v3698 = vadd.f32 %v3622, %v3675
    %v3699 = vadd.f32 %v3623, %v3679
    %v3700 = vadd.f32 %v3624, %v3675
    %v3701 = vadd.f32 %v3625, %v3679
    %v3702 = vadd.f32 %v3626, %v3675
    %v3703 = vadd.f32 %v3627, %v3679
    %v3704 = vadd.f32 %v3628, %v3675
    %v3705 = vadd.f32 %v3629, %v3679
    %v3706 = vadd.f32 %v3630, %v3675
    %v3707 = vadd.f32 %v3631, %v3679
    %v3708 = vadd.f32 %v3632, %v3675
    %v3709 = vadd.f32 %v3633, %v3679
    %v3710 = vadd.f32 %v3634, %v3675
    %v3711 = vadd.f32 %v3635, %v3679
    %v3712 = vadd.f32 %v3636, %v3675
    %v3713 = vadd.f32 %v3637, %v3679
    %v3714 = vadd.f32 %v3638, %v3675
    %v3715 = vadd.f32 %v3639, %v3679
    %v3716 = vadd.f32 %v3640, %v3675
    %v3717 = vadd.f32 %v3641, %v3679
    %v3718 = vadd.f32 %v3642, %v3675
    %v3719 = vadd.f32 %v3643, %v3679
    %v3720 = vadd.f32 %v3644, %v3675
    %v3721 = vadd.f32 %v3645, %v3679
    %v3722 = vadd.f32 %v3646, %v3675
    %v3723 = vadd.f32 %v3647, %v3679
    %v3724 = vadd.f32 %v3648, %v3675
    %v3725 = vadd.f32 %v3649, %v3679
    %v3726 = vadd.f32 %v3650, %v3675
    %v3727 = vadd.f32 %v3651, %v3679
    %v3728 = vadd.f32 %v3652, %v3675
    %v3729 = vadd.f32 %v3653, %v3679
    %v3730 = vadd.f32 %v3654, %v3675
    %v3731 = vadd.f32 %v3655, %v3679
    %v3732 = vadd.f32 %v3656, %v3675
    %v3733 = vadd.f32 %v3657, %v3679
    %v3734 = vadd.f32 %v3658, %v3675
    %v3735 = vadd.f32 %v3659, %v3679
    %v3736 = vadd.f32 %v3660, %v3675
    %v3737 = vadd.f32 %v3661, %v3679
    %v3738 = vadd.f32 %v3662, %v3675
    %v3739 = vadd.f32 %v3663, %v3679
    %v3740 = vadd.f32 %v3664, %v3675
    %v3741 = vadd.f32 %v3665, %v3679
    %v3742 = vadd.f32 %v3666, %v3675
    %v3743 = vadd.f32 %v3667, %v3679
    %v3744 = vadd.f32 %v3668, %v3675
    %v3745 = vadd.f32 %v3669, %v3679
    %v3746 = vmax.f32 %v3682, %v3684
    %v3747 = vmax.f32 %v3683, %v3685
    %v3748 = vmax.f32 %v3686, %v3688
    %v3749 = vmax.f32 %v3687, %v3689
    %v3750 = vmax.f32 %v3690, %v3692
    %v3751 = vmax.f32 %v3691, %v3693
    %v3752 = vmax.f32 %v3694, %v3696
    %v3753 = vmax.f32 %v3695, %v3697
    %v3754 = vmax.f32 %v3698, %v3700
    %v3755 = vmax.f32 %v3699, %v3701
    %v3756 = vmax.f32 %v3702, %v3704
    %v3757 = vmax.f32 %v3703, %v3705
    %v3758 = vmax.f32 %v3706, %v3708
    %v3759 = vmax.f32 %v3707, %v3709
    %v3760 = vmax.f32 %v3710, %v3712
    %v3761 = vmax.f32 %v3711, %v3713
    %v3762 = vmax.f32 %v3714, %v3716
    %v3763 = vmax.f32 %v3715, %v3717
    %v3764 = vmax.f32 %v3718, %v3720
    %v3765 = vmax.f32 %v3719, %v3721
    %v3766 = vmax.f32 %v3722, %v3724
    %v3767 = vmax.f32 %v3723, %v3725
    %v3768 = vmax.f32 %v3726, %v3728
    %v3769 = vmax.f32 %v3727, %v3729
    %v3770 = vmax.f32 %v3730, %v3732
    %v3771 = vmax.f32 %v3731, %v3733
    %v3772 = vmax.f32 %v3734, %v3736
    %v3773 = vmax.f32 %v3735, %v3737
    %v3774 = vmax.f32 %v3738, %v3740
    %v3775 = vmax.f32 %v3739, %v3741
    %v3776 = vmax.f32 %v3742, %v3744
    %v3777 = vmax.f32 %v3743, %v3745
    %3778 = vst [vmem:[#allocation3] sm:$0xff] 0.0
    %3779 = vst [vmem:[#allocation3 + $0x8] sm:$0xff] 0.0
    %s3780 = scalar_lea.vmem [#allocation3], 272
    %3781 = vst [vmem:[%s3780] sm:$0xff] 0.0
    %3782 = vst [vmem:[%s3780 + $0x8] sm:$0xff] 0.0
    %s3783 = scalar_lea.vmem [#allocation3], 16
    %3784 = vst [vmem:[%s3783] sm:$0xff] %v3746
    %3785 = vst [vmem:[%s3783 + $0x8] sm:$0xff] %v3747
    %3786 = vst [vmem:[%s3783 + $0x10] sm:$0xff] %v3748
    %3787 = vst [vmem:[%s3783 + $0x18] sm:$0xff] %v3749
    %3788 = vst [vmem:[%s3783 + $0x20] sm:$0xff] %v3750
    %3789 = vst [vmem:[%s3783 + $0x28] sm:$0xff] %v3751
    %3790 = vst [vmem:[%s3783 + $0x30] sm:$0xff] %v3752
    %3791 = vst [vmem:[%s3783 + $0x38] sm:$0xff] %v3753
    %3792 = vst [vmem:[%s3783 + $0x40] sm:$0xff] %v3754
    %3793 = vst [vmem:[%s3783 + $0x48] sm:$0xff] %v3755
    %3794 = vst [vmem:[%s3783 + $0x50] sm:$0xff] %v3756
    %3795 = vst [vmem:[%s3783 + $0x58] sm:$0xff] %v3757
    %3796 = vst [vmem:[%s3783 + $0x60] sm:$0xff] %v3758
    %3797 = vst [vmem:[%s3783 + $0x68] sm:$0xff] %v3759
    %3798 = vst [vmem:[%s3783 + $0x70] sm:$0xff] %v3760
    %3799 = vst [vmem:[%s3783 + $0x78] sm:$0xff] %v3761
    %3800 = vst [vmem:[%s3783 + $0x80] sm:$0xff] %v3762
    %3801 = vst [vmem:[%s3783 + $0x88] sm:$0xff] %v3763
    %3802 = vst [vmem:[%s3783 + $0x90] sm:$0xff] %v3764
    %3803 = vst [vmem:[%s3783 + $0x98] sm:$0xff] %v3765
    %3804 = vst [vmem:[%s3783 + $0xa0] sm:$0xff] %v3766
    %3805 = vst [vmem:[%s3783 + $0xa8] sm:$0xff] %v3767
    %3806 = vst [vmem:[%s3783 + $0xb0] sm:$0xff] %v3768
    %3807 = vst [vmem:[%s3783 + $0xb8] sm:$0xff] %v3769
    %3808 = vst [vmem:[%s3783 + $0xc0] sm:$0xff] %v3770
    %3809 = vst [vmem:[%s3783 + $0xc8] sm:$0xff] %v3771
    %3810 = vst [vmem:[%s3783 + $0xd0] sm:$0xff] %v3772
    %3811 = vst [vmem:[%s3783 + $0xd8] sm:$0xff] %v3773
    %3812 = vst [vmem:[%s3783 + $0xe0] sm:$0xff] %v3774
    %3813 = vst [vmem:[%s3783 + $0xe8] sm:$0xff] %v3775
    %3814 = vst [vmem:[%s3783 + $0xf0] sm:$0xff] %v3776
    %3815 = vst [vmem:[%s3783 + $0xf8] sm:$0xff] %v3777
    %v3816 = vld [vmem:[#allocation3] sm:$0xff]
    %v3817 = vld [vmem:[#allocation3 + $0x8] sm:$0xff]
    %v3818 = vld [vmem:[#allocation3 + $0x10] sm:$0xff]
    %v3819 = vld [vmem:[#allocation3 + $0x18] sm:$0xff]
    %v3820 = vld [vmem:[#allocation3 + $0x20] sm:$0xff]
    %v3821 = vld [vmem:[#allocation3 + $0x28] sm:$0xff]
    %v3822 = vld [vmem:[#allocation3 + $0x30] sm:$0xff]
    %v3823 = vld [vmem:[#allocation3 + $0x38] sm:$0xff]
    %v3824 = vld [vmem:[#allocation3 + $0x40] sm:$0xff]
    %v3825 = vld [vmem:[#allocation3 + $0x48] sm:$0xff]
    %v3826 = vld [vmem:[#allocation3 + $0x50] sm:$0xff]
    %v3827 = vld [vmem:[#allocation3 + $0x58] sm:$0xff]
    %v3828 = vld [vmem:[#allocation3 + $0x60] sm:$0xff]
    %v3829 = vld [vmem:[#allocation3 + $0x68] sm:$0xff]
    %v3830 = vld [vmem:[#allocation3 + $0x70] sm:$0xff]
    %v3831 = vld [vmem:[#allocation3 + $0x78] sm:$0xff]
    %v3832 = vld [vmem:[#allocation3 + $0x80] sm:$0xff]
    %v3833 = vld [vmem:[#allocation3 + $0x88] sm:$0xff]
    %v3834 = vld [vmem:[#allocation3 + $0x90] sm:$0xff]
    %v3835 = vld [vmem:[#allocation3 + $0x98] sm:$0xff]
    %v3836 = vld [vmem:[#allocation3 + $0xa0] sm:$0xff]
    %v3837 = vld [vmem:[#allocation3 + $0xa8] sm:$0xff]
    %v3838 = vld [vmem:[#allocation3 + $0xb0] sm:$0xff]
    %v3839 = vld [vmem:[#allocation3 + $0xb8] sm:$0xff]
    %v3840 = vld [vmem:[#allocation3 + $0xc0] sm:$0xff]
    %v3841 = vld [vmem:[#allocation3 + $0xc8] sm:$0xff]
    %v3842 = vld [vmem:[#allocation3 + $0xd0] sm:$0xff]
    %v3843 = vld [vmem:[#allocation3 + $0xd8] sm:$0xff]
    %v3844 = vld [vmem:[#allocation3 + $0xe0] sm:$0xff]
    %v3845 = vld [vmem:[#allocation3 + $0xe8] sm:$0xff]
    %v3846 = vld [vmem:[#allocation3 + $0xf0] sm:$0xff]
    %v3847 = vld [vmem:[#allocation3 + $0xf8] sm:$0xff]
    %v3848 = vld [vmem:[#allocation8] sm:$0xff]
    %v3849 = vld [vmem:[#allocation8 + $0x8] sm:$0xff]
    %v3850 = vld [vmem:[#allocation8 + $0x10] sm:$0xff]
    %v3851 = vld [vmem:[#allocation8 + $0x18] sm:$0xff]
    %v3852 = vld [vmem:[#allocation8 + $0x20] sm:$0xff]
    %v3853 = vld [vmem:[#allocation8 + $0x28] sm:$0xff]
    %v3854 = vld [vmem:[#allocation8 + $0x30] sm:$0xff]
    %v3855 = vld [vmem:[#allocation8 + $0x38] sm:$0xff]
    %v3856 = vld [vmem:[#allocation8 + $0x40] sm:$0xff]
    %v3857 = vld [vmem:[#allocation8 + $0x48] sm:$0xff]
    %v3858 = vld [vmem:[#allocation8 + $0x50] sm:$0xff]
    %v3859 = vld [vmem:[#allocation8 + $0x58] sm:$0xff]
    %v3860 = vld [vmem:[#allocation8 + $0x60] sm:$0xff]
    %v3861 = vld [vmem:[#allocation8 + $0x68] sm:$0xff]
    %v3862 = vld [vmem:[#allocation8 + $0x70] sm:$0xff]
    %v3863 = vld [vmem:[#allocation8 + $0x78] sm:$0xff]
    %v3864 = vld [vmem:[#allocation8 + $0x80] sm:$0xff]
    %v3865 = vld [vmem:[#allocation8 + $0x88] sm:$0xff]
    %v3866 = vld [vmem:[#allocation8 + $0x90] sm:$0xff]
    %v3867 = vld [vmem:[#allocation8 + $0x98] sm:$0xff]
    %v3868 = vld [vmem:[#allocation8 + $0xa0] sm:$0xff]
    %v3869 = vld [vmem:[#allocation8 + $0xa8] sm:$0xff]
    %v3870 = vld [vmem:[#allocation8 + $0xb0] sm:$0xff]
    %v3871 = vld [vmem:[#allocation8 + $0xb8] sm:$0xff]
    %v3872 = vld [vmem:[#allocation8 + $0xc0] sm:$0xff]
    %v3873 = vld [vmem:[#allocation8 + $0xc8] sm:$0xff]
    %v3874 = vld [vmem:[#allocation8 + $0xd0] sm:$0xff]
    %v3875 = vld [vmem:[#allocation8 + $0xd8] sm:$0xff]
    %v3876 = vld [vmem:[#allocation8 + $0xe0] sm:$0xff]
    %v3877 = vld [vmem:[#allocation8 + $0xe8] sm:$0xff]
    %v3878 = vld [vmem:[#allocation8 + $0xf0] sm:$0xff]
    %v3879 = vld [vmem:[#allocation8 + $0xf8] sm:$0xff]
    %v3880 = vld [vmem:[#allocation8 + $0x100] sm:$0xff]
    %v3881 = vld [vmem:[#allocation8 + $0x108] sm:$0xff]
    %v3882 = vld [vmem:[#allocation8 + $0x110] sm:$0xff]
    %v3883 = vld [vmem:[#allocation8 + $0x118] sm:$0xff]
    %v3884 = vld [vmem:[#allocation8 + $0x120] sm:$0xff]
    %v3885 = vld [vmem:[#allocation8 + $0x128] sm:$0xff]
    %v3886 = vld [vmem:[#allocation8 + $0x130] sm:$0xff]
    %v3887 = vld [vmem:[#allocation8 + $0x138] sm:$0xff]
    %v3888 = vld [vmem:[#allocation8 + $0x140] sm:$0xff]
    %v3889 = vld [vmem:[#allocation8 + $0x148] sm:$0xff]
    %v3890 = vld [vmem:[#allocation8 + $0x150] sm:$0xff]
    %v3891 = vld [vmem:[#allocation8 + $0x158] sm:$0xff]
    %v3892 = vld [vmem:[#allocation8 + $0x160] sm:$0xff]
    %v3893 = vld [vmem:[#allocation8 + $0x168] sm:$0xff]
    %v3894 = vld [vmem:[#allocation8 + $0x170] sm:$0xff]
    %v3895 = vld [vmem:[#allocation8 + $0x178] sm:$0xff]
    %v3896 = vld [vmem:[#allocation8 + $0x180] sm:$0xff]
    %v3897 = vld [vmem:[#allocation8 + $0x188] sm:$0xff]
    %v3898 = vld [vmem:[#allocation8 + $0x190] sm:$0xff]
    %v3899 = vld [vmem:[#allocation8 + $0x198] sm:$0xff]
    %v3900 = vld [vmem:[#allocation8 + $0x1a0] sm:$0xff]
    %v3901 = vld [vmem:[#allocation8 + $0x1a8] sm:$0xff]
    %v3902 = vld [vmem:[#allocation8 + $0x1b0] sm:$0xff]
    %v3903 = vld [vmem:[#allocation8 + $0x1b8] sm:$0xff]
    %v3904 = vld [vmem:[#allocation8 + $0x1c0] sm:$0xff]
    %v3905 = vld [vmem:[#allocation8 + $0x1c8] sm:$0xff]
    %v3906 = vld [vmem:[#allocation8 + $0x1d0] sm:$0xff]
    %v3907 = vld [vmem:[#allocation8 + $0x1d8] sm:$0xff]
    %v3908 = vld [vmem:[#allocation8 + $0x1e0] sm:$0xff]
    %v3909 = vld [vmem:[#allocation8 + $0x1e8] sm:$0xff]
    %v3910 = vld [vmem:[#allocation8 + $0x1f0] sm:$0xff]
    %v3911 = vld [vmem:[#allocation8 + $0x1f8] sm:$0xff]
    %3912 = vmatprep.subr.mxu0 %v3879
    %3913 = vmatpush1.msra.mxu0 %v3878
    %3914 = vmatprep.subr.mxu0 %v3877
    %3915 = vmatpush1.msra.mxu0 %v3876
    %3916 = vmatprep.subr.mxu0 %v3875
    %3917 = vmatpush1.msra.mxu0 %v3874
    %3918 = vmatprep.subr.mxu0 %v3873
    %3919 = vmatpush1.msra.mxu0 %v3872
    %3920 = vmatprep.subr.mxu0 %v3871
    %3921 = vmatpush1.msra.mxu0 %v3870
    %3922 = vmatprep.subr.mxu0 %v3869
    %3923 = vmatpush1.msra.mxu0 %v3868
    %3924 = vmatprep.subr.mxu0 %v3867
    %3925 = vmatpush1.msra.mxu0 %v3866
    %3926 = vmatprep.subr.mxu0 %v3865
    %3927 = vmatpush1.msra.mxu0 %v3864
    %3928 = vmatprep.subr.mxu0 %v3863
    %3929 = vmatpush1.msra.mxu0 %v3862
    %3930 = vmatprep.subr.mxu0 %v3861
    %3931 = vmatpush1.msra.mxu0 %v3860
    %3932 = vmatprep.subr.mxu0 %v3859
    %3933 = vmatpush1.msra.mxu0 %v3858
    %3934 = vmatprep.subr.mxu0 %v3857
    %3935 = vmatpush1.msra.mxu0 %v3856
    %3936 = vmatprep.subr.mxu0 %v3855
    %3937 = vmatpush1.msra.mxu0 %v3854
    %3938 = vmatprep.subr.mxu0 %v3853
    %3939 = vmatpush1.msra.mxu0 %v3852
    %3940 = vmatprep.subr.mxu0 %v3851
    %3941 = vmatpush1.msra.mxu0 %v3850
    %3942 = vmatprep.subr.mxu0 %v3849
    %3943 = vmatpush1.msra.mxu0 %v3848
    %3944 = vmatprep.subr.mxu0 %v3911
    %3945 = vmatpush2.msra.mxu0 %v3910
    %3946 = vmatprep.subr.mxu0 %v3909
    %3947 = vmatpush2.msra.mxu0 %v3908
    %3948 = vmatprep.subr.mxu0 %v3907
    %3949 = vmatpush2.msra.mxu0 %v3906
    %3950 = vmatprep.subr.mxu0 %v3905
    %3951 = vmatpush2.msra.mxu0 %v3904
    %3952 = vmatprep.subr.mxu0 %v3903
    %3953 = vmatpush2.msra.mxu0 %v3902
    %3954 = vmatprep.subr.mxu0 %v3901
    %3955 = vmatpush2.msra.mxu0 %v3900
    %3956 = vmatprep.subr.mxu0 %v3899
    %3957 = vmatpush2.msra.mxu0 %v3898
    %3958 = vmatprep.subr.mxu0 %v3897
    %3959 = vmatpush2.msra.mxu0 %v3896
    %3960 = vmatprep.subr.mxu0 %v3895
    %3961 = vmatpush2.msra.mxu0 %v3894
    %3962 = vmatprep.subr.mxu0 %v3893
    %3963 = vmatpush2.msra.mxu0 %v3892
    %3964 = vmatprep.subr.mxu0 %v3891
    %3965 = vmatpush2.msra.mxu0 %v3890
    %3966 = vmatprep.subr.mxu0 %v3889
    %3967 = vmatpush2.msra.mxu0 %v3888
    %3968 = vmatprep.subr.mxu0 %v3887
    %3969 = vmatpush2.msra.mxu0 %v3886
    %3970 = vmatprep.subr.mxu0 %v3885
    %3971 = vmatpush2.msra.mxu0 %v3884
    %3972 = vmatprep.subr.mxu0 %v3883
    %3973 = vmatpush2.msra.mxu0 %v3882
    %3974 = vmatprep.subr.mxu0 %v3881
    %3975 = vmatpush2.msra.mxu0 %v3880
    %3976 = vmatprep.mubr.f32.mxu0 %v3817
    %3977 = vmatmul.mubr.f32.gmra.mxu0 %v3816
    %v3978 = vpop.f32.mrf.mxu0
    %v3979 = vadd.f32 0.0, %v3978
    %v3980 = vpop.f32.mrf.mxu0
    %v3981 = vadd.f32 0.0, %v3980
    %3982 = vmatprep.mubr.f32.mxu0 %v3819
    %3983 = vmatmul.mubr.f32.gmra.mxu0 %v3818
    %v3984 = vpop.f32.mrf.mxu0
    %v3985 = vadd.f32 0.0, %v3984
    %v3986 = vpop.f32.mrf.mxu0
    %v3987 = vadd.f32 0.0, %v3986
    %3988 = vmatprep.mubr.f32.mxu0 %v3821
    %3989 = vmatmul.mubr.f32.gmra.mxu0 %v3820
    %v3990 = vpop.f32.mrf.mxu0
    %v3991 = vadd.f32 0.0, %v3990
    %v3992 = vpop.f32.mrf.mxu0
    %v3993 = vadd.f32 0.0, %v3992
    %3994 = vmatprep.mubr.f32.mxu0 %v3823
    %3995 = vmatmul.mubr.f32.gmra.mxu0 %v3822
    %v3996 = vpop.f32.mrf.mxu0
    %v3997 = vadd.f32 0.0, %v3996
    %v3998 = vpop.f32.mrf.mxu0
    %v3999 = vadd.f32 0.0, %v3998
    %4000 = vmatprep.mubr.f32.mxu0 %v3825
    %4001 = vmatmul.mubr.f32.gmra.mxu0 %v3824
    %v4002 = vpop.f32.mrf.mxu0
    %v4003 = vadd.f32 0.0, %v4002
    %v4004 = vpop.f32.mrf.mxu0
    %v4005 = vadd.f32 0.0, %v4004
    %4006 = vmatprep.mubr.f32.mxu0 %v3827
    %4007 = vmatmul.mubr.f32.gmra.mxu0 %v3826
    %v4008 = vpop.f32.mrf.mxu0
    %v4009 = vadd.f32 0.0, %v4008
    %v4010 = vpop.f32.mrf.mxu0
    %v4011 = vadd.f32 0.0, %v4010
    %4012 = vmatprep.mubr.f32.mxu0 %v3829
    %4013 = vmatmul.mubr.f32.gmra.mxu0 %v3828
    %v4014 = vpop.f32.mrf.mxu0
    %v4015 = vadd.f32 0.0, %v4014
    %v4016 = vpop.f32.mrf.mxu0
    %v4017 = vadd.f32 0.0, %v4016
    %4018 = vmatprep.mubr.f32.mxu0 %v3831
    %4019 = vmatmul.mubr.f32.gmra.mxu0 %v3830
    %v4020 = vpop.f32.mrf.mxu0
    %v4021 = vadd.f32 0.0, %v4020
    %v4022 = vpop.f32.mrf.mxu0
    %v4023 = vadd.f32 0.0, %v4022
    %4024 = vmatprep.mubr.f32.mxu0 %v3833
    %4025 = vmatmul.mubr.f32.gmra.mxu0 %v3832
    %v4026 = vpop.f32.mrf.mxu0
    %v4027 = vadd.f32 0.0, %v4026
    %v4028 = vpop.f32.mrf.mxu0
    %v4029 = vadd.f32 0.0, %v4028
    %4030 = vmatprep.mubr.f32.mxu0 %v3835
    %4031 = vmatmul.mubr.f32.gmra.mxu0 %v3834
    %v4032 = vpop.f32.mrf.mxu0
    %v4033 = vadd.f32 0.0, %v4032
    %v4034 = vpop.f32.mrf.mxu0
    %v4035 = vadd.f32 0.0, %v4034
    %4036 = vmatprep.mubr.f32.mxu0 %v3837
    %4037 = vmatmul.mubr.f32.gmra.mxu0 %v3836
    %v4038 = vpop.f32.mrf.mxu0
    %v4039 = vadd.f32 0.0, %v4038
    %v4040 = vpop.f32.mrf.mxu0
    %v4041 = vadd.f32 0.0, %v4040
    %4042 = vmatprep.mubr.f32.mxu0 %v3839
    %4043 = vmatmul.mubr.f32.gmra.mxu0 %v3838
    %v4044 = vpop.f32.mrf.mxu0
    %v4045 = vadd.f32 0.0, %v4044
    %v4046 = vpop.f32.mrf.mxu0
    %v4047 = vadd.f32 0.0, %v4046
    %4048 = vmatprep.mubr.f32.mxu0 %v3841
    %4049 = vmatmul.mubr.f32.gmra.mxu0 %v3840
    %v4050 = vpop.f32.mrf.mxu0
    %v4051 = vadd.f32 0.0, %v4050
    %v4052 = vpop.f32.mrf.mxu0
    %v4053 = vadd.f32 0.0, %v4052
    %4054 = vmatprep.mubr.f32.mxu0 %v3843
    %4055 = vmatmul.mubr.f32.gmra.mxu0 %v3842
    %v4056 = vpop.f32.mrf.mxu0
    %v4057 = vadd.f32 0.0, %v4056
    %v4058 = vpop.f32.mrf.mxu0
    %v4059 = vadd.f32 0.0, %v4058
    %4060 = vmatprep.mubr.f32.mxu0 %v3845
    %4061 = vmatmul.mubr.f32.gmra.mxu0 %v3844
    %v4062 = vpop.f32.mrf.mxu0
    %v4063 = vadd.f32 0.0, %v4062
    %v4064 = vpop.f32.mrf.mxu0
    %v4065 = vadd.f32 0.0, %v4064
    %4066 = vmatprep.mubr.f32.mxu0 %v3847
    %4067 = vmatmul.mubr.f32.gmra.mxu0 %v3846
    %v4068 = vpop.f32.mrf.mxu0
    %v4069 = vadd.f32 0.0, %v4068
    %v4070 = vpop.f32.mrf.mxu0
    %v4071 = vadd.f32 0.0, %v4070
    %4072 = vdwg.mxu0
    %4073 = vst [vmem:[#allocation2] sm:$0xff] %v3979
    %4074 = vst [vmem:[#allocation2 + $0x8] sm:$0xff] %v3981
    %4075 = vst [vmem:[#allocation2 + $0x10] sm:$0xff] %v3985
    %4076 = vst [vmem:[#allocation2 + $0x18] sm:$0xff] %v3987
    %4077 = vst [vmem:[#allocation2 + $0x20] sm:$0xff] %v3991
    %4078 = vst [vmem:[#allocation2 + $0x28] sm:$0xff] %v3993
    %4079 = vst [vmem:[#allocation2 + $0x30] sm:$0xff] %v3997
    %4080 = vst [vmem:[#allocation2 + $0x38] sm:$0xff] %v3999
    %4081 = vst [vmem:[#allocation2 + $0x40] sm:$0xff] %v4003
    %4082 = vst [vmem:[#allocation2 + $0x48] sm:$0xff] %v4005
    %4083 = vst [vmem:[#allocation2 + $0x50] sm:$0xff] %v4009
    %4084 = vst [vmem:[#allocation2 + $0x58] sm:$0xff] %v4011
    %4085 = vst [vmem:[#allocation2 + $0x60] sm:$0xff] %v4015
    %4086 = vst [vmem:[#allocation2 + $0x68] sm:$0xff] %v4017
    %4087 = vst [vmem:[#allocation2 + $0x70] sm:$0xff] %v4021
    %4088 = vst [vmem:[#allocation2 + $0x78] sm:$0xff] %v4023
    %4089 = vst [vmem:[#allocation2 + $0x80] sm:$0xff] %v4027
    %4090 = vst [vmem:[#allocation2 + $0x88] sm:$0xff] %v4029
    %4091 = vst [vmem:[#allocation2 + $0x90] sm:$0xff] %v4033
    %4092 = vst [vmem:[#allocation2 + $0x98] sm:$0xff] %v4035
    %4093 = vst [vmem:[#allocation2 + $0xa0] sm:$0xff] %v4039
    %4094 = vst [vmem:[#allocation2 + $0xa8] sm:$0xff] %v4041
    %4095 = vst [vmem:[#allocation2 + $0xb0] sm:$0xff] %v4045
    %4096 = vst [vmem:[#allocation2 + $0xb8] sm:$0xff] %v4047
    %4097 = vst [vmem:[#allocation2 + $0xc0] sm:$0xff] %v4051
    %4098 = vst [vmem:[#allocation2 + $0xc8] sm:$0xff] %v4053
    %4099 = vst [vmem:[#allocation2 + $0xd0] sm:$0xff] %v4057
    %4100 = vst [vmem:[#allocation2 + $0xd8] sm:$0xff] %v4059
    %4101 = vst [vmem:[#allocation2 + $0xe0] sm:$0xff] %v4063
    %4102 = vst [vmem:[#allocation2 + $0xe8] sm:$0xff] %v4065
    %4103 = vst [vmem:[#allocation2 + $0xf0] sm:$0xff] %v4069
    %4104 = vst [vmem:[#allocation2 + $0xf8] sm:$0xff] %v4071
    %v4105 = vld [vmem:[%s3783] sm:$0xff]
    %v4106 = vld [vmem:[%s3783 + $0x8] sm:$0xff]
    %v4107 = vld [vmem:[%s3783 + $0x10] sm:$0xff]
    %v4108 = vld [vmem:[%s3783 + $0x18] sm:$0xff]
    %v4109 = vld [vmem:[%s3783 + $0x20] sm:$0xff]
    %v4110 = vld [vmem:[%s3783 + $0x28] sm:$0xff]
    %v4111 = vld [vmem:[%s3783 + $0x30] sm:$0xff]
    %v4112 = vld [vmem:[%s3783 + $0x38] sm:$0xff]
    %v4113 = vld [vmem:[%s3783 + $0x40] sm:$0xff]
    %v4114 = vld [vmem:[%s3783 + $0x48] sm:$0xff]
    %v4115 = vld [vmem:[%s3783 + $0x50] sm:$0xff]
    %v4116 = vld [vmem:[%s3783 + $0x58] sm:$0xff]
    %v4117 = vld [vmem:[%s3783 + $0x60] sm:$0xff]
    %v4118 = vld [vmem:[%s3783 + $0x68] sm:$0xff]
    %v4119 = vld [vmem:[%s3783 + $0x70] sm:$0xff]
    %v4120 = vld [vmem:[%s3783 + $0x78] sm:$0xff]
    %v4121 = vld [vmem:[%s3783 + $0x80] sm:$0xff]
    %v4122 = vld [vmem:[%s3783 + $0x88] sm:$0xff]
    %v4123 = vld [vmem:[%s3783 + $0x90] sm:$0xff]
    %v4124 = vld [vmem:[%s3783 + $0x98] sm:$0xff]
    %v4125 = vld [vmem:[%s3783 + $0xa0] sm:$0xff]
    %v4126 = vld [vmem:[%s3783 + $0xa8] sm:$0xff]
    %v4127 = vld [vmem:[%s3783 + $0xb0] sm:$0xff]
    %v4128 = vld [vmem:[%s3783 + $0xb8] sm:$0xff]
    %v4129 = vld [vmem:[%s3783 + $0xc0] sm:$0xff]
    %v4130 = vld [vmem:[%s3783 + $0xc8] sm:$0xff]
    %v4131 = vld [vmem:[%s3783 + $0xd0] sm:$0xff]
    %v4132 = vld [vmem:[%s3783 + $0xd8] sm:$0xff]
    %v4133 = vld [vmem:[%s3783 + $0xe0] sm:$0xff]
    %v4134 = vld [vmem:[%s3783 + $0xe8] sm:$0xff]
    %v4135 = vld [vmem:[%s3783 + $0xf0] sm:$0xff]
    %v4136 = vld [vmem:[%s3783 + $0xf8] sm:$0xff]
    %s4137 = scalar_lea.vmem [#allocation8], 1024
    %v4138 = vld [vmem:[%s4137] sm:$0xff]
    %v4139 = vld [vmem:[%s4137 + $0x8] sm:$0xff]
    %v4140 = vld [vmem:[%s4137 + $0x10] sm:$0xff]
    %v4141 = vld [vmem:[%s4137 + $0x18] sm:$0xff]
    %v4142 = vld [vmem:[%s4137 + $0x20] sm:$0xff]
    %v4143 = vld [vmem:[%s4137 + $0x28] sm:$0xff]
    %v4144 = vld [vmem:[%s4137 + $0x30] sm:$0xff]
    %v4145 = vld [vmem:[%s4137 + $0x38] sm:$0xff]
    %v4146 = vld [vmem:[%s4137 + $0x40] sm:$0xff]
    %v4147 = vld [vmem:[%s4137 + $0x48] sm:$0xff]
    %v4148 = vld [vmem:[%s4137 + $0x50] sm:$0xff]
    %v4149 = vld [vmem:[%s4137 + $0x58] sm:$0xff]
    %v4150 = vld [vmem:[%s4137 + $0x60] sm:$0xff]
    %v4151 = vld [vmem:[%s4137 + $0x68] sm:$0xff]
    %v4152 = vld [vmem:[%s4137 + $0x70] sm:$0xff]
    %v4153 = vld [vmem:[%s4137 + $0x78] sm:$0xff]
    %v4154 = vld [vmem:[%s4137 + $0x80] sm:$0xff]
    %v4155 = vld [vmem:[%s4137 + $0x88] sm:$0xff]
    %v4156 = vld [vmem:[%s4137 + $0x90] sm:$0xff]
    %v4157 = vld [vmem:[%s4137 + $0x98] sm:$0xff]
    %v4158 = vld [vmem:[%s4137 + $0xa0] sm:$0xff]
    %v4159 = vld [vmem:[%s4137 + $0xa8] sm:$0xff]
    %v4160 = vld [vmem:[%s4137 + $0xb0] sm:$0xff]
    %v4161 = vld [vmem:[%s4137 + $0xb8] sm:$0xff]
    %v4162 = vld [vmem:[%s4137 + $0xc0] sm:$0xff]
    %v4163 = vld [vmem:[%s4137 + $0xc8] sm:$0xff]
    %v4164 = vld [vmem:[%s4137 + $0xd0] sm:$0xff]
    %v4165 = vld [vmem:[%s4137 + $0xd8] sm:$0xff]
    %v4166 = vld [vmem:[%s4137 + $0xe0] sm:$0xff]
    %v4167 = vld [vmem:[%s4137 + $0xe8] sm:$0xff]
    %v4168 = vld [vmem:[%s4137 + $0xf0] sm:$0xff]
    %v4169 = vld [vmem:[%s4137 + $0xf8] sm:$0xff]
    %v4170 = vld [vmem:[%s4137 + $0x100] sm:$0xff]
    %v4171 = vld [vmem:[%s4137 + $0x108] sm:$0xff]
    %v4172 = vld [vmem:[%s4137 + $0x110] sm:$0xff]
    %v4173 = vld [vmem:[%s4137 + $0x118] sm:$0xff]
    %v4174 = vld [vmem:[%s4137 + $0x120] sm:$0xff]
    %v4175 = vld [vmem:[%s4137 + $0x128] sm:$0xff]
    %v4176 = vld [vmem:[%s4137 + $0x130] sm:$0xff]
    %v4177 = vld [vmem:[%s4137 + $0x138] sm:$0xff]
    %v4178 = vld [vmem:[%s4137 + $0x140] sm:$0xff]
    %v4179 = vld [vmem:[%s4137 + $0x148] sm:$0xff]
    %v4180 = vld [vmem:[%s4137 + $0x150] sm:$0xff]
    %v4181 = vld [vmem:[%s4137 + $0x158] sm:$0xff]
    %v4182 = vld [vmem:[%s4137 + $0x160] sm:$0xff]
    %v4183 = vld [vmem:[%s4137 + $0x168] sm:$0xff]
    %v4184 = vld [vmem:[%s4137 + $0x170] sm:$0xff]
    %v4185 = vld [vmem:[%s4137 + $0x178] sm:$0xff]
    %v4186 = vld [vmem:[%s4137 + $0x180] sm:$0xff]
    %v4187 = vld [vmem:[%s4137 + $0x188] sm:$0xff]
    %v4188 = vld [vmem:[%s4137 + $0x190] sm:$0xff]
    %v4189 = vld [vmem:[%s4137 + $0x198] sm:$0xff]
    %v4190 = vld [vmem:[%s4137 + $0x1a0] sm:$0xff]
    %v4191 = vld [vmem:[%s4137 + $0x1a8] sm:$0xff]
    %v4192 = vld [vmem:[%s4137 + $0x1b0] sm:$0xff]
    %v4193 = vld [vmem:[%s4137 + $0x1b8] sm:$0xff]
    %v4194 = vld [vmem:[%s4137 + $0x1c0] sm:$0xff]
    %v4195 = vld [vmem:[%s4137 + $0x1c8] sm:$0xff]
    %v4196 = vld [vmem:[%s4137 + $0x1d0] sm:$0xff]
    %v4197 = vld [vmem:[%s4137 + $0x1d8] sm:$0xff]
    %v4198 = vld [vmem:[%s4137 + $0x1e0] sm:$0xff]
    %v4199 = vld [vmem:[%s4137 + $0x1e8] sm:$0xff]
    %v4200 = vld [vmem:[%s4137 + $0x1f0] sm:$0xff]
    %v4201 = vld [vmem:[%s4137 + $0x1f8] sm:$0xff]
    %4202 = vmatprep.subr.mxu0 %v4169
    %4203 = vmatpush1.msra.mxu0 %v4168
    %4204 = vmatprep.subr.mxu0 %v4167
    %4205 = vmatpush1.msra.mxu0 %v4166
    %4206 = vmatprep.subr.mxu0 %v4165
    %4207 = vmatpush1.msra.mxu0 %v4164
    %4208 = vmatprep.subr.mxu0 %v4163
    %4209 = vmatpush1.msra.mxu0 %v4162
    %4210 = vmatprep.subr.mxu0 %v4161
    %4211 = vmatpush1.msra.mxu0 %v4160
    %4212 = vmatprep.subr.mxu0 %v4159
    %4213 = vmatpush1.msra.mxu0 %v4158
    %4214 = vmatprep.subr.mxu0 %v4157
    %4215 = vmatpush1.msra.mxu0 %v4156
    %4216 = vmatprep.subr.mxu0 %v4155
    %4217 = vmatpush1.msra.mxu0 %v4154
    %4218 = vmatprep.subr.mxu0 %v4153
    %4219 = vmatpush1.msra.mxu0 %v4152
    %4220 = vmatprep.subr.mxu0 %v4151
    %4221 = vmatpush1.msra.mxu0 %v4150
    %4222 = vmatprep.subr.mxu0 %v4149
    %4223 = vmatpush1.msra.mxu0 %v4148
    %4224 = vmatprep.subr.mxu0 %v4147
    %4225 = vmatpush1.msra.mxu0 %v4146
    %4226 = vmatprep.subr.mxu0 %v4145
    %4227 = vmatpush1.msra.mxu0 %v4144
    %4228 = vmatprep.subr.mxu0 %v4143
    %4229 = vmatpush1.msra.mxu0 %v4142
    %4230 = vmatprep.subr.mxu0 %v4141
    %4231 = vmatpush1.msra.mxu0 %v4140
    %4232 = vmatprep.subr.mxu0 %v4139
    %4233 = vmatpush1.msra.mxu0 %v4138
    %4234 = vmatprep.subr.mxu0 %v4201
    %4235 = vmatpush2.msra.mxu0 %v4200
    %4236 = vmatprep.subr.mxu0 %v4199
    %4237 = vmatpush2.msra.mxu0 %v4198
    %4238 = vmatprep.subr.mxu0 %v4197
    %4239 = vmatpush2.msra.mxu0 %v4196
    %4240 = vmatprep.subr.mxu0 %v4195
    %4241 = vmatpush2.msra.mxu0 %v4194
    %4242 = vmatprep.subr.mxu0 %v4193
    %4243 = vmatpush2.msra.mxu0 %v4192
    %4244 = vmatprep.subr.mxu0 %v4191
    %4245 = vmatpush2.msra.mxu0 %v4190
    %4246 = vmatprep.subr.mxu0 %v4189
    %4247 = vmatpush2.msra.mxu0 %v4188
    %4248 = vmatprep.subr.mxu0 %v4187
    %4249 = vmatpush2.msra.mxu0 %v4186
    %4250 = vmatprep.subr.mxu0 %v4185
    %4251 = vmatpush2.msra.mxu0 %v4184
    %4252 = vmatprep.subr.mxu0 %v4183
    %4253 = vmatpush2.msra.mxu0 %v4182
    %4254 = vmatprep.subr.mxu0 %v4181
    %4255 = vmatpush2.msra.mxu0 %v4180
    %4256 = vmatprep.subr.mxu0 %v4179
    %4257 = vmatpush2.msra.mxu0 %v4178
    %4258 = vmatprep.subr.mxu0 %v4177
    %4259 = vmatpush2.msra.mxu0 %v4176
    %4260 = vmatprep.subr.mxu0 %v4175
    %4261 = vmatpush2.msra.mxu0 %v4174
    %4262 = vmatprep.subr.mxu0 %v4173
    %4263 = vmatpush2.msra.mxu0 %v4172
    %4264 = vmatprep.subr.mxu0 %v4171
    %4265 = vmatpush2.msra.mxu0 %v4170
    %4266 = vmatprep.mubr.f32.mxu0 %v4106
    %4267 = vmatmul.mubr.f32.gmra.mxu0 %v4105
    %v4268 = vpop.f32.mrf.mxu0
    %v4269 = vadd.f32 0.0, %v4268
    %v4270 = vpop.f32.mrf.mxu0
    %v4271 = vadd.f32 0.0, %v4270
    %4272 = vmatprep.mubr.f32.mxu0 %v4108
    %4273 = vmatmul.mubr.f32.gmra.mxu0 %v4107
    %v4274 = vpop.f32.mrf.mxu0
    %v4275 = vadd.f32 0.0, %v4274
    %v4276 = vpop.f32.mrf.mxu0
    %v4277 = vadd.f32 0.0, %v4276
    %4278 = vmatprep.mubr.f32.mxu0 %v4110
    %4279 = vmatmul.mubr.f32.gmra.mxu0 %v4109
    %v4280 = vpop.f32.mrf.mxu0
    %v4281 = vadd.f32 0.0, %v4280
    %v4282 = vpop.f32.mrf.mxu0
    %v4283 = vadd.f32 0.0, %v4282
    %4284 = vmatprep.mubr.f32.mxu0 %v4112
    %4285 = vmatmul.mubr.f32.gmra.mxu0 %v4111
    %v4286 = vpop.f32.mrf.mxu0
    %v4287 = vadd.f32 0.0, %v4286
    %v4288 = vpop.f32.mrf.mxu0
    %v4289 = vadd.f32 0.0, %v4288
    %4290 = vmatprep.mubr.f32.mxu0 %v4114
    %4291 = vmatmul.mubr.f32.gmra.mxu0 %v4113
    %v4292 = vpop.f32.mrf.mxu0
    %v4293 = vadd.f32 0.0, %v4292
    %v4294 = vpop.f32.mrf.mxu0
    %v4295 = vadd.f32 0.0, %v4294
    %4296 = vmatprep.mubr.f32.mxu0 %v4116
    %4297 = vmatmul.mubr.f32.gmra.mxu0 %v4115
    %v4298 = vpop.f32.mrf.mxu0
    %v4299 = vadd.f32 0.0, %v4298
    %v4300 = vpop.f32.mrf.mxu0
    %v4301 = vadd.f32 0.0, %v4300
    %4302 = vmatprep.mubr.f32.mxu0 %v4118
    %4303 = vmatmul.mubr.f32.gmra.mxu0 %v4117
    %v4304 = vpop.f32.mrf.mxu0
    %v4305 = vadd.f32 0.0, %v4304
    %v4306 = vpop.f32.mrf.mxu0
    %v4307 = vadd.f32 0.0, %v4306
    %4308 = vmatprep.mubr.f32.mxu0 %v4120
    %4309 = vmatmul.mubr.f32.gmra.mxu0 %v4119
    %v4310 = vpop.f32.mrf.mxu0
    %v4311 = vadd.f32 0.0, %v4310
    %v4312 = vpop.f32.mrf.mxu0
    %v4313 = vadd.f32 0.0, %v4312
    %4314 = vmatprep.mubr.f32.mxu0 %v4122
    %4315 = vmatmul.mubr.f32.gmra.mxu0 %v4121
    %v4316 = vpop.f32.mrf.mxu0
    %v4317 = vadd.f32 0.0, %v4316
    %v4318 = vpop.f32.mrf.mxu0
    %v4319 = vadd.f32 0.0, %v4318
    %4320 = vmatprep.mubr.f32.mxu0 %v4124
    %4321 = vmatmul.mubr.f32.gmra.mxu0 %v4123
    %v4322 = vpop.f32.mrf.mxu0
    %v4323 = vadd.f32 0.0, %v4322
    %v4324 = vpop.f32.mrf.mxu0
    %v4325 = vadd.f32 0.0, %v4324
    %4326 = vmatprep.mubr.f32.mxu0 %v4126
    %4327 = vmatmul.mubr.f32.gmra.mxu0 %v4125
    %v4328 = vpop.f32.mrf.mxu0
    %v4329 = vadd.f32 0.0, %v4328
    %v4330 = vpop.f32.mrf.mxu0
    %v4331 = vadd.f32 0.0, %v4330
    %4332 = vmatprep.mubr.f32.mxu0 %v4128
    %4333 = vmatmul.mubr.f32.gmra.mxu0 %v4127
    %v4334 = vpop.f32.mrf.mxu0
    %v4335 = vadd.f32 0.0, %v4334
    %v4336 = vpop.f32.mrf.mxu0
    %v4337 = vadd.f32 0.0, %v4336
    %4338 = vmatprep.mubr.f32.mxu0 %v4130
    %4339 = vmatmul.mubr.f32.gmra.mxu0 %v4129
    %v4340 = vpop.f32.mrf.mxu0
    %v4341 = vadd.f32 0.0, %v4340
    %v4342 = vpop.f32.mrf.mxu0
    %v4343 = vadd.f32 0.0, %v4342
    %4344 = vmatprep.mubr.f32.mxu0 %v4132
    %4345 = vmatmul.mubr.f32.gmra.mxu0 %v4131
    %v4346 = vpop.f32.mrf.mxu0
    %v4347 = vadd.f32 0.0, %v4346
    %v4348 = vpop.f32.mrf.mxu0
    %v4349 = vadd.f32 0.0, %v4348
    %4350 = vmatprep.mubr.f32.mxu0 %v4134
    %4351 = vmatmul.mubr.f32.gmra.mxu0 %v4133
    %v4352 = vpop.f32.mrf.mxu0
    %v4353 = vadd.f32 0.0, %v4352
    %v4354 = vpop.f32.mrf.mxu0
    %v4355 = vadd.f32 0.0, %v4354
    %4356 = vmatprep.mubr.f32.mxu0 %v4136
    %4357 = vmatmul.mubr.f32.gmra.mxu0 %v4135
    %v4358 = vpop.f32.mrf.mxu0
    %v4359 = vadd.f32 0.0, %v4358
    %v4360 = vpop.f32.mrf.mxu0
    %v4361 = vadd.f32 0.0, %v4360
    %4362 = vdwg.mxu0
    %v4363 = vld [vmem:[#allocation2] sm:$0xff]
    %v4364 = vld [vmem:[#allocation2 + $0x8] sm:$0xff]
    %v4365 = vld [vmem:[#allocation2 + $0x10] sm:$0xff]
    %v4366 = vld [vmem:[#allocation2 + $0x18] sm:$0xff]
    %v4367 = vld [vmem:[#allocation2 + $0x20] sm:$0xff]
    %v4368 = vld [vmem:[#allocation2 + $0x28] sm:$0xff]
    %v4369 = vld [vmem:[#allocation2 + $0x30] sm:$0xff]
    %v4370 = vld [vmem:[#allocation2 + $0x38] sm:$0xff]
    %v4371 = vld [vmem:[#allocation2 + $0x40] sm:$0xff]
    %v4372 = vld [vmem:[#allocation2 + $0x48] sm:$0xff]
    %v4373 = vld [vmem:[#allocation2 + $0x50] sm:$0xff]
    %v4374 = vld [vmem:[#allocation2 + $0x58] sm:$0xff]
    %v4375 = vld [vmem:[#allocation2 + $0x60] sm:$0xff]
    %v4376 = vld [vmem:[#allocation2 + $0x68] sm:$0xff]
    %v4377 = vld [vmem:[#allocation2 + $0x70] sm:$0xff]
    %v4378 = vld [vmem:[#allocation2 + $0x78] sm:$0xff]
    %v4379 = vld [vmem:[#allocation2 + $0x80] sm:$0xff]
    %v4380 = vld [vmem:[#allocation2 + $0x88] sm:$0xff]
    %v4381 = vld [vmem:[#allocation2 + $0x90] sm:$0xff]
    %v4382 = vld [vmem:[#allocation2 + $0x98] sm:$0xff]
    %v4383 = vld [vmem:[#allocation2 + $0xa0] sm:$0xff]
    %v4384 = vld [vmem:[#allocation2 + $0xa8] sm:$0xff]
    %v4385 = vld [vmem:[#allocation2 + $0xb0] sm:$0xff]
    %v4386 = vld [vmem:[#allocation2 + $0xb8] sm:$0xff]
    %v4387 = vld [vmem:[#allocation2 + $0xc0] sm:$0xff]
    %v4388 = vld [vmem:[#allocation2 + $0xc8] sm:$0xff]
    %v4389 = vld [vmem:[#allocation2 + $0xd0] sm:$0xff]
    %v4390 = vld [vmem:[#allocation2 + $0xd8] sm:$0xff]
    %v4391 = vld [vmem:[#allocation2 + $0xe0] sm:$0xff]
    %v4392 = vld [vmem:[#allocation2 + $0xe8] sm:$0xff]
    %v4393 = vld [vmem:[#allocation2 + $0xf0] sm:$0xff]
    %v4394 = vld [vmem:[#allocation2 + $0xf8] sm:$0xff]
    %v4395 = vadd.f32 %v4363, %v4269
    %v4396 = vadd.f32 %v4364, %v4271
    %v4397 = vadd.f32 %v4365, %v4275
    %v4398 = vadd.f32 %v4366, %v4277
    %v4399 = vadd.f32 %v4367, %v4281
    %v4400 = vadd.f32 %v4368, %v4283
    %v4401 = vadd.f32 %v4369, %v4287
    %v4402 = vadd.f32 %v4370, %v4289
    %v4403 = vadd.f32 %v4371, %v4293
    %v4404 = vadd.f32 %v4372, %v4295
    %v4405 = vadd.f32 %v4373, %v4299
    %v4406 = vadd.f32 %v4374, %v4301
    %v4407 = vadd.f32 %v4375, %v4305
    %v4408 = vadd.f32 %v4376, %v4307
    %v4409 = vadd.f32 %v4377, %v4311
    %v4410 = vadd.f32 %v4378, %v4313
    %v4411 = vadd.f32 %v4379, %v4317
    %v4412 = vadd.f32 %v4380, %v4319
    %v4413 = vadd.f32 %v4381, %v4323
    %v4414 = vadd.f32 %v4382, %v4325
    %v4415 = vadd.f32 %v4383, %v4329
    %v4416 = vadd.f32 %v4384, %v4331
    %v4417 = vadd.f32 %v4385, %v4335
    %v4418 = vadd.f32 %v4386, %v4337
    %v4419 = vadd.f32 %v4387, %v4341
    %v4420 = vadd.f32 %v4388, %v4343
    %v4421 = vadd.f32 %v4389, %v4347
    %v4422 = vadd.f32 %v4390, %v4349
    %v4423 = vadd.f32 %v4391, %v4353
    %v4424 = vadd.f32 %v4392, %v4355
    %v4425 = vadd.f32 %v4393, %v4359
    %v4426 = vadd.f32 %v4394, %v4361
    %4427 = vst [vmem:[#allocation2] sm:$0xff] %v4395
    %4428 = vst [vmem:[#allocation2 + $0x8] sm:$0xff] %v4396
    %4429 = vst [vmem:[#allocation2 + $0x10] sm:$0xff] %v4397
    %4430 = vst [vmem:[#allocation2 + $0x18] sm:$0xff] %v4398
    %4431 = vst [vmem:[#allocation2 + $0x20] sm:$0xff] %v4399
    %4432 = vst [vmem:[#allocation2 + $0x28] sm:$0xff] %v4400
    %4433 = vst [vmem:[#allocation2 + $0x30] sm:$0xff] %v4401
    %4434 = vst [vmem:[#allocation2 + $0x38] sm:$0xff] %v4402
    %4435 = vst [vmem:[#allocation2 + $0x40] sm:$0xff] %v4403
    %4436 = vst [vmem:[#allocation2 + $0x48] sm:$0xff] %v4404
    %4437 = vst [vmem:[#allocation2 + $0x50] sm:$0xff] %v4405
    %4438 = vst [vmem:[#allocation2 + $0x58] sm:$0xff] %v4406
    %4439 = vst [vmem:[#allocation2 + $0x60] sm:$0xff] %v4407
    %4440 = vst [vmem:[#allocation2 + $0x68] sm:$0xff] %v4408
    %4441 = vst [vmem:[#allocation2 + $0x70] sm:$0xff] %v4409
    %4442 = vst [vmem:[#allocation2 + $0x78] sm:$0xff] %v4410
    %4443 = vst [vmem:[#allocation2 + $0x80] sm:$0xff] %v4411
    %4444 = vst [vmem:[#allocation2 + $0x88] sm:$0xff] %v4412
    %4445 = vst [vmem:[#allocation2 + $0x90] sm:$0xff] %v4413
    %4446 = vst [vmem:[#allocation2 + $0x98] sm:$0xff] %v4414
    %4447 = vst [vmem:[#allocation2 + $0xa0] sm:$0xff] %v4415
    %4448 = vst [vmem:[#allocation2 + $0xa8] sm:$0xff] %v4416
    %4449 = vst [vmem:[#allocation2 + $0xb0] sm:$0xff] %v4417
    %4450 = vst [vmem:[#allocation2 + $0xb8] sm:$0xff] %v4418
    %4451 = vst [vmem:[#allocation2 + $0xc0] sm:$0xff] %v4419
    %4452 = vst [vmem:[#allocation2 + $0xc8] sm:$0xff] %v4420
    %4453 = vst [vmem:[#allocation2 + $0xd0] sm:$0xff] %v4421
    %4454 = vst [vmem:[#allocation2 + $0xd8] sm:$0xff] %v4422
    %4455 = vst [vmem:[#allocation2 + $0xe0] sm:$0xff] %v4423
    %4456 = vst [vmem:[#allocation2 + $0xe8] sm:$0xff] %v4424
    %4457 = vst [vmem:[#allocation2 + $0xf0] sm:$0xff] %v4425
    %4458 = vst [vmem:[#allocation2 + $0xf8] sm:$0xff] %v4426
    %s4459 = scalar_lea.vmem [#allocation3], 32
    %v4460 = vld [vmem:[%s4459] sm:$0xff]
    %v4461 = vld [vmem:[%s4459 + $0x8] sm:$0xff]
    %v4462 = vld [vmem:[%s4459 + $0x10] sm:$0xff]
    %v4463 = vld [vmem:[%s4459 + $0x18] sm:$0xff]
    %v4464 = vld [vmem:[%s4459 + $0x20] sm:$0xff]
    %v4465 = vld [vmem:[%s4459 + $0x28] sm:$0xff]
    %v4466 = vld [vmem:[%s4459 + $0x30] sm:$0xff]
    %v4467 = vld [vmem:[%s4459 + $0x38] sm:$0xff]
    %v4468 = vld [vmem:[%s4459 + $0x40] sm:$0xff]
    %v4469 = vld [vmem:[%s4459 + $0x48] sm:$0xff]
    %v4470 = vld [vmem:[%s4459 + $0x50] sm:$0xff]
    %v4471 = vld [vmem:[%s4459 + $0x58] sm:$0xff]
    %v4472 = vld [vmem:[%s4459 + $0x60] sm:$0xff]
    %v4473 = vld [vmem:[%s4459 + $0x68] sm:$0xff]
    %v4474 = vld [vmem:[%s4459 + $0x70] sm:$0xff]
    %v4475 = vld [vmem:[%s4459 + $0x78] sm:$0xff]
    %v4476 = vld [vmem:[%s4459 + $0x80] sm:$0xff]
    %v4477 = vld [vmem:[%s4459 + $0x88] sm:$0xff]
    %v4478 = vld [vmem:[%s4459 + $0x90] sm:$0xff]
    %v4479 = vld [vmem:[%s4459 + $0x98] sm:$0xff]
    %v4480 = vld [vmem:[%s4459 + $0xa0] sm:$0xff]
    %v4481 = vld [vmem:[%s4459 + $0xa8] sm:$0xff]
    %v4482 = vld [vmem:[%s4459 + $0xb0] sm:$0xff]
    %v4483 = vld [vmem:[%s4459 + $0xb8] sm:$0xff]
    %v4484 = vld [vmem:[%s4459 + $0xc0] sm:$0xff]
    %v4485 = vld [vmem:[%s4459 + $0xc8] sm:$0xff]
    %v4486 = vld [vmem:[%s4459 + $0xd0] sm:$0xff]
    %v4487 = vld [vmem:[%s4459 + $0xd8] sm:$0xff]
    %v4488 = vld [vmem:[%s4459 + $0xe0] sm:$0xff]
    %v4489 = vld [vmem:[%s4459 + $0xe8] sm:$0xff]
    %v4490 = vld [vmem:[%s4459 + $0xf0] sm:$0xff]
    %v4491 = vld [vmem:[%s4459 + $0xf8] sm:$0xff]
    %s4492 = scalar_lea.vmem [#allocation8], 2048
    %v4493 = vld [vmem:[%s4492] sm:$0xff]
    %v4494 = vld [vmem:[%s4492 + $0x8] sm:$0xff]
    %v4495 = vld [vmem:[%s4492 + $0x10] sm:$0xff]
    %v4496 = vld [vmem:[%s4492 + $0x18] sm:$0xff]
    %v4497 = vld [vmem:[%s4492 + $0x20] sm:$0xff]
    %v4498 = vld [vmem:[%s4492 + $0x28] sm:$0xff]
    %v4499 = vld [vmem:[%s4492 + $0x30] sm:$0xff]
    %v4500 = vld [vmem:[%s4492 + $0x38] sm:$0xff]
    %v4501 = vld [vmem:[%s4492 + $0x40] sm:$0xff]
    %v4502 = vld [vmem:[%s4492 + $0x48] sm:$0xff]
    %v4503 = vld [vmem:[%s4492 + $0x50] sm:$0xff]
    %v4504 = vld [vmem:[%s4492 + $0x58] sm:$0xff]
    %v4505 = vld [vmem:[%s4492 + $0x60] sm:$0xff]
    %v4506 = vld [vmem:[%s4492 + $0x68] sm:$0xff]
    %v4507 = vld [vmem:[%s4492 + $0x70] sm:$0xff]
    %v4508 = vld [vmem:[%s4492 + $0x78] sm:$0xff]
    %v4509 = vld [vmem:[%s4492 + $0x80] sm:$0xff]
    %v4510 = vld [vmem:[%s4492 + $0x88] sm:$0xff]
    %v4511 = vld [vmem:[%s4492 + $0x90] sm:$0xff]
    %v4512 = vld [vmem:[%s4492 + $0x98] sm:$0xff]
    %v4513 = vld [vmem:[%s4492 + $0xa0] sm:$0xff]
    %v4514 = vld [vmem:[%s4492 + $0xa8] sm:$0xff]
    %v4515 = vld [vmem:[%s4492 + $0xb0] sm:$0xff]
    %v4516 = vld [vmem:[%s4492 + $0xb8] sm:$0xff]
    %v4517 = vld [vmem:[%s4492 + $0xc0] sm:$0xff]
    %v4518 = vld [vmem:[%s4492 + $0xc8] sm:$0xff]
    %v4519 = vld [vmem:[%s4492 + $0xd0] sm:$0xff]
    %v4520 = vld [vmem:[%s4492 + $0xd8] sm:$0xff]
    %v4521 = vld [vmem:[%s4492 + $0xe0] sm:$0xff]
    %v4522 = vld [vmem:[%s4492 + $0xe8] sm:$0xff]
    %v4523 = vld [vmem:[%s4492 + $0xf0] sm:$0xff]
    %v4524 = vld [vmem:[%s4492 + $0xf8] sm:$0xff]
    %v4525 = vld [vmem:[%s4492 + $0x100] sm:$0xff]
    %v4526 = vld [vmem:[%s4492 + $0x108] sm:$0xff]
    %v4527 = vld [vmem:[%s4492 + $0x110] sm:$0xff]
    %v4528 = vld [vmem:[%s4492 + $0x118] sm:$0xff]
    %v4529 = vld [vmem:[%s4492 + $0x120] sm:$0xff]
    %v4530 = vld [vmem:[%s4492 + $0x128] sm:$0xff]
    %v4531 = vld [vmem:[%s4492 + $0x130] sm:$0xff]
    %v4532 = vld [vmem:[%s4492 + $0x138] sm:$0xff]
    %v4533 = vld [vmem:[%s4492 + $0x140] sm:$0xff]
    %v4534 = vld [vmem:[%s4492 + $0x148] sm:$0xff]
    %v4535 = vld [vmem:[%s4492 + $0x150] sm:$0xff]
    %v4536 = vld [vmem:[%s4492 + $0x158] sm:$0xff]
    %v4537 = vld [vmem:[%s4492 + $0x160] sm:$0xff]
    %v4538 = vld [vmem:[%s4492 + $0x168] sm:$0xff]
    %v4539 = vld [vmem:[%s4492 + $0x170] sm:$0xff]
    %v4540 = vld [vmem:[%s4492 + $0x178] sm:$0xff]
    %v4541 = vld [vmem:[%s4492 + $0x180] sm:$0xff]
    %v4542 = vld [vmem:[%s4492 + $0x188] sm:$0xff]
    %v4543 = vld [vmem:[%s4492 + $0x190] sm:$0xff]
    %v4544 = vld [vmem:[%s4492 + $0x198] sm:$0xff]
    %v4545 = vld [vmem:[%s4492 + $0x1a0] sm:$0xff]
    %v4546 = vld [vmem:[%s4492 + $0x1a8] sm:$0xff]
    %v4547 = vld [vmem:[%s4492 + $0x1b0] sm:$0xff]
    %v4548 = vld [vmem:[%s4492 + $0x1b8] sm:$0xff]
    %v4549 = vld [vmem:[%s4492 + $0x1c0] sm:$0xff]
    %v4550 = vld [vmem:[%s4492 + $0x1c8] sm:$0xff]
    %v4551 = vld [vmem:[%s4492 + $0x1d0] sm:$0xff]
    %v4552 = vld [vmem:[%s4492 + $0x1d8] sm:$0xff]
    %v4553 = vld [vmem:[%s4492 + $0x1e0] sm:$0xff]
    %v4554 = vld [vmem:[%s4492 + $0x1e8] sm:$0xff]
    %v4555 = vld [vmem:[%s4492 + $0x1f0] sm:$0xff]
    %v4556 = vld [vmem:[%s4492 + $0x1f8] sm:$0xff]
    %4557 = vmatprep.subr.mxu0 %v4524
    %4558 = vmatpush1.msra.mxu0 %v4523
    %4559 = vmatprep.subr.mxu0 %v4522
    %4560 = vmatpush1.msra.mxu0 %v4521
    %4561 = vmatprep.subr.mxu0 %v4520
    %4562 = vmatpush1.msra.mxu0 %v4519
    %4563 = vmatprep.subr.mxu0 %v4518
    %4564 = vmatpush1.msra.mxu0 %v4517
    %4565 = vmatprep.subr.mxu0 %v4516
    %4566 = vmatpush1.msra.mxu0 %v4515
    %4567 = vmatprep.subr.mxu0 %v4514
    %4568 = vmatpush1.msra.mxu0 %v4513
    %4569 = vmatprep.subr.mxu0 %v4512
    %4570 = vmatpush1.msra.mxu0 %v4511
    %4571 = vmatprep.subr.mxu0 %v4510
    %4572 = vmatpush1.msra.mxu0 %v4509
    %4573 = vmatprep.subr.mxu0 %v4508
    %4574 = vmatpush1.msra.mxu0 %v4507
    %4575 = vmatprep.subr.mxu0 %v4506
    %4576 = vmatpush1.msra.mxu0 %v4505
    %4577 = vmatprep.subr.mxu0 %v4504
    %4578 = vmatpush1.msra.mxu0 %v4503
    %4579 = vmatprep.subr.mxu0 %v4502
    %4580 = vmatpush1.msra.mxu0 %v4501
    %4581 = vmatprep.subr.mxu0 %v4500
    %4582 = vmatpush1.msra.mxu0 %v4499
    %4583 = vmatprep.subr.mxu0 %v4498
    %4584 = vmatpush1.msra.mxu0 %v4497
    %4585 = vmatprep.subr.mxu0 %v4496
    %4586 = vmatpush1.msra.mxu0 %v4495
    %4587 = vmatprep.subr.mxu0 %v4494
    %4588 = vmatpush1.msra.mxu0 %v4493
    %4589 = vmatprep.subr.mxu0 %v4556
    %4590 = vmatpush2.msra.mxu0 %v4555
    %4591 = vmatprep.subr.mxu0 %v4554
    %4592 = vmatpush2.msra.mxu0 %v4553
    %4593 = vmatprep.subr.mxu0 %v4552
    %4594 = vmatpush2.msra.mxu0 %v4551
    %4595 = vmatprep.subr.mxu0 %v4550
    %4596 = vmatpush2.msra.mxu0 %v4549
    %4597 = vmatprep.subr.mxu0 %v4548
    %4598 = vmatpush2.msra.mxu0 %v4547
    %4599 = vmatprep.subr.mxu0 %v4546
    %4600 = vmatpush2.msra.mxu0 %v4545
    %4601 = vmatprep.subr.mxu0 %v4544
    %4602 = vmatpush2.msra.mxu0 %v4543
    %4603 = vmatprep.subr.mxu0 %v4542
    %4604 = vmatpush2.msra.mxu0 %v4541
    %4605 = vmatprep.subr.mxu0 %v4540
    %4606 = vmatpush2.msra.mxu0 %v4539
    %4607 = vmatprep.subr.mxu0 %v4538
    %4608 = vmatpush2.msra.mxu0 %v4537
    %4609 = vmatprep.subr.mxu0 %v4536
    %4610 = vmatpush2.msra.mxu0 %v4535
    %4611 = vmatprep.subr.mxu0 %v4534
    %4612 = vmatpush2.msra.mxu0 %v4533
    %4613 = vmatprep.subr.mxu0 %v4532
    %4614 = vmatpush2.msra.mxu0 %v4531
    %4615 = vmatprep.subr.mxu0 %v4530
    %4616 = vmatpush2.msra.mxu0 %v4529
    %4617 = vmatprep.subr.mxu0 %v4528
    %4618 = vmatpush2.msra.mxu0 %v4527
    %4619 = vmatprep.subr.mxu0 %v4526
    %4620 = vmatpush2.msra.mxu0 %v4525
    %4621 = vmatprep.mubr.f32.mxu0 %v4461
    %4622 = vmatmul.mubr.f32.gmra.mxu0 %v4460
    %v4623 = vpop.f32.mrf.mxu0
    %v4624 = vadd.f32 0.0, %v4623
    %v4625 = vpop.f32.mrf.mxu0
    %v4626 = vadd.f32 0.0, %v4625
    %4627 = vmatprep.mubr.f32.mxu0 %v4463
    %4628 = vmatmul.mubr.f32.gmra.mxu0 %v4462
    %v4629 = vpop.f32.mrf.mxu0
    %v4630 = vadd.f32 0.0, %v4629
    %v4631 = vpop.f32.mrf.mxu0
    %v4632 = vadd.f32 0.0, %v4631
    %4633 = vmatprep.mubr.f32.mxu0 %v4465
    %4634 = vmatmul.mubr.f32.gmra.mxu0 %v4464
    %v4635 = vpop.f32.mrf.mxu0
    %v4636 = vadd.f32 0.0, %v4635
    %v4637 = vpop.f32.mrf.mxu0
    %v4638 = vadd.f32 0.0, %v4637
    %4639 = vmatprep.mubr.f32.mxu0 %v4467
    %4640 = vmatmul.mubr.f32.gmra.mxu0 %v4466
    %v4641 = vpop.f32.mrf.mxu0
    %v4642 = vadd.f32 0.0, %v4641
    %v4643 = vpop.f32.mrf.mxu0
    %v4644 = vadd.f32 0.0, %v4643
    %4645 = vmatprep.mubr.f32.mxu0 %v4469
    %4646 = vmatmul.mubr.f32.gmra.mxu0 %v4468
    %v4647 = vpop.f32.mrf.mxu0
    %v4648 = vadd.f32 0.0, %v4647
    %v4649 = vpop.f32.mrf.mxu0
    %v4650 = vadd.f32 0.0, %v4649
    %4651 = vmatprep.mubr.f32.mxu0 %v4471
    %4652 = vmatmul.mubr.f32.gmra.mxu0 %v4470
    %v4653 = vpop.f32.mrf.mxu0
    %v4654 = vadd.f32 0.0, %v4653
    %v4655 = vpop.f32.mrf.mxu0
    %v4656 = vadd.f32 0.0, %v4655
    %4657 = vmatprep.mubr.f32.mxu0 %v4473
    %4658 = vmatmul.mubr.f32.gmra.mxu0 %v4472
    %v4659 = vpop.f32.mrf.mxu0
    %v4660 = vadd.f32 0.0, %v4659
    %v4661 = vpop.f32.mrf.mxu0
    %v4662 = vadd.f32 0.0, %v4661
    %4663 = vmatprep.mubr.f32.mxu0 %v4475
    %4664 = vmatmul.mubr.f32.gmra.mxu0 %v4474
    %v4665 = vpop.f32.mrf.mxu0
    %v4666 = vadd.f32 0.0, %v4665
    %v4667 = vpop.f32.mrf.mxu0
    %v4668 = vadd.f32 0.0, %v4667
    %4669 = vmatprep.mubr.f32.mxu0 %v4477
    %4670 = vmatmul.mubr.f32.gmra.mxu0 %v4476
    %v4671 = vpop.f32.mrf.mxu0
    %v4672 = vadd.f32 0.0, %v4671
    %v4673 = vpop.f32.mrf.mxu0
    %v4674 = vadd.f32 0.0, %v4673
    %4675 = vmatprep.mubr.f32.mxu0 %v4479
    %4676 = vmatmul.mubr.f32.gmra.mxu0 %v4478
    %v4677 = vpop.f32.mrf.mxu0
    %v4678 = vadd.f32 0.0, %v4677
    %v4679 = vpop.f32.mrf.mxu0
    %v4680 = vadd.f32 0.0, %v4679
    %4681 = vmatprep.mubr.f32.mxu0 %v4481
    %4682 = vmatmul.mubr.f32.gmra.mxu0 %v4480
    %v4683 = vpop.f32.mrf.mxu0
    %v4684 = vadd.f32 0.0, %v4683
    %v4685 = vpop.f32.mrf.mxu0
    %v4686 = vadd.f32 0.0, %v4685
    %4687 = vmatprep.mubr.f32.mxu0 %v4483
    %4688 = vmatmul.mubr.f32.gmra.mxu0 %v4482
    %v4689 = vpop.f32.mrf.mxu0
    %v4690 = vadd.f32 0.0, %v4689
    %v4691 = vpop.f32.mrf.mxu0
    %v4692 = vadd.f32 0.0, %v4691
    %4693 = vmatprep.mubr.f32.mxu0 %v4485
    %4694 = vmatmul.mubr.f32.gmra.mxu0 %v4484
    %v4695 = vpop.f32.mrf.mxu0
    %v4696 = vadd.f32 0.0, %v4695
    %v4697 = vpop.f32.mrf.mxu0
    %v4698 = vadd.f32 0.0, %v4697
    %4699 = vmatprep.mubr.f32.mxu0 %v4487
    %4700 = vmatmul.mubr.f32.gmra.mxu0 %v4486
    %v4701 = vpop.f32.mrf.mxu0
    %v4702 = vadd.f32 0.0, %v4701
    %v4703 = vpop.f32.mrf.mxu0
    %v4704 = vadd.f32 0.0, %v4703
    %4705 = vmatprep.mubr.f32.mxu0 %v4489
    %4706 = vmatmul.mubr.f32.gmra.mxu0 %v4488
    %v4707 = vpop.f32.mrf.mxu0
    %v4708 = vadd.f32 0.0, %v4707
    %v4709 = vpop.f32.mrf.mxu0
    %v4710 = vadd.f32 0.0, %v4709
    %4711 = vmatprep.mubr.f32.mxu0 %v4491
    %4712 = vmatmul.mubr.f32.gmra.mxu0 %v4490
    %v4713 = vpop.f32.mrf.mxu0
    %v4714 = vadd.f32 0.0, %v4713
    %v4715 = vpop.f32.mrf.mxu0
    %v4716 = vadd.f32 0.0, %v4715
    %4717 = vdwg.mxu0
    %v4718 = vld [vmem:[#allocation2] sm:$0xff]
    %v4719 = vld [vmem:[#allocation2 + $0x8] sm:$0xff]
    %v4720 = vld [vmem:[#allocation2 + $0x10] sm:$0xff]
    %v4721 = vld [vmem:[#allocation2 + $0x18] sm:$0xff]
    %v4722 = vld [vmem:[#allocation2 + $0x20] sm:$0xff]
    %v4723 = vld [vmem:[#allocation2 + $0x28] sm:$0xff]
    %v4724 = vld [vmem:[#allocation2 + $0x30] sm:$0xff]
    %v4725 = vld [vmem:[#allocation2 + $0x38] sm:$0xff]
    %v4726 = vld [vmem:[#allocation2 + $0x40] sm:$0xff]
    %v4727 = vld [vmem:[#allocation2 + $0x48] sm:$0xff]
    %v4728 = vld [vmem:[#allocation2 + $0x50] sm:$0xff]
    %v4729 = vld [vmem:[#allocation2 + $0x58] sm:$0xff]
    %v4730 = vld [vmem:[#allocation2 + $0x60] sm:$0xff]
    %v4731 = vld [vmem:[#allocation2 + $0x68] sm:$0xff]
    %v4732 = vld [vmem:[#allocation2 + $0x70] sm:$0xff]
    %v4733 = vld [vmem:[#allocation2 + $0x78] sm:$0xff]
    %v4734 = vld [vmem:[#allocation2 + $0x80] sm:$0xff]
    %v4735 = vld [vmem:[#allocation2 + $0x88] sm:$0xff]
    %v4736 = vld [vmem:[#allocation2 + $0x90] sm:$0xff]
    %v4737 = vld [vmem:[#allocation2 + $0x98] sm:$0xff]
    %v4738 = vld [vmem:[#allocation2 + $0xa0] sm:$0xff]
    %v4739 = vld [vmem:[#allocation2 + $0xa8] sm:$0xff]
    %v4740 = vld [vmem:[#allocation2 + $0xb0] sm:$0xff]
    %v4741 = vld [vmem:[#allocation2 + $0xb8] sm:$0xff]
    %v4742 = vld [vmem:[#allocation2 + $0xc0] sm:$0xff]
    %v4743 = vld [vmem:[#allocation2 + $0xc8] sm:$0xff]
    %v4744 = vld [vmem:[#allocation2 + $0xd0] sm:$0xff]
    %v4745 = vld [vmem:[#allocation2 + $0xd8] sm:$0xff]
    %v4746 = vld [vmem:[#allocation2 + $0xe0] sm:$0xff]
    %v4747 = vld [vmem:[#allocation2 + $0xe8] sm:$0xff]
    %v4748 = vld [vmem:[#allocation2 + $0xf0] sm:$0xff]
    %v4749 = vld [vmem:[#allocation2 + $0xf8] sm:$0xff]
    %v4750 = vadd.f32 %v4718, %v4624
    %v4751 = vadd.f32 %v4719, %v4626
    %v4752 = vadd.f32 %v4720, %v4630
    %v4753 = vadd.f32 %v4721, %v4632
    %v4754 = vadd.f32 %v4722, %v4636
    %v4755 = vadd.f32 %v4723, %v4638
    %v4756 = vadd.f32 %v4724, %v4642
    %v4757 = vadd.f32 %v4725, %v4644
    %v4758 = vadd.f32 %v4726, %v4648
    %v4759 = vadd.f32 %v4727, %v4650
    %v4760 = vadd.f32 %v4728, %v4654
    %v4761 = vadd.f32 %v4729, %v4656
    %v4762 = vadd.f32 %v4730, %v4660
    %v4763 = vadd.f32 %v4731, %v4662
    %v4764 = vadd.f32 %v4732, %v4666
    %v4765 = vadd.f32 %v4733, %v4668
    %v4766 = vadd.f32 %v4734, %v4672
    %v4767 = vadd.f32 %v4735, %v4674
    %v4768 = vadd.f32 %v4736, %v4678
    %v4769 = vadd.f32 %v4737, %v4680
    %v4770 = vadd.f32 %v4738, %v4684
    %v4771 = vadd.f32 %v4739, %v4686
    %v4772 = vadd.f32 %v4740, %v4690
    %v4773 = vadd.f32 %v4741, %v4692
    %v4774 = vadd.f32 %v4742, %v4696
    %v4775 = vadd.f32 %v4743, %v4698
    %v4776 = vadd.f32 %v4744, %v4702
    %v4777 = vadd.f32 %v4745, %v4704
    %v4778 = vadd.f32 %v4746, %v4708
    %v4779 = vadd.f32 %v4747, %v4710
    %v4780 = vadd.f32 %v4748, %v4714
    %v4781 = vadd.f32 %v4749, %v4716
    %4782 = vst [vmem:[#allocation2] sm:$0xff] %v4750
    %4783 = vst [vmem:[#allocation2 + $0x8] sm:$0xff] %v4751
    %4784 = vst [vmem:[#allocation2 + $0x10] sm:$0xff] %v4752
    %4785 = vst [vmem:[#allocation2 + $0x18] sm:$0xff] %v4753
    %4786 = vst [vmem:[#allocation2 + $0x20] sm:$0xff] %v4754
    %4787 = vst [vmem:[#allocation2 + $0x28] sm:$0xff] %v4755
    %4788 = vst [vmem:[#allocation2 + $0x30] sm:$0xff] %v4756
    %4789 = vst [vmem:[#allocation2 + $0x38] sm:$0xff] %v4757
    %4790 = vst [vmem:[#allocation2 + $0x40] sm:$0xff] %v4758
    %4791 = vst [vmem:[#allocation2 + $0x48] sm:$0xff] %v4759
    %4792 = vst [vmem:[#allocation2 + $0x50] sm:$0xff] %v4760
    %4793 = vst [vmem:[#allocation2 + $0x58] sm:$0xff] %v4761
    %4794 = vst [vmem:[#allocation2 + $0x60] sm:$0xff] %v4762
    %4795 = vst [vmem:[#allocation2 + $0x68] sm:$0xff] %v4763
    %4796 = vst [vmem:[#allocation2 + $0x70] sm:$0xff] %v4764
    %4797 = vst [vmem:[#allocation2 + $0x78] sm:$0xff] %v4765
    %4798 = vst [vmem:[#allocation2 + $0x80] sm:$0xff] %v4766
    %4799 = vst [vmem:[#allocation2 + $0x88] sm:$0xff] %v4767
    %4800 = vst [vmem:[#allocation2 + $0x90] sm:$0xff] %v4768
    %4801 = vst [vmem:[#allocation2 + $0x98] sm:$0xff] %v4769
    %4802 = vst [vmem:[#allocation2 + $0xa0] sm:$0xff] %v4770
    %4803 = vst [vmem:[#allocation2 + $0xa8] sm:$0xff] %v4771
    %4804 = vst [vmem:[#allocation2 + $0xb0] sm:$0xff] %v4772
    %4805 = vst [vmem:[#allocation2 + $0xb8] sm:$0xff] %v4773
    %4806 = vst [vmem:[#allocation2 + $0xc0] sm:$0xff] %v4774
    %4807 = vst [vmem:[#allocation2 + $0xc8] sm:$0xff] %v4775
    %4808 = vst [vmem:[#allocation2 + $0xd0] sm:$0xff] %v4776
    %4809 = vst [vmem:[#allocation2 + $0xd8] sm:$0xff] %v4777
    %4810 = vst [vmem:[#allocation2 + $0xe0] sm:$0xff] %v4778
    %4811 = vst [vmem:[#allocation2 + $0xe8] sm:$0xff] %v4779
    %4812 = vst [vmem:[#allocation2 + $0xf0] sm:$0xff] %v4780
    %4813 = vst [vmem:[#allocation2 + $0xf8] sm:$0xff] %v4781
    %v4814 = vld [vmem:[#allocation3] sm:$0xff]
    %v4815 = vld [vmem:[#allocation3 + $0x8] sm:$0xff]
    %v4816 = vld [vmem:[#allocation3 + $0x10] sm:$0xff]
    %v4817 = vld [vmem:[#allocation3 + $0x18] sm:$0xff]
    %v4818 = vld [vmem:[#allocation3 + $0x20] sm:$0xff]
    %v4819 = vld [vmem:[#allocation3 + $0x28] sm:$0xff]
    %v4820 = vld [vmem:[#allocation3 + $0x30] sm:$0xff]
    %v4821 = vld [vmem:[#allocation3 + $0x38] sm:$0xff]
    %v4822 = vld [vmem:[#allocation3 + $0x40] sm:$0xff]
    %v4823 = vld [vmem:[#allocation3 + $0x48] sm:$0xff]
    %v4824 = vld [vmem:[#allocation3 + $0x50] sm:$0xff]
    %v4825 = vld [vmem:[#allocation3 + $0x58] sm:$0xff]
    %v4826 = vld [vmem:[#allocation3 + $0x60] sm:$0xff]
    %v4827 = vld [vmem:[#allocation3 + $0x68] sm:$0xff]
    %v4828 = vld [vmem:[#allocation3 + $0x70] sm:$0xff]
    %v4829 = vld [vmem:[#allocation3 + $0x78] sm:$0xff]
    %v4830 = vld [vmem:[#allocation3 + $0x80] sm:$0xff]
    %v4831 = vld [vmem:[#allocation3 + $0x88] sm:$0xff]
    %v4832 = vld [vmem:[#allocation3 + $0x90] sm:$0xff]
    %v4833 = vld [vmem:[#allocation3 + $0x98] sm:$0xff]
    %v4834 = vld [vmem:[#allocation3 + $0xa0] sm:$0xff]
    %v4835 = vld [vmem:[#allocation3 + $0xa8] sm:$0xff]
    %v4836 = vld [vmem:[#allocation3 + $0xb0] sm:$0xff]
    %v4837 = vld [vmem:[#allocation3 + $0xb8] sm:$0xff]
    %v4838 = vld [vmem:[#allocation3 + $0xc0] sm:$0xff]
    %v4839 = vld [vmem:[#allocation3 + $0xc8] sm:$0xff]
    %v4840 = vld [vmem:[#allocation3 + $0xd0] sm:$0xff]
    %v4841 = vld [vmem:[#allocation3 + $0xd8] sm:$0xff]
    %v4842 = vld [vmem:[#allocation3 + $0xe0] sm:$0xff]
    %v4843 = vld [vmem:[#allocation3 + $0xe8] sm:$0xff]
    %v4844 = vld [vmem:[#allocation3 + $0xf0] sm:$0xff]
    %v4845 = vld [vmem:[#allocation3 + $0xf8] sm:$0xff]
    %s4846 = scalar_lea.vmem [#allocation8], 512
    %v4847 = vld [vmem:[%s4846] sm:$0xff]
    %v4848 = vld [vmem:[%s4846 + $0x8] sm:$0xff]
    %v4849 = vld [vmem:[%s4846 + $0x10] sm:$0xff]
    %v4850 = vld [vmem:[%s4846 + $0x18] sm:$0xff]
    %v4851 = vld [vmem:[%s4846 + $0x20] sm:$0xff]
    %v4852 = vld [vmem:[%s4846 + $0x28] sm:$0xff]
    %v4853 = vld [vmem:[%s4846 + $0x30] sm:$0xff]
    %v4854 = vld [vmem:[%s4846 + $0x38] sm:$0xff]
    %v4855 = vld [vmem:[%s4846 + $0x40] sm:$0xff]
    %v4856 = vld [vmem:[%s4846 + $0x48] sm:$0xff]
    %v4857 = vld [vmem:[%s4846 + $0x50] sm:$0xff]
    %v4858 = vld [vmem:[%s4846 + $0x58] sm:$0xff]
    %v4859 = vld [vmem:[%s4846 + $0x60] sm:$0xff]
    %v4860 = vld [vmem:[%s4846 + $0x68] sm:$0xff]
    %v4861 = vld [vmem:[%s4846 + $0x70] sm:$0xff]
    %v4862 = vld [vmem:[%s4846 + $0x78] sm:$0xff]
    %v4863 = vld [vmem:[%s4846 + $0x80] sm:$0xff]
    %v4864 = vld [vmem:[%s4846 + $0x88] sm:$0xff]
    %v4865 = vld [vmem:[%s4846 + $0x90] sm:$0xff]
    %v4866 = vld [vmem:[%s4846 + $0x98] sm:$0xff]
    %v4867 = vld [vmem:[%s4846 + $0xa0] sm:$0xff]
    %v4868 = vld [vmem:[%s4846 + $0xa8] sm:$0xff]
    %v4869 = vld [vmem:[%s4846 + $0xb0] sm:$0xff]
    %v4870 = vld [vmem:[%s4846 + $0xb8] sm:$0xff]
    %v4871 = vld [vmem:[%s4846 + $0xc0] sm:$0xff]
    %v4872 = vld [vmem:[%s4846 + $0xc8] sm:$0xff]
    %v4873 = vld [vmem:[%s4846 + $0xd0] sm:$0xff]
    %v4874 = vld [vmem:[%s4846 + $0xd8] sm:$0xff]
    %v4875 = vld [vmem:[%s4846 + $0xe0] sm:$0xff]
    %v4876 = vld [vmem:[%s4846 + $0xe8] sm:$0xff]
    %v4877 = vld [vmem:[%s4846 + $0xf0] sm:$0xff]
    %v4878 = vld [vmem:[%s4846 + $0xf8] sm:$0xff]
    %v4879 = vld [vmem:[%s4846 + $0x100] sm:$0xff]
    %v4880 = vld [vmem:[%s4846 + $0x108] sm:$0xff]
    %v4881 = vld [vmem:[%s4846 + $0x110] sm:$0xff]
    %v4882 = vld [vmem:[%s4846 + $0x118] sm:$0xff]
    %v4883 = vld [vmem:[%s4846 + $0x120] sm:$0xff]
    %v4884 = vld [vmem:[%s4846 + $0x128] sm:$0xff]
    %v4885 = vld [vmem:[%s4846 + $0x130] sm:$0xff]
    %v4886 = vld [vmem:[%s4846 + $0x138] sm:$0xff]
    %v4887 = vld [vmem:[%s4846 + $0x140] sm:$0xff]
    %v4888 = vld [vmem:[%s4846 + $0x148] sm:$0xff]
    %v4889 = vld [vmem:[%s4846 + $0x150] sm:$0xff]
    %v4890 = vld [vmem:[%s4846 + $0x158] sm:$0xff]
    %v4891 = vld [vmem:[%s4846 + $0x160] sm:$0xff]
    %v4892 = vld [vmem:[%s4846 + $0x168] sm:$0xff]
    %v4893 = vld [vmem:[%s4846 + $0x170] sm:$0xff]
    %v4894 = vld [vmem:[%s4846 + $0x178] sm:$0xff]
    %v4895 = vld [vmem:[%s4846 + $0x180] sm:$0xff]
    %v4896 = vld [vmem:[%s4846 + $0x188] sm:$0xff]
    %v4897 = vld [vmem:[%s4846 + $0x190] sm:$0xff]
    %v4898 = vld [vmem:[%s4846 + $0x198] sm:$0xff]
    %v4899 = vld [vmem:[%s4846 + $0x1a0] sm:$0xff]
    %v4900 = vld [vmem:[%s4846 + $0x1a8] sm:$0xff]
    %v4901 = vld [vmem:[%s4846 + $0x1b0] sm:$0xff]
    %v4902 = vld [vmem:[%s4846 + $0x1b8] sm:$0xff]
    %v4903 = vld [vmem:[%s4846 + $0x1c0] sm:$0xff]
    %v4904 = vld [vmem:[%s4846 + $0x1c8] sm:$0xff]
    %v4905 = vld [vmem:[%s4846 + $0x1d0] sm:$0xff]
    %v4906 = vld [vmem:[%s4846 + $0x1d8] sm:$0xff]
    %v4907 = vld [vmem:[%s4846 + $0x1e0] sm:$0xff]
    %v4908 = vld [vmem:[%s4846 + $0x1e8] sm:$0xff]
    %v4909 = vld [vmem:[%s4846 + $0x1f0] sm:$0xff]
    %v4910 = vld [vmem:[%s4846 + $0x1f8] sm:$0xff]
    %4911 = vmatprep.subr.mxu0 %v4878
    %4912 = vmatpush1.msra.mxu0 %v4877
    %4913 = vmatprep.subr.mxu0 %v4876
    %4914 = vmatpush1.msra.mxu0 %v4875
    %4915 = vmatprep.subr.mxu0 %v4874
    %4916 = vmatpush1.msra.mxu0 %v4873
    %4917 = vmatprep.subr.mxu0 %v4872
    %4918 = vmatpush1.msra.mxu0 %v4871
    %4919 = vmatprep.subr.mxu0 %v4870
    %4920 = vmatpush1.msra.mxu0 %v4869
    %4921 = vmatprep.subr.mxu0 %v4868
    %4922 = vmatpush1.msra.mxu0 %v4867
    %4923 = vmatprep.subr.mxu0 %v4866
    %4924 = vmatpush1.msra.mxu0 %v4865
    %4925 = vmatprep.subr.mxu0 %v4864
    %4926 = vmatpush1.msra.mxu0 %v4863
    %4927 = vmatprep.subr.mxu0 %v4862
    %4928 = vmatpush1.msra.mxu0 %v4861
    %4929 = vmatprep.subr.mxu0 %v4860
    %4930 = vmatpush1.msra.mxu0 %v4859
    %4931 = vmatprep.subr.mxu0 %v4858
    %4932 = vmatpush1.msra.mxu0 %v4857
    %4933 = vmatprep.subr.mxu0 %v4856
    %4934 = vmatpush1.msra.mxu0 %v4855
    %4935 = vmatprep.subr.mxu0 %v4854
    %4936 = vmatpush1.msra.mxu0 %v4853
    %4937 = vmatprep.subr.mxu0 %v4852
    %4938 = vmatpush1.msra.mxu0 %v4851
    %4939 = vmatprep.subr.mxu0 %v4850
    %4940 = vmatpush1.msra.mxu0 %v4849
    %4941 = vmatprep.subr.mxu0 %v4848
    %4942 = vmatpush1.msra.mxu0 %v4847
    %4943 = vmatprep.subr.mxu0 %v4910
    %4944 = vmatpush2.msra.mxu0 %v4909
    %4945 = vmatprep.subr.mxu0 %v4908
    %4946 = vmatpush2.msra.mxu0 %v4907
    %4947 = vmatprep.subr.mxu0 %v4906
    %4948 = vmatpush2.msra.mxu0 %v4905
    %4949 = vmatprep.subr.mxu0 %v4904
    %4950 = vmatpush2.msra.mxu0 %v4903
    %4951 = vmatprep.subr.mxu0 %v4902
    %4952 = vmatpush2.msra.mxu0 %v4901
    %4953 = vmatprep.subr.mxu0 %v4900
    %4954 = vmatpush2.msra.mxu0 %v4899
    %4955 = vmatprep.subr.mxu0 %v4898
    %4956 = vmatpush2.msra.mxu0 %v4897
    %4957 = vmatprep.subr.mxu0 %v4896
    %4958 = vmatpush2.msra.mxu0 %v4895
    %4959 = vmatprep.subr.mxu0 %v4894
    %4960 = vmatpush2.msra.mxu0 %v4893
    %4961 = vmatprep.subr.mxu0 %v4892
    %4962 = vmatpush2.msra.mxu0 %v4891
    %4963 = vmatprep.subr.mxu0 %v4890
    %4964 = vmatpush2.msra.mxu0 %v4889
    %4965 = vmatprep.subr.mxu0 %v4888
    %4966 = vmatpush2.msra.mxu0 %v4887
    %4967 = vmatprep.subr.mxu0 %v4886
    %4968 = vmatpush2.msra.mxu0 %v4885
    %4969 = vmatprep.subr.mxu0 %v4884
    %4970 = vmatpush2.msra.mxu0 %v4883
    %4971 = vmatprep.subr.mxu0 %v4882
    %4972 = vmatpush2.msra.mxu0 %v4881
    %4973 = vmatprep.subr.mxu0 %v4880
    %4974 = vmatpush2.msra.mxu0 %v4879
    %4975 = vmatprep.mubr.f32.mxu0 %v4815
    %4976 = vmatmul.mubr.f32.gmra.mxu0 %v4814
    %v4977 = vpop.f32.mrf.mxu0
    %v4978 = vadd.f32 0.0, %v4977
    %v4979 = vpop.f32.mrf.mxu0
    %v4980 = vadd.f32 0.0, %v4979
    %4981 = vmatprep.mubr.f32.mxu0 %v4817
    %4982 = vmatmul.mubr.f32.gmra.mxu0 %v4816
    %v4983 = vpop.f32.mrf.mxu0
    %v4984 = vadd.f32 0.0, %v4983
    %v4985 = vpop.f32.mrf.mxu0
    %v4986 = vadd.f32 0.0, %v4985
    %4987 = vmatprep.mubr.f32.mxu0 %v4819
    %4988 = vmatmul.mubr.f32.gmra.mxu0 %v4818
    %v4989 = vpop.f32.mrf.mxu0
    %v4990 = vadd.f32 0.0, %v4989
    %v4991 = vpop.f32.mrf.mxu0
    %v4992 = vadd.f32 0.0, %v4991
    %4993 = vmatprep.mubr.f32.mxu0 %v4821
    %4994 = vmatmul.mubr.f32.gmra.mxu0 %v4820
    %v4995 = vpop.f32.mrf.mxu0
    %v4996 = vadd.f32 0.0, %v4995
    %v4997 = vpop.f32.mrf.mxu0
    %v4998 = vadd.f32 0.0, %v4997
    %4999 = vmatprep.mubr.f32.mxu0 %v4823
    %5000 = vmatmul.mubr.f32.gmra.mxu0 %v4822
    %v5001 = vpop.f32.mrf.mxu0
    %v5002 = vadd.f32 0.0, %v5001
    %v5003 = vpop.f32.mrf.mxu0
    %v5004 = vadd.f32 0.0, %v5003
    %5005 = vmatprep.mubr.f32.mxu0 %v4825
    %5006 = vmatmul.mubr.f32.gmra.mxu0 %v4824
    %v5007 = vpop.f32.mrf.mxu0
    %v5008 = vadd.f32 0.0, %v5007
    %v5009 = vpop.f32.mrf.mxu0
    %v5010 = vadd.f32 0.0, %v5009
    %5011 = vmatprep.mubr.f32.mxu0 %v4827
    %5012 = vmatmul.mubr.f32.gmra.mxu0 %v4826
    %v5013 = vpop.f32.mrf.mxu0
    %v5014 = vadd.f32 0.0, %v5013
    %v5015 = vpop.f32.mrf.mxu0
    %v5016 = vadd.f32 0.0, %v5015
    %5017 = vmatprep.mubr.f32.mxu0 %v4829
    %5018 = vmatmul.mubr.f32.gmra.mxu0 %v4828
    %v5019 = vpop.f32.mrf.mxu0
    %v5020 = vadd.f32 0.0, %v5019
    %v5021 = vpop.f32.mrf.mxu0
    %v5022 = vadd.f32 0.0, %v5021
    %5023 = vmatprep.mubr.f32.mxu0 %v4831
    %5024 = vmatmul.mubr.f32.gmra.mxu0 %v4830
    %v5025 = vpop.f32.mrf.mxu0
    %v5026 = vadd.f32 0.0, %v5025
    %v5027 = vpop.f32.mrf.mxu0
    %v5028 = vadd.f32 0.0, %v5027
    %5029 = vmatprep.mubr.f32.mxu0 %v4833
    %5030 = vmatmul.mubr.f32.gmra.mxu0 %v4832
    %v5031 = vpop.f32.mrf.mxu0
    %v5032 = vadd.f32 0.0, %v5031
    %v5033 = vpop.f32.mrf.mxu0
    %v5034 = vadd.f32 0.0, %v5033
    %5035 = vmatprep.mubr.f32.mxu0 %v4835
    %5036 = vmatmul.mubr.f32.gmra.mxu0 %v4834
    %v5037 = vpop.f32.mrf.mxu0
    %v5038 = vadd.f32 0.0, %v5037
    %v5039 = vpop.f32.mrf.mxu0
    %v5040 = vadd.f32 0.0, %v5039
    %5041 = vmatprep.mubr.f32.mxu0 %v4837
    %5042 = vmatmul.mubr.f32.gmra.mxu0 %v4836
    %v5043 = vpop.f32.mrf.mxu0
    %v5044 = vadd.f32 0.0, %v5043
    %v5045 = vpop.f32.mrf.mxu0
    %v5046 = vadd.f32 0.0, %v5045
    %5047 = vmatprep.mubr.f32.mxu0 %v4839
    %5048 = vmatmul.mubr.f32.gmra.mxu0 %v4838
    %v5049 = vpop.f32.mrf.mxu0
    %v5050 = vadd.f32 0.0, %v5049
    %v5051 = vpop.f32.mrf.mxu0
    %v5052 = vadd.f32 0.0, %v5051
    %5053 = vmatprep.mubr.f32.mxu0 %v4841
    %5054 = vmatmul.mubr.f32.gmra.mxu0 %v4840
    %v5055 = vpop.f32.mrf.mxu0
    %v5056 = vadd.f32 0.0, %v5055
    %v5057 = vpop.f32.mrf.mxu0
    %v5058 = vadd.f32 0.0, %v5057
    %5059 = vmatprep.mubr.f32.mxu0 %v4843
    %5060 = vmatmul.mubr.f32.gmra.mxu0 %v4842
    %v5061 = vpop.f32.mrf.mxu0
    %v5062 = vadd.f32 0.0, %v5061
    %v5063 = vpop.f32.mrf.mxu0
    %v5064 = vadd.f32 0.0, %v5063
    %5065 = vmatprep.mubr.f32.mxu0 %v4845
    %5066 = vmatmul.mubr.f32.gmra.mxu0 %v4844
    %v5067 = vpop.f32.mrf.mxu0
    %v5068 = vadd.f32 0.0, %v5067
    %v5069 = vpop.f32.mrf.mxu0
    %v5070 = vadd.f32 0.0, %v5069
    %5071 = vdwg.mxu0
    %5072 = vst [vmem:[%s2209] sm:$0xff] %v4978
    %5073 = vst [vmem:[%s2209 + $0x8] sm:$0xff] %v4980
    %5074 = vst [vmem:[%s2209 + $0x10] sm:$0xff] %v4984
    %5075 = vst [vmem:[%s2209 + $0x18] sm:$0xff] %v4986
    %5076 = vst [vmem:[%s2209 + $0x20] sm:$0xff] %v4990
    %5077 = vst [vmem:[%s2209 + $0x28] sm:$0xff] %v4992
    %5078 = vst [vmem:[%s2209 + $0x30] sm:$0xff] %v4996
    %5079 = vst [vmem:[%s2209 + $0x38] sm:$0xff] %v4998
    %5080 = vst [vmem:[%s2209 + $0x40] sm:$0xff] %v5002
    %5081 = vst [vmem:[%s2209 + $0x48] sm:$0xff] %v5004
    %5082 = vst [vmem:[%s2209 + $0x50] sm:$0xff] %v5008
    %5083 = vst [vmem:[%s2209 + $0x58] sm:$0xff] %v5010
    %5084 = vst [vmem:[%s2209 + $0x60] sm:$0xff] %v5014
    %5085 = vst [vmem:[%s2209 + $0x68] sm:$0xff] %v5016
    %5086 = vst [vmem:[%s2209 + $0x70] sm:$0xff] %v5020
    %5087 = vst [vmem:[%s2209 + $0x78] sm:$0xff] %v5022
    %5088 = vst [vmem:[%s2209 + $0x80] sm:$0xff] %v5026
    %5089 = vst [vmem:[%s2209 + $0x88] sm:$0xff] %v5028
    %5090 = vst [vmem:[%s2209 + $0x90] sm:$0xff] %v5032
    %5091 = vst [vmem:[%s2209 + $0x98] sm:$0xff] %v5034
    %5092 = vst [vmem:[%s2209 + $0xa0] sm:$0xff] %v5038
    %5093 = vst [vmem:[%s2209 + $0xa8] sm:$0xff] %v5040
    %5094 = vst [vmem:[%s2209 + $0xb0] sm:$0xff] %v5044
    %5095 = vst [vmem:[%s2209 + $0xb8] sm:$0xff] %v5046
    %5096 = vst [vmem:[%s2209 + $0xc0] sm:$0xff] %v5050
    %5097 = vst [vmem:[%s2209 + $0xc8] sm:$0xff] %v5052
    %5098 = vst [vmem:[%s2209 + $0xd0] sm:$0xff] %v5056
    %5099 = vst [vmem:[%s2209 + $0xd8] sm:$0xff] %v5058
    %5100 = vst [vmem:[%s2209 + $0xe0] sm:$0xff] %v5062
    %5101 = vst [vmem:[%s2209 + $0xe8] sm:$0xff] %v5064
    %5102 = vst [vmem:[%s2209 + $0xf0] sm:$0xff] %v5068
    %5103 = vst [vmem:[%s2209 + $0xf8] sm:$0xff] %v5070
    %v5104 = vld [vmem:[%s3783] sm:$0xff]
    %v5105 = vld [vmem:[%s3783 + $0x8] sm:$0xff]
    %v5106 = vld [vmem:[%s3783 + $0x10] sm:$0xff]
    %v5107 = vld [vmem:[%s3783 + $0x18] sm:$0xff]
    %v5108 = vld [vmem:[%s3783 + $0x20] sm:$0xff]
    %v5109 = vld [vmem:[%s3783 + $0x28] sm:$0xff]
    %v5110 = vld [vmem:[%s3783 + $0x30] sm:$0xff]
    %v5111 = vld [vmem:[%s3783 + $0x38] sm:$0xff]
    %v5112 = vld [vmem:[%s3783 + $0x40] sm:$0xff]
    %v5113 = vld [vmem:[%s3783 + $0x48] sm:$0xff]
    %v5114 = vld [vmem:[%s3783 + $0x50] sm:$0xff]
    %v5115 = vld [vmem:[%s3783 + $0x58] sm:$0xff]
    %v5116 = vld [vmem:[%s3783 + $0x60] sm:$0xff]
    %v5117 = vld [vmem:[%s3783 + $0x68] sm:$0xff]
    %v5118 = vld [vmem:[%s3783 + $0x70] sm:$0xff]
    %v5119 = vld [vmem:[%s3783 + $0x78] sm:$0xff]
    %v5120 = vld [vmem:[%s3783 + $0x80] sm:$0xff]
    %v5121 = vld [vmem:[%s3783 + $0x88] sm:$0xff]
    %v5122 = vld [vmem:[%s3783 + $0x90] sm:$0xff]
    %v5123 = vld [vmem:[%s3783 + $0x98] sm:$0xff]
    %v5124 = vld [vmem:[%s3783 + $0xa0] sm:$0xff]
    %v5125 = vld [vmem:[%s3783 + $0xa8] sm:$0xff]
    %v5126 = vld [vmem:[%s3783 + $0xb0] sm:$0xff]
    %v5127 = vld [vmem:[%s3783 + $0xb8] sm:$0xff]
    %v5128 = vld [vmem:[%s3783 + $0xc0] sm:$0xff]
    %v5129 = vld [vmem:[%s3783 + $0xc8] sm:$0xff]
    %v5130 = vld [vmem:[%s3783 + $0xd0] sm:$0xff]
    %v5131 = vld [vmem:[%s3783 + $0xd8] sm:$0xff]
    %v5132 = vld [vmem:[%s3783 + $0xe0] sm:$0xff]
    %v5133 = vld [vmem:[%s3783 + $0xe8] sm:$0xff]
    %v5134 = vld [vmem:[%s3783 + $0xf0] sm:$0xff]
    %v5135 = vld [vmem:[%s3783 + $0xf8] sm:$0xff]
    %s5136 = scalar_lea.vmem [#allocation8], 1536
    %v5137 = vld [vmem:[%s5136] sm:$0xff]
    %v5138 = vld [vmem:[%s5136 + $0x8] sm:$0xff]
    %v5139 = vld [vmem:[%s5136 + $0x10] sm:$0xff]
    %v5140 = vld [vmem:[%s5136 + $0x18] sm:$0xff]
    %v5141 = vld [vmem:[%s5136 + $0x20] sm:$0xff]
    %v5142 = vld [vmem:[%s5136 + $0x28] sm:$0xff]
    %v5143 = vld [vmem:[%s5136 + $0x30] sm:$0xff]
    %v5144 = vld [vmem:[%s5136 + $0x38] sm:$0xff]
    %v5145 = vld [vmem:[%s5136 + $0x40] sm:$0xff]
    %v5146 = vld [vmem:[%s5136 + $0x48] sm:$0xff]
    %v5147 = vld [vmem:[%s5136 + $0x50] sm:$0xff]
    %v5148 = vld [vmem:[%s5136 + $0x58] sm:$0xff]
    %v5149 = vld [vmem:[%s5136 + $0x60] sm:$0xff]
    %v5150 = vld [vmem:[%s5136 + $0x68] sm:$0xff]
    %v5151 = vld [vmem:[%s5136 + $0x70] sm:$0xff]
    %v5152 = vld [vmem:[%s5136 + $0x78] sm:$0xff]
    %v5153 = vld [vmem:[%s5136 + $0x80] sm:$0xff]
    %v5154 = vld [vmem:[%s5136 + $0x88] sm:$0xff]
    %v5155 = vld [vmem:[%s5136 + $0x90] sm:$0xff]
    %v5156 = vld [vmem:[%s5136 + $0x98] sm:$0xff]
    %v5157 = vld [vmem:[%s5136 + $0xa0] sm:$0xff]
    %v5158 = vld [vmem:[%s5136 + $0xa8] sm:$0xff]
    %v5159 = vld [vmem:[%s5136 + $0xb0] sm:$0xff]
    %v5160 = vld [vmem:[%s5136 + $0xb8] sm:$0xff]
    %v5161 = vld [vmem:[%s5136 + $0xc0] sm:$0xff]
    %v5162 = vld [vmem:[%s5136 + $0xc8] sm:$0xff]
    %v5163 = vld [vmem:[%s5136 + $0xd0] sm:$0xff]
    %v5164 = vld [vmem:[%s5136 + $0xd8] sm:$0xff]
    %v5165 = vld [vmem:[%s5136 + $0xe0] sm:$0xff]
    %v5166 = vld [vmem:[%s5136 + $0xe8] sm:$0xff]
    %v5167 = vld [vmem:[%s5136 + $0xf0] sm:$0xff]
    %v5168 = vld [vmem:[%s5136 + $0xf8] sm:$0xff]
    %v5169 = vld [vmem:[%s5136 + $0x100] sm:$0xff]
    %v5170 = vld [vmem:[%s5136 + $0x108] sm:$0xff]
    %v5171 = vld [vmem:[%s5136 + $0x110] sm:$0xff]
    %v5172 = vld [vmem:[%s5136 + $0x118] sm:$0xff]
    %v5173 = vld [vmem:[%s5136 + $0x120] sm:$0xff]
    %v5174 = vld [vmem:[%s5136 + $0x128] sm:$0xff]
    %v5175 = vld [vmem:[%s5136 + $0x130] sm:$0xff]
    %v5176 = vld [vmem:[%s5136 + $0x138] sm:$0xff]
    %v5177 = vld [vmem:[%s5136 + $0x140] sm:$0xff]
    %v5178 = vld [vmem:[%s5136 + $0x148] sm:$0xff]
    %v5179 = vld [vmem:[%s5136 + $0x150] sm:$0xff]
    %v5180 = vld [vmem:[%s5136 + $0x158] sm:$0xff]
    %v5181 = vld [vmem:[%s5136 + $0x160] sm:$0xff]
    %v5182 = vld [vmem:[%s5136 + $0x168] sm:$0xff]
    %v5183 = vld [vmem:[%s5136 + $0x170] sm:$0xff]
    %v5184 = vld [vmem:[%s5136 + $0x178] sm:$0xff]
    %v5185 = vld [vmem:[%s5136 + $0x180] sm:$0xff]
    %v5186 = vld [vmem:[%s5136 + $0x188] sm:$0xff]
    %v5187 = vld [vmem:[%s5136 + $0x190] sm:$0xff]
    %v5188 = vld [vmem:[%s5136 + $0x198] sm:$0xff]
    %v5189 = vld [vmem:[%s5136 + $0x1a0] sm:$0xff]
    %v5190 = vld [vmem:[%s5136 + $0x1a8] sm:$0xff]
    %v5191 = vld [vmem:[%s5136 + $0x1b0] sm:$0xff]
    %v5192 = vld [vmem:[%s5136 + $0x1b8] sm:$0xff]
    %v5193 = vld [vmem:[%s5136 + $0x1c0] sm:$0xff]
    %v5194 = vld [vmem:[%s5136 + $0x1c8] sm:$0xff]
    %v5195 = vld [vmem:[%s5136 + $0x1d0] sm:$0xff]
    %v5196 = vld [vmem:[%s5136 + $0x1d8] sm:$0xff]
    %v5197 = vld [vmem:[%s5136 + $0x1e0] sm:$0xff]
    %v5198 = vld [vmem:[%s5136 + $0x1e8] sm:$0xff]
    %v5199 = vld [vmem:[%s5136 + $0x1f0] sm:$0xff]
    %v5200 = vld [vmem:[%s5136 + $0x1f8] sm:$0xff]
    %5201 = vmatprep.subr.mxu0 %v5168
    %5202 = vmatpush1.msra.mxu0 %v5167
    %5203 = vmatprep.subr.mxu0 %v5166
    %5204 = vmatpush1.msra.mxu0 %v5165
    %5205 = vmatprep.subr.mxu0 %v5164
    %5206 = vmatpush1.msra.mxu0 %v5163
    %5207 = vmatprep.subr.mxu0 %v5162
    %5208 = vmatpush1.msra.mxu0 %v5161
    %5209 = vmatprep.subr.mxu0 %v5160
    %5210 = vmatpush1.msra.mxu0 %v5159
    %5211 = vmatprep.subr.mxu0 %v5158
    %5212 = vmatpush1.msra.mxu0 %v5157
    %5213 = vmatprep.subr.mxu0 %v5156
    %5214 = vmatpush1.msra.mxu0 %v5155
    %5215 = vmatprep.subr.mxu0 %v5154
    %5216 = vmatpush1.msra.mxu0 %v5153
    %5217 = vmatprep.subr.mxu0 %v5152
    %5218 = vmatpush1.msra.mxu0 %v5151
    %5219 = vmatprep.subr.mxu0 %v5150
    %5220 = vmatpush1.msra.mxu0 %v5149
    %5221 = vmatprep.subr.mxu0 %v5148
    %5222 = vmatpush1.msra.mxu0 %v5147
    %5223 = vmatprep.subr.mxu0 %v5146
    %5224 = vmatpush1.msra.mxu0 %v5145
    %5225 = vmatprep.subr.mxu0 %v5144
    %5226 = vmatpush1.msra.mxu0 %v5143
    %5227 = vmatprep.subr.mxu0 %v5142
    %5228 = vmatpush1.msra.mxu0 %v5141
    %5229 = vmatprep.subr.mxu0 %v5140
    %5230 = vmatpush1.msra.mxu0 %v5139
    %5231 = vmatprep.subr.mxu0 %v5138
    %5232 = vmatpush1.msra.mxu0 %v5137
    %5233 = vmatprep.subr.mxu0 %v5200
    %5234 = vmatpush2.msra.mxu0 %v5199
    %5235 = vmatprep.subr.mxu0 %v5198
    %5236 = vmatpush2.msra.mxu0 %v5197
    %5237 = vmatprep.subr.mxu0 %v5196
    %5238 = vmatpush2.msra.mxu0 %v5195
    %5239 = vmatprep.subr.mxu0 %v5194
    %5240 = vmatpush2.msra.mxu0 %v5193
    %5241 = vmatprep.subr.mxu0 %v5192
    %5242 = vmatpush2.msra.mxu0 %v5191
    %5243 = vmatprep.subr.mxu0 %v5190
    %5244 = vmatpush2.msra.mxu0 %v5189
    %5245 = vmatprep.subr.mxu0 %v5188
    %5246 = vmatpush2.msra.mxu0 %v5187
    %5247 = vmatprep.subr.mxu0 %v5186
    %5248 = vmatpush2.msra.mxu0 %v5185
    %5249 = vmatprep.subr.mxu0 %v5184
    %5250 = vmatpush2.msra.mxu0 %v5183
    %5251 = vmatprep.subr.mxu0 %v5182
    %5252 = vmatpush2.msra.mxu0 %v5181
    %5253 = vmatprep.subr.mxu0 %v5180
    %5254 = vmatpush2.msra.mxu0 %v5179
    %5255 = vmatprep.subr.mxu0 %v5178
    %5256 = vmatpush2.msra.mxu0 %v5177
    %5257 = vmatprep.subr.mxu0 %v5176
    %5258 = vmatpush2.msra.mxu0 %v5175
    %5259 = vmatprep.subr.mxu0 %v5174
    %5260 = vmatpush2.msra.mxu0 %v5173
    %5261 = vmatprep.subr.mxu0 %v5172
    %5262 = vmatpush2.msra.mxu0 %v5171
    %5263 = vmatprep.subr.mxu0 %v5170
    %5264 = vmatpush2.msra.mxu0 %v5169
    %5265 = vmatprep.mubr.f32.mxu0 %v5105
    %5266 = vmatmul.mubr.f32.gmra.mxu0 %v5104
    %v5267 = vpop.f32.mrf.mxu0
    %v5268 = vadd.f32 0.0, %v5267
    %v5269 = vpop.f32.mrf.mxu0
    %v5270 = vadd.f32 0.0, %v5269
    %5271 = vmatprep.mubr.f32.mxu0 %v5107
    %5272 = vmatmul.mubr.f32.gmra.mxu0 %v5106
    %v5273 = vpop.f32.mrf.mxu0
    %v5274 = vadd.f32 0.0, %v5273
    %v5275 = vpop.f32.mrf.mxu0
    %v5276 = vadd.f32 0.0, %v5275
    %5277 = vmatprep.mubr.f32.mxu0 %v5109
    %5278 = vmatmul.mubr.f32.gmra.mxu0 %v5108
    %v5279 = vpop.f32.mrf.mxu0
    %v5280 = vadd.f32 0.0, %v5279
    %v5281 = vpop.f32.mrf.mxu0
    %v5282 = vadd.f32 0.0, %v5281
    %5283 = vmatprep.mubr.f32.mxu0 %v5111
    %5284 = vmatmul.mubr.f32.gmra.mxu0 %v5110
    %v5285 = vpop.f32.mrf.mxu0
    %v5286 = vadd.f32 0.0, %v5285
    %v5287 = vpop.f32.mrf.mxu0
    %v5288 = vadd.f32 0.0, %v5287
    %5289 = vmatprep.mubr.f32.mxu0 %v5113
    %5290 = vmatmul.mubr.f32.gmra.mxu0 %v5112
    %v5291 = vpop.f32.mrf.mxu0
    %v5292 = vadd.f32 0.0, %v5291
    %v5293 = vpop.f32.mrf.mxu0
    %v5294 = vadd.f32 0.0, %v5293
    %5295 = vmatprep.mubr.f32.mxu0 %v5115
    %5296 = vmatmul.mubr.f32.gmra.mxu0 %v5114
    %v5297 = vpop.f32.mrf.mxu0
    %v5298 = vadd.f32 0.0, %v5297
    %v5299 = vpop.f32.mrf.mxu0
    %v5300 = vadd.f32 0.0, %v5299
    %5301 = vmatprep.mubr.f32.mxu0 %v5117
    %5302 = vmatmul.mubr.f32.gmra.mxu0 %v5116
    %v5303 = vpop.f32.mrf.mxu0
    %v5304 = vadd.f32 0.0, %v5303
    %v5305 = vpop.f32.mrf.mxu0
    %v5306 = vadd.f32 0.0, %v5305
    %5307 = vmatprep.mubr.f32.mxu0 %v5119
    %5308 = vmatmul.mubr.f32.gmra.mxu0 %v5118
    %v5309 = vpop.f32.mrf.mxu0
    %v5310 = vadd.f32 0.0, %v5309
    %v5311 = vpop.f32.mrf.mxu0
    %v5312 = vadd.f32 0.0, %v5311
    %5313 = vmatprep.mubr.f32.mxu0 %v5121
    %5314 = vmatmul.mubr.f32.gmra.mxu0 %v5120
    %v5315 = vpop.f32.mrf.mxu0
    %v5316 = vadd.f32 0.0, %v5315
    %v5317 = vpop.f32.mrf.mxu0
    %v5318 = vadd.f32 0.0, %v5317
    %5319 = vmatprep.mubr.f32.mxu0 %v5123
    %5320 = vmatmul.mubr.f32.gmra.mxu0 %v5122
    %v5321 = vpop.f32.mrf.mxu0
    %v5322 = vadd.f32 0.0, %v5321
    %v5323 = vpop.f32.mrf.mxu0
    %v5324 = vadd.f32 0.0, %v5323
    %5325 = vmatprep.mubr.f32.mxu0 %v5125
    %5326 = vmatmul.mubr.f32.gmra.mxu0 %v5124
    %v5327 = vpop.f32.mrf.mxu0
    %v5328 = vadd.f32 0.0, %v5327
    %v5329 = vpop.f32.mrf.mxu0
    %v5330 = vadd.f32 0.0, %v5329
    %5331 = vmatprep.mubr.f32.mxu0 %v5127
    %5332 = vmatmul.mubr.f32.gmra.mxu0 %v5126
    %v5333 = vpop.f32.mrf.mxu0
    %v5334 = vadd.f32 0.0, %v5333
    %v5335 = vpop.f32.mrf.mxu0
    %v5336 = vadd.f32 0.0, %v5335
    %5337 = vmatprep.mubr.f32.mxu0 %v5129
    %5338 = vmatmul.mubr.f32.gmra.mxu0 %v5128
    %v5339 = vpop.f32.mrf.mxu0
    %v5340 = vadd.f32 0.0, %v5339
    %v5341 = vpop.f32.mrf.mxu0
    %v5342 = vadd.f32 0.0, %v5341
    %5343 = vmatprep.mubr.f32.mxu0 %v5131
    %5344 = vmatmul.mubr.f32.gmra.mxu0 %v5130
    %v5345 = vpop.f32.mrf.mxu0
    %v5346 = vadd.f32 0.0, %v5345
    %v5347 = vpop.f32.mrf.mxu0
    %v5348 = vadd.f32 0.0, %v5347
    %5349 = vmatprep.mubr.f32.mxu0 %v5133
    %5350 = vmatmul.mubr.f32.gmra.mxu0 %v5132
    %v5351 = vpop.f32.mrf.mxu0
    %v5352 = vadd.f32 0.0, %v5351
    %v5353 = vpop.f32.mrf.mxu0
    %v5354 = vadd.f32 0.0, %v5353
    %5355 = vmatprep.mubr.f32.mxu0 %v5135
    %5356 = vmatmul.mubr.f32.gmra.mxu0 %v5134
    %v5357 = vpop.f32.mrf.mxu0
    %v5358 = vadd.f32 0.0, %v5357
    %v5359 = vpop.f32.mrf.mxu0
    %v5360 = vadd.f32 0.0, %v5359
    %5361 = vdwg.mxu0
    %v5362 = vld [vmem:[%s2209] sm:$0xff]
    %v5363 = vld [vmem:[%s2209 + $0x8] sm:$0xff]
    %v5364 = vld [vmem:[%s2209 + $0x10] sm:$0xff]
    %v5365 = vld [vmem:[%s2209 + $0x18] sm:$0xff]
    %v5366 = vld [vmem:[%s2209 + $0x20] sm:$0xff]
    %v5367 = vld [vmem:[%s2209 + $0x28] sm:$0xff]
    %v5368 = vld [vmem:[%s2209 + $0x30] sm:$0xff]
    %v5369 = vld [vmem:[%s2209 + $0x38] sm:$0xff]
    %v5370 = vld [vmem:[%s2209 + $0x40] sm:$0xff]
    %v5371 = vld [vmem:[%s2209 + $0x48] sm:$0xff]
    %v5372 = vld [vmem:[%s2209 + $0x50] sm:$0xff]
    %v5373 = vld [vmem:[%s2209 + $0x58] sm:$0xff]
    %v5374 = vld [vmem:[%s2209 + $0x60] sm:$0xff]
    %v5375 = vld [vmem:[%s2209 + $0x68] sm:$0xff]
    %v5376 = vld [vmem:[%s2209 + $0x70] sm:$0xff]
    %v5377 = vld [vmem:[%s2209 + $0x78] sm:$0xff]
    %v5378 = vld [vmem:[%s2209 + $0x80] sm:$0xff]
    %v5379 = vld [vmem:[%s2209 + $0x88] sm:$0xff]
    %v5380 = vld [vmem:[%s2209 + $0x90] sm:$0xff]
    %v5381 = vld [vmem:[%s2209 + $0x98] sm:$0xff]
    %v5382 = vld [vmem:[%s2209 + $0xa0] sm:$0xff]
    %v5383 = vld [vmem:[%s2209 + $0xa8] sm:$0xff]
    %v5384 = vld [vmem:[%s2209 + $0xb0] sm:$0xff]
    %v5385 = vld [vmem:[%s2209 + $0xb8] sm:$0xff]
    %v5386 = vld [vmem:[%s2209 + $0xc0] sm:$0xff]
    %v5387 = vld [vmem:[%s2209 + $0xc8] sm:$0xff]
    %v5388 = vld [vmem:[%s2209 + $0xd0] sm:$0xff]
    %v5389 = vld [vmem:[%s2209 + $0xd8] sm:$0xff]
    %v5390 = vld [vmem:[%s2209 + $0xe0] sm:$0xff]
    %v5391 = vld [vmem:[%s2209 + $0xe8] sm:$0xff]
    %v5392 = vld [vmem:[%s2209 + $0xf0] sm:$0xff]
    %v5393 = vld [vmem:[%s2209 + $0xf8] sm:$0xff]
    %v5394 = vadd.f32 %v5362, %v5268
    %v5395 = vadd.f32 %v5363, %v5270
    %v5396 = vadd.f32 %v5364, %v5274
    %v5397 = vadd.f32 %v5365, %v5276
    %v5398 = vadd.f32 %v5366, %v5280
    %v5399 = vadd.f32 %v5367, %v5282
    %v5400 = vadd.f32 %v5368, %v5286
    %v5401 = vadd.f32 %v5369, %v5288
    %v5402 = vadd.f32 %v5370, %v5292
    %v5403 = vadd.f32 %v5371, %v5294
    %v5404 = vadd.f32 %v5372, %v5298
    %v5405 = vadd.f32 %v5373, %v5300
    %v5406 = vadd.f32 %v5374, %v5304
    %v5407 = vadd.f32 %v5375, %v5306
    %v5408 = vadd.f32 %v5376, %v5310
    %v5409 = vadd.f32 %v5377, %v5312
    %v5410 = vadd.f32 %v5378, %v5316
    %v5411 = vadd.f32 %v5379, %v5318
    %v5412 = vadd.f32 %v5380, %v5322
    %v5413 = vadd.f32 %v5381, %v5324
    %v5414 = vadd.f32 %v5382, %v5328
    %v5415 = vadd.f32 %v5383, %v5330
    %v5416 = vadd.f32 %v5384, %v5334
    %v5417 = vadd.f32 %v5385, %v5336
    %v5418 = vadd.f32 %v5386, %v5340
    %v5419 = vadd.f32 %v5387, %v5342
    %v5420 = vadd.f32 %v5388, %v5346
    %v5421 = vadd.f32 %v5389, %v5348
    %v5422 = vadd.f32 %v5390, %v5352
    %v5423 = vadd.f32 %v5391, %v5354
    %v5424 = vadd.f32 %v5392, %v5358
    %v5425 = vadd.f32 %v5393, %v5360
    %5426 = vst [vmem:[%s2209] sm:$0xff] %v5394
    %5427 = vst [vmem:[%s2209 + $0x8] sm:$0xff] %v5395
    %5428 = vst [vmem:[%s2209 + $0x10] sm:$0xff] %v5396
    %5429 = vst [vmem:[%s2209 + $0x18] sm:$0xff] %v5397
    %5430 = vst [vmem:[%s2209 + $0x20] sm:$0xff] %v5398
    %5431 = vst [vmem:[%s2209 + $0x28] sm:$0xff] %v5399
    %5432 = vst [vmem:[%s2209 + $0x30] sm:$0xff] %v5400
    %5433 = vst [vmem:[%s2209 + $0x38] sm:$0xff] %v5401
    %5434 = vst [vmem:[%s2209 + $0x40] sm:$0xff] %v5402
    %5435 = vst [vmem:[%s2209 + $0x48] sm:$0xff] %v5403
    %5436 = vst [vmem:[%s2209 + $0x50] sm:$0xff] %v5404
    %5437 = vst [vmem:[%s2209 + $0x58] sm:$0xff] %v5405
    %5438 = vst [vmem:[%s2209 + $0x60] sm:$0xff] %v5406
    %5439 = vst [vmem:[%s2209 + $0x68] sm:$0xff] %v5407
    %5440 = vst [vmem:[%s2209 + $0x70] sm:$0xff] %v5408
    %5441 = vst [vmem:[%s2209 + $0x78] sm:$0xff] %v5409
    %5442 = vst [vmem:[%s2209 + $0x80] sm:$0xff] %v5410
    %5443 = vst [vmem:[%s2209 + $0x88] sm:$0xff] %v5411
    %5444 = vst [vmem:[%s2209 + $0x90] sm:$0xff] %v5412
    %5445 = vst [vmem:[%s2209 + $0x98] sm:$0xff] %v5413
    %5446 = vst [vmem:[%s2209 + $0xa0] sm:$0xff] %v5414
    %5447 = vst [vmem:[%s2209 + $0xa8] sm:$0xff] %v5415
    %5448 = vst [vmem:[%s2209 + $0xb0] sm:$0xff] %v5416
    %5449 = vst [vmem:[%s2209 + $0xb8] sm:$0xff] %v5417
    %5450 = vst [vmem:[%s2209 + $0xc0] sm:$0xff] %v5418
    %5451 = vst [vmem:[%s2209 + $0xc8] sm:$0xff] %v5419
    %5452 = vst [vmem:[%s2209 + $0xd0] sm:$0xff] %v5420
    %5453 = vst [vmem:[%s2209 + $0xd8] sm:$0xff] %v5421
    %5454 = vst [vmem:[%s2209 + $0xe0] sm:$0xff] %v5422
    %5455 = vst [vmem:[%s2209 + $0xe8] sm:$0xff] %v5423
    %5456 = vst [vmem:[%s2209 + $0xf0] sm:$0xff] %v5424
    %5457 = vst [vmem:[%s2209 + $0xf8] sm:$0xff] %v5425
    %v5458 = vld [vmem:[%s4459] sm:$0xff]
    %v5459 = vld [vmem:[%s4459 + $0x8] sm:$0xff]
    %v5460 = vld [vmem:[%s4459 + $0x10] sm:$0xff]
    %v5461 = vld [vmem:[%s4459 + $0x18] sm:$0xff]
    %v5462 = vld [vmem:[%s4459 + $0x20] sm:$0xff]
    %v5463 = vld [vmem:[%s4459 + $0x28] sm:$0xff]
    %v5464 = vld [vmem:[%s4459 + $0x30] sm:$0xff]
    %v5465 = vld [vmem:[%s4459 + $0x38] sm:$0xff]
    %v5466 = vld [vmem:[%s4459 + $0x40] sm:$0xff]
    %v5467 = vld [vmem:[%s4459 + $0x48] sm:$0xff]
    %v5468 = vld [vmem:[%s4459 + $0x50] sm:$0xff]
    %v5469 = vld [vmem:[%s4459 + $0x58] sm:$0xff]
    %v5470 = vld [vmem:[%s4459 + $0x60] sm:$0xff]
    %v5471 = vld [vmem:[%s4459 + $0x68] sm:$0xff]
    %v5472 = vld [vmem:[%s4459 + $0x70] sm:$0xff]
    %v5473 = vld [vmem:[%s4459 + $0x78] sm:$0xff]
    %v5474 = vld [vmem:[%s4459 + $0x80] sm:$0xff]
    %v5475 = vld [vmem:[%s4459 + $0x88] sm:$0xff]
    %v5476 = vld [vmem:[%s4459 + $0x90] sm:$0xff]
    %v5477 = vld [vmem:[%s4459 + $0x98] sm:$0xff]
    %v5478 = vld [vmem:[%s4459 + $0xa0] sm:$0xff]
    %v5479 = vld [vmem:[%s4459 + $0xa8] sm:$0xff]
    %v5480 = vld [vmem:[%s4459 + $0xb0] sm:$0xff]
    %v5481 = vld [vmem:[%s4459 + $0xb8] sm:$0xff]
    %v5482 = vld [vmem:[%s4459 + $0xc0] sm:$0xff]
    %v5483 = vld [vmem:[%s4459 + $0xc8] sm:$0xff]
    %v5484 = vld [vmem:[%s4459 + $0xd0] sm:$0xff]
    %v5485 = vld [vmem:[%s4459 + $0xd8] sm:$0xff]
    %v5486 = vld [vmem:[%s4459 + $0xe0] sm:$0xff]
    %v5487 = vld [vmem:[%s4459 + $0xe8] sm:$0xff]
    %v5488 = vld [vmem:[%s4459 + $0xf0] sm:$0xff]
    %v5489 = vld [vmem:[%s4459 + $0xf8] sm:$0xff]
    %s5490 = scalar_lea.vmem [#allocation8], 2560
    %v5491 = vld [vmem:[%s5490] sm:$0xff]
    %v5492 = vld [vmem:[%s5490 + $0x8] sm:$0xff]
    %v5493 = vld [vmem:[%s5490 + $0x10] sm:$0xff]
    %v5494 = vld [vmem:[%s5490 + $0x18] sm:$0xff]
    %v5495 = vld [vmem:[%s5490 + $0x20] sm:$0xff]
    %v5496 = vld [vmem:[%s5490 + $0x28] sm:$0xff]
    %v5497 = vld [vmem:[%s5490 + $0x30] sm:$0xff]
    %v5498 = vld [vmem:[%s5490 + $0x38] sm:$0xff]
    %v5499 = vld [vmem:[%s5490 + $0x40] sm:$0xff]
    %v5500 = vld [vmem:[%s5490 + $0x48] sm:$0xff]
    %v5501 = vld [vmem:[%s5490 + $0x50] sm:$0xff]
    %v5502 = vld [vmem:[%s5490 + $0x58] sm:$0xff]
    %v5503 = vld [vmem:[%s5490 + $0x60] sm:$0xff]
    %v5504 = vld [vmem:[%s5490 + $0x68] sm:$0xff]
    %v5505 = vld [vmem:[%s5490 + $0x70] sm:$0xff]
    %v5506 = vld [vmem:[%s5490 + $0x78] sm:$0xff]
    %v5507 = vld [vmem:[%s5490 + $0x80] sm:$0xff]
    %v5508 = vld [vmem:[%s5490 + $0x88] sm:$0xff]
    %v5509 = vld [vmem:[%s5490 + $0x90] sm:$0xff]
    %v5510 = vld [vmem:[%s5490 + $0x98] sm:$0xff]
    %v5511 = vld [vmem:[%s5490 + $0xa0] sm:$0xff]
    %v5512 = vld [vmem:[%s5490 + $0xa8] sm:$0xff]
    %v5513 = vld [vmem:[%s5490 + $0xb0] sm:$0xff]
    %v5514 = vld [vmem:[%s5490 + $0xb8] sm:$0xff]
    %v5515 = vld [vmem:[%s5490 + $0xc0] sm:$0xff]
    %v5516 = vld [vmem:[%s5490 + $0xc8] sm:$0xff]
    %v5517 = vld [vmem:[%s5490 + $0xd0] sm:$0xff]
    %v5518 = vld [vmem:[%s5490 + $0xd8] sm:$0xff]
    %v5519 = vld [vmem:[%s5490 + $0xe0] sm:$0xff]
    %v5520 = vld [vmem:[%s5490 + $0xe8] sm:$0xff]
    %v5521 = vld [vmem:[%s5490 + $0xf0] sm:$0xff]
    %v5522 = vld [vmem:[%s5490 + $0xf8] sm:$0xff]
    %v5523 = vld [vmem:[%s5490 + $0x100] sm:$0xff]
    %v5524 = vld [vmem:[%s5490 + $0x108] sm:$0xff]
    %v5525 = vld [vmem:[%s5490 + $0x110] sm:$0xff]
    %v5526 = vld [vmem:[%s5490 + $0x118] sm:$0xff]
    %v5527 = vld [vmem:[%s5490 + $0x120] sm:$0xff]
    %v5528 = vld [vmem:[%s5490 + $0x128] sm:$0xff]
    %v5529 = vld [vmem:[%s5490 + $0x130] sm:$0xff]
    %v5530 = vld [vmem:[%s5490 + $0x138] sm:$0xff]
    %v5531 = vld [vmem:[%s5490 + $0x140] sm:$0xff]
    %v5532 = vld [vmem:[%s5490 + $0x148] sm:$0xff]
    %v5533 = vld [vmem:[%s5490 + $0x150] sm:$0xff]
    %v5534 = vld [vmem:[%s5490 + $0x158] sm:$0xff]
    %v5535 = vld [vmem:[%s5490 + $0x160] sm:$0xff]
    %v5536 = vld [vmem:[%s5490 + $0x168] sm:$0xff]
    %v5537 = vld [vmem:[%s5490 + $0x170] sm:$0xff]
    %v5538 = vld [vmem:[%s5490 + $0x178] sm:$0xff]
    %v5539 = vld [vmem:[%s5490 + $0x180] sm:$0xff]
    %v5540 = vld [vmem:[%s5490 + $0x188] sm:$0xff]
    %v5541 = vld [vmem:[%s5490 + $0x190] sm:$0xff]
    %v5542 = vld [vmem:[%s5490 + $0x198] sm:$0xff]
    %v5543 = vld [vmem:[%s5490 + $0x1a0] sm:$0xff]
    %v5544 = vld [vmem:[%s5490 + $0x1a8] sm:$0xff]
    %v5545 = vld [vmem:[%s5490 + $0x1b0] sm:$0xff]
    %v5546 = vld [vmem:[%s5490 + $0x1b8] sm:$0xff]
    %v5547 = vld [vmem:[%s5490 + $0x1c0] sm:$0xff]
    %v5548 = vld [vmem:[%s5490 + $0x1c8] sm:$0xff]
    %v5549 = vld [vmem:[%s5490 + $0x1d0] sm:$0xff]
    %v5550 = vld [vmem:[%s5490 + $0x1d8] sm:$0xff]
    %v5551 = vld [vmem:[%s5490 + $0x1e0] sm:$0xff]
    %v5552 = vld [vmem:[%s5490 + $0x1e8] sm:$0xff]
    %v5553 = vld [vmem:[%s5490 + $0x1f0] sm:$0xff]
    %v5554 = vld [vmem:[%s5490 + $0x1f8] sm:$0xff]
    %5555 = vmatprep.subr.mxu0 %v5522
    %5556 = vmatpush1.msra.mxu0 %v5521
    %5557 = vmatprep.subr.mxu0 %v5520
    %5558 = vmatpush1.msra.mxu0 %v5519
    %5559 = vmatprep.subr.mxu0 %v5518
    %5560 = vmatpush1.msra.mxu0 %v5517
    %5561 = vmatprep.subr.mxu0 %v5516
    %5562 = vmatpush1.msra.mxu0 %v5515
    %5563 = vmatprep.subr.mxu0 %v5514
    %5564 = vmatpush1.msra.mxu0 %v5513
    %5565 = vmatprep.subr.mxu0 %v5512
    %5566 = vmatpush1.msra.mxu0 %v5511
    %5567 = vmatprep.subr.mxu0 %v5510
    %5568 = vmatpush1.msra.mxu0 %v5509
    %5569 = vmatprep.subr.mxu0 %v5508
    %5570 = vmatpush1.msra.mxu0 %v5507
    %5571 = vmatprep.subr.mxu0 %v5506
    %5572 = vmatpush1.msra.mxu0 %v5505
    %5573 = vmatprep.subr.mxu0 %v5504
    %5574 = vmatpush1.msra.mxu0 %v5503
    %5575 = vmatprep.subr.mxu0 %v5502
    %5576 = vmatpush1.msra.mxu0 %v5501
    %5577 = vmatprep.subr.mxu0 %v5500
    %5578 = vmatpush1.msra.mxu0 %v5499
    %5579 = vmatprep.subr.mxu0 %v5498
    %5580 = vmatpush1.msra.mxu0 %v5497
    %5581 = vmatprep.subr.mxu0 %v5496
    %5582 = vmatpush1.msra.mxu0 %v5495
    %5583 = vmatprep.subr.mxu0 %v5494
    %5584 = vmatpush1.msra.mxu0 %v5493
    %5585 = vmatprep.subr.mxu0 %v5492
    %5586 = vmatpush1.msra.mxu0 %v5491
    %5587 = vmatprep.subr.mxu0 %v5554
    %5588 = vmatpush2.msra.mxu0 %v5553
    %5589 = vmatprep.subr.mxu0 %v5552
    %5590 = vmatpush2.msra.mxu0 %v5551
    %5591 = vmatprep.subr.mxu0 %v5550
    %5592 = vmatpush2.msra.mxu0 %v5549
    %5593 = vmatprep.subr.mxu0 %v5548
    %5594 = vmatpush2.msra.mxu0 %v5547
    %5595 = vmatprep.subr.mxu0 %v5546
    %5596 = vmatpush2.msra.mxu0 %v5545
    %5597 = vmatprep.subr.mxu0 %v5544
    %5598 = vmatpush2.msra.mxu0 %v5543
    %5599 = vmatprep.subr.mxu0 %v5542
    %5600 = vmatpush2.msra.mxu0 %v5541
    %5601 = vmatprep.subr.mxu0 %v5540
    %5602 = vmatpush2.msra.mxu0 %v5539
    %5603 = vmatprep.subr.mxu0 %v5538
    %5604 = vmatpush2.msra.mxu0 %v5537
    %5605 = vmatprep.subr.mxu0 %v5536
    %5606 = vmatpush2.msra.mxu0 %v5535
    %5607 = vmatprep.subr.mxu0 %v5534
    %5608 = vmatpush2.msra.mxu0 %v5533
    %5609 = vmatprep.subr.mxu0 %v5532
    %5610 = vmatpush2.msra.mxu0 %v5531
    %5611 = vmatprep.subr.mxu0 %v5530
    %5612 = vmatpush2.msra.mxu0 %v5529
    %5613 = vmatprep.subr.mxu0 %v5528
    %5614 = vmatpush2.msra.mxu0 %v5527
    %5615 = vmatprep.subr.mxu0 %v5526
    %5616 = vmatpush2.msra.mxu0 %v5525
    %5617 = vmatprep.subr.mxu0 %v5524
    %5618 = vmatpush2.msra.mxu0 %v5523
    %5619 = vmatprep.mubr.f32.mxu0 %v5459
    %5620 = vmatmul.mubr.f32.gmra.mxu0 %v5458
    %v5621 = vpop.f32.mrf.mxu0
    %v5622 = vadd.f32 0.0, %v5621
    %v5623 = vpop.f32.mrf.mxu0
    %v5624 = vadd.f32 0.0, %v5623
    %5625 = vmatprep.mubr.f32.mxu0 %v5461
    %5626 = vmatmul.mubr.f32.gmra.mxu0 %v5460
    %v5627 = vpop.f32.mrf.mxu0
    %v5628 = vadd.f32 0.0, %v5627
    %v5629 = vpop.f32.mrf.mxu0
    %v5630 = vadd.f32 0.0, %v5629
    %5631 = vmatprep.mubr.f32.mxu0 %v5463
    %5632 = vmatmul.mubr.f32.gmra.mxu0 %v5462
    %v5633 = vpop.f32.mrf.mxu0
    %v5634 = vadd.f32 0.0, %v5633
    %v5635 = vpop.f32.mrf.mxu0
    %v5636 = vadd.f32 0.0, %v5635
    %5637 = vmatprep.mubr.f32.mxu0 %v5465
    %5638 = vmatmul.mubr.f32.gmra.mxu0 %v5464
    %v5639 = vpop.f32.mrf.mxu0
    %v5640 = vadd.f32 0.0, %v5639
    %v5641 = vpop.f32.mrf.mxu0
    %v5642 = vadd.f32 0.0, %v5641
    %5643 = vmatprep.mubr.f32.mxu0 %v5467
    %5644 = vmatmul.mubr.f32.gmra.mxu0 %v5466
    %v5645 = vpop.f32.mrf.mxu0
    %v5646 = vadd.f32 0.0, %v5645
    %v5647 = vpop.f32.mrf.mxu0
    %v5648 = vadd.f32 0.0, %v5647
    %5649 = vmatprep.mubr.f32.mxu0 %v5469
    %5650 = vmatmul.mubr.f32.gmra.mxu0 %v5468
    %v5651 = vpop.f32.mrf.mxu0
    %v5652 = vadd.f32 0.0, %v5651
    %v5653 = vpop.f32.mrf.mxu0
    %v5654 = vadd.f32 0.0, %v5653
    %5655 = vmatprep.mubr.f32.mxu0 %v5471
    %5656 = vmatmul.mubr.f32.gmra.mxu0 %v5470
    %v5657 = vpop.f32.mrf.mxu0
    %v5658 = vadd.f32 0.0, %v5657
    %v5659 = vpop.f32.mrf.mxu0
    %v5660 = vadd.f32 0.0, %v5659
    %5661 = vmatprep.mubr.f32.mxu0 %v5473
    %5662 = vmatmul.mubr.f32.gmra.mxu0 %v5472
    %v5663 = vpop.f32.mrf.mxu0
    %v5664 = vadd.f32 0.0, %v5663
    %v5665 = vpop.f32.mrf.mxu0
    %v5666 = vadd.f32 0.0, %v5665
    %5667 = vmatprep.mubr.f32.mxu0 %v5475
    %5668 = vmatmul.mubr.f32.gmra.mxu0 %v5474
    %v5669 = vpop.f32.mrf.mxu0
    %v5670 = vadd.f32 0.0, %v5669
    %v5671 = vpop.f32.mrf.mxu0
    %v5672 = vadd.f32 0.0, %v5671
    %5673 = vmatprep.mubr.f32.mxu0 %v5477
    %5674 = vmatmul.mubr.f32.gmra.mxu0 %v5476
    %v5675 = vpop.f32.mrf.mxu0
    %v5676 = vadd.f32 0.0, %v5675
    %v5677 = vpop.f32.mrf.mxu0
    %v5678 = vadd.f32 0.0, %v5677
    %5679 = vmatprep.mubr.f32.mxu0 %v5479
    %5680 = vmatmul.mubr.f32.gmra.mxu0 %v5478
    %v5681 = vpop.f32.mrf.mxu0
    %v5682 = vadd.f32 0.0, %v5681
    %v5683 = vpop.f32.mrf.mxu0
    %v5684 = vadd.f32 0.0, %v5683
    %5685 = vmatprep.mubr.f32.mxu0 %v5481
    %5686 = vmatmul.mubr.f32.gmra.mxu0 %v5480
    %v5687 = vpop.f32.mrf.mxu0
    %v5688 = vadd.f32 0.0, %v5687
    %v5689 = vpop.f32.mrf.mxu0
    %v5690 = vadd.f32 0.0, %v5689
    %5691 = vmatprep.mubr.f32.mxu0 %v5483
    %5692 = vmatmul.mubr.f32.gmra.mxu0 %v5482
    %v5693 = vpop.f32.mrf.mxu0
    %v5694 = vadd.f32 0.0, %v5693
    %v5695 = vpop.f32.mrf.mxu0
    %v5696 = vadd.f32 0.0, %v5695
    %5697 = vmatprep.mubr.f32.mxu0 %v5485
    %5698 = vmatmul.mubr.f32.gmra.mxu0 %v5484
    %v5699 = vpop.f32.mrf.mxu0
    %v5700 = vadd.f32 0.0, %v5699
    %v5701 = vpop.f32.mrf.mxu0
    %v5702 = vadd.f32 0.0, %v5701
    %5703 = vmatprep.mubr.f32.mxu0 %v5487
    %5704 = vmatmul.mubr.f32.gmra.mxu0 %v5486
    %v5705 = vpop.f32.mrf.mxu0
    %v5706 = vadd.f32 0.0, %v5705
    %v5707 = vpop.f32.mrf.mxu0
    %v5708 = vadd.f32 0.0, %v5707
    %5709 = vmatprep.mubr.f32.mxu0 %v5489
    %5710 = vmatmul.mubr.f32.gmra.mxu0 %v5488
    %v5711 = vpop.f32.mrf.mxu0
    %v5712 = vadd.f32 0.0, %v5711
    %v5713 = vpop.f32.mrf.mxu0
    %v5714 = vadd.f32 0.0, %v5713
    %5715 = vdwg.mxu0
    %v5716 = vld [vmem:[%s2209] sm:$0xff]
    %v5717 = vld [vmem:[%s2209 + $0x8] sm:$0xff]
    %v5718 = vld [vmem:[%s2209 + $0x10] sm:$0xff]
    %v5719 = vld [vmem:[%s2209 + $0x18] sm:$0xff]
    %v5720 = vld [vmem:[%s2209 + $0x20] sm:$0xff]
    %v5721 = vld [vmem:[%s2209 + $0x28] sm:$0xff]
    %v5722 = vld [vmem:[%s2209 + $0x30] sm:$0xff]
    %v5723 = vld [vmem:[%s2209 + $0x38] sm:$0xff]
    %v5724 = vld [vmem:[%s2209 + $0x40] sm:$0xff]
    %v5725 = vld [vmem:[%s2209 + $0x48] sm:$0xff]
    %v5726 = vld [vmem:[%s2209 + $0x50] sm:$0xff]
    %v5727 = vld [vmem:[%s2209 + $0x58] sm:$0xff]
    %v5728 = vld [vmem:[%s2209 + $0x60] sm:$0xff]
    %v5729 = vld [vmem:[%s2209 + $0x68] sm:$0xff]
    %v5730 = vld [vmem:[%s2209 + $0x70] sm:$0xff]
    %v5731 = vld [vmem:[%s2209 + $0x78] sm:$0xff]
    %v5732 = vld [vmem:[%s2209 + $0x80] sm:$0xff]
    %v5733 = vld [vmem:[%s2209 + $0x88] sm:$0xff]
    %v5734 = vld [vmem:[%s2209 + $0x90] sm:$0xff]
    %v5735 = vld [vmem:[%s2209 + $0x98] sm:$0xff]
    %v5736 = vld [vmem:[%s2209 + $0xa0] sm:$0xff]
    %v5737 = vld [vmem:[%s2209 + $0xa8] sm:$0xff]
    %v5738 = vld [vmem:[%s2209 + $0xb0] sm:$0xff]
    %v5739 = vld [vmem:[%s2209 + $0xb8] sm:$0xff]
    %v5740 = vld [vmem:[%s2209 + $0xc0] sm:$0xff]
    %v5741 = vld [vmem:[%s2209 + $0xc8] sm:$0xff]
    %v5742 = vld [vmem:[%s2209 + $0xd0] sm:$0xff]
    %v5743 = vld [vmem:[%s2209 + $0xd8] sm:$0xff]
    %v5744 = vld [vmem:[%s2209 + $0xe0] sm:$0xff]
    %v5745 = vld [vmem:[%s2209 + $0xe8] sm:$0xff]
    %v5746 = vld [vmem:[%s2209 + $0xf0] sm:$0xff]
    %v5747 = vld [vmem:[%s2209 + $0xf8] sm:$0xff]
    %v5748 = vadd.f32 %v5716, %v5622
    %v5749 = vadd.f32 %v5717, %v5624
    %v5750 = vadd.f32 %v5718, %v5628
    %v5751 = vadd.f32 %v5719, %v5630
    %v5752 = vadd.f32 %v5720, %v5634
    %v5753 = vadd.f32 %v5721, %v5636
    %v5754 = vadd.f32 %v5722, %v5640
    %v5755 = vadd.f32 %v5723, %v5642
    %v5756 = vadd.f32 %v5724, %v5646
    %v5757 = vadd.f32 %v5725, %v5648
    %v5758 = vadd.f32 %v5726, %v5652
    %v5759 = vadd.f32 %v5727, %v5654
    %v5760 = vadd.f32 %v5728, %v5658
    %v5761 = vadd.f32 %v5729, %v5660
    %v5762 = vadd.f32 %v5730, %v5664
    %v5763 = vadd.f32 %v5731, %v5666
    %v5764 = vadd.f32 %v5732, %v5670
    %v5765 = vadd.f32 %v5733, %v5672
    %v5766 = vadd.f32 %v5734, %v5676
    %v5767 = vadd.f32 %v5735, %v5678
    %v5768 = vadd.f32 %v5736, %v5682
    %v5769 = vadd.f32 %v5737, %v5684
    %v5770 = vadd.f32 %v5738, %v5688
    %v5771 = vadd.f32 %v5739, %v5690
    %v5772 = vadd.f32 %v5740, %v5694
    %v5773 = vadd.f32 %v5741, %v5696
    %v5774 = vadd.f32 %v5742, %v5700
    %v5775 = vadd.f32 %v5743, %v5702
    %v5776 = vadd.f32 %v5744, %v5706
    %v5777 = vadd.f32 %v5745, %v5708
    %v5778 = vadd.f32 %v5746, %v5712
    %v5779 = vadd.f32 %v5747, %v5714
    %5780 = vst [vmem:[%s2209] sm:$0xff] %v5748
    %5781 = vst [vmem:[%s2209 + $0x8] sm:$0xff] %v5749
    %5782 = vst [vmem:[%s2209 + $0x10] sm:$0xff] %v5750
    %5783 = vst [vmem:[%s2209 + $0x18] sm:$0xff] %v5751
    %5784 = vst [vmem:[%s2209 + $0x20] sm:$0xff] %v5752
    %5785 = vst [vmem:[%s2209 + $0x28] sm:$0xff] %v5753
    %5786 = vst [vmem:[%s2209 + $0x30] sm:$0xff] %v5754
    %5787 = vst [vmem:[%s2209 + $0x38] sm:$0xff] %v5755
    %5788 = vst [vmem:[%s2209 + $0x40] sm:$0xff] %v5756
    %5789 = vst [vmem:[%s2209 + $0x48] sm:$0xff] %v5757
    %5790 = vst [vmem:[%s2209 + $0x50] sm:$0xff] %v5758
    %5791 = vst [vmem:[%s2209 + $0x58] sm:$0xff] %v5759
    %5792 = vst [vmem:[%s2209 + $0x60] sm:$0xff] %v5760
    %5793 = vst [vmem:[%s2209 + $0x68] sm:$0xff] %v5761
    %5794 = vst [vmem:[%s2209 + $0x70] sm:$0xff] %v5762
    %5795 = vst [vmem:[%s2209 + $0x78] sm:$0xff] %v5763
    %5796 = vst [vmem:[%s2209 + $0x80] sm:$0xff] %v5764
    %5797 = vst [vmem:[%s2209 + $0x88] sm:$0xff] %v5765
    %5798 = vst [vmem:[%s2209 + $0x90] sm:$0xff] %v5766
    %5799 = vst [vmem:[%s2209 + $0x98] sm:$0xff] %v5767
    %5800 = vst [vmem:[%s2209 + $0xa0] sm:$0xff] %v5768
    %5801 = vst [vmem:[%s2209 + $0xa8] sm:$0xff] %v5769
    %5802 = vst [vmem:[%s2209 + $0xb0] sm:$0xff] %v5770
    %5803 = vst [vmem:[%s2209 + $0xb8] sm:$0xff] %v5771
    %5804 = vst [vmem:[%s2209 + $0xc0] sm:$0xff] %v5772
    %5805 = vst [vmem:[%s2209 + $0xc8] sm:$0xff] %v5773
    %5806 = vst [vmem:[%s2209 + $0xd0] sm:$0xff] %v5774
    %5807 = vst [vmem:[%s2209 + $0xd8] sm:$0xff] %v5775
    %5808 = vst [vmem:[%s2209 + $0xe0] sm:$0xff] %v5776
    %5809 = vst [vmem:[%s2209 + $0xe8] sm:$0xff] %v5777
    %5810 = vst [vmem:[%s2209 + $0xf0] sm:$0xff] %v5778
    %5811 = vst [vmem:[%s2209 + $0xf8] sm:$0xff] %v5779
    %v5812 = vld [vmem:[#allocation2] sm:$0xff]
    %v5813 = vld [vmem:[#allocation2 + $0x8] sm:$0xff]
    %v5814 = vld [vmem:[#allocation2 + $0x10] sm:$0xff]
    %v5815 = vld [vmem:[#allocation2 + $0x18] sm:$0xff]
    %v5816 = vld [vmem:[#allocation2 + $0x20] sm:$0xff]
    %v5817 = vld [vmem:[#allocation2 + $0x28] sm:$0xff]
    %v5818 = vld [vmem:[#allocation2 + $0x30] sm:$0xff]
    %v5819 = vld [vmem:[#allocation2 + $0x38] sm:$0xff]
    %v5820 = vld [vmem:[#allocation2 + $0x40] sm:$0xff]
    %v5821 = vld [vmem:[#allocation2 + $0x48] sm:$0xff]
    %v5822 = vld [vmem:[#allocation2 + $0x50] sm:$0xff]
    %v5823 = vld [vmem:[#allocation2 + $0x58] sm:$0xff]
    %v5824 = vld [vmem:[#allocation2 + $0x60] sm:$0xff]
    %v5825 = vld [vmem:[#allocation2 + $0x68] sm:$0xff]
    %v5826 = vld [vmem:[#allocation2 + $0x70] sm:$0xff]
    %v5827 = vld [vmem:[#allocation2 + $0x78] sm:$0xff]
    %v5828 = vld [vmem:[#allocation2 + $0x80] sm:$0xff]
    %v5829 = vld [vmem:[#allocation2 + $0x88] sm:$0xff]
    %v5830 = vld [vmem:[#allocation2 + $0x90] sm:$0xff]
    %v5831 = vld [vmem:[#allocation2 + $0x98] sm:$0xff]
    %v5832 = vld [vmem:[#allocation2 + $0xa0] sm:$0xff]
    %v5833 = vld [vmem:[#allocation2 + $0xa8] sm:$0xff]
    %v5834 = vld [vmem:[#allocation2 + $0xb0] sm:$0xff]
    %v5835 = vld [vmem:[#allocation2 + $0xb8] sm:$0xff]
    %v5836 = vld [vmem:[#allocation2 + $0xc0] sm:$0xff]
    %v5837 = vld [vmem:[#allocation2 + $0xc8] sm:$0xff]
    %v5838 = vld [vmem:[#allocation2 + $0xd0] sm:$0xff]
    %v5839 = vld [vmem:[#allocation2 + $0xd8] sm:$0xff]
    %v5840 = vld [vmem:[#allocation2 + $0xe0] sm:$0xff]
    %v5841 = vld [vmem:[#allocation2 + $0xe8] sm:$0xff]
    %v5842 = vld [vmem:[#allocation2 + $0xf0] sm:$0xff]
    %v5843 = vld [vmem:[#allocation2 + $0xf8] sm:$0xff]
    %v5844 = vld [vmem:[%s2209] sm:$0xff]
    %v5845 = vld [vmem:[%s2209 + $0x8] sm:$0xff]
    %v5846 = vld [vmem:[%s2209 + $0x10] sm:$0xff]
    %v5847 = vld [vmem:[%s2209 + $0x18] sm:$0xff]
    %v5848 = vld [vmem:[%s2209 + $0x20] sm:$0xff]
    %v5849 = vld [vmem:[%s2209 + $0x28] sm:$0xff]
    %v5850 = vld [vmem:[%s2209 + $0x30] sm:$0xff]
    %v5851 = vld [vmem:[%s2209 + $0x38] sm:$0xff]
    %v5852 = vld [vmem:[%s2209 + $0x40] sm:$0xff]
    %v5853 = vld [vmem:[%s2209 + $0x48] sm:$0xff]
    %v5854 = vld [vmem:[%s2209 + $0x50] sm:$0xff]
    %v5855 = vld [vmem:[%s2209 + $0x58] sm:$0xff]
    %v5856 = vld [vmem:[%s2209 + $0x60] sm:$0xff]
    %v5857 = vld [vmem:[%s2209 + $0x68] sm:$0xff]
    %v5858 = vld [vmem:[%s2209 + $0x70] sm:$0xff]
    %v5859 = vld [vmem:[%s2209 + $0x78] sm:$0xff]
    %v5860 = vld [vmem:[%s2209 + $0x80] sm:$0xff]
    %v5861 = vld [vmem:[%s2209 + $0x88] sm:$0xff]
    %v5862 = vld [vmem:[%s2209 + $0x90] sm:$0xff]
    %v5863 = vld [vmem:[%s2209 + $0x98] sm:$0xff]
    %v5864 = vld [vmem:[%s2209 + $0xa0] sm:$0xff]
    %v5865 = vld [vmem:[%s2209 + $0xa8] sm:$0xff]
    %v5866 = vld [vmem:[%s2209 + $0xb0] sm:$0xff]
    %v5867 = vld [vmem:[%s2209 + $0xb8] sm:$0xff]
    %v5868 = vld [vmem:[%s2209 + $0xc0] sm:$0xff]
    %v5869 = vld [vmem:[%s2209 + $0xc8] sm:$0xff]
    %v5870 = vld [vmem:[%s2209 + $0xd0] sm:$0xff]
    %v5871 = vld [vmem:[%s2209 + $0xd8] sm:$0xff]
    %v5872 = vld [vmem:[%s2209 + $0xe0] sm:$0xff]
    %v5873 = vld [vmem:[%s2209 + $0xe8] sm:$0xff]
    %v5874 = vld [vmem:[%s2209 + $0xf0] sm:$0xff]
    %v5875 = vld [vmem:[%s2209 + $0xf8] sm:$0xff]
    %v5876 = vmax.f32 %v5812, %v5844
    %v5877 = vmax.f32 %v5813, %v5845
    %v5878 = vmax.f32 %v5814, %v5846
    %v5879 = vmax.f32 %v5815, %v5847
    %v5880 = vmax.f32 %v5816, %v5848
    %v5881 = vmax.f32 %v5817, %v5849
    %v5882 = vmax.f32 %v5818, %v5850
    %v5883 = vmax.f32 %v5819, %v5851
    %v5884 = vmax.f32 %v5820, %v5852
    %v5885 = vmax.f32 %v5821, %v5853
    %v5886 = vmax.f32 %v5822, %v5854
    %v5887 = vmax.f32 %v5823, %v5855
    %v5888 = vmax.f32 %v5824, %v5856
    %v5889 = vmax.f32 %v5825, %v5857
    %v5890 = vmax.f32 %v5826, %v5858
    %v5891 = vmax.f32 %v5827, %v5859
    %v5892 = vmax.f32 %v5828, %v5860
    %v5893 = vmax.f32 %v5829, %v5861
    %v5894 = vmax.f32 %v5830, %v5862
    %v5895 = vmax.f32 %v5831, %v5863
    %v5896 = vmax.f32 %v5832, %v5864
    %v5897 = vmax.f32 %v5833, %v5865
    %v5898 = vmax.f32 %v5834, %v5866
    %v5899 = vmax.f32 %v5835, %v5867
    %v5900 = vmax.f32 %v5836, %v5868
    %v5901 = vmax.f32 %v5837, %v5869
    %v5902 = vmax.f32 %v5838, %v5870
    %v5903 = vmax.f32 %v5839, %v5871
    %v5904 = vmax.f32 %v5840, %v5872
    %v5905 = vmax.f32 %v5841, %v5873
    %v5906 = vmax.f32 %v5842, %v5874
    %v5907 = vmax.f32 %v5843, %v5875
    %v5908 = vld [vmem:[#allocation9] sm:$0x3]
    %v5910 = vlaneseq
    %v5911 = vshrl.u32 %v5910, 7
    %v5912 = vsub.s32 0, %v5911
    %v5913 = vrot.slane %v5908, %v5912
    %v5914 = vlaneseq
    %v5915 = vshrl.u32 %v5914, 7
    %v5916 = vsub.s32 1, %v5915
    %v5917 = vrot.slane %v5908, %v5916
    %v5920 = vadd.f32 %v5876, %v5913
    %v5921 = vadd.f32 %v5877, %v5917
    %v5922 = vadd.f32 %v5878, %v5913
    %v5923 = vadd.f32 %v5879, %v5917
    %v5924 = vadd.f32 %v5880, %v5913
    %v5925 = vadd.f32 %v5881, %v5917
    %v5926 = vadd.f32 %v5882, %v5913
    %v5927 = vadd.f32 %v5883, %v5917
    %v5928 = vadd.f32 %v5884, %v5913
    %v5929 = vadd.f32 %v5885, %v5917
    %v5930 = vadd.f32 %v5886, %v5913
    %v5931 = vadd.f32 %v5887, %v5917
    %v5932 = vadd.f32 %v5888, %v5913
    %v5933 = vadd.f32 %v5889, %v5917
    %v5934 = vadd.f32 %v5890, %v5913
    %v5935 = vadd.f32 %v5891, %v5917
    %v5936 = vadd.f32 %v5892, %v5913
    %v5937 = vadd.f32 %v5893, %v5917
    %v5938 = vadd.f32 %v5894, %v5913
    %v5939 = vadd.f32 %v5895, %v5917
    %v5940 = vadd.f32 %v5896, %v5913
    %v5941 = vadd.f32 %v5897, %v5917
    %v5942 = vadd.f32 %v5898, %v5913
    %v5943 = vadd.f32 %v5899, %v5917
    %v5944 = vadd.f32 %v5900, %v5913
    %v5945 = vadd.f32 %v5901, %v5917
    %v5946 = vadd.f32 %v5902, %v5913
    %v5947 = vadd.f32 %v5903, %v5917
    %v5948 = vadd.f32 %v5904, %v5913
    %v5949 = vadd.f32 %v5905, %v5917
    %v5950 = vadd.f32 %v5906, %v5913
    %v5951 = vadd.f32 %v5907, %v5917
    %v5952 = vmax.f32 %v5920, %v5922
    %v5953 = vmax.f32 %v5921, %v5923
    %v5954 = vmax.f32 %v5924, %v5926
    %v5955 = vmax.f32 %v5925, %v5927
    %v5956 = vmax.f32 %v5928, %v5930
    %v5957 = vmax.f32 %v5929, %v5931
    %v5958 = vmax.f32 %v5932, %v5934
    %v5959 = vmax.f32 %v5933, %v5935
    %v5960 = vmax.f32 %v5936, %v5938
    %v5961 = vmax.f32 %v5937, %v5939
    %v5962 = vmax.f32 %v5940, %v5942
    %v5963 = vmax.f32 %v5941, %v5943
    %v5964 = vmax.f32 %v5944, %v5946
    %v5965 = vmax.f32 %v5945, %v5947
    %v5966 = vmax.f32 %v5948, %v5950
    %v5967 = vmax.f32 %v5949, %v5951
    %v5968 = vld [vmem:[%s5] sm:$0xff]
    %v5969 = vld [vmem:[%s5 + $0x8] sm:$0xff]
    %v5970 = vld [vmem:[%s5 + $0x10] sm:$0xff]
    %v5971 = vld [vmem:[%s5 + $0x18] sm:$0xff]
    %v5972 = vld [vmem:[%s5 + $0x20] sm:$0xff]
    %v5973 = vld [vmem:[%s5 + $0x28] sm:$0xff]
    %v5974 = vld [vmem:[%s5 + $0x30] sm:$0xff]
    %v5975 = vld [vmem:[%s5 + $0x38] sm:$0xff]
    %v5976 = vld [vmem:[%s5 + $0x40] sm:$0xff]
    %v5977 = vld [vmem:[%s5 + $0x48] sm:$0xff]
    %v5978 = vld [vmem:[%s5 + $0x50] sm:$0xff]
    %v5979 = vld [vmem:[%s5 + $0x58] sm:$0xff]
    %v5980 = vld [vmem:[%s5 + $0x60] sm:$0xff]
    %v5981 = vld [vmem:[%s5 + $0x68] sm:$0xff]
    %v5982 = vld [vmem:[%s5 + $0x70] sm:$0xff]
    %v5983 = vld [vmem:[%s5 + $0x78] sm:$0xff]
    %v5984 = vld [vmem:[%s5 + $0x80] sm:$0xff]
    %v5985 = vld [vmem:[%s5 + $0x88] sm:$0xff]
    %v5986 = vld [vmem:[%s5 + $0x90] sm:$0xff]
    %v5987 = vld [vmem:[%s5 + $0x98] sm:$0xff]
    %v5988 = vld [vmem:[%s5 + $0xa0] sm:$0xff]
    %v5989 = vld [vmem:[%s5 + $0xa8] sm:$0xff]
    %v5990 = vld [vmem:[%s5 + $0xb0] sm:$0xff]
    %v5991 = vld [vmem:[%s5 + $0xb8] sm:$0xff]
    %v5992 = vld [vmem:[%s5 + $0xc0] sm:$0xff]
    %v5993 = vld [vmem:[%s5 + $0xc8] sm:$0xff]
    %v5994 = vld [vmem:[%s5 + $0xd0] sm:$0xff]
    %v5995 = vld [vmem:[%s5 + $0xd8] sm:$0xff]
    %v5996 = vld [vmem:[%s5 + $0xe0] sm:$0xff]
    %v5997 = vld [vmem:[%s5 + $0xe8] sm:$0xff]
    %v5998 = vld [vmem:[%s5 + $0xf0] sm:$0xff]
    %v5999 = vld [vmem:[%s5 + $0xf8] sm:$0xff]
    %s6000 = scalar_lea.vmem %s5, 256
    %v6001 = vld [vmem:[%s6000] sm:$0xff]
    %v6002 = vld [vmem:[%s6000 + $0x8] sm:$0xff]
    %v6003 = vld [vmem:[%s6000 + $0x10] sm:$0xff]
    %v6004 = vld [vmem:[%s6000 + $0x18] sm:$0xff]
    %v6005 = vld [vmem:[%s6000 + $0x20] sm:$0xff]
    %v6006 = vld [vmem:[%s6000 + $0x28] sm:$0xff]
    %v6007 = vld [vmem:[%s6000 + $0x30] sm:$0xff]
    %v6008 = vld [vmem:[%s6000 + $0x38] sm:$0xff]
    %v6009 = vld [vmem:[%s6000 + $0x40] sm:$0xff]
    %v6010 = vld [vmem:[%s6000 + $0x48] sm:$0xff]
    %v6011 = vld [vmem:[%s6000 + $0x50] sm:$0xff]
    %v6012 = vld [vmem:[%s6000 + $0x58] sm:$0xff]
    %v6013 = vld [vmem:[%s6000 + $0x60] sm:$0xff]
    %v6014 = vld [vmem:[%s6000 + $0x68] sm:$0xff]
    %v6015 = vld [vmem:[%s6000 + $0x70] sm:$0xff]
    %v6016 = vld [vmem:[%s6000 + $0x78] sm:$0xff]
    %v6017 = vld [vmem:[%s6000 + $0x80] sm:$0xff]
    %v6018 = vld [vmem:[%s6000 + $0x88] sm:$0xff]
    %v6019 = vld [vmem:[%s6000 + $0x90] sm:$0xff]
    %v6020 = vld [vmem:[%s6000 + $0x98] sm:$0xff]
    %v6021 = vld [vmem:[%s6000 + $0xa0] sm:$0xff]
    %v6022 = vld [vmem:[%s6000 + $0xa8] sm:$0xff]
    %v6023 = vld [vmem:[%s6000 + $0xb0] sm:$0xff]
    %v6024 = vld [vmem:[%s6000 + $0xb8] sm:$0xff]
    %v6025 = vld [vmem:[%s6000 + $0xc0] sm:$0xff]
    %v6026 = vld [vmem:[%s6000 + $0xc8] sm:$0xff]
    %v6027 = vld [vmem:[%s6000 + $0xd0] sm:$0xff]
    %v6028 = vld [vmem:[%s6000 + $0xd8] sm:$0xff]
    %v6029 = vld [vmem:[%s6000 + $0xe0] sm:$0xff]
    %v6030 = vld [vmem:[%s6000 + $0xe8] sm:$0xff]
    %v6031 = vld [vmem:[%s6000 + $0xf0] sm:$0xff]
    %v6032 = vld [vmem:[%s6000 + $0xf8] sm:$0xff]
    %6033 = vmatprep.subr.mxu0 0.0
    %6034 = vmatpush1.msra.mxu0 %v6016
    %6035 = vmatprep.subr.mxu0 0.0
    %6036 = vmatpush1.msra.mxu0 %v6015
    %6037 = vmatprep.subr.mxu0 0.0
    %6038 = vmatpush1.msra.mxu0 %v6014
    %6039 = vmatprep.subr.mxu0 0.0
    %6040 = vmatpush1.msra.mxu0 %v6013
    %6041 = vmatprep.subr.mxu0 0.0
    %6042 = vmatpush1.msra.mxu0 %v6012
    %6043 = vmatprep.subr.mxu0 0.0
    %6044 = vmatpush1.msra.mxu0 %v6011
    %6045 = vmatprep.subr.mxu0 0.0
    %6046 = vmatpush1.msra.mxu0 %v6010
    %6047 = vmatprep.subr.mxu0 0.0
    %6048 = vmatpush1.msra.mxu0 %v6009
    %6049 = vmatprep.subr.mxu0 0.0
    %6050 = vmatpush1.msra.mxu0 %v6008
    %6051 = vmatprep.subr.mxu0 0.0
    %6052 = vmatpush1.msra.mxu0 %v6007
    %6053 = vmatprep.subr.mxu0 0.0
    %6054 = vmatpush1.msra.mxu0 %v6006
    %6055 = vmatprep.subr.mxu0 0.0
    %6056 = vmatpush1.msra.mxu0 %v6005
    %6057 = vmatprep.subr.mxu0 0.0
    %6058 = vmatpush1.msra.mxu0 %v6004
    %6059 = vmatprep.subr.mxu0 0.0
    %6060 = vmatpush1.msra.mxu0 %v6003
    %6061 = vmatprep.subr.mxu0 0.0
    %6062 = vmatpush1.msra.mxu0 %v6002
    %6063 = vmatprep.subr.mxu0 0.0
    %6064 = vmatpush1.msra.mxu0 %v6001
    %6065 = vmatprep.subr.mxu0 0.0
    %6066 = vmatpush2.msra.mxu0 %v6032
    %6067 = vmatprep.subr.mxu0 0.0
    %6068 = vmatpush2.msra.mxu0 %v6031
    %6069 = vmatprep.subr.mxu0 0.0
    %6070 = vmatpush2.msra.mxu0 %v6030
    %6071 = vmatprep.subr.mxu0 0.0
    %6072 = vmatpush2.msra.mxu0 %v6029
    %6073 = vmatprep.subr.mxu0 0.0
    %6074 = vmatpush2.msra.mxu0 %v6028
    %6075 = vmatprep.subr.mxu0 0.0
    %6076 = vmatpush2.msra.mxu0 %v6027
    %6077 = vmatprep.subr.mxu0 0.0
    %6078 = vmatpush2.msra.mxu0 %v6026
    %6079 = vmatprep.subr.mxu0 0.0
    %6080 = vmatpush2.msra.mxu0 %v6025
    %6081 = vmatprep.subr.mxu0 0.0
    %6082 = vmatpush2.msra.mxu0 %v6024
    %6083 = vmatprep.subr.mxu0 0.0
    %6084 = vmatpush2.msra.mxu0 %v6023
    %6085 = vmatprep.subr.mxu0 0.0
    %6086 = vmatpush2.msra.mxu0 %v6022
    %6087 = vmatprep.subr.mxu0 0.0
    %6088 = vmatpush2.msra.mxu0 %v6021
    %6089 = vmatprep.subr.mxu0 0.0
    %6090 = vmatpush2.msra.mxu0 %v6020
    %6091 = vmatprep.subr.mxu0 0.0
    %6092 = vmatpush2.msra.mxu0 %v6019
    %6093 = vmatprep.subr.mxu0 0.0
    %6094 = vmatpush2.msra.mxu0 %v6018
    %6095 = vmatprep.subr.mxu0 0.0
    %6096 = vmatpush2.msra.mxu0 %v6017
    %6097 = vmatprep.mubr.f32.mxu0 %v5955
    %6098 = vmatmul.mubr.f32.gmra.mxu0 %v5954
    %v6099 = vpop.f32.mrf.mxu0
    %v6100 = vadd.f32 0.0, %v6099
    %v6101 = vpop.f32.mrf.mxu0
    %6102 = vdwg.mxu0
    %6103 = vmatprep.subr.mxu0 0.0
    %6104 = vmatpush1.msra.mxu0 %v5983
    %6105 = vmatprep.subr.mxu0 0.0
    %6106 = vmatpush1.msra.mxu0 %v5982
    %6107 = vmatprep.subr.mxu0 0.0
    %6108 = vmatpush1.msra.mxu0 %v5981
    %6109 = vmatprep.subr.mxu0 0.0
    %6110 = vmatpush1.msra.mxu0 %v5980
    %6111 = vmatprep.subr.mxu0 0.0
    %6112 = vmatpush1.msra.mxu0 %v5979
    %6113 = vmatprep.subr.mxu0 0.0
    %6114 = vmatpush1.msra.mxu0 %v5978
    %6115 = vmatprep.subr.mxu0 0.0
    %6116 = vmatpush1.msra.mxu0 %v5977
    %6117 = vmatprep.subr.mxu0 0.0
    %6118 = vmatpush1.msra.mxu0 %v5976
    %6119 = vmatprep.subr.mxu0 0.0
    %6120 = vmatpush1.msra.mxu0 %v5975
    %6121 = vmatprep.subr.mxu0 0.0
    %6122 = vmatpush1.msra.mxu0 %v5974
    %6123 = vmatprep.subr.mxu0 0.0
    %6124 = vmatpush1.msra.mxu0 %v5973
    %6125 = vmatprep.subr.mxu0 0.0
    %6126 = vmatpush1.msra.mxu0 %v5972
    %6127 = vmatprep.subr.mxu0 0.0
    %6128 = vmatpush1.msra.mxu0 %v5971
    %6129 = vmatprep.subr.mxu0 0.0
    %6130 = vmatpush1.msra.mxu0 %v5970
    %6131 = vmatprep.subr.mxu0 0.0
    %6132 = vmatpush1.msra.mxu0 %v5969
    %6133 = vmatprep.subr.mxu0 0.0
    %6134 = vmatpush1.msra.mxu0 %v5968
    %6135 = vmatprep.subr.mxu0 0.0
    %6136 = vmatpush2.msra.mxu0 %v5999
    %6137 = vmatprep.subr.mxu0 0.0
    %6138 = vmatpush2.msra.mxu0 %v5998
    %6139 = vmatprep.subr.mxu0 0.0
    %6140 = vmatpush2.msra.mxu0 %v5997
    %6141 = vmatprep.subr.mxu0 0.0
    %6142 = vmatpush2.msra.mxu0 %v5996
    %6143 = vmatprep.subr.mxu0 0.0
    %6144 = vmatpush2.msra.mxu0 %v5995
    %6145 = vmatprep.subr.mxu0 0.0
    %6146 = vmatpush2.msra.mxu0 %v5994
    %6147 = vmatprep.subr.mxu0 0.0
    %6148 = vmatpush2.msra.mxu0 %v5993
    %6149 = vmatprep.subr.mxu0 0.0
    %6150 = vmatpush2.msra.mxu0 %v5992
    %6151 = vmatprep.subr.mxu0 0.0
    %6152 = vmatpush2.msra.mxu0 %v5991
    %6153 = vmatprep.subr.mxu0 0.0
    %6154 = vmatpush2.msra.mxu0 %v5990
    %6155 = vmatprep.subr.mxu0 0.0
    %6156 = vmatpush2.msra.mxu0 %v5989
    %6157 = vmatprep.subr.mxu0 0.0
    %6158 = vmatpush2.msra.mxu0 %v5988
    %6159 = vmatprep.subr.mxu0 0.0
    %6160 = vmatpush2.msra.mxu0 %v5987
    %6161 = vmatprep.subr.mxu0 0.0
    %6162 = vmatpush2.msra.mxu0 %v5986
    %6163 = vmatprep.subr.mxu0 0.0
    %6164 = vmatpush2.msra.mxu0 %v5985
    %6165 = vmatprep.subr.mxu0 0.0
    %6166 = vmatpush2.msra.mxu0 %v5984
    %6167 = vmatprep.mubr.f32.mxu0 %v5953
    %6168 = vmatmul.mubr.f32.gmra.mxu0 %v5952
    %v6169 = vpop.f32.mrf.mxu0
    %v6170 = vadd.f32 %v6100, %v6169
    %v6171 = vpop.f32.mrf.mxu0
    %6172 = vdwg.mxu0
    %s6173 = scalar_lea.vmem %s5, 512
    %v6174 = vld [vmem:[%s6173] sm:$0xff]
    %v6175 = vld [vmem:[%s6173 + $0x8] sm:$0xff]
    %v6176 = vld [vmem:[%s6173 + $0x10] sm:$0xff]
    %v6177 = vld [vmem:[%s6173 + $0x18] sm:$0xff]
    %v6178 = vld [vmem:[%s6173 + $0x20] sm:$0xff]
    %v6179 = vld [vmem:[%s6173 + $0x28] sm:$0xff]
    %v6180 = vld [vmem:[%s6173 + $0x30] sm:$0xff]
    %v6181 = vld [vmem:[%s6173 + $0x38] sm:$0xff]
    %v6182 = vld [vmem:[%s6173 + $0x40] sm:$0xff]
    %v6183 = vld [vmem:[%s6173 + $0x48] sm:$0xff]
    %v6184 = vld [vmem:[%s6173 + $0x50] sm:$0xff]
    %v6185 = vld [vmem:[%s6173 + $0x58] sm:$0xff]
    %v6186 = vld [vmem:[%s6173 + $0x60] sm:$0xff]
    %v6187 = vld [vmem:[%s6173 + $0x68] sm:$0xff]
    %v6188 = vld [vmem:[%s6173 + $0x70] sm:$0xff]
    %v6189 = vld [vmem:[%s6173 + $0x78] sm:$0xff]
    %v6190 = vld [vmem:[%s6173 + $0x80] sm:$0xff]
    %v6191 = vld [vmem:[%s6173 + $0x88] sm:$0xff]
    %v6192 = vld [vmem:[%s6173 + $0x90] sm:$0xff]
    %v6193 = vld [vmem:[%s6173 + $0x98] sm:$0xff]
    %v6194 = vld [vmem:[%s6173 + $0xa0] sm:$0xff]
    %v6195 = vld [vmem:[%s6173 + $0xa8] sm:$0xff]
    %v6196 = vld [vmem:[%s6173 + $0xb0] sm:$0xff]
    %v6197 = vld [vmem:[%s6173 + $0xb8] sm:$0xff]
    %v6198 = vld [vmem:[%s6173 + $0xc0] sm:$0xff]
    %v6199 = vld [vmem:[%s6173 + $0xc8] sm:$0xff]
    %v6200 = vld [vmem:[%s6173 + $0xd0] sm:$0xff]
    %v6201 = vld [vmem:[%s6173 + $0xd8] sm:$0xff]
    %v6202 = vld [vmem:[%s6173 + $0xe0] sm:$0xff]
    %v6203 = vld [vmem:[%s6173 + $0xe8] sm:$0xff]
    %v6204 = vld [vmem:[%s6173 + $0xf0] sm:$0xff]
    %v6205 = vld [vmem:[%s6173 + $0xf8] sm:$0xff]
    %6206 = vmatprep.subr.mxu0 0.0
    %6207 = vmatpush1.msra.mxu0 %v6189
    %6208 = vmatprep.subr.mxu0 0.0
    %6209 = vmatpush1.msra.mxu0 %v6188
    %6210 = vmatprep.subr.mxu0 0.0
    %6211 = vmatpush1.msra.mxu0 %v6187
    %6212 = vmatprep.subr.mxu0 0.0
    %6213 = vmatpush1.msra.mxu0 %v6186
    %6214 = vmatprep.subr.mxu0 0.0
    %6215 = vmatpush1.msra.mxu0 %v6185
    %6216 = vmatprep.subr.mxu0 0.0
    %6217 = vmatpush1.msra.mxu0 %v6184
    %6218 = vmatprep.subr.mxu0 0.0
    %6219 = vmatpush1.msra.mxu0 %v6183
    %6220 = vmatprep.subr.mxu0 0.0
    %6221 = vmatpush1.msra.mxu0 %v6182
    %6222 = vmatprep.subr.mxu0 0.0
    %6223 = vmatpush1.msra.mxu0 %v6181
    %6224 = vmatprep.subr.mxu0 0.0
    %6225 = vmatpush1.msra.mxu0 %v6180
    %6226 = vmatprep.subr.mxu0 0.0
    %6227 = vmatpush1.msra.mxu0 %v6179
    %6228 = vmatprep.subr.mxu0 0.0
    %6229 = vmatpush1.msra.mxu0 %v6178
    %6230 = vmatprep.subr.mxu0 0.0
    %6231 = vmatpush1.msra.mxu0 %v6177
    %6232 = vmatprep.subr.mxu0 0.0
    %6233 = vmatpush1.msra.mxu0 %v6176
    %6234 = vmatprep.subr.mxu0 0.0
    %6235 = vmatpush1.msra.mxu0 %v6175
    %6236 = vmatprep.subr.mxu0 0.0
    %6237 = vmatpush1.msra.mxu0 %v6174
    %6238 = vmatprep.subr.mxu0 0.0
    %6239 = vmatpush2.msra.mxu0 %v6205
    %6240 = vmatprep.subr.mxu0 0.0
    %6241 = vmatpush2.msra.mxu0 %v6204
    %6242 = vmatprep.subr.mxu0 0.0
    %6243 = vmatpush2.msra.mxu0 %v6203
    %6244 = vmatprep.subr.mxu0 0.0
    %6245 = vmatpush2.msra.mxu0 %v6202
    %6246 = vmatprep.subr.mxu0 0.0
    %6247 = vmatpush2.msra.mxu0 %v6201
    %6248 = vmatprep.subr.mxu0 0.0
    %6249 = vmatpush2.msra.mxu0 %v6200
    %6250 = vmatprep.subr.mxu0 0.0
    %6251 = vmatpush2.msra.mxu0 %v6199
    %6252 = vmatprep.subr.mxu0 0.0
    %6253 = vmatpush2.msra.mxu0 %v6198
    %6254 = vmatprep.subr.mxu0 0.0
    %6255 = vmatpush2.msra.mxu0 %v6197
    %6256 = vmatprep.subr.mxu0 0.0
    %6257 = vmatpush2.msra.mxu0 %v6196
    %6258 = vmatprep.subr.mxu0 0.0
    %6259 = vmatpush2.msra.mxu0 %v6195
    %6260 = vmatprep.subr.mxu0 0.0
    %6261 = vmatpush2.msra.mxu0 %v6194
    %6262 = vmatprep.subr.mxu0 0.0
    %6263 = vmatpush2.msra.mxu0 %v6193
    %6264 = vmatprep.subr.mxu0 0.0
    %6265 = vmatpush2.msra.mxu0 %v6192
    %6266 = vmatprep.subr.mxu0 0.0
    %6267 = vmatpush2.msra.mxu0 %v6191
    %6268 = vmatprep.subr.mxu0 0.0
    %6269 = vmatpush2.msra.mxu0 %v6190
    %6270 = vmatprep.mubr.f32.mxu0 %v5957
    %6271 = vmatmul.mubr.f32.gmra.mxu0 %v5956
    %v6272 = vpop.f32.mrf.mxu0
    %v6273 = vadd.f32 0.0, %v6272
    %v6274 = vpop.f32.mrf.mxu0
    %6275 = vdwg.mxu0
    %v6276 = vadd.f32 %v6170, %v6273
    %s6277 = scalar_lea.vmem %s5, 768
    %v6278 = vld [vmem:[%s6277] sm:$0xff]
    %v6279 = vld [vmem:[%s6277 + $0x8] sm:$0xff]
    %v6280 = vld [vmem:[%s6277 + $0x10] sm:$0xff]
    %v6281 = vld [vmem:[%s6277 + $0x18] sm:$0xff]
    %v6282 = vld [vmem:[%s6277 + $0x20] sm:$0xff]
    %v6283 = vld [vmem:[%s6277 + $0x28] sm:$0xff]
    %v6284 = vld [vmem:[%s6277 + $0x30] sm:$0xff]
    %v6285 = vld [vmem:[%s6277 + $0x38] sm:$0xff]
    %v6286 = vld [vmem:[%s6277 + $0x40] sm:$0xff]
    %v6287 = vld [vmem:[%s6277 + $0x48] sm:$0xff]
    %v6288 = vld [vmem:[%s6277 + $0x50] sm:$0xff]
    %v6289 = vld [vmem:[%s6277 + $0x58] sm:$0xff]
    %v6290 = vld [vmem:[%s6277 + $0x60] sm:$0xff]
    %v6291 = vld [vmem:[%s6277 + $0x68] sm:$0xff]
    %v6292 = vld [vmem:[%s6277 + $0x70] sm:$0xff]
    %v6293 = vld [vmem:[%s6277 + $0x78] sm:$0xff]
    %v6294 = vld [vmem:[%s6277 + $0x80] sm:$0xff]
    %v6295 = vld [vmem:[%s6277 + $0x88] sm:$0xff]
    %v6296 = vld [vmem:[%s6277 + $0x90] sm:$0xff]
    %v6297 = vld [vmem:[%s6277 + $0x98] sm:$0xff]
    %v6298 = vld [vmem:[%s6277 + $0xa0] sm:$0xff]
    %v6299 = vld [vmem:[%s6277 + $0xa8] sm:$0xff]
    %v6300 = vld [vmem:[%s6277 + $0xb0] sm:$0xff]
    %v6301 = vld [vmem:[%s6277 + $0xb8] sm:$0xff]
    %v6302 = vld [vmem:[%s6277 + $0xc0] sm:$0xff]
    %v6303 = vld [vmem:[%s6277 + $0xc8] sm:$0xff]
    %v6304 = vld [vmem:[%s6277 + $0xd0] sm:$0xff]
    %v6305 = vld [vmem:[%s6277 + $0xd8] sm:$0xff]
    %v6306 = vld [vmem:[%s6277 + $0xe0] sm:$0xff]
    %v6307 = vld [vmem:[%s6277 + $0xe8] sm:$0xff]
    %v6308 = vld [vmem:[%s6277 + $0xf0] sm:$0xff]
    %v6309 = vld [vmem:[%s6277 + $0xf8] sm:$0xff]
    %6310 = vmatprep.subr.mxu0 0.0
    %6311 = vmatpush1.msra.mxu0 %v6293
    %6312 = vmatprep.subr.mxu0 0.0
    %6313 = vmatpush1.msra.mxu0 %v6292
    %6314 = vmatprep.subr.mxu0 0.0
    %6315 = vmatpush1.msra.mxu0 %v6291
    %6316 = vmatprep.subr.mxu0 0.0
    %6317 = vmatpush1.msra.mxu0 %v6290
    %6318 = vmatprep.subr.mxu0 0.0
    %6319 = vmatpush1.msra.mxu0 %v6289
    %6320 = vmatprep.subr.mxu0 0.0
    %6321 = vmatpush1.msra.mxu0 %v6288
    %6322 = vmatprep.subr.mxu0 0.0
    %6323 = vmatpush1.msra.mxu0 %v6287
    %6324 = vmatprep.subr.mxu0 0.0
    %6325 = vmatpush1.msra.mxu0 %v6286
    %6326 = vmatprep.subr.mxu0 0.0
    %6327 = vmatpush1.msra.mxu0 %v6285
    %6328 = vmatprep.subr.mxu0 0.0
    %6329 = vmatpush1.msra.mxu0 %v6284
    %6330 = vmatprep.subr.mxu0 0.0
    %6331 = vmatpush1.msra.mxu0 %v6283
    %6332 = vmatprep.subr.mxu0 0.0
    %6333 = vmatpush1.msra.mxu0 %v6282
    %6334 = vmatprep.subr.mxu0 0.0
    %6335 = vmatpush1.msra.mxu0 %v6281
    %6336 = vmatprep.subr.mxu0 0.0
    %6337 = vmatpush1.msra.mxu0 %v6280
    %6338 = vmatprep.subr.mxu0 0.0
    %6339 = vmatpush1.msra.mxu0 %v6279
    %6340 = vmatprep.subr.mxu0 0.0
    %6341 = vmatpush1.msra.mxu0 %v6278
    %6342 = vmatprep.subr.mxu0 0.0
    %6343 = vmatpush2.msra.mxu0 %v6309
    %6344 = vmatprep.subr.mxu0 0.0
    %6345 = vmatpush2.msra.mxu0 %v6308
    %6346 = vmatprep.subr.mxu0 0.0
    %6347 = vmatpush2.msra.mxu0 %v6307
    %6348 = vmatprep.subr.mxu0 0.0
    %6349 = vmatpush2.msra.mxu0 %v6306
    %6350 = vmatprep.subr.mxu0 0.0
    %6351 = vmatpush2.msra.mxu0 %v6305
    %6352 = vmatprep.subr.mxu0 0.0
    %6353 = vmatpush2.msra.mxu0 %v6304
    %6354 = vmatprep.subr.mxu0 0.0
    %6355 = vmatpush2.msra.mxu0 %v6303
    %6356 = vmatprep.subr.mxu0 0.0
    %6357 = vmatpush2.msra.mxu0 %v6302
    %6358 = vmatprep.subr.mxu0 0.0
    %6359 = vmatpush2.msra.mxu0 %v6301
    %6360 = vmatprep.subr.mxu0 0.0
    %6361 = vmatpush2.msra.mxu0 %v6300
    %6362 = vmatprep.subr.mxu0 0.0
    %6363 = vmatpush2.msra.mxu0 %v6299
    %6364 = vmatprep.subr.mxu0 0.0
    %6365 = vmatpush2.msra.mxu0 %v6298
    %6366 = vmatprep.subr.mxu0 0.0
    %6367 = vmatpush2.msra.mxu0 %v6297
    %6368 = vmatprep.subr.mxu0 0.0
    %6369 = vmatpush2.msra.mxu0 %v6296
    %6370 = vmatprep.subr.mxu0 0.0
    %6371 = vmatpush2.msra.mxu0 %v6295
    %6372 = vmatprep.subr.mxu0 0.0
    %6373 = vmatpush2.msra.mxu0 %v6294
    %6374 = vmatprep.mubr.f32.mxu0 %v5959
    %6375 = vmatmul.mubr.f32.gmra.mxu0 %v5958
    %v6376 = vpop.f32.mrf.mxu0
    %v6377 = vadd.f32 0.0, %v6376
    %v6378 = vpop.f32.mrf.mxu0
    %6379 = vdwg.mxu0
    %v6380 = vadd.f32 %v6276, %v6377
    %s6381 = scalar_lea.vmem %s5, 1024
    %v6382 = vld [vmem:[%s6381] sm:$0xff]
    %v6383 = vld [vmem:[%s6381 + $0x8] sm:$0xff]
    %v6384 = vld [vmem:[%s6381 + $0x10] sm:$0xff]
    %v6385 = vld [vmem:[%s6381 + $0x18] sm:$0xff]
    %v6386 = vld [vmem:[%s6381 + $0x20] sm:$0xff]
    %v6387 = vld [vmem:[%s6381 + $0x28] sm:$0xff]
    %v6388 = vld [vmem:[%s6381 + $0x30] sm:$0xff]
    %v6389 = vld [vmem:[%s6381 + $0x38] sm:$0xff]
    %v6390 = vld [vmem:[%s6381 + $0x40] sm:$0xff]
    %v6391 = vld [vmem:[%s6381 + $0x48] sm:$0xff]
    %v6392 = vld [vmem:[%s6381 + $0x50] sm:$0xff]
    %v6393 = vld [vmem:[%s6381 + $0x58] sm:$0xff]
    %v6394 = vld [vmem:[%s6381 + $0x60] sm:$0xff]
    %v6395 = vld [vmem:[%s6381 + $0x68] sm:$0xff]
    %v6396 = vld [vmem:[%s6381 + $0x70] sm:$0xff]
    %v6397 = vld [vmem:[%s6381 + $0x78] sm:$0xff]
    %v6398 = vld [vmem:[%s6381 + $0x80] sm:$0xff]
    %v6399 = vld [vmem:[%s6381 + $0x88] sm:$0xff]
    %v6400 = vld [vmem:[%s6381 + $0x90] sm:$0xff]
    %v6401 = vld [vmem:[%s6381 + $0x98] sm:$0xff]
    %v6402 = vld [vmem:[%s6381 + $0xa0] sm:$0xff]
    %v6403 = vld [vmem:[%s6381 + $0xa8] sm:$0xff]
    %v6404 = vld [vmem:[%s6381 + $0xb0] sm:$0xff]
    %v6405 = vld [vmem:[%s6381 + $0xb8] sm:$0xff]
    %v6406 = vld [vmem:[%s6381 + $0xc0] sm:$0xff]
    %v6407 = vld [vmem:[%s6381 + $0xc8] sm:$0xff]
    %v6408 = vld [vmem:[%s6381 + $0xd0] sm:$0xff]
    %v6409 = vld [vmem:[%s6381 + $0xd8] sm:$0xff]
    %v6410 = vld [vmem:[%s6381 + $0xe0] sm:$0xff]
    %v6411 = vld [vmem:[%s6381 + $0xe8] sm:$0xff]
    %v6412 = vld [vmem:[%s6381 + $0xf0] sm:$0xff]
    %v6413 = vld [vmem:[%s6381 + $0xf8] sm:$0xff]
    %6414 = vmatprep.subr.mxu0 0.0
    %6415 = vmatpush1.msra.mxu0 %v6397
    %6416 = vmatprep.subr.mxu0 0.0
    %6417 = vmatpush1.msra.mxu0 %v6396
    %6418 = vmatprep.subr.mxu0 0.0
    %6419 = vmatpush1.msra.mxu0 %v6395
    %6420 = vmatprep.subr.mxu0 0.0
    %6421 = vmatpush1.msra.mxu0 %v6394
    %6422 = vmatprep.subr.mxu0 0.0
    %6423 = vmatpush1.msra.mxu0 %v6393
    %6424 = vmatprep.subr.mxu0 0.0
    %6425 = vmatpush1.msra.mxu0 %v6392
    %6426 = vmatprep.subr.mxu0 0.0
    %6427 = vmatpush1.msra.mxu0 %v6391
    %6428 = vmatprep.subr.mxu0 0.0
    %6429 = vmatpush1.msra.mxu0 %v6390
    %6430 = vmatprep.subr.mxu0 0.0
    %6431 = vmatpush1.msra.mxu0 %v6389
    %6432 = vmatprep.subr.mxu0 0.0
    %6433 = vmatpush1.msra.mxu0 %v6388
    %6434 = vmatprep.subr.mxu0 0.0
    %6435 = vmatpush1.msra.mxu0 %v6387
    %6436 = vmatprep.subr.mxu0 0.0
    %6437 = vmatpush1.msra.mxu0 %v6386
    %6438 = vmatprep.subr.mxu0 0.0
    %6439 = vmatpush1.msra.mxu0 %v6385
    %6440 = vmatprep.subr.mxu0 0.0
    %6441 = vmatpush1.msra.mxu0 %v6384
    %6442 = vmatprep.subr.mxu0 0.0
    %6443 = vmatpush1.msra.mxu0 %v6383
    %6444 = vmatprep.subr.mxu0 0.0
    %6445 = vmatpush1.msra.mxu0 %v6382
    %6446 = vmatprep.subr.mxu0 0.0
    %6447 = vmatpush2.msra.mxu0 %v6413
    %6448 = vmatprep.subr.mxu0 0.0
    %6449 = vmatpush2.msra.mxu0 %v6412
    %6450 = vmatprep.subr.mxu0 0.0
    %6451 = vmatpush2.msra.mxu0 %v6411
    %6452 = vmatprep.subr.mxu0 0.0
    %6453 = vmatpush2.msra.mxu0 %v6410
    %6454 = vmatprep.subr.mxu0 0.0
    %6455 = vmatpush2.msra.mxu0 %v6409
    %6456 = vmatprep.subr.mxu0 0.0
    %6457 = vmatpush2.msra.mxu0 %v6408
    %6458 = vmatprep.subr.mxu0 0.0
    %6459 = vmatpush2.msra.mxu0 %v6407
    %6460 = vmatprep.subr.mxu0 0.0
    %6461 = vmatpush2.msra.mxu0 %v6406
    %6462 = vmatprep.subr.mxu0 0.0
    %6463 = vmatpush2.msra.mxu0 %v6405
    %6464 = vmatprep.subr.mxu0 0.0
    %6465 = vmatpush2.msra.mxu0 %v6404
    %6466 = vmatprep.subr.mxu0 0.0
    %6467 = vmatpush2.msra.mxu0 %v6403
    %6468 = vmatprep.subr.mxu0 0.0
    %6469 = vmatpush2.msra.mxu0 %v6402
    %6470 = vmatprep.subr.mxu0 0.0
    %6471 = vmatpush2.msra.mxu0 %v6401
    %6472 = vmatprep.subr.mxu0 0.0
    %6473 = vmatpush2.msra.mxu0 %v6400
    %6474 = vmatprep.subr.mxu0 0.0
    %6475 = vmatpush2.msra.mxu0 %v6399
    %6476 = vmatprep.subr.mxu0 0.0
    %6477 = vmatpush2.msra.mxu0 %v6398
    %6478 = vmatprep.mubr.f32.mxu0 %v5961
    %6479 = vmatmul.mubr.f32.gmra.mxu0 %v5960
    %v6480 = vpop.f32.mrf.mxu0
    %v6481 = vadd.f32 0.0, %v6480
    %v6482 = vpop.f32.mrf.mxu0
    %6483 = vdwg.mxu0
    %v6484 = vadd.f32 %v6380, %v6481
    %s6485 = scalar_lea.vmem %s5, 1280
    %v6486 = vld [vmem:[%s6485] sm:$0xff]
    %v6487 = vld [vmem:[%s6485 + $0x8] sm:$0xff]
    %v6488 = vld [vmem:[%s6485 + $0x10] sm:$0xff]
    %v6489 = vld [vmem:[%s6485 + $0x18] sm:$0xff]
    %v6490 = vld [vmem:[%s6485 + $0x20] sm:$0xff]
    %v6491 = vld [vmem:[%s6485 + $0x28] sm:$0xff]
    %v6492 = vld [vmem:[%s6485 + $0x30] sm:$0xff]
    %v6493 = vld [vmem:[%s6485 + $0x38] sm:$0xff]
    %v6494 = vld [vmem:[%s6485 + $0x40] sm:$0xff]
    %v6495 = vld [vmem:[%s6485 + $0x48] sm:$0xff]
    %v6496 = vld [vmem:[%s6485 + $0x50] sm:$0xff]
    %v6497 = vld [vmem:[%s6485 + $0x58] sm:$0xff]
    %v6498 = vld [vmem:[%s6485 + $0x60] sm:$0xff]
    %v6499 = vld [vmem:[%s6485 + $0x68] sm:$0xff]
    %v6500 = vld [vmem:[%s6485 + $0x70] sm:$0xff]
    %v6501 = vld [vmem:[%s6485 + $0x78] sm:$0xff]
    %v6502 = vld [vmem:[%s6485 + $0x80] sm:$0xff]
    %v6503 = vld [vmem:[%s6485 + $0x88] sm:$0xff]
    %v6504 = vld [vmem:[%s6485 + $0x90] sm:$0xff]
    %v6505 = vld [vmem:[%s6485 + $0x98] sm:$0xff]
    %v6506 = vld [vmem:[%s6485 + $0xa0] sm:$0xff]
    %v6507 = vld [vmem:[%s6485 + $0xa8] sm:$0xff]
    %v6508 = vld [vmem:[%s6485 + $0xb0] sm:$0xff]
    %v6509 = vld [vmem:[%s6485 + $0xb8] sm:$0xff]
    %v6510 = vld [vmem:[%s6485 + $0xc0] sm:$0xff]
    %v6511 = vld [vmem:[%s6485 + $0xc8] sm:$0xff]
    %v6512 = vld [vmem:[%s6485 + $0xd0] sm:$0xff]
    %v6513 = vld [vmem:[%s6485 + $0xd8] sm:$0xff]
    %v6514 = vld [vmem:[%s6485 + $0xe0] sm:$0xff]
    %v6515 = vld [vmem:[%s6485 + $0xe8] sm:$0xff]
    %v6516 = vld [vmem:[%s6485 + $0xf0] sm:$0xff]
    %v6517 = vld [vmem:[%s6485 + $0xf8] sm:$0xff]
    %6518 = vmatprep.subr.mxu0 0.0
    %6519 = vmatpush1.msra.mxu0 %v6501
    %6520 = vmatprep.subr.mxu0 0.0
    %6521 = vmatpush1.msra.mxu0 %v6500
    %6522 = vmatprep.subr.mxu0 0.0
    %6523 = vmatpush1.msra.mxu0 %v6499
    %6524 = vmatprep.subr.mxu0 0.0
    %6525 = vmatpush1.msra.mxu0 %v6498
    %6526 = vmatprep.subr.mxu0 0.0
    %6527 = vmatpush1.msra.mxu0 %v6497
    %6528 = vmatprep.subr.mxu0 0.0
    %6529 = vmatpush1.msra.mxu0 %v6496
    %6530 = vmatprep.subr.mxu0 0.0
    %6531 = vmatpush1.msra.mxu0 %v6495
    %6532 = vmatprep.subr.mxu0 0.0
    %6533 = vmatpush1.msra.mxu0 %v6494
    %6534 = vmatprep.subr.mxu0 0.0
    %6535 = vmatpush1.msra.mxu0 %v6493
    %6536 = vmatprep.subr.mxu0 0.0
    %6537 = vmatpush1.msra.mxu0 %v6492
    %6538 = vmatprep.subr.mxu0 0.0
    %6539 = vmatpush1.msra.mxu0 %v6491
    %6540 = vmatprep.subr.mxu0 0.0
    %6541 = vmatpush1.msra.mxu0 %v6490
    %6542 = vmatprep.subr.mxu0 0.0
    %6543 = vmatpush1.msra.mxu0 %v6489
    %6544 = vmatprep.subr.mxu0 0.0
    %6545 = vmatpush1.msra.mxu0 %v6488
    %6546 = vmatprep.subr.mxu0 0.0
    %6547 = vmatpush1.msra.mxu0 %v6487
    %6548 = vmatprep.subr.mxu0 0.0
    %6549 = vmatpush1.msra.mxu0 %v6486
    %6550 = vmatprep.subr.mxu0 0.0
    %6551 = vmatpush2.msra.mxu0 %v6517
    %6552 = vmatprep.subr.mxu0 0.0
    %6553 = vmatpush2.msra.mxu0 %v6516
    %6554 = vmatprep.subr.mxu0 0.0
    %6555 = vmatpush2.msra.mxu0 %v6515
    %6556 = vmatprep.subr.mxu0 0.0
    %6557 = vmatpush2.msra.mxu0 %v6514
    %6558 = vmatprep.subr.mxu0 0.0
    %6559 = vmatpush2.msra.mxu0 %v6513
    %6560 = vmatprep.subr.mxu0 0.0
    %6561 = vmatpush2.msra.mxu0 %v6512
    %6562 = vmatprep.subr.mxu0 0.0
    %6563 = vmatpush2.msra.mxu0 %v6511
    %6564 = vmatprep.subr.mxu0 0.0
    %6565 = vmatpush2.msra.mxu0 %v6510
    %6566 = vmatprep.subr.mxu0 0.0
    %6567 = vmatpush2.msra.mxu0 %v6509
    %6568 = vmatprep.subr.mxu0 0.0
    %6569 = vmatpush2.msra.mxu0 %v6508
    %6570 = vmatprep.subr.mxu0 0.0
    %6571 = vmatpush2.msra.mxu0 %v6507
    %6572 = vmatprep.subr.mxu0 0.0
    %6573 = vmatpush2.msra.mxu0 %v6506
    %6574 = vmatprep.subr.mxu0 0.0
    %6575 = vmatpush2.msra.mxu0 %v6505
    %6576 = vmatprep.subr.mxu0 0.0
    %6577 = vmatpush2.msra.mxu0 %v6504
    %6578 = vmatprep.subr.mxu0 0.0
    %6579 = vmatpush2.msra.mxu0 %v6503
    %6580 = vmatprep.subr.mxu0 0.0
    %6581 = vmatpush2.msra.mxu0 %v6502
    %6582 = vmatprep.mubr.f32.mxu0 %v5963
    %6583 = vmatmul.mubr.f32.gmra.mxu0 %v5962
    %v6584 = vpop.f32.mrf.mxu0
    %v6585 = vadd.f32 0.0, %v6584
    %v6586 = vpop.f32.mrf.mxu0
    %6587 = vdwg.mxu0
    %v6588 = vadd.f32 %v6484, %v6585
    %s6589 = scalar_lea.vmem %s5, 1536
    %v6590 = vld [vmem:[%s6589] sm:$0xff]
    %v6591 = vld [vmem:[%s6589 + $0x8] sm:$0xff]
    %v6592 = vld [vmem:[%s6589 + $0x10] sm:$0xff]
    %v6593 = vld [vmem:[%s6589 + $0x18] sm:$0xff]
    %v6594 = vld [vmem:[%s6589 + $0x20] sm:$0xff]
    %v6595 = vld [vmem:[%s6589 + $0x28] sm:$0xff]
    %v6596 = vld [vmem:[%s6589 + $0x30] sm:$0xff]
    %v6597 = vld [vmem:[%s6589 + $0x38] sm:$0xff]
    %v6598 = vld [vmem:[%s6589 + $0x40] sm:$0xff]
    %v6599 = vld [vmem:[%s6589 + $0x48] sm:$0xff]
    %v6600 = vld [vmem:[%s6589 + $0x50] sm:$0xff]
    %v6601 = vld [vmem:[%s6589 + $0x58] sm:$0xff]
    %v6602 = vld [vmem:[%s6589 + $0x60] sm:$0xff]
    %v6603 = vld [vmem:[%s6589 + $0x68] sm:$0xff]
    %v6604 = vld [vmem:[%s6589 + $0x70] sm:$0xff]
    %v6605 = vld [vmem:[%s6589 + $0x78] sm:$0xff]
    %v6606 = vld [vmem:[%s6589 + $0x80] sm:$0xff]
    %v6607 = vld [vmem:[%s6589 + $0x88] sm:$0xff]
    %v6608 = vld [vmem:[%s6589 + $0x90] sm:$0xff]
    %v6609 = vld [vmem:[%s6589 + $0x98] sm:$0xff]
    %v6610 = vld [vmem:[%s6589 + $0xa0] sm:$0xff]
    %v6611 = vld [vmem:[%s6589 + $0xa8] sm:$0xff]
    %v6612 = vld [vmem:[%s6589 + $0xb0] sm:$0xff]
    %v6613 = vld [vmem:[%s6589 + $0xb8] sm:$0xff]
    %v6614 = vld [vmem:[%s6589 + $0xc0] sm:$0xff]
    %v6615 = vld [vmem:[%s6589 + $0xc8] sm:$0xff]
    %v6616 = vld [vmem:[%s6589 + $0xd0] sm:$0xff]
    %v6617 = vld [vmem:[%s6589 + $0xd8] sm:$0xff]
    %v6618 = vld [vmem:[%s6589 + $0xe0] sm:$0xff]
    %v6619 = vld [vmem:[%s6589 + $0xe8] sm:$0xff]
    %v6620 = vld [vmem:[%s6589 + $0xf0] sm:$0xff]
    %v6621 = vld [vmem:[%s6589 + $0xf8] sm:$0xff]
    %6622 = vmatprep.subr.mxu0 0.0
    %6623 = vmatpush1.msra.mxu0 %v6605
    %6624 = vmatprep.subr.mxu0 0.0
    %6625 = vmatpush1.msra.mxu0 %v6604
    %6626 = vmatprep.subr.mxu0 0.0
    %6627 = vmatpush1.msra.mxu0 %v6603
    %6628 = vmatprep.subr.mxu0 0.0
    %6629 = vmatpush1.msra.mxu0 %v6602
    %6630 = vmatprep.subr.mxu0 0.0
    %6631 = vmatpush1.msra.mxu0 %v6601
    %6632 = vmatprep.subr.mxu0 0.0
    %6633 = vmatpush1.msra.mxu0 %v6600
    %6634 = vmatprep.subr.mxu0 0.0
    %6635 = vmatpush1.msra.mxu0 %v6599
    %6636 = vmatprep.subr.mxu0 0.0
    %6637 = vmatpush1.msra.mxu0 %v6598
    %6638 = vmatprep.subr.mxu0 0.0
    %6639 = vmatpush1.msra.mxu0 %v6597
    %6640 = vmatprep.subr.mxu0 0.0
    %6641 = vmatpush1.msra.mxu0 %v6596
    %6642 = vmatprep.subr.mxu0 0.0
    %6643 = vmatpush1.msra.mxu0 %v6595
    %6644 = vmatprep.subr.mxu0 0.0
    %6645 = vmatpush1.msra.mxu0 %v6594
    %6646 = vmatprep.subr.mxu0 0.0
    %6647 = vmatpush1.msra.mxu0 %v6593
    %6648 = vmatprep.subr.mxu0 0.0
    %6649 = vmatpush1.msra.mxu0 %v6592
    %6650 = vmatprep.subr.mxu0 0.0
    %6651 = vmatpush1.msra.mxu0 %v6591
    %6652 = vmatprep.subr.mxu0 0.0
    %6653 = vmatpush1.msra.mxu0 %v6590
    %6654 = vmatprep.subr.mxu0 0.0
    %6655 = vmatpush2.msra.mxu0 %v6621
    %6656 = vmatprep.subr.mxu0 0.0
    %6657 = vmatpush2.msra.mxu0 %v6620
    %6658 = vmatprep.subr.mxu0 0.0
    %6659 = vmatpush2.msra.mxu0 %v6619
    %6660 = vmatprep.subr.mxu0 0.0
    %6661 = vmatpush2.msra.mxu0 %v6618
    %6662 = vmatprep.subr.mxu0 0.0
    %6663 = vmatpush2.msra.mxu0 %v6617
    %6664 = vmatprep.subr.mxu0 0.0
    %6665 = vmatpush2.msra.mxu0 %v6616
    %6666 = vmatprep.subr.mxu0 0.0
    %6667 = vmatpush2.msra.mxu0 %v6615
    %6668 = vmatprep.subr.mxu0 0.0
    %6669 = vmatpush2.msra.mxu0 %v6614
    %6670 = vmatprep.subr.mxu0 0.0
    %6671 = vmatpush2.msra.mxu0 %v6613
    %6672 = vmatprep.subr.mxu0 0.0
    %6673 = vmatpush2.msra.mxu0 %v6612
    %6674 = vmatprep.subr.mxu0 0.0
    %6675 = vmatpush2.msra.mxu0 %v6611
    %6676 = vmatprep.subr.mxu0 0.0
    %6677 = vmatpush2.msra.mxu0 %v6610
    %6678 = vmatprep.subr.mxu0 0.0
    %6679 = vmatpush2.msra.mxu0 %v6609
    %6680 = vmatprep.subr.mxu0 0.0
    %6681 = vmatpush2.msra.mxu0 %v6608
    %6682 = vmatprep.subr.mxu0 0.0
    %6683 = vmatpush2.msra.mxu0 %v6607
    %6684 = vmatprep.subr.mxu0 0.0
    %6685 = vmatpush2.msra.mxu0 %v6606
    %6686 = vmatprep.mubr.f32.mxu0 %v5965
    %6687 = vmatmul.mubr.f32.gmra.mxu0 %v5964
    %v6688 = vpop.f32.mrf.mxu0
    %v6689 = vadd.f32 0.0, %v6688
    %v6690 = vpop.f32.mrf.mxu0
    %6691 = vdwg.mxu0
    %v6692 = vadd.f32 %v6588, %v6689
    %s6693 = scalar_lea.vmem %s5, 1792
    %v6694 = vld [vmem:[%s6693] sm:$0xff]
    %v6695 = vld [vmem:[%s6693 + $0x8] sm:$0xff]
    %v6696 = vld [vmem:[%s6693 + $0x10] sm:$0xff]
    %v6697 = vld [vmem:[%s6693 + $0x18] sm:$0xff]
    %v6698 = vld [vmem:[%s6693 + $0x20] sm:$0xff]
    %v6699 = vld [vmem:[%s6693 + $0x28] sm:$0xff]
    %v6700 = vld [vmem:[%s6693 + $0x30] sm:$0xff]
    %v6701 = vld [vmem:[%s6693 + $0x38] sm:$0xff]
    %v6702 = vld [vmem:[%s6693 + $0x40] sm:$0xff]
    %v6703 = vld [vmem:[%s6693 + $0x48] sm:$0xff]
    %v6704 = vld [vmem:[%s6693 + $0x50] sm:$0xff]
    %v6705 = vld [vmem:[%s6693 + $0x58] sm:$0xff]
    %v6706 = vld [vmem:[%s6693 + $0x60] sm:$0xff]
    %v6707 = vld [vmem:[%s6693 + $0x68] sm:$0xff]
    %v6708 = vld [vmem:[%s6693 + $0x70] sm:$0xff]
    %v6709 = vld [vmem:[%s6693 + $0x78] sm:$0xff]
    %v6710 = vld [vmem:[%s6693 + $0x80] sm:$0xff]
    %v6711 = vld [vmem:[%s6693 + $0x88] sm:$0xff]
    %v6712 = vld [vmem:[%s6693 + $0x90] sm:$0xff]
    %v6713 = vld [vmem:[%s6693 + $0x98] sm:$0xff]
    %v6714 = vld [vmem:[%s6693 + $0xa0] sm:$0xff]
    %v6715 = vld [vmem:[%s6693 + $0xa8] sm:$0xff]
    %v6716 = vld [vmem:[%s6693 + $0xb0] sm:$0xff]
    %v6717 = vld [vmem:[%s6693 + $0xb8] sm:$0xff]
    %v6718 = vld [vmem:[%s6693 + $0xc0] sm:$0xff]
    %v6719 = vld [vmem:[%s6693 + $0xc8] sm:$0xff]
    %v6720 = vld [vmem:[%s6693 + $0xd0] sm:$0xff]
    %v6721 = vld [vmem:[%s6693 + $0xd8] sm:$0xff]
    %v6722 = vld [vmem:[%s6693 + $0xe0] sm:$0xff]
    %v6723 = vld [vmem:[%s6693 + $0xe8] sm:$0xff]
    %v6724 = vld [vmem:[%s6693 + $0xf0] sm:$0xff]
    %v6725 = vld [vmem:[%s6693 + $0xf8] sm:$0xff]
    %6726 = vmatprep.subr.mxu0 0.0
    %6727 = vmatpush1.msra.mxu0 %v6709
    %6728 = vmatprep.subr.mxu0 0.0
    %6729 = vmatpush1.msra.mxu0 %v6708
    %6730 = vmatprep.subr.mxu0 0.0
    %6731 = vmatpush1.msra.mxu0 %v6707
    %6732 = vmatprep.subr.mxu0 0.0
    %6733 = vmatpush1.msra.mxu0 %v6706
    %6734 = vmatprep.subr.mxu0 0.0
    %6735 = vmatpush1.msra.mxu0 %v6705
    %6736 = vmatprep.subr.mxu0 0.0
    %6737 = vmatpush1.msra.mxu0 %v6704
    %6738 = vmatprep.subr.mxu0 0.0
    %6739 = vmatpush1.msra.mxu0 %v6703
    %6740 = vmatprep.subr.mxu0 0.0
    %6741 = vmatpush1.msra.mxu0 %v6702
    %6742 = vmatprep.subr.mxu0 0.0
    %6743 = vmatpush1.msra.mxu0 %v6701
    %6744 = vmatprep.subr.mxu0 0.0
    %6745 = vmatpush1.msra.mxu0 %v6700
    %6746 = vmatprep.subr.mxu0 0.0
    %6747 = vmatpush1.msra.mxu0 %v6699
    %6748 = vmatprep.subr.mxu0 0.0
    %6749 = vmatpush1.msra.mxu0 %v6698
    %6750 = vmatprep.subr.mxu0 0.0
    %6751 = vmatpush1.msra.mxu0 %v6697
    %6752 = vmatprep.subr.mxu0 0.0
    %6753 = vmatpush1.msra.mxu0 %v6696
    %6754 = vmatprep.subr.mxu0 0.0
    %6755 = vmatpush1.msra.mxu0 %v6695
    %6756 = vmatprep.subr.mxu0 0.0
    %6757 = vmatpush1.msra.mxu0 %v6694
    %6758 = vmatprep.subr.mxu0 0.0
    %6759 = vmatpush2.msra.mxu0 %v6725
    %6760 = vmatprep.subr.mxu0 0.0
    %6761 = vmatpush2.msra.mxu0 %v6724
    %6762 = vmatprep.subr.mxu0 0.0
    %6763 = vmatpush2.msra.mxu0 %v6723
    %6764 = vmatprep.subr.mxu0 0.0
    %6765 = vmatpush2.msra.mxu0 %v6722
    %6766 = vmatprep.subr.mxu0 0.0
    %6767 = vmatpush2.msra.mxu0 %v6721
    %6768 = vmatprep.subr.mxu0 0.0
    %6769 = vmatpush2.msra.mxu0 %v6720
    %6770 = vmatprep.subr.mxu0 0.0
    %6771 = vmatpush2.msra.mxu0 %v6719
    %6772 = vmatprep.subr.mxu0 0.0
    %6773 = vmatpush2.msra.mxu0 %v6718
    %6774 = vmatprep.subr.mxu0 0.0
    %6775 = vmatpush2.msra.mxu0 %v6717
    %6776 = vmatprep.subr.mxu0 0.0
    %6777 = vmatpush2.msra.mxu0 %v6716
    %6778 = vmatprep.subr.mxu0 0.0
    %6779 = vmatpush2.msra.mxu0 %v6715
    %6780 = vmatprep.subr.mxu0 0.0
    %6781 = vmatpush2.msra.mxu0 %v6714
    %6782 = vmatprep.subr.mxu0 0.0
    %6783 = vmatpush2.msra.mxu0 %v6713
    %6784 = vmatprep.subr.mxu0 0.0
    %6785 = vmatpush2.msra.mxu0 %v6712
    %6786 = vmatprep.subr.mxu0 0.0
    %6787 = vmatpush2.msra.mxu0 %v6711
    %6788 = vmatprep.subr.mxu0 0.0
    %6789 = vmatpush2.msra.mxu0 %v6710
    %6790 = vmatprep.mubr.f32.mxu0 %v5967
    %6791 = vmatmul.mubr.f32.gmra.mxu0 %v5966
    %v6792 = vpop.f32.mrf.mxu0
    %v6793 = vadd.f32 0.0, %v6792
    %v6794 = vpop.f32.mrf.mxu0
    %6795 = vdwg.mxu0
    %v6796 = vadd.f32 %v6692, %v6793
    %v6797 = vld [vmem:[#allocation11] sm:$0x1]
    %v6799 = vlaneseq
    %v6800 = vshrl.u32 %v6799, 7
    %v6801 = vsub.s32 0, %v6800
    %v6802 = vrot.slane %v6797, %v6801
    %v6804 = vadd.f32 %v6796, %v6802
    %v6805 = vmax.f32 %v6804, 0.0
    %v6806 = vld [vmem:[#allocation12] sm:$0xff]
    %v6807 = vld [vmem:[#allocation12 + $0x8] sm:$0xff]
    %v6808 = vld [vmem:[#allocation12 + $0x10] sm:$0xff]
    %v6809 = vld [vmem:[#allocation12 + $0x18] sm:$0xff]
    %v6810 = vld [vmem:[#allocation12 + $0x20] sm:$0xff]
    %v6811 = vld [vmem:[#allocation12 + $0x28] sm:$0xff]
    %v6812 = vld [vmem:[#allocation12 + $0x30] sm:$0xff]
    %v6813 = vld [vmem:[#allocation12 + $0x38] sm:$0xff]
    %v6814 = vld [vmem:[#allocation12 + $0x40] sm:$0xff]
    %v6815 = vld [vmem:[#allocation12 + $0x48] sm:$0xff]
    %v6816 = vld [vmem:[#allocation12 + $0x50] sm:$0xff]
    %v6817 = vld [vmem:[#allocation12 + $0x58] sm:$0xff]
    %v6818 = vld [vmem:[#allocation12 + $0x60] sm:$0xff]
    %v6819 = vld [vmem:[#allocation12 + $0x68] sm:$0xff]
    %v6820 = vld [vmem:[#allocation12 + $0x70] sm:$0xff]
    %v6821 = vld [vmem:[#allocation12 + $0x78] sm:$0xff]
    %v6822 = vld [vmem:[#allocation14] sm:$0x1]
    %v6824 = vlaneseq
    %v6825 = vshrl.u32 %v6824, 7
    %v6826 = vsub.s32 0, %v6825
    %v6827 = vrot.slane %v6822, %v6826
    %6829 = vmatprep.subr.mxu0 0.0
    %6830 = vmatpush1.msra.mxu0 %v6821
    %6831 = vmatprep.subr.mxu0 0.0
    %6832 = vmatpush1.msra.mxu0 %v6820
    %6833 = vmatprep.subr.mxu0 0.0
    %6834 = vmatpush1.msra.mxu0 %v6819
    %6835 = vmatprep.subr.mxu0 0.0
    %6836 = vmatpush1.msra.mxu0 %v6818
    %6837 = vmatprep.subr.mxu0 0.0
    %6838 = vmatpush1.msra.mxu0 %v6817
    %6839 = vmatprep.subr.mxu0 0.0
    %6840 = vmatpush1.msra.mxu0 %v6816
    %6841 = vmatprep.subr.mxu0 0.0
    %6842 = vmatpush1.msra.mxu0 %v6815
    %6843 = vmatprep.subr.mxu0 0.0
    %6844 = vmatpush1.msra.mxu0 %v6814
    %6845 = vmatprep.subr.mxu0 0.0
    %6846 = vmatpush1.msra.mxu0 %v6813
    %6847 = vmatprep.subr.mxu0 0.0
    %6848 = vmatpush1.msra.mxu0 %v6812
    %6849 = vmatprep.subr.mxu0 0.0
    %6850 = vmatpush1.msra.mxu0 %v6811
    %6851 = vmatprep.subr.mxu0 0.0
    %6852 = vmatpush1.msra.mxu0 %v6810
    %6853 = vmatprep.subr.mxu0 0.0
    %6854 = vmatpush1.msra.mxu0 %v6809
    %6855 = vmatprep.subr.mxu0 0.0
    %6856 = vmatpush1.msra.mxu0 %v6808
    %6857 = vmatprep.subr.mxu0 0.0
    %6858 = vmatpush1.msra.mxu0 %v6807
    %6859 = vmatprep.subr.mxu0 0.0
    %6860 = vmatpush1.msra.mxu0 %v6806
    %6861 = vmatprep.subr.mxu0 0.0
    %6862 = vmatpush2.msra.mxu0 0.0
    %6863 = vmatprep.subr.mxu0 0.0
    %6864 = vmatpush2.msra.mxu0 0.0
    %6865 = vmatprep.subr.mxu0 0.0
    %6866 = vmatpush2.msra.mxu0 0.0
    %6867 = vmatprep.subr.mxu0 0.0
    %6868 = vmatpush2.msra.mxu0 0.0
    %6869 = vmatprep.subr.mxu0 0.0
    %6870 = vmatpush2.msra.mxu0 0.0
    %6871 = vmatprep.subr.mxu0 0.0
    %6872 = vmatpush2.msra.mxu0 0.0
    %6873 = vmatprep.subr.mxu0 0.0
    %6874 = vmatpush2.msra.mxu0 0.0
    %6875 = vmatprep.subr.mxu0 0.0
    %6876 = vmatpush2.msra.mxu0 0.0
    %6877 = vmatprep.subr.mxu0 0.0
    %6878 = vmatpush2.msra.mxu0 0.0
    %6879 = vmatprep.subr.mxu0 0.0
    %6880 = vmatpush2.msra.mxu0 0.0
    %6881 = vmatprep.subr.mxu0 0.0
    %6882 = vmatpush2.msra.mxu0 0.0
    %6883 = vmatprep.subr.mxu0 0.0
    %6884 = vmatpush2.msra.mxu0 0.0
    %6885 = vmatprep.subr.mxu0 0.0
    %6886 = vmatpush2.msra.mxu0 0.0
    %6887 = vmatprep.subr.mxu0 0.0
    %6888 = vmatpush2.msra.mxu0 0.0
    %6889 = vmatprep.subr.mxu0 0.0
    %6890 = vmatpush2.msra.mxu0 0.0
    %6891 = vmatprep.subr.mxu0 0.0
    %6892 = vmatpush2.msra.mxu0 0.0
    %6893 = vmatprep.mubr.f32.mxu0 0.0
    %6894 = vmatmul.mubr.f32.gmra.mxu0 %v6805
    %v6895 = vpop.f32.mrf.mxu0
    %v6896 = vadd.f32 %v6827, %v6895
    %v6897 = vpop.f32.mrf.mxu0
    %6898 = vdwg.mxu0
    %6899 = vst [vmem:[%s9] sm:$0xff] %v6896
    // Predicated region
    $region66: #{simple_cnn_forward.1} parent=1 // pred_check
      _
    $region67: #{simple_cnn_forward.1} parent=1 // pred_check_branch
      %6901 = sbr.rel (0) target = $region69
    $region68: #{simple_cnn_forward.1} parent=1 // pred_region
      _
    $region69: #{simple_cnn_forward.1} parent=1 // pred_fallthru
      _
    // Predicated region
    $region70: #{simple_cnn_forward.1} parent=1 // pred_check
      _
    $region71: #{simple_cnn_forward.1} parent=1 // pred_check_branch
      %6903 = sbr.rel (0) target = $region73
    $region72: #{simple_cnn_forward.1} parent=1 // pred_region
      _
    $region73: #{simple_cnn_forward.1} parent=1 // pred_fallthru
      _
    %6904 = vsyncpa [#allocation5], 1
    %6905 = vsyncpa [#allocation7], 1
    %6906 = vsyncpa [#allocation10], 1
    %6907 = vsyncpa [#allocation13], 1

</llo_original>
